<compile_context>
chip_gen: v5e
topology: v5e:2x2
jax: 0.10.0
libtpu: 0.0.40
codegen_flags: <defaults>
</compile_context>

<pallas_src>
import math
import functools

import jax
import jax.numpy as jnp
from jax.experimental import pallas as pl
from jax.experimental.pallas import tpu as pltpu

ALPHA = 0.1  # LeakyReLU negative slope


def _round_up(v, m):
    return (v + m - 1) // m * m


# ----------------------------- Pallas kernels ------------------------------ #
def _gemm_kernel(a_ref, b_ref, bias_ref, o_ref, *, apply_act):
    acc = jnp.dot(a_ref[...], b_ref[...], preferred_element_type=jnp.float32)
    acc = acc + bias_ref[...]                       # (1, N) broadcasts over rows
    if apply_act:
        acc = jnp.where(acc >= 0.0, acc, ALPHA * acc)
    o_ref[...] = acc.astype(o_ref.dtype)


def _gemm_res_kernel(a_ref, b_ref, bias_ref, r_ref, o_ref, *, apply_act, res_scale):
    acc = jnp.dot(a_ref[...], b_ref[...], preferred_element_type=jnp.float32)
    acc = acc + bias_ref[...]
    if apply_act:
        acc = jnp.where(acc >= 0.0, acc, ALPHA * acc)
    acc = acc + res_scale * r_ref[...].astype(jnp.float32)   # fused epilogue residual
    o_ref[...] = acc.astype(o_ref.dtype)


def gemm_bias_act(a, b, bias, *, apply_act, residual=None, res_scale=1.0,
                  out_dtype=jnp.bfloat16):
    """out[:M,:N] = act(a @ b + bias) (+ res_scale*residual) via a Pallas MXU GEMM."""
    M, K = a.shape
    K2, N = b.shape
    assert K == K2

    # Lane-dense output: pad Cout up to a multiple of 128 (zero columns).
    N_pad = _round_up(N, 128)
    if N_pad != N:
        b = jnp.pad(b, ((0, 0), (0, N_pad - N)))
        bias = jnp.pad(bias, (0, N_pad - N))
        if residual is not None:
            residual = jnp.pad(residual, ((0, 0), (0, N_pad - N)))

    # Fixed large M tile; pad M so every block is full (never sub-(8,128)).
    TM = 256 if M >= 256 else _round_up(M, 8)
    M_pad = _round_up(M, TM)
    if M_pad != M:
        a = jnp.pad(a, ((0, M_pad - M), (0, 0)))
        if residual is not None:
            residual = jnp.pad(residual, ((0, M_pad - M), (0, 0)))

    a = a.astype(jnp.bfloat16)
    b = b.astype(jnp.bfloat16)
    bias2 = bias.reshape(1, N_pad).astype(jnp.float32)

    grid = (M_pad // TM,)
    out_itemsize = jnp.dtype(out_dtype).itemsize

    in_specs = [
        pl.BlockSpec((TM, K), lambda i: (i, 0)),
        pl.BlockSpec((K, N_pad), lambda i: (0, 0)),
        pl.BlockSpec((1, N_pad), lambda i: (0, 0)),
    ]
    operands = [a, b, bias2]
    if residual is not None:
        residual = residual.astype(jnp.bfloat16)
        in_specs.append(pl.BlockSpec((TM, N_pad), lambda i: (i, 0)))
        operands.append(residual)
        kernel = functools.partial(_gemm_res_kernel, apply_act=apply_act,
                                   res_scale=float(res_scale))
        res_bytes = residual.size * 2
    else:
        kernel = functools.partial(_gemm_kernel, apply_act=apply_act)
        res_bytes = 0

    cost = pl.CostEstimate(
        flops=int(2 * M_pad * K * N_pad),
        transcendentals=0,
        bytes_accessed=int(a.size * 2 + b.size * 2 + bias2.size * 4
                           + M_pad * N_pad * out_itemsize + res_bytes),
    )

    out = pl.pallas_call(
        kernel,
        out_shape=jax.ShapeDtypeStruct((M_pad, N_pad), out_dtype),
        grid_spec=pltpu.PrefetchScalarGridSpec(
            num_scalar_prefetch=0,
            grid=grid,
            in_specs=in_specs,
            out_specs=pl.BlockSpec((TM, N_pad), lambda i: (i, 0)),
        ),
        compiler_params=pltpu.CompilerParams(
            dimension_semantics=("parallel",),
            vmem_limit_bytes=48 * 1024 * 1024,   # <= 64 MiB physical VMEM on v7x
        ),
        cost_estimate=cost,
    )(*operands)
    return out[:M, :N]


# ------------------------------- conv glue --------------------------------- #
def _im2col_nhwc(x, k, stride, pad):
    """x: (N, H, W, C) -> patches (N*Ho*Wo, k*k*C), K ordered (dy, dx, C)."""
    n, h, w, c = x.shape
    xp = jnp.pad(x, ((0, 0), (pad, pad), (pad, pad), (0, 0))) if pad else x
    ho = (h + 2 * pad - k) // stride + 1
    wo = (w + 2 * pad - k) // stride + 1
    taps = []
    for dy in range(k):
        for dx in range(k):
            taps.append(xp[:, dy:dy + stride * ho:stride, dx:dx + stride * wo:stride, :])
    col = jnp.stack(taps, axis=3)                  # (N, Ho, Wo, k*k, C)
    col = col.reshape(n * ho * wo, k * k * c)
    return col, ho, wo


def conv2d_nhwc(x, w, b, *, stride, pad, act, out_dtype=jnp.bfloat16):
    """PyTorch-semantics Conv2d on NHWC input. w:(Cout,Cin,k,k), b:(Cout,)."""
    n = x.shape[0]
    cout, cin, k, _ = w.shape
    a, ho, wo = _im2col_nhwc(x, k, stride, pad)
    bmat = w.transpose(2, 3, 1, 0).reshape(k * k * cin, cout)     # (dy,dx,Cin) x Cout
    out = gemm_bias_act(a, bmat, b, apply_act=act, out_dtype=out_dtype)
    return out.reshape(n, ho, wo, cout)


# kernel-tap indices used by even / odd output phases of ConvTranspose2d(4, 2, 1)
_PHASE_TAPS = ((3, 1), (2, 0))


def conv_transpose2d_nhwc(x, w_t, b, *, act, residual=None, res_scale=1.0,
                          out_dtype=jnp.bfloat16):
    """PyTorch ConvTranspose2d(k=4, stride=2, padding=1) on NHWC input via
    sub-pixel decomposition: one stride-1 GEMM with a 2x2 sub-kernel per output
    phase (ey, ex). w_t:(Cin,Cout,4,4), b:(Cout,). `residual` (full-res NHWC)
    is fused into the epilogue as `+ res_scale * residual`."""
    n, h, w, cin = x.shape
    cout = w_t.shape[1]
    phases = []
    for ey in (0, 1):
        pad_h = (1, 0) if ey == 0 else (0, 1)
        row = []
        for ex in (0, 1):
            pad_w = (1, 0) if ex == 0 else (0, 1)
            # 2x2 sub-kernel for this phase, ordered (dy, dx, Cin, Cout).
            wk = w_t[:, :, jnp.array(_PHASE_TAPS[ey]), :]
            wk = wk[:, :, :, jnp.array(_PHASE_TAPS[ex])]          # (Cin, Cout, 2, 2)
            bmat = wk.transpose(2, 3, 0, 1).reshape(4 * cin, cout)
            xp = jnp.pad(x, ((0, 0), pad_h, pad_w, (0, 0)))
            a, ho, wo = _im2col_nhwc(xp, 2, 1, 0)                 # ho == h, wo == w
            r = None
            if residual is not None:
                r = residual[:, ey::2, ex::2, :].reshape(n * h * w, cout)
            ph = gemm_bias_act(a, bmat, b, apply_act=act, residual=r,
                               res_scale=res_scale, out_dtype=out_dtype)
            row.append(ph.reshape(n, h, w, cout))
        phases.append(row)
    # Interleave the four phases: out[:, 2m+ey, 2k+ex, :] = phases[ey][ex][:, m, k, :]
    row0 = jnp.stack(phases[0], axis=3)            # (N, h, w, 2, Cout)   ex
    row1 = jnp.stack(phases[1], axis=3)
    out = jnp.stack((row0, row1), axis=2)          # (N, h, 2, w, 2, Cout) ey
    return out.reshape(n, 2 * h, 2 * w, cout)


# ------------------------------ parameters --------------------------------- #
def _init_conv(key, cout, cin, k):
    bound = 1.0 / math.sqrt(cin * k * k)
    kw, kb = jax.random.split(key)
    w = jax.random.uniform(kw, (cout, cin, k, k), jnp.float32, -bound, bound)
    b = jax.random.uniform(kb, (cout,), jnp.float32, -bound, bound)
    return w, b


def _init_deconv(key, cin, cout, k):
    bound = 1.0 / math.sqrt(cin * k * k)
    kw, kb = jax.random.split(key)
    w = jax.random.uniform(kw, (cin, cout, k, k), jnp.float32, -bound, bound)
    b = jax.random.uniform(kb, (cout,), jnp.float32, -bound, bound)
    return w, b


def make_params(in_ch, key):
    e0_out = 128
    e1_out = e0_out * 2            # 256
    e2_out = e1_out                # 256
    d3_out = e2_out // 2           # 128
    d2_out = d3_out                # 128
    d1_in = d2_out + e1_out        # 384
    d1_out = d3_out                # 128
    d0_in = d1_out + e0_out        # 256
    d0_out = 128

    keys = jax.random.split(key, 10)
    p = {}
    p["e0"] = _init_conv(keys[0], e0_out, in_ch, 3)
    p["e1"] = _init_conv(keys[1], e1_out, e0_out, 3)
    p["e2"] = _init_conv(keys[2], e2_out, e1_out, 3)
    p["d3"] = _init_conv(keys[3], d3_out, e2_out, 3)
    p["d2"] = _init_deconv(keys[4], d2_out, d2_out, 4)
    p["d1"] = _init_deconv(keys[5], d1_in, d1_out, 4)
    p["d0"] = _init_deconv(keys[6], d0_in, d0_out, 4)
    p["bp"] = _init_conv(keys[7], d0_out, in_ch, 3)
    p["rg0"] = _init_conv(keys[8], 64, d0_out, 3)
    p["rg1"] = _init_conv(keys[9], 1, 64, 3)
    return p


# ------------------------------- forward ----------------------------------- #
def ed_regression_forward(params, x):
    # x: (N, inCh, H, W) NCHW (PyTorch layout). Internals run NHWC + bfloat16.
    xh = jnp.transpose(x, (0, 2, 3, 1)).astype(jnp.bfloat16)               # (N,H,W,Cin)
    fe0 = conv2d_nhwc(xh, *params["e0"], stride=2, pad=1, act=True)        # (N,H/2,W/2,128)
    fe1 = conv2d_nhwc(fe0, *params["e1"], stride=2, pad=1, act=True)       # (N,H/4,W/4,256)
    fe2 = conv2d_nhwc(fe1, *params["e2"], stride=2, pad=1, act=True)       # (N,H/8,W/8,256)
    fd3 = conv2d_nhwc(fe2, *params["d3"], stride=1, pad=1, act=True)       # (N,H/8,W/8,128)
    bp = conv2d_nhwc(xh, *params["bp"], stride=1, pad=1, act=True)         # (N,H,W,128)

    fd2 = conv_transpose2d_nhwc(fd3, *params["d2"], act=True)              # (N,H/4,W/4,128)
    fd2 = jnp.concatenate((fd2, fe1), axis=-1)                             # (N,H/4,W/4,384)
    fd1 = conv_transpose2d_nhwc(fd2, *params["d1"], act=True)              # (N,H/2,W/2,128)
    fd1 = jnp.concatenate((fd1, fe0), axis=-1)                             # (N,H/2,W/2,256)
    # fd0 + bp*0.1 fused into the d0 deconv epilogue
    fd0p = conv_transpose2d_nhwc(fd1, *params["d0"], act=True,
                                 residual=bp, res_scale=0.1)               # (N,H,W,128)

    disp0 = conv2d_nhwc(fd0p, *params["rg0"], stride=1, pad=1, act=True)   # (N,H,W,64)
    disp1 = conv2d_nhwc(disp0, *params["rg1"], stride=1, pad=1, act=False,
                        out_dtype=jnp.float32)                             # (N,H,W,1)
    return jnp.transpose(disp1, (0, 3, 1, 2))                              # (N,1,H,W)


# --------------------------------- main ------------------------------------ #
if __name__ == "__main__":
    key = jax.random.PRNGKey(0)
    k_param, k_x = jax.random.split(key)

    batch, in_ch, H, W = 2, 4, 16, 16
    x = jax.random.normal(k_x, (batch, in_ch, H, W), jnp.float32)
    params = make_params(in_ch, k_param)

    fwd = jax.jit(ed_regression_forward)
    out = fwd(params, x)
    out = jax.block_until_ready(out)

    assert out.shape == (batch, 1, H, W), out.shape
    assert bool(jnp.all(jnp.isfinite(out)))
    print("KERNEL_OK")
</pallas_src>

<mosaic_0001>
module attributes {stable_mosaic.version = 11 : i64} {
  func.func @_gemm_kernel(%arg0: i32, %arg1: memref<128x36xbf16, #tpu.memory_space<vmem>>, %arg2: memref<36x128xbf16, #tpu.memory_space<vmem>>, %arg3: memref<1x128xf32, #tpu.memory_space<vmem>>, %arg4: memref<128x128xbf16, #tpu.memory_space<vmem>>) attributes {dimension_semantics = [#tpu.dimension_semantics<parallel>], iteration_bounds = array<i64: 1>, scalar_prefetch = 0 : i64, scratch_operands = 0 : i64, tpu.core_type = #tpu.core_type<tc>, window_params = [{transform_indices = @transform_0, window_bounds = array<i64: 128, 36>}, {pipeline_mode = #tpu.pipeline_mode<synchronous>, transform_indices = @transform_1, window_bounds = array<i64: 36, 128>}, {pipeline_mode = #tpu.pipeline_mode<synchronous>, transform_indices = @transform_2, window_bounds = array<i64: 1, 128>}, {transform_indices = @transform_3, window_bounds = array<i64: 128, 128>}]} {
    %c0 = arith.constant 0 : index
    %c0_0 = arith.constant 0 : index
    %0 = vector.load %arg1[%c0, %c0_0] : memref<128x36xbf16, #tpu.memory_space<vmem>>, vector<128x36xbf16>
    %c0_1 = arith.constant 0 : index
    %c0_2 = arith.constant 0 : index
    %1 = vector.load %arg2[%c0_1, %c0_2] : memref<36x128xbf16, #tpu.memory_space<vmem>>, vector<36x128xbf16>
    %cst = arith.constant dense<0.000000e+00> : vector<128x128xf32>
    %2 = tpu.matmul %0, %1, %cst {dimension_numbers = #tpu.dot_dimension_numbers<[1], [0], [0], [1], [0, 0, 1, 1], [], []>} : vector<128x36xbf16>, vector<36x128xbf16>, vector<128x128xf32> -> vector<128x128xf32>
    %c0_3 = arith.constant 0 : index
    %c0_4 = arith.constant 0 : index
    %3 = vector.load %arg3[%c0_3, %c0_4] : memref<1x128xf32, #tpu.memory_space<vmem>>, vector<1x128xf32>
    %4 = vector.broadcast %3 : vector<1x128xf32> to vector<128x128xf32>
    %5 = arith.addf %2, %4 : vector<128x128xf32>
    %cst_5 = arith.constant 0.000000e+00 : f32
    %6 = vector.broadcast %cst_5 : f32 to vector<128x128xf32>
    %7 = arith.cmpf oge, %5, %6 : vector<128x128xf32>
    %cst_6 = arith.constant 1.000000e-01 : f32
    %8 = vector.broadcast %cst_6 : f32 to vector<128x128xf32>
    %9 = arith.mulf %8, %5 : vector<128x128xf32>
    %10 = arith.select %7, %5, %9 : vector<128x128xi1>, vector<128x128xf32>
    %11 = arith.truncf %10 : vector<128x128xf32> to vector<128x128xbf16>
    %c0_7 = arith.constant 0 : index
    %c0_8 = arith.constant 0 : index
    %12 = vector.load %arg4[%c0_7, %c0_8] : memref<128x128xbf16, #tpu.memory_space<vmem>>, vector<128x128xbf16>
    tpu.vector_store %arg4[%c0_7, %c0_8], %11 {strides = array<i32>} : memref<128x128xbf16, #tpu.memory_space<vmem>>, vector<128x128xbf16>,
    return
  }
  func.func @transform_0(%arg0: i32) -> (i32, i32) {
    %c0_i32 = arith.constant 0 : i32
    %c0_i32_0 = arith.constant 0 : i32
    return %arg0, %c0_i32 : i32, i32
  }
  func.func @transform_1(%arg0: i32) -> (i32, i32) {
    %c0_i32 = arith.constant 0 : i32
    %c0_i32_0 = arith.constant 0 : i32
    %c0_i32_1 = arith.constant 0 : i32
    return %c0_i32, %c0_i32_0 : i32, i32
  }
  func.func @transform_2(%arg0: i32) -> (i32, i32) {
    %c0_i32 = arith.constant 0 : i32
    %c0_i32_0 = arith.constant 0 : i32
    %c0_i32_1 = arith.constant 0 : i32
    return %c0_i32, %c0_i32_0 : i32, i32
  }
  func.func @transform_3(%arg0: i32) -> (i32, i32) {
    %c0_i32 = arith.constant 0 : i32
    %c0_i32_0 = arith.constant 0 : i32
    return %arg0, %c0_i32 : i32, i32
  }
}

module attributes {stable_mosaic.version = 11 : i64} {
  func.func @_gemm_kernel(%arg0: i32, %arg1: memref<32x1152xbf16, #tpu.memory_space<vmem>>, %arg2: memref<1152x256xbf16, #tpu.memory_space<vmem>>, %arg3: memref<1x256xf32, #tpu.memory_space<vmem>>, %arg4: memref<32x256xbf16, #tpu.memory_space<vmem>>) attributes {dimension_semantics = [#tpu.dimension_semantics<parallel>], iteration_bounds = array<i64: 1>, scalar_prefetch = 0 : i64, scratch_operands = 0 : i64, tpu.core_type = #tpu.core_type<tc>, window_params = [{transform_indices = @transform_0, window_bounds = array<i64: 32, 1152>}, {pipeline_mode = #tpu.pipeline_mode<synchronous>, transform_indices = @transform_1, window_bounds = array<i64: 1152, 256>}, {pipeline_mode = #tpu.pipeline_mode<synchronous>, transform_indices = @transform_2, window_bounds = array<i64: 1, 256>}, {transform_indices = @transform_3, window_bounds = array<i64: 32, 256>}]} {
    %c0 = arith.constant 0 : index
    %c0_0 = arith.constant 0 : index
    %0 = vector.load %arg1[%c0, %c0_0] : memref<32x1152xbf16, #tpu.memory_space<vmem>>, vector<32x1152xbf16>
    %c0_1 = arith.constant 0 : index
    %c0_2 = arith.constant 0 : index
    %1 = vector.load %arg2[%c0_1, %c0_2] : memref<1152x256xbf16, #tpu.memory_space<vmem>>, vector<1152x256xbf16>
    %cst = arith.constant dense<0.000000e+00> : vector<32x256xf32>
    %2 = tpu.matmul %0, %1, %cst {dimension_numbers = #tpu.dot_dimension_numbers<[1], [0], [0], [1], [0, 0, 1, 1], [], []>} : vector<32x1152xbf16>, vector<1152x256xbf16>, vector<32x256xf32> -> vector<32x256xf32>
    %c0_3 = arith.constant 0 : index
    %c0_4 = arith.constant 0 : index
    %3 = vector.load %arg3[%c0_3, %c0_4] : memref<1x256xf32, #tpu.memory_space<vmem>>, vector<1x256xf32>
    %4 = vector.broadcast %3 : vector<1x256xf32> to vector<32x256xf32>
    %5 = arith.addf %2, %4 : vector<32x256xf32>
    %cst_5 = arith.constant 0.000000e+00 : f32
    %6 = vector.broadcast %cst_5 : f32 to vector<32x256xf32>
    %7 = arith.cmpf oge, %5, %6 : vector<32x256xf32>
    %cst_6 = arith.constant 1.000000e-01 : f32
    %8 = vector.broadcast %cst_6 : f32 to vector<32x256xf32>
    %9 = arith.mulf %8, %5 : vector<32x256xf32>
    %10 = arith.select %7, %5, %9 : vector<32x256xi1>, vector<32x256xf32>
    %11 = arith.truncf %10 : vector<32x256xf32> to vector<32x256xbf16>
    %c0_7 = arith.constant 0 : index
    %c0_8 = arith.constant 0 : index
    %12 = vector.load %arg4[%c0_7, %c0_8] : memref<32x256xbf16, #tpu.memory_space<vmem>>, vector<32x256xbf16>
    tpu.vector_store %arg4[%c0_7, %c0_8], %11 {strides = array<i32>} : memref<32x256xbf16, #tpu.memory_space<vmem>>, vector<32x256xbf16>,
    return
  }
  func.func @transform_0(%arg0: i32) -> (i32, i32) {
    %c0_i32 = arith.constant 0 : i32
    %c0_i32_0 = arith.constant 0 : i32
    return %arg0, %c0_i32 : i32, i32
  }
  func.func @transform_1(%arg0: i32) -> (i32, i32) {
    %c0_i32 = arith.constant 0 : i32
    %c0_i32_0 = arith.constant 0 : i32
    %c0_i32_1 = arith.constant 0 : i32
    return %c0_i32, %c0_i32_0 : i32, i32
  }
  func.func @transform_2(%arg0: i32) -> (i32, i32) {
    %c0_i32 = arith.constant 0 : i32
    %c0_i32_0 = arith.constant 0 : i32
    %c0_i32_1 = arith.constant 0 : i32
    return %c0_i32, %c0_i32_0 : i32, i32
  }
  func.func @transform_3(%arg0: i32) -> (i32, i32) {
    %c0_i32 = arith.constant 0 : i32
    %c0_i32_0 = arith.constant 0 : i32
    return %arg0, %c0_i32 : i32, i32
  }
}

module attributes {stable_mosaic.version = 11 : i64} {
  func.func @_gemm_kernel(%arg0: i32, %arg1: memref<8x2304xbf16, #tpu.memory_space<vmem>>, %arg2: memref<2304x256xbf16, #tpu.memory_space<vmem>>, %arg3: memref<1x256xf32, #tpu.memory_space<vmem>>, %arg4: memref<8x256xbf16, #tpu.memory_space<vmem>>) attributes {dimension_semantics = [#tpu.dimension_semantics<parallel>], iteration_bounds = array<i64: 1>, scalar_prefetch = 0 : i64, scratch_operands = 0 : i64, tpu.core_type = #tpu.core_type<tc>, window_params = [{transform_indices = @transform_0, window_bounds = array<i64: 8, 2304>}, {pipeline_mode = #tpu.pipeline_mode<synchronous>, transform_indices = @transform_1, window_bounds = array<i64: 2304, 256>}, {pipeline_mode = #tpu.pipeline_mode<synchronous>, transform_indices = @transform_2, window_bounds = array<i64: 1, 256>}, {transform_indices = @transform_3, window_bounds = array<i64: 8, 256>}]} {
    %c0 = arith.constant 0 : index
    %c0_0 = arith.constant 0 : index
    %0 = vector.load %arg1[%c0, %c0_0] : memref<8x2304xbf16, #tpu.memory_space<vmem>>, vector<8x2304xbf16>
    %c0_1 = arith.constant 0 : index
    %c0_2 = arith.constant 0 : index
    %1 = vector.load %arg2[%c0_1, %c0_2] : memref<2304x256xbf16, #tpu.memory_space<vmem>>, vector<2304x256xbf16>
    %cst = arith.constant dense<0.000000e+00> : vector<8x256xf32>
    %2 = tpu.matmul %0, %1, %cst {dimension_numbers = #tpu.dot_dimension_numbers<[1], [0], [0], [1], [0, 0, 1, 1], [], []>} : vector<8x2304xbf16>, vector<2304x256xbf16>, vector<8x256xf32> -> vector<8x256xf32>
    %c0_3 = arith.constant 0 : index
    %c0_4 = arith.constant 0 : index
    %3 = vector.load %arg3[%c0_3, %c0_4] : memref<1x256xf32, #tpu.memory_space<vmem>>, vector<1x256xf32>
    %4 = vector.broadcast %3 : vector<1x256xf32> to vector<8x256xf32>
    %5 = arith.addf %2, %4 : vector<8x256xf32>
    %cst_5 = arith.constant 0.000000e+00 : f32
    %6 = vector.broadcast %cst_5 : f32 to vector<8x256xf32>
    %7 = arith.cmpf oge, %5, %6 : vector<8x256xf32>
    %cst_6 = arith.constant 1.000000e-01 : f32
    %8 = vector.broadcast %cst_6 : f32 to vector<8x256xf32>
    %9 = arith.mulf %8, %5 : vector<8x256xf32>
    %10 = arith.select %7, %5, %9 : vector<8x256xi1>, vector<8x256xf32>
    %11 = arith.truncf %10 : vector<8x256xf32> to vector<8x256xbf16>
    %c0_7 = arith.constant 0 : index
    %c0_8 = arith.constant 0 : index
    %12 = vector.load %arg4[%c0_7, %c0_8] : memref<8x256xbf16, #tpu.memory_space<vmem>>, vector<8x256xbf16>
    tpu.vector_store %arg4[%c0_7, %c0_8], %11 {strides = array<i32>} : memref<8x256xbf16, #tpu.memory_space<vmem>>, vector<8x256xbf16>,
    return
  }
  func.func @transform_0(%arg0: i32) -> (i32, i32) {
    %c0_i32 = arith.constant 0 : i32
    %c0_i32_0 = arith.constant 0 : i32
    return %arg0, %c0_i32 : i32, i32
  }
  func.func @transform_1(%arg0: i32) -> (i32, i32) {
    %c0_i32 = arith.constant 0 : i32
    %c0_i32_0 = arith.constant 0 : i32
    %c0_i32_1 = arith.constant 0 : i32
    return %c0_i32, %c0_i32_0 : i32, i32
  }
  func.func @transform_2(%arg0: i32) -> (i32, i32) {
    %c0_i32 = arith.constant 0 : i32
    %c0_i32_0 = arith.constant 0 : i32
    %c0_i32_1 = arith.constant 0 : i32
    return %c0_i32, %c0_i32_0 : i32, i32
  }
  func.func @transform_3(%arg0: i32) -> (i32, i32) {
    %c0_i32 = arith.constant 0 : i32
    %c0_i32_0 = arith.constant 0 : i32
    return %arg0, %c0_i32 : i32, i32
  }
}

module attributes {stable_mosaic.version = 11 : i64} {
  func.func @_gemm_kernel(%arg0: i32, %arg1: memref<8x2304xbf16, #tpu.memory_space<vmem>>, %arg2: memref<2304x128xbf16, #tpu.memory_space<vmem>>, %arg3: memref<1x128xf32, #tpu.memory_space<vmem>>, %arg4: memref<8x128xbf16, #tpu.memory_space<vmem>>) attributes {dimension_semantics = [#tpu.dimension_semantics<parallel>], iteration_bounds = array<i64: 1>, scalar_prefetch = 0 : i64, scratch_operands = 0 : i64, tpu.core_type = #tpu.core_type<tc>, window_params = [{transform_indices = @transform_0, window_bounds = array<i64: 8, 2304>}, {pipeline_mode = #tpu.pipeline_mode<synchronous>, transform_indices = @transform_1, window_bounds = array<i64: 2304, 128>}, {pipeline_mode = #tpu.pipeline_mode<synchronous>, transform_indices = @transform_2, window_bounds = array<i64: 1, 128>}, {transform_indices = @transform_3, window_bounds = array<i64: 8, 128>}]} {
    %c0 = arith.constant 0 : index
    %c0_0 = arith.constant 0 : index
    %0 = vector.load %arg1[%c0, %c0_0] : memref<8x2304xbf16, #tpu.memory_space<vmem>>, vector<8x2304xbf16>
    %c0_1 = arith.constant 0 : index
    %c0_2 = arith.constant 0 : index
    %1 = vector.load %arg2[%c0_1, %c0_2] : memref<2304x128xbf16, #tpu.memory_space<vmem>>, vector<2304x128xbf16>
    %cst = arith.constant dense<0.000000e+00> : vector<8x128xf32>
    %2 = tpu.matmul %0, %1, %cst {dimension_numbers = #tpu.dot_dimension_numbers<[1], [0], [0], [1], [0, 0, 1, 1], [], []>} : vector<8x2304xbf16>, vector<2304x128xbf16>, vector<8x128xf32> -> vector<8x128xf32>
    %c0_3 = arith.constant 0 : index
    %c0_4 = arith.constant 0 : index
    %3 = vector.load %arg3[%c0_3, %c0_4] : memref<1x128xf32, #tpu.memory_space<vmem>>, vector<1x128xf32>
    %4 = vector.broadcast %3 : vector<1x128xf32> to vector<8x128xf32>
    %5 = arith.addf %2, %4 : vector<8x128xf32>
    %cst_5 = arith.constant 0.000000e+00 : f32
    %6 = vector.broadcast %cst_5 : f32 to vector<8x128xf32>
    %7 = arith.cmpf oge, %5, %6 : vector<8x128xf32>
    %cst_6 = arith.constant 1.000000e-01 : f32
    %8 = vector.broadcast %cst_6 : f32 to vector<8x128xf32>
    %9 = arith.mulf %8, %5 : vector<8x128xf32>
    %10 = arith.select %7, %5, %9 : vector<8x128xi1>, vector<8x128xf32>
    %11 = arith.truncf %10 : vector<8x128xf32> to vector<8x128xbf16>
    %c0_7 = arith.constant 0 : index
    %c0_8 = arith.constant 0 : index
    %12 = vector.load %arg4[%c0_7, %c0_8] : memref<8x128xbf16, #tpu.memory_space<vmem>>, vector<8x128xbf16>
    tpu.vector_store %arg4[%c0_7, %c0_8], %11 {strides = array<i32>} : memref<8x128xbf16, #tpu.memory_space<vmem>>, vector<8x128xbf16>,
    return
  }
  func.func @transform_0(%arg0: i32) -> (i32, i32) {
    %c0_i32 = arith.constant 0 : i32
    %c0_i32_0 = arith.constant 0 : i32
    return %arg0, %c0_i32 : i32, i32
  }
  func.func @transform_1(%arg0: i32) -> (i32, i32) {
    %c0_i32 = arith.constant 0 : i32
    %c0_i32_0 = arith.constant 0 : i32
    %c0_i32_1 = arith.constant 0 : i32
    return %c0_i32, %c0_i32_0 : i32, i32
  }
  func.func @transform_2(%arg0: i32) -> (i32, i32) {
    %c0_i32 = arith.constant 0 : i32
    %c0_i32_0 = arith.constant 0 : i32
    %c0_i32_1 = arith.constant 0 : i32
    return %c0_i32, %c0_i32_0 : i32, i32
  }
  func.func @transform_3(%arg0: i32) -> (i32, i32) {
    %c0_i32 = arith.constant 0 : i32
    %c0_i32_0 = arith.constant 0 : i32
    return %arg0, %c0_i32 : i32, i32
  }
}

module attributes {stable_mosaic.version = 11 : i64} {
  func.func @_gemm_kernel(%arg0: i32, %arg1: memref<8x512xbf16, #tpu.memory_space<vmem>>, %arg2: memref<512x128xbf16, #tpu.memory_space<vmem>>, %arg3: memref<1x128xf32, #tpu.memory_space<vmem>>, %arg4: memref<8x128xbf16, #tpu.memory_space<vmem>>) attributes {dimension_semantics = [#tpu.dimension_semantics<parallel>], iteration_bounds = array<i64: 1>, scalar_prefetch = 0 : i64, scratch_operands = 0 : i64, tpu.core_type = #tpu.core_type<tc>, window_params = [{transform_indices = @transform_0, window_bounds = array<i64: 8, 512>}, {pipeline_mode = #tpu.pipeline_mode<synchronous>, transform_indices = @transform_1, window_bounds = array<i64: 512, 128>}, {pipeline_mode = #tpu.pipeline_mode<synchronous>, transform_indices = @transform_2, window_bounds = array<i64: 1, 128>}, {transform_indices = @transform_3, window_bounds = array<i64: 8, 128>}]} {
    %c0 = arith.constant 0 : index
    %c0_0 = arith.constant 0 : index
    %0 = vector.load %arg1[%c0, %c0_0] : memref<8x512xbf16, #tpu.memory_space<vmem>>, vector<8x512xbf16>
    %c0_1 = arith.constant 0 : index
    %c0_2 = arith.constant 0 : index
    %1 = vector.load %arg2[%c0_1, %c0_2] : memref<512x128xbf16, #tpu.memory_space<vmem>>, vector<512x128xbf16>
    %cst = arith.constant dense<0.000000e+00> : vector<8x128xf32>
    %2 = tpu.matmul %0, %1, %cst {dimension_numbers = #tpu.dot_dimension_numbers<[1], [0], [0], [1], [0, 0, 1, 1], [], []>} : vector<8x512xbf16>, vector<512x128xbf16>, vector<8x128xf32> -> vector<8x128xf32>
    %c0_3 = arith.constant 0 : index
    %c0_4 = arith.constant 0 : index
    %3 = vector.load %arg3[%c0_3, %c0_4] : memref<1x128xf32, #tpu.memory_space<vmem>>, vector<1x128xf32>
    %4 = vector.broadcast %3 : vector<1x128xf32> to vector<8x128xf32>
    %5 = arith.addf %2, %4 : vector<8x128xf32>
    %cst_5 = arith.constant 0.000000e+00 : f32
    %6 = vector.broadcast %cst_5 : f32 to vector<8x128xf32>
    %7 = arith.cmpf oge, %5, %6 : vector<8x128xf32>
    %cst_6 = arith.constant 1.000000e-01 : f32
    %8 = vector.broadcast %cst_6 : f32 to vector<8x128xf32>
    %9 = arith.mulf %8, %5 : vector<8x128xf32>
    %10 = arith.select %7, %5, %9 : vector<8x128xi1>, vector<8x128xf32>
    %11 = arith.truncf %10 : vector<8x128xf32> to vector<8x128xbf16>
    %c0_7 = arith.constant 0 : index
    %c0_8 = arith.constant 0 : index
    %12 = vector.load %arg4[%c0_7, %c0_8] : memref<8x128xbf16, #tpu.memory_space<vmem>>, vector<8x128xbf16>
    tpu.vector_store %arg4[%c0_7, %c0_8], %11 {strides = array<i32>} : memref<8x128xbf16, #tpu.memory_space<vmem>>, vector<8x128xbf16>,
    return
  }
  func.func @transform_0(%arg0: i32) -> (i32, i32) {
    %c0_i32 = arith.constant 0 : i32
    %c0_i32_0 = arith.constant 0 : i32
    return %arg0, %c0_i32 : i32, i32
  }
  func.func @transform_1(%arg0: i32) -> (i32, i32) {
    %c0_i32 = arith.constant 0 : i32
    %c0_i32_0 = arith.constant 0 : i32
    %c0_i32_1 = arith.constant 0 : i32
    return %c0_i32, %c0_i32_0 : i32, i32
  }
  func.func @transform_2(%arg0: i32) -> (i32, i32) {
    %c0_i32 = arith.constant 0 : i32
    %c0_i32_0 = arith.constant 0 : i32
    %c0_i32_1 = arith.constant 0 : i32
    return %c0_i32, %c0_i32_0 : i32, i32
  }
  func.func @transform_3(%arg0: i32) -> (i32, i32) {
    %c0_i32 = arith.constant 0 : i32
    %c0_i32_0 = arith.constant 0 : i32
    return %arg0, %c0_i32 : i32, i32
  }
}

module attributes {stable_mosaic.version = 11 : i64} {
  func.func @_gemm_kernel(%arg0: i32, %arg1: memref<32x1536xbf16, #tpu.memory_space<vmem>>, %arg2: memref<1536x128xbf16, #tpu.memory_space<vmem>>, %arg3: memref<1x128xf32, #tpu.memory_space<vmem>>, %arg4: memref<32x128xbf16, #tpu.memory_space<vmem>>) attributes {dimension_semantics = [#tpu.dimension_semantics<parallel>], iteration_bounds = array<i64: 1>, scalar_prefetch = 0 : i64, scratch_operands = 0 : i64, tpu.core_type = #tpu.core_type<tc>, window_params = [{transform_indices = @transform_0, window_bounds = array<i64: 32, 1536>}, {pipeline_mode = #tpu.pipeline_mode<synchronous>, transform_indices = @transform_1, window_bounds = array<i64: 1536, 128>}, {pipeline_mode = #tpu.pipeline_mode<synchronous>, transform_indices = @transform_2, window_bounds = array<i64: 1, 128>}, {transform_indices = @transform_3, window_bounds = array<i64: 32, 128>}]} {
    %c0 = arith.constant 0 : index
    %c0_0 = arith.constant 0 : index
    %0 = vector.load %arg1[%c0, %c0_0] : memref<32x1536xbf16, #tpu.memory_space<vmem>>, vector<32x1536xbf16>
    %c0_1 = arith.constant 0 : index
    %c0_2 = arith.constant 0 : index
    %1 = vector.load %arg2[%c0_1, %c0_2] : memref<1536x128xbf16, #tpu.memory_space<vmem>>, vector<1536x128xbf16>
    %cst = arith.constant dense<0.000000e+00> : vector<32x128xf32>
    %2 = tpu.matmul %0, %1, %cst {dimension_numbers = #tpu.dot_dimension_numbers<[1], [0], [0], [1], [0, 0, 1, 1], [], []>} : vector<32x1536xbf16>, vector<1536x128xbf16>, vector<32x128xf32> -> vector<32x128xf32>
    %c0_3 = arith.constant 0 : index
    %c0_4 = arith.constant 0 : index
    %3 = vector.load %arg3[%c0_3, %c0_4] : memref<1x128xf32, #tpu.memory_space<vmem>>, vector<1x128xf32>
    %4 = vector.broadcast %3 : vector<1x128xf32> to vector<32x128xf32>
    %5 = arith.addf %2, %4 : vector<32x128xf32>
    %cst_5 = arith.constant 0.000000e+00 : f32
    %6 = vector.broadcast %cst_5 : f32 to vector<32x128xf32>
    %7 = arith.cmpf oge, %5, %6 : vector<32x128xf32>
    %cst_6 = arith.constant 1.000000e-01 : f32
    %8 = vector.broadcast %cst_6 : f32 to vector<32x128xf32>
    %9 = arith.mulf %8, %5 : vector<32x128xf32>
    %10 = arith.select %7, %5, %9 : vector<32x128xi1>, vector<32x128xf32>
    %11 = arith.truncf %10 : vector<32x128xf32> to vector<32x128xbf16>
    %c0_7 = arith.constant 0 : index
    %c0_8 = arith.constant 0 : index
    %12 = vector.load %arg4[%c0_7, %c0_8] : memref<32x128xbf16, #tpu.memory_space<vmem>>, vector<32x128xbf16>
    tpu.vector_store %arg4[%c0_7, %c0_8], %11 {strides = array<i32>} : memref<32x128xbf16, #tpu.memory_space<vmem>>, vector<32x128xbf16>,
    return
  }
  func.func @transform_0(%arg0: i32) -> (i32, i32) {
    %c0_i32 = arith.constant 0 : i32
    %c0_i32_0 = arith.constant 0 : i32
    return %arg0, %c0_i32 : i32, i32
  }
  func.func @transform_1(%arg0: i32) -> (i32, i32) {
    %c0_i32 = arith.constant 0 : i32
    %c0_i32_0 = arith.constant 0 : i32
    %c0_i32_1 = arith.constant 0 : i32
    return %c0_i32, %c0_i32_0 : i32, i32
  }
  func.func @transform_2(%arg0: i32) -> (i32, i32) {
    %c0_i32 = arith.constant 0 : i32
    %c0_i32_0 = arith.constant 0 : i32
    %c0_i32_1 = arith.constant 0 : i32
    return %c0_i32, %c0_i32_0 : i32, i32
  }
  func.func @transform_3(%arg0: i32) -> (i32, i32) {
    %c0_i32 = arith.constant 0 : i32
    %c0_i32_0 = arith.constant 0 : i32
    return %arg0, %c0_i32 : i32, i32
  }
}

module attributes {stable_mosaic.version = 11 : i64} {
  func.func @_gemm_kernel(%arg0: i32, %arg1: memref<256x36xbf16, #tpu.memory_space<vmem>>, %arg2: memref<36x128xbf16, #tpu.memory_space<vmem>>, %arg3: memref<1x128xf32, #tpu.memory_space<vmem>>, %arg4: memref<256x128xbf16, #tpu.memory_space<vmem>>) attributes {dimension_semantics = [#tpu.dimension_semantics<parallel>], iteration_bounds = array<i64: 2>, scalar_prefetch = 0 : i64, scratch_operands = 0 : i64, tpu.core_type = #tpu.core_type<tc>, window_params = [{transform_indices = @transform_0, window_bounds = array<i64: 256, 36>}, {pipeline_mode = #tpu.pipeline_mode<synchronous>, transform_indices = @transform_1, window_bounds = array<i64: 36, 128>}, {pipeline_mode = #tpu.pipeline_mode<synchronous>, transform_indices = @transform_2, window_bounds = array<i64: 1, 128>}, {transform_indices = @transform_3, window_bounds = array<i64: 256, 128>}]} {
    %c0 = arith.constant 0 : index
    %c0_0 = arith.constant 0 : index
    %0 = vector.load %arg1[%c0, %c0_0] : memref<256x36xbf16, #tpu.memory_space<vmem>>, vector<256x36xbf16>
    %c0_1 = arith.constant 0 : index
    %c0_2 = arith.constant 0 : index
    %1 = vector.load %arg2[%c0_1, %c0_2] : memref<36x128xbf16, #tpu.memory_space<vmem>>, vector<36x128xbf16>
    %cst = arith.constant dense<0.000000e+00> : vector<256x128xf32>
    %2 = tpu.matmul %0, %1, %cst {dimension_numbers = #tpu.dot_dimension_numbers<[1], [0], [0], [1], [0, 0, 1, 1], [], []>} : vector<256x36xbf16>, vector<36x128xbf16>, vector<256x128xf32> -> vector<256x128xf32>
    %c0_3 = arith.constant 0 : index
    %c0_4 = arith.constant 0 : index
    %3 = vector.load %arg3[%c0_3, %c0_4] : memref<1x128xf32, #tpu.memory_space<vmem>>, vector<1x128xf32>
    %4 = vector.broadcast %3 : vector<1x128xf32> to vector<256x128xf32>
    %5 = arith.addf %2, %4 : vector<256x128xf32>
    %cst_5 = arith.constant 0.000000e+00 : f32
    %6 = vector.broadcast %cst_5 : f32 to vector<256x128xf32>
    %7 = arith.cmpf oge, %5, %6 : vector<256x128xf32>
    %cst_6 = arith.constant 1.000000e-01 : f32
    %8 = vector.broadcast %cst_6 : f32 to vector<256x128xf32>
    %9 = arith.mulf %8, %5 : vector<256x128xf32>
    %10 = arith.select %7, %5, %9 : vector<256x128xi1>, vector<256x128xf32>
    %11 = arith.truncf %10 : vector<256x128xf32> to vector<256x128xbf16>
    %c0_7 = arith.constant 0 : index
    %c0_8 = arith.constant 0 : index
    %12 = vector.load %arg4[%c0_7, %c0_8] : memref<256x128xbf16, #tpu.memory_space<vmem>>, vector<256x128xbf16>
    tpu.vector_store %arg4[%c0_7, %c0_8], %11 {strides = array<i32>} : memref<256x128xbf16, #tpu.memory_space<vmem>>, vector<256x128xbf16>,
    return
  }
  func.func @transform_0(%arg0: i32) -> (i32, i32) {
    %c0_i32 = arith.constant 0 : i32
    %c0_i32_0 = arith.constant 0 : i32
    return %arg0, %c0_i32 : i32, i32
  }
  func.func @transform_1(%arg0: i32) -> (i32, i32) {
    %c0_i32 = arith.constant 0 : i32
    %c0_i32_0 = arith.constant 0 : i32
    %c0_i32_1 = arith.constant 0 : i32
    return %c0_i32, %c0_i32_0 : i32, i32
  }
  func.func @transform_2(%arg0: i32) -> (i32, i32) {
    %c0_i32 = arith.constant 0 : i32
    %c0_i32_0 = arith.constant 0 : i32
    %c0_i32_1 = arith.constant 0 : i32
    return %c0_i32, %c0_i32_0 : i32, i32
  }
  func.func @transform_3(%arg0: i32) -> (i32, i32) {
    %c0_i32 = arith.constant 0 : i32
    %c0_i32_0 = arith.constant 0 : i32
    return %arg0, %c0_i32 : i32, i32
  }
}

module attributes {stable_mosaic.version = 11 : i64} {
  func.func @_gemm_res_kernel(%arg0: i32, %arg1: memref<128x1024xbf16, #tpu.memory_space<vmem>>, %arg2: memref<1024x128xbf16, #tpu.memory_space<vmem>>, %arg3: memref<1x128xf32, #tpu.memory_space<vmem>>, %arg4: memref<128x128xbf16, #tpu.memory_space<vmem>>, %arg5: memref<128x128xbf16, #tpu.memory_space<vmem>>) attributes {dimension_semantics = [#tpu.dimension_semantics<parallel>], iteration_bounds = array<i64: 1>, scalar_prefetch = 0 : i64, scratch_operands = 0 : i64, tpu.core_type = #tpu.core_type<tc>, window_params = [{transform_indices = @transform_0, window_bounds = array<i64: 128, 1024>}, {pipeline_mode = #tpu.pipeline_mode<synchronous>, transform_indices = @transform_1, window_bounds = array<i64: 1024, 128>}, {pipeline_mode = #tpu.pipeline_mode<synchronous>, transform_indices = @transform_2, window_bounds = array<i64: 1, 128>}, {transform_indices = @transform_3, window_bounds = array<i64: 128, 128>}, {transform_indices = @transform_4, window_bounds = array<i64: 128, 128>}]} {
    %c0 = arith.constant 0 : index
    %c0_0 = arith.constant 0 : index
    %0 = vector.load %arg1[%c0, %c0_0] : memref<128x1024xbf16, #tpu.memory_space<vmem>>, vector<128x1024xbf16>
    %c0_1 = arith.constant 0 : index
    %c0_2 = arith.constant 0 : index
    %1 = vector.load %arg2[%c0_1, %c0_2] : memref<1024x128xbf16, #tpu.memory_space<vmem>>, vector<1024x128xbf16>
    %cst = arith.constant dense<0.000000e+00> : vector<128x128xf32>
    %2 = tpu.matmul %0, %1, %cst {dimension_numbers = #tpu.dot_dimension_numbers<[1], [0], [0], [1], [0, 0, 1, 1], [], []>} : vector<128x1024xbf16>, vector<1024x128xbf16>, vector<128x128xf32> -> vector<128x128xf32>
    %c0_3 = arith.constant 0 : index
    %c0_4 = arith.constant 0 : index
    %3 = vector.load %arg3[%c0_3, %c0_4] : memref<1x128xf32, #tpu.memory_space<vmem>>, vector<1x128xf32>
    %4 = vector.broadcast %3 : vector<1x128xf32> to vector<128x128xf32>
    %5 = arith.addf %2, %4 : vector<128x128xf32>
    %cst_5 = arith.constant 0.000000e+00 : f32
    %6 = vector.broadcast %cst_5 : f32 to vector<128x128xf32>
    %7 = arith.cmpf oge, %5, %6 : vector<128x128xf32>
    %cst_6 = arith.constant 1.000000e-01 : f32
    %8 = vector.broadcast %cst_6 : f32 to vector<128x128xf32>
    %9 = arith.mulf %8, %5 : vector<128x128xf32>
    %10 = arith.select %7, %5, %9 : vector<128x128xi1>, vector<128x128xf32>
    %c0_7 = arith.constant 0 : index
    %c0_8 = arith.constant 0 : index
    %11 = vector.load %arg4[%c0_7, %c0_8] : memref<128x128xbf16, #tpu.memory_space<vmem>>, vector<128x128xbf16>
    %12 = arith.extf %11 : vector<128x128xbf16> to vector<128x128xf32>
    %cst_9 = arith.constant 1.000000e-01 : f32
    %13 = vector.broadcast %cst_9 : f32 to vector<128x128xf32>
    %14 = arith.mulf %13, %12 : vector<128x128xf32>
    %15 = arith.addf %10, %14 : vector<128x128xf32>
    %16 = arith.truncf %15 : vector<128x128xf32> to vector<128x128xbf16>
    %c0_10 = arith.constant 0 : index
    %c0_11 = arith.constant 0 : index
    %17 = vector.load %arg5[%c0_10, %c0_11] : memref<128x128xbf16, #tpu.memory_space<vmem>>, vector<128x128xbf16>
    tpu.vector_store %arg5[%c0_10, %c0_11], %16 {strides = array<i32>} : memref<128x128xbf16, #tpu.memory_space<vmem>>, vector<128x128xbf16>,
    return
  }
  func.func @transform_0(%arg0: i32) -> (i32, i32) {
    %c0_i32 = arith.constant 0 : i32
    %c0_i32_0 = arith.constant 0 : i32
    return %arg0, %c0_i32 : i32, i32
  }
  func.func @transform_1(%arg0: i32) -> (i32, i32) {
    %c0_i32 = arith.constant 0 : i32
    %c0_i32_0 = arith.constant 0 : i32
    %c0_i32_1 = arith.constant 0 : i32
    return %c0_i32, %c0_i32_0 : i32, i32
  }
  func.func @transform_2(%arg0: i32) -> (i32, i32) {
    %c0_i32 = arith.constant 0 : i32
    %c0_i32_0 = arith.constant 0 : i32
    %c0_i32_1 = arith.constant 0 : i32
    return %c0_i32, %c0_i32_0 : i32, i32
  }
  func.func @transform_3(%arg0: i32) -> (i32, i32) {
    %c0_i32 = arith.constant 0 : i32
    %c0_i32_0 = arith.constant 0 : i32
    return %arg0, %c0_i32 : i32, i32
  }
  func.func @transform_4(%arg0: i32) -> (i32, i32) {
    %c0_i32 = arith.constant 0 : i32
    %c0_i32_0 = arith.constant 0 : i32
    return %arg0, %c0_i32 : i32, i32
  }
}

module attributes {stable_mosaic.version = 11 : i64} {
  func.func @_gemm_kernel(%arg0: i32, %arg1: memref<256x1152xbf16, #tpu.memory_space<vmem>>, %arg2: memref<1152x128xbf16, #tpu.memory_space<vmem>>, %arg3: memref<1x128xf32, #tpu.memory_space<vmem>>, %arg4: memref<256x128xbf16, #tpu.memory_space<vmem>>) attributes {dimension_semantics = [#tpu.dimension_semantics<parallel>], iteration_bounds = array<i64: 2>, scalar_prefetch = 0 : i64, scratch_operands = 0 : i64, tpu.core_type = #tpu.core_type<tc>, window_params = [{transform_indices = @transform_0, window_bounds = array<i64: 256, 1152>}, {pipeline_mode = #tpu.pipeline_mode<synchronous>, transform_indices = @transform_1, window_bounds = array<i64: 1152, 128>}, {pipeline_mode = #tpu.pipeline_mode<synchronous>, transform_indices = @transform_2, window_bounds = array<i64: 1, 128>}, {transform_indices = @transform_3, window_bounds = array<i64: 256, 128>}]} {
    %c0 = arith.constant 0 : index
    %c0_0 = arith.constant 0 : index
    %0 = vector.load %arg1[%c0, %c0_0] : memref<256x1152xbf16, #tpu.memory_space<vmem>>, vector<256x1152xbf16>
    %c0_1 = arith.constant 0 : index
    %c0_2 = arith.constant 0 : index
    %1 = vector.load %arg2[%c0_1, %c0_2] : memref<1152x128xbf16, #tpu.memory_space<vmem>>, vector<1152x128xbf16>
    %cst = arith.constant dense<0.000000e+00> : vector<256x128xf32>
    %2 = tpu.matmul %0, %1, %cst {dimension_numbers = #tpu.dot_dimension_numbers<[1], [0], [0], [1], [0, 0, 1, 1], [], []>} : vector<256x1152xbf16>, vector<1152x128xbf16>, vector<256x128xf32> -> vector<256x128xf32>
    %c0_3 = arith.constant 0 : index
    %c0_4 = arith.constant 0 : index
    %3 = vector.load %arg3[%c0_3, %c0_4] : memref<1x128xf32, #tpu.memory_space<vmem>>, vector<1x128xf32>
    %4 = vector.broadcast %3 : vector<1x128xf32> to vector<256x128xf32>
    %5 = arith.addf %2, %4 : vector<256x128xf32>
    %cst_5 = arith.constant 0.000000e+00 : f32
    %6 = vector.broadcast %cst_5 : f32 to vector<256x128xf32>
    %7 = arith.cmpf oge, %5, %6 : vector<256x128xf32>
    %cst_6 = arith.constant 1.000000e-01 : f32
    %8 = vector.broadcast %cst_6 : f32 to vector<256x128xf32>
    %9 = arith.mulf %8, %5 : vector<256x128xf32>
    %10 = arith.select %7, %5, %9 : vector<256x128xi1>, vector<256x128xf32>
    %11 = arith.truncf %10 : vector<256x128xf32> to vector<256x128xbf16>
    %c0_7 = arith.constant 0 : index
    %c0_8 = arith.constant 0 : index
    %12 = vector.load %arg4[%c0_7, %c0_8] : memref<256x128xbf16, #tpu.memory_space<vmem>>, vector<256x128xbf16>
    tpu.vector_store %arg4[%c0_7, %c0_8], %11 {strides = array<i32>} : memref<256x128xbf16, #tpu.memory_space<vmem>>, vector<256x128xbf16>,
    return
  }
  func.func @transform_0(%arg0: i32) -> (i32, i32) {
    %c0_i32 = arith.constant 0 : i32
    %c0_i32_0 = arith.constant 0 : i32
    return %arg0, %c0_i32 : i32, i32
  }
  func.func @transform_1(%arg0: i32) -> (i32, i32) {
    %c0_i32 = arith.constant 0 : i32
    %c0_i32_0 = arith.constant 0 : i32
    %c0_i32_1 = arith.constant 0 : i32
    return %c0_i32, %c0_i32_0 : i32, i32
  }
  func.func @transform_2(%arg0: i32) -> (i32, i32) {
    %c0_i32 = arith.constant 0 : i32
    %c0_i32_0 = arith.constant 0 : i32
    %c0_i32_1 = arith.constant 0 : i32
    return %c0_i32, %c0_i32_0 : i32, i32
  }
  func.func @transform_3(%arg0: i32) -> (i32, i32) {
    %c0_i32 = arith.constant 0 : i32
    %c0_i32_0 = arith.constant 0 : i32
    return %arg0, %c0_i32 : i32, i32
  }
}

module attributes {stable_mosaic.version = 11 : i64} {
  func.func @_gemm_kernel(%arg0: i32, %arg1: memref<256x576xbf16, #tpu.memory_space<vmem>>, %arg2: memref<576x128xbf16, #tpu.memory_space<vmem>>, %arg3: memref<1x128xf32, #tpu.memory_space<vmem>>, %arg4: memref<256x128xf32, #tpu.memory_space<vmem>>) attributes {dimension_semantics = [#tpu.dimension_semantics<parallel>], iteration_bounds = array<i64: 2>, scalar_prefetch = 0 : i64, scratch_operands = 0 : i64, tpu.core_type = #tpu.core_type<tc>, window_params = [{transform_indices = @transform_0, window_bounds = array<i64: 256, 576>}, {pipeline_mode = #tpu.pipeline_mode<synchronous>, transform_indices = @transform_1, window_bounds = array<i64: 576, 128>}, {pipeline_mode = #tpu.pipeline_mode<synchronous>, transform_indices = @transform_2, window_bounds = array<i64: 1, 128>}, {transform_indices = @transform_3, window_bounds = array<i64: 256, 128>}]} {
    %c0 = arith.constant 0 : index
    %c0_0 = arith.constant 0 : index
    %0 = vector.load %arg1[%c0, %c0_0] : memref<256x576xbf16, #tpu.memory_space<vmem>>, vector<256x576xbf16>
    %c0_1 = arith.constant 0 : index
    %c0_2 = arith.constant 0 : index
    %1 = vector.load %arg2[%c0_1, %c0_2] : memref<576x128xbf16, #tpu.memory_space<vmem>>, vector<576x128xbf16>
    %cst = arith.constant dense<0.000000e+00> : vector<256x128xf32>
    %2 = tpu.matmul %0, %1, %cst {dimension_numbers = #tpu.dot_dimension_numbers<[1], [0], [0], [1], [0, 0, 1, 1], [], []>} : vector<256x576xbf16>, vector<576x128xbf16>, vector<256x128xf32> -> vector<256x128xf32>
    %c0_3 = arith.constant 0 : index
    %c0_4 = arith.constant 0 : index
    %3 = vector.load %arg3[%c0_3, %c0_4] : memref<1x128xf32, #tpu.memory_space<vmem>>, vector<1x128xf32>
    %4 = vector.broadcast %3 : vector<1x128xf32> to vector<256x128xf32>
    %5 = arith.addf %2, %4 : vector<256x128xf32>
    %c0_5 = arith.constant 0 : index
    %c0_6 = arith.constant 0 : index
    %6 = vector.load %arg4[%c0_5, %c0_6] : memref<256x128xf32, #tpu.memory_space<vmem>>, vector<256x128xf32>
    tpu.vector_store %arg4[%c0_5, %c0_6], %5 {strides = array<i32>} : memref<256x128xf32, #tpu.memory_space<vmem>>, vector<256x128xf32>,
    return
  }
  func.func @transform_0(%arg0: i32) -> (i32, i32) {
    %c0_i32 = arith.constant 0 : i32
    %c0_i32_0 = arith.constant 0 : i32
    return %arg0, %c0_i32 : i32, i32
  }
  func.func @transform_1(%arg0: i32) -> (i32, i32) {
    %c0_i32 = arith.constant 0 : i32
    %c0_i32_0 = arith.constant 0 : i32
    %c0_i32_1 = arith.constant 0 : i32
    return %c0_i32, %c0_i32_0 : i32, i32
  }
  func.func @transform_2(%arg0: i32) -> (i32, i32) {
    %c0_i32 = arith.constant 0 : i32
    %c0_i32_0 = arith.constant 0 : i32
    %c0_i32_1 = arith.constant 0 : i32
    return %c0_i32, %c0_i32_0 : i32, i32
  }
  func.func @transform_3(%arg0: i32) -> (i32, i32) {
    %c0_i32 = arith.constant 0 : i32
    %c0_i32_0 = arith.constant 0 : i32
    return %arg0, %c0_i32 : i32, i32
  }
}

</mosaic_0001>

<llo_original>
// kernel: ed_regression_forward.19
$region0: #{ed_regression_forward.19}
  #allocation0 [shape = 'u32[]', space=smem, size = 0x4, offset = 0x4, fixed_abs, tag = 'smem constant byte address 0x4 - core index']
  #allocation1 [shape = 'u32[72,128]{1,0:T(1,128)}', space=vmem, size = 0x9000, scoped, tag = 'internal scratch']
  %s0 = inlined_call_operand.vmem [shape: bf16[128,36], index: 0, kind: input, shape index: {}]
  %s1 = inlined_call_operand.vmem [shape: bf16[36,128], index: 1, kind: input, shape index: {}]
  %s2 = inlined_call_operand.vmem [shape: f32[1,128], index: 2, kind: input, shape index: {}]
  %s3 = inlined_call_operand.vmem [shape: bf16[128,128], index: 3, kind: output, shape index: {}]
  %s4 = sld [smem:[#allocation0]]
  $region22: #{ed_regression_forward.19} parent=0
    _
  %s6 = ssub.s32 1, %s4
  %s7 = scalar_select 0, %s6, %s4
  // Predicated region
  $region2: #{ed_regression_forward.19} parent=0 // pred_check
    _
  $region3: #{ed_regression_forward.19} parent=0 // pred_check_branch
    %9 = sbr.rel (0) target = $region5
  $region4: #{ed_regression_forward.19} parent=0 // pred_region
    _
  $region5: #{ed_regression_forward.19} parent=0 // pred_fallthru
    _
  // Predicated region
  $region6: #{ed_regression_forward.19} parent=0 // pred_check
    _
  $region7: #{ed_regression_forward.19} parent=0 // pred_check_branch
    %11 = sbr.rel (0) target = $region9
  $region8: #{ed_regression_forward.19} parent=0 // pred_region
    _
  $region9: #{ed_regression_forward.19} parent=0 // pred_fallthru
    _
  // Predicated region
  $region10: #{ed_regression_forward.19} parent=0 // pred_check
    _
  $region11: #{ed_regression_forward.19} parent=0 // pred_check_branch
    %13 = sbr.rel (0) target = $region13
  $region12: #{ed_regression_forward.19} parent=0 // pred_region
    _
  $region13: #{ed_regression_forward.19} parent=0 // pred_fallthru
    _
  %v15 = vld [vmem:[%s0] sm:$0xf]
  %v16 = vld [vmem:[%s0 + $0x4] sm:$0xf]
  %v17 = vld [vmem:[%s0 + $0x8] sm:$0xf]
  %v18 = vld [vmem:[%s0 + $0xc] sm:$0xf]
  %v19 = vld [vmem:[%s0 + $0x10] sm:$0xf]
  %v20 = vld [vmem:[%s0 + $0x14] sm:$0xf]
  %v21 = vld [vmem:[%s0 + $0x18] sm:$0xf]
  %v22 = vld [vmem:[%s0 + $0x1c] sm:$0xf]
  %v23 = vld [vmem:[%s0 + $0x20] sm:$0xf]
  %v24 = vld [vmem:[%s0 + $0x24] sm:$0xf]
  %v25 = vld [vmem:[%s0 + $0x28] sm:$0xf]
  %v26 = vld [vmem:[%s0 + $0x2c] sm:$0xf]
  %v27 = vld [vmem:[%s0 + $0x30] sm:$0xf]
  %v28 = vld [vmem:[%s0 + $0x34] sm:$0xf]
  %v29 = vld [vmem:[%s0 + $0x38] sm:$0xf]
  %v30 = vld [vmem:[%s0 + $0x3c] sm:$0xf]
  %v31 = vld [vmem:[%s1] sm:$0xf]
  %v32 = vld [vmem:[%s1 + $0x4] sm:$0xf]
  %v33 = vld [vmem:[%s1 + $0x8] sm:$0xf]
  %v34 = vld [vmem:[%s1 + $0xc] sm:$0xf]
  %v35 = vld [vmem:[%s1 + $0x10] sm:$0x3]
  %v36 = vld [vmem:[%s2] sm:$0x1]
  %v38 = vperm.slane %v36, 0
  %v56 = vunpack.c.l.b16 %v15
  %v57 = vunpack.c.l.b16 %v16
  %v58 = vunpack.c.l.b16 %v17
  %v59 = vunpack.c.l.b16 %v18
  %v60 = vunpack.c.l.b16 %v19
  %v61 = vunpack.c.l.b16 %v20
  %v62 = vunpack.c.l.b16 %v21
  %v63 = vunpack.c.l.b16 %v22
  %v64 = vunpack.c.l.b16 %v23
  %v65 = vunpack.c.l.b16 %v24
  %v66 = vunpack.c.l.b16 %v25
  %v67 = vunpack.c.l.b16 %v26
  %v68 = vunpack.c.l.b16 %v27
  %v69 = vunpack.c.l.b16 %v28
  %v70 = vunpack.c.l.b16 %v29
  %v71 = vunpack.c.l.b16 %v30
  %v72 = vpack.c.b16 %v57, %v56
  %v73 = vpack.c.b16 %v59, %v58
  %v74 = vpack.c.b16 %v61, %v60
  %v75 = vpack.c.b16 %v63, %v62
  %v76 = vpack.c.b16 %v65, %v64
  %v77 = vpack.c.b16 %v67, %v66
  %v78 = vpack.c.b16 %v69, %v68
  %v79 = vpack.c.b16 %v71, %v70
  %v85 = vunpack.c.l.b16 %v31
  %v86 = vunpack.c.l.b16 %v32
  %v87 = vunpack.c.l.b16 %v33
  %v88 = vunpack.c.l.b16 %v34
  %v89 = vunpack.c.l.b16 %v35
  %v90 = vpack.c.b16 %v86, %v85
  %v91 = vpack.c.b16 %v88, %v87
  %v92 = vpack.c.b16 %v89, %v89
  %vm95 = vcmask 293888
  %v97 = vsel %vm95, %v72, 0
  %v100 = vsel %vm95, %v73, 0
  %v103 = vsel %vm95, %v74, 0
  %v106 = vsel %vm95, %v75, 0
  %v109 = vsel %vm95, %v76, 0
  %v112 = vsel %vm95, %v77, 0
  %v115 = vsel %vm95, %v78, 0
  %v118 = vsel %vm95, %v79, 0
  %vm120 = vcmask 1041408
  %v122 = vsel %vm120, %v92, 0
  %124 = vmatpush.bf16.msra.mxu0 0
  %125 = vmatpush.bf16.msra.mxu0 0
  %126 = vmatpush.bf16.msra.mxu0 0
  %127 = vmatpush.bf16.msra.mxu0 0
  %128 = vmatpush.bf16.msra.mxu0 0
  %129 = vmatpush.bf16.msra.mxu0 %v122
  %130 = vmatpush.bf16.msra.mxu0 %v91
  %131 = vmatpush.bf16.msra.mxu0 %v90
  %132 = vmatmul.bf16.gmra.mxu0 %v97
  %v133 = vpop.f32.mrf.mxu0
  %v134 = vadd.f32 %v38, %v133
  %v135 = vpop.f32.mrf.mxu0
  %v136 = vadd.f32 %v38, %v135
  %137 = vmatmul.bf16.gmra.mxu0 %v100
  %v138 = vpop.f32.mrf.mxu0
  %v139 = vadd.f32 %v38, %v138
  %v140 = vpop.f32.mrf.mxu0
  %v141 = vadd.f32 %v38, %v140
  %142 = vmatmul.bf16.gmra.mxu0 %v103
  %v143 = vpop.f32.mrf.mxu0
  %v144 = vadd.f32 %v38, %v143
  %v145 = vpop.f32.mrf.mxu0
  %v146 = vadd.f32 %v38, %v145
  %147 = vmatmul.bf16.gmra.mxu0 %v106
  %v148 = vpop.f32.mrf.mxu0
  %v149 = vadd.f32 %v38, %v148
  %v150 = vpop.f32.mrf.mxu0
  %v151 = vadd.f32 %v38, %v150
  %152 = vmatmul.bf16.gmra.mxu0 %v109
  %v153 = vpop.f32.mrf.mxu0
  %v154 = vadd.f32 %v38, %v153
  %v155 = vpop.f32.mrf.mxu0
  %v156 = vadd.f32 %v38, %v155
  %157 = vmatmul.bf16.gmra.mxu0 %v112
  %v158 = vpop.f32.mrf.mxu0
  %v159 = vadd.f32 %v38, %v158
  %v160 = vpop.f32.mrf.mxu0
  %v161 = vadd.f32 %v38, %v160
  %162 = vmatmul.bf16.gmra.mxu0 %v115
  %v163 = vpop.f32.mrf.mxu0
  %v164 = vadd.f32 %v38, %v163
  %v165 = vpop.f32.mrf.mxu0
  %v166 = vadd.f32 %v38, %v165
  %167 = vmatmul.bf16.gmra.mxu0 %v118
  %v168 = vpop.f32.mrf.mxu0
  %v169 = vadd.f32 %v38, %v168
  %v170 = vpop.f32.mrf.mxu0
  %v171 = vadd.f32 %v38, %v170
  %172 = vdwg.mxu0
  %vm173 = vcmp.ge.f32.partialorder %v134, 0.0
  %vm174 = vcmp.ge.f32.partialorder %v136, 0.0
  %vm175 = vcmp.ge.f32.partialorder %v139, 0.0
  %vm176 = vcmp.ge.f32.partialorder %v141, 0.0
  %vm177 = vcmp.ge.f32.partialorder %v144, 0.0
  %vm178 = vcmp.ge.f32.partialorder %v146, 0.0
  %vm179 = vcmp.ge.f32.partialorder %v149, 0.0
  %vm180 = vcmp.ge.f32.partialorder %v151, 0.0
  %vm181 = vcmp.ge.f32.partialorder %v154, 0.0
  %vm182 = vcmp.ge.f32.partialorder %v156, 0.0
  %vm183 = vcmp.ge.f32.partialorder %v159, 0.0
  %vm184 = vcmp.ge.f32.partialorder %v161, 0.0
  %vm185 = vcmp.ge.f32.partialorder %v164, 0.0
  %vm186 = vcmp.ge.f32.partialorder %v166, 0.0
  %vm187 = vcmp.ge.f32.partialorder %v169, 0.0
  %vm188 = vcmp.ge.f32.partialorder %v171, 0.0
  %v189 = vmul.f32 %v134, 0.1
  %v190 = vmul.f32 %v136, 0.1
  %v191 = vmul.f32 %v139, 0.1
  %v192 = vmul.f32 %v141, 0.1
  %v193 = vmul.f32 %v144, 0.1
  %v194 = vmul.f32 %v146, 0.1
  %v195 = vmul.f32 %v149, 0.1
  %v196 = vmul.f32 %v151, 0.1
  %v197 = vmul.f32 %v154, 0.1
  %v198 = vmul.f32 %v156, 0.1
  %v199 = vmul.f32 %v159, 0.1
  %v200 = vmul.f32 %v161, 0.1
  %v201 = vmul.f32 %v164, 0.1
  %v202 = vmul.f32 %v166, 0.1
  %v203 = vmul.f32 %v169, 0.1
  %v204 = vmul.f32 %v171, 0.1
  %v205 = vsel %vm173, %v134, %v189
  %v206 = vsel %vm174, %v136, %v190
  %v207 = vsel %vm175, %v139, %v191
  %v208 = vsel %vm176, %v141, %v192
  %v209 = vsel %vm177, %v144, %v193
  %v210 = vsel %vm178, %v146, %v194
  %v211 = vsel %vm179, %v149, %v195
  %v212 = vsel %vm180, %v151, %v196
  %v213 = vsel %vm181, %v154, %v197
  %v214 = vsel %vm182, %v156, %v198
  %v215 = vsel %vm183, %v159, %v199
  %v216 = vsel %vm184, %v161, %v200
  %v217 = vsel %vm185, %v164, %v201
  %v218 = vsel %vm186, %v166, %v202
  %v219 = vsel %vm187, %v169, %v203
  %v220 = vsel %vm188, %v171, %v204
  %v221 = vpack.c.bf16 %v205, %v205
  %v222 = vpack.c.bf16 %v206, %v206
  %v223 = vpack.c.bf16 %v207, %v207
  %v224 = vpack.c.bf16 %v208, %v208
  %v225 = vpack.c.bf16 %v209, %v209
  %v226 = vpack.c.bf16 %v210, %v210
  %v227 = vpack.c.bf16 %v211, %v211
  %v228 = vpack.c.bf16 %v212, %v212
  %v229 = vpack.c.bf16 %v213, %v213
  %v230 = vpack.c.bf16 %v214, %v214
  %v231 = vpack.c.bf16 %v215, %v215
  %v232 = vpack.c.bf16 %v216, %v216
  %v233 = vpack.c.bf16 %v217, %v217
  %v234 = vpack.c.bf16 %v218, %v218
  %v235 = vpack.c.bf16 %v219, %v219
  %v236 = vpack.c.bf16 %v220, %v220
  %237 = vst [vmem:[%s3] sm:$0xf] %v221
  %238 = vst [vmem:[%s3 + $0x4] sm:$0xf] %v222
  %239 = vst [vmem:[%s3 + $0x8] sm:$0xf] %v223
  %240 = vst [vmem:[%s3 + $0xc] sm:$0xf] %v224
  %241 = vst [vmem:[%s3 + $0x10] sm:$0xf] %v225
  %242 = vst [vmem:[%s3 + $0x14] sm:$0xf] %v226
  %243 = vst [vmem:[%s3 + $0x18] sm:$0xf] %v227
  %244 = vst [vmem:[%s3 + $0x1c] sm:$0xf] %v228
  %245 = vst [vmem:[%s3 + $0x20] sm:$0xf] %v229
  %246 = vst [vmem:[%s3 + $0x24] sm:$0xf] %v230
  %247 = vst [vmem:[%s3 + $0x28] sm:$0xf] %v231
  %248 = vst [vmem:[%s3 + $0x2c] sm:$0xf] %v232
  %249 = vst [vmem:[%s3 + $0x30] sm:$0xf] %v233
  %250 = vst [vmem:[%s3 + $0x34] sm:$0xf] %v234
  %251 = vst [vmem:[%s3 + $0x38] sm:$0xf] %v235
  %252 = vst [vmem:[%s3 + $0x3c] sm:$0xf] %v236
  // Predicated region
  $region14: #{ed_regression_forward.19} parent=0 // pred_check
    _
  $region15: #{ed_regression_forward.19} parent=0 // pred_check_branch
    %254 = sbr.rel (0) target = $region17
  $region16: #{ed_regression_forward.19} parent=0 // pred_region
    _
  $region17: #{ed_regression_forward.19} parent=0 // pred_fallthru
    _
  // Predicated region
  $region18: #{ed_regression_forward.19} parent=0 // pred_check
    _
  $region19: #{ed_regression_forward.19} parent=0 // pred_check_branch
    %256 = sbr.rel (0) target = $region21
  $region20: #{ed_regression_forward.19} parent=0 // pred_region
    _
  $region21: #{ed_regression_forward.19} parent=0 // pred_fallthru
    _

// kernel: ed_regression_forward.20
$region0: #{ed_regression_forward.20}
  #allocation0 [shape = 'u32[]', space=smem, size = 0x4, offset = 0x4, fixed_abs, tag = 'smem constant byte address 0x4 - core index']
  #allocation1 [shape = 'u32[72,128]{1,0:T(1,128)}', space=vmem, size = 0x9000, scoped, tag = 'internal scratch']
  %s0 = inlined_call_operand.vmem [shape: bf16[32,1152], index: 0, kind: input, shape index: {}]
  %s1 = inlined_call_operand.vmem [shape: bf16[1152,256], index: 1, kind: input, shape index: {}]
  %s2 = inlined_call_operand.vmem [shape: f32[1,256], index: 2, kind: input, shape index: {}]
  %s3 = inlined_call_operand.vmem [shape: bf16[32,256], index: 3, kind: output, shape index: {}]
  %s4 = sld [smem:[#allocation0]]
  $region22: #{ed_regression_forward.20} parent=0
    _
  %s6 = ssub.s32 1, %s4
  %s7 = scalar_select 0, %s6, %s4
  // Predicated region
  $region2: #{ed_regression_forward.20} parent=0 // pred_check
    _
  $region3: #{ed_regression_forward.20} parent=0 // pred_check_branch
    %9 = sbr.rel (0) target = $region5
  $region4: #{ed_regression_forward.20} parent=0 // pred_region
    _
  $region5: #{ed_regression_forward.20} parent=0 // pred_fallthru
    _
  // Predicated region
  $region6: #{ed_regression_forward.20} parent=0 // pred_check
    _
  $region7: #{ed_regression_forward.20} parent=0 // pred_check_branch
    %11 = sbr.rel (0) target = $region9
  $region8: #{ed_regression_forward.20} parent=0 // pred_region
    _
  $region9: #{ed_regression_forward.20} parent=0 // pred_fallthru
    _
  // Predicated region
  $region10: #{ed_regression_forward.20} parent=0 // pred_check
    _
  $region11: #{ed_regression_forward.20} parent=0 // pred_check_branch
    %13 = sbr.rel (0) target = $region13
  $region12: #{ed_regression_forward.20} parent=0 // pred_region
    _
  $region13: #{ed_regression_forward.20} parent=0 // pred_fallthru
    _
  %v14 = vld [vmem:[%s0] sm:$0xff]
  %v15 = vld [vmem:[%s0 + $0x8] sm:$0xff]
  %v16 = vld [vmem:[%s0 + $0x10] sm:$0xff]
  %v17 = vld [vmem:[%s0 + $0x18] sm:$0xff]
  %v18 = vld [vmem:[%s0 + $0x20] sm:$0xf]
  %v19 = vld [vmem:[%s0 + $0x24] sm:$0xff]
  %v20 = vld [vmem:[%s0 + $0x2c] sm:$0xff]
  %v21 = vld [vmem:[%s0 + $0x34] sm:$0xff]
  %v22 = vld [vmem:[%s0 + $0x3c] sm:$0xff]
  %v23 = vld [vmem:[%s0 + $0x44] sm:$0xf]
  %v24 = vld [vmem:[%s0 + $0x48] sm:$0xff]
  %v25 = vld [vmem:[%s0 + $0x50] sm:$0xff]
  %v26 = vld [vmem:[%s0 + $0x58] sm:$0xff]
  %v27 = vld [vmem:[%s0 + $0x60] sm:$0xff]
  %v28 = vld [vmem:[%s0 + $0x68] sm:$0xf]
  %v29 = vld [vmem:[%s0 + $0x6c] sm:$0xff]
  %v30 = vld [vmem:[%s0 + $0x74] sm:$0xff]
  %v31 = vld [vmem:[%s0 + $0x7c] sm:$0xff]
  %v32 = vld [vmem:[%s0 + $0x84] sm:$0xff]
  %v33 = vld [vmem:[%s0 + $0x8c] sm:$0xf]
  %v34 = vld [vmem:[%s1] sm:$0xff]
  %v35 = vld [vmem:[%s1 + $0x8] sm:$0xff]
  %v36 = vld [vmem:[%s1 + $0x10] sm:$0xff]
  %v37 = vld [vmem:[%s1 + $0x18] sm:$0xff]
  %v38 = vld [vmem:[%s1 + $0x20] sm:$0xff]
  %v39 = vld [vmem:[%s1 + $0x28] sm:$0xff]
  %v40 = vld [vmem:[%s1 + $0x30] sm:$0xff]
  %v41 = vld [vmem:[%s1 + $0x38] sm:$0xff]
  %v42 = vld [vmem:[%s1 + $0x40] sm:$0xff]
  %v43 = vld [vmem:[%s1 + $0x48] sm:$0xff]
  %v44 = vld [vmem:[%s1 + $0x50] sm:$0xff]
  %v45 = vld [vmem:[%s1 + $0x58] sm:$0xff]
  %v46 = vld [vmem:[%s1 + $0x60] sm:$0xff]
  %v47 = vld [vmem:[%s1 + $0x68] sm:$0xff]
  %v48 = vld [vmem:[%s1 + $0x70] sm:$0xff]
  %v49 = vld [vmem:[%s1 + $0x78] sm:$0xff]
  %v50 = vld [vmem:[%s1 + $0x80] sm:$0xff]
  %v51 = vld [vmem:[%s1 + $0x88] sm:$0xff]
  %v52 = vld [vmem:[%s1 + $0x90] sm:$0xff]
  %v53 = vld [vmem:[%s1 + $0x98] sm:$0xff]
  %v54 = vld [vmem:[%s1 + $0xa0] sm:$0xff]
  %v55 = vld [vmem:[%s1 + $0xa8] sm:$0xff]
  %v56 = vld [vmem:[%s1 + $0xb0] sm:$0xff]
  %v57 = vld [vmem:[%s1 + $0xb8] sm:$0xff]
  %v58 = vld [vmem:[%s1 + $0xc0] sm:$0xff]
  %v59 = vld [vmem:[%s1 + $0xc8] sm:$0xff]
  %v60 = vld [vmem:[%s1 + $0xd0] sm:$0xff]
  %v61 = vld [vmem:[%s1 + $0xd8] sm:$0xff]
  %v62 = vld [vmem:[%s1 + $0xe0] sm:$0xff]
  %v63 = vld [vmem:[%s1 + $0xe8] sm:$0xff]
  %v64 = vld [vmem:[%s1 + $0xf0] sm:$0xff]
  %v65 = vld [vmem:[%s1 + $0xf8] sm:$0xff]
  %v66 = vld [vmem:[%s1 + $0x100] sm:$0xff]
  %v67 = vld [vmem:[%s1 + $0x108] sm:$0xff]
  %v68 = vld [vmem:[%s1 + $0x110] sm:$0xff]
  %v69 = vld [vmem:[%s1 + $0x118] sm:$0xff]
  %v70 = vld [vmem:[%s1 + $0x120] sm:$0xff]
  %v71 = vld [vmem:[%s1 + $0x128] sm:$0xff]
  %v72 = vld [vmem:[%s1 + $0x130] sm:$0xff]
  %v73 = vld [vmem:[%s1 + $0x138] sm:$0xff]
  %v74 = vld [vmem:[%s1 + $0x140] sm:$0xff]
  %v75 = vld [vmem:[%s1 + $0x148] sm:$0xff]
  %v76 = vld [vmem:[%s1 + $0x150] sm:$0xff]
  %v77 = vld [vmem:[%s1 + $0x158] sm:$0xff]
  %v78 = vld [vmem:[%s1 + $0x160] sm:$0xff]
  %v79 = vld [vmem:[%s1 + $0x168] sm:$0xff]
  %v80 = vld [vmem:[%s1 + $0x170] sm:$0xff]
  %v81 = vld [vmem:[%s1 + $0x178] sm:$0xff]
  %v82 = vld [vmem:[%s1 + $0x180] sm:$0xff]
  %v83 = vld [vmem:[%s1 + $0x188] sm:$0xff]
  %v84 = vld [vmem:[%s1 + $0x190] sm:$0xff]
  %v85 = vld [vmem:[%s1 + $0x198] sm:$0xff]
  %v86 = vld [vmem:[%s1 + $0x1a0] sm:$0xff]
  %v87 = vld [vmem:[%s1 + $0x1a8] sm:$0xff]
  %v88 = vld [vmem:[%s1 + $0x1b0] sm:$0xff]
  %v89 = vld [vmem:[%s1 + $0x1b8] sm:$0xff]
  %v90 = vld [vmem:[%s1 + $0x1c0] sm:$0xff]
  %v91 = vld [vmem:[%s1 + $0x1c8] sm:$0xff]
  %v92 = vld [vmem:[%s1 + $0x1d0] sm:$0xff]
  %v93 = vld [vmem:[%s1 + $0x1d8] sm:$0xff]
  %v94 = vld [vmem:[%s1 + $0x1e0] sm:$0xff]
  %v95 = vld [vmem:[%s1 + $0x1e8] sm:$0xff]
  %v96 = vld [vmem:[%s1 + $0x1f0] sm:$0xff]
  %v97 = vld [vmem:[%s1 + $0x1f8] sm:$0xff]
  %v98 = vld [vmem:[%s1 + $0x200] sm:$0xff]
  %v99 = vld [vmem:[%s1 + $0x208] sm:$0xff]
  %v100 = vld [vmem:[%s1 + $0x210] sm:$0xff]
  %v101 = vld [vmem:[%s1 + $0x218] sm:$0xff]
  %v102 = vld [vmem:[%s1 + $0x220] sm:$0xff]
  %v103 = vld [vmem:[%s1 + $0x228] sm:$0xff]
  %v104 = vld [vmem:[%s1 + $0x230] sm:$0xff]
  %v105 = vld [vmem:[%s1 + $0x238] sm:$0xff]
  %v106 = vld [vmem:[%s1 + $0x240] sm:$0xff]
  %v107 = vld [vmem:[%s1 + $0x248] sm:$0xff]
  %v108 = vld [vmem:[%s1 + $0x250] sm:$0xff]
  %v109 = vld [vmem:[%s1 + $0x258] sm:$0xff]
  %v110 = vld [vmem:[%s1 + $0x260] sm:$0xff]
  %v111 = vld [vmem:[%s1 + $0x268] sm:$0xff]
  %v112 = vld [vmem:[%s1 + $0x270] sm:$0xff]
  %v113 = vld [vmem:[%s1 + $0x278] sm:$0xff]
  %v114 = vld [vmem:[%s1 + $0x280] sm:$0xff]
  %v115 = vld [vmem:[%s1 + $0x288] sm:$0xff]
  %v116 = vld [vmem:[%s1 + $0x290] sm:$0xff]
  %v117 = vld [vmem:[%s1 + $0x298] sm:$0xff]
  %v118 = vld [vmem:[%s1 + $0x2a0] sm:$0xff]
  %v119 = vld [vmem:[%s1 + $0x2a8] sm:$0xff]
  %v120 = vld [vmem:[%s1 + $0x2b0] sm:$0xff]
  %v121 = vld [vmem:[%s1 + $0x2b8] sm:$0xff]
  %v122 = vld [vmem:[%s1 + $0x2c0] sm:$0xff]
  %v123 = vld [vmem:[%s1 + $0x2c8] sm:$0xff]
  %v124 = vld [vmem:[%s1 + $0x2d0] sm:$0xff]
  %v125 = vld [vmem:[%s1 + $0x2d8] sm:$0xff]
  %v126 = vld [vmem:[%s1 + $0x2e0] sm:$0xff]
  %v127 = vld [vmem:[%s1 + $0x2e8] sm:$0xff]
  %v128 = vld [vmem:[%s1 + $0x2f0] sm:$0xff]
  %v129 = vld [vmem:[%s1 + $0x2f8] sm:$0xff]
  %v130 = vld [vmem:[%s1 + $0x300] sm:$0xff]
  %v131 = vld [vmem:[%s1 + $0x308] sm:$0xff]
  %v132 = vld [vmem:[%s1 + $0x310] sm:$0xff]
  %v133 = vld [vmem:[%s1 + $0x318] sm:$0xff]
  %v134 = vld [vmem:[%s1 + $0x320] sm:$0xff]
  %v135 = vld [vmem:[%s1 + $0x328] sm:$0xff]
  %v136 = vld [vmem:[%s1 + $0x330] sm:$0xff]
  %v137 = vld [vmem:[%s1 + $0x338] sm:$0xff]
  %v138 = vld [vmem:[%s1 + $0x340] sm:$0xff]
  %v139 = vld [vmem:[%s1 + $0x348] sm:$0xff]
  %v140 = vld [vmem:[%s1 + $0x350] sm:$0xff]
  %v141 = vld [vmem:[%s1 + $0x358] sm:$0xff]
  %v142 = vld [vmem:[%s1 + $0x360] sm:$0xff]
  %v143 = vld [vmem:[%s1 + $0x368] sm:$0xff]
  %v144 = vld [vmem:[%s1 + $0x370] sm:$0xff]
  %v145 = vld [vmem:[%s1 + $0x378] sm:$0xff]
  %v146 = vld [vmem:[%s1 + $0x380] sm:$0xff]
  %v147 = vld [vmem:[%s1 + $0x388] sm:$0xff]
  %v148 = vld [vmem:[%s1 + $0x390] sm:$0xff]
  %v149 = vld [vmem:[%s1 + $0x398] sm:$0xff]
  %v150 = vld [vmem:[%s1 + $0x3a0] sm:$0xff]
  %v151 = vld [vmem:[%s1 + $0x3a8] sm:$0xff]
  %v152 = vld [vmem:[%s1 + $0x3b0] sm:$0xff]
  %v153 = vld [vmem:[%s1 + $0x3b8] sm:$0xff]
  %v154 = vld [vmem:[%s1 + $0x3c0] sm:$0xff]
  %v155 = vld [vmem:[%s1 + $0x3c8] sm:$0xff]
  %v156 = vld [vmem:[%s1 + $0x3d0] sm:$0xff]
  %v157 = vld [vmem:[%s1 + $0x3d8] sm:$0xff]
  %v158 = vld [vmem:[%s1 + $0x3e0] sm:$0xff]
  %v159 = vld [vmem:[%s1 + $0x3e8] sm:$0xff]
  %v160 = vld [vmem:[%s1 + $0x3f0] sm:$0xff]
  %v161 = vld [vmem:[%s1 + $0x3f8] sm:$0xff]
  %v162 = vld [vmem:[%s1 + $0x400] sm:$0xff]
  %v163 = vld [vmem:[%s1 + $0x408] sm:$0xff]
  %v164 = vld [vmem:[%s1 + $0x410] sm:$0xff]
  %v165 = vld [vmem:[%s1 + $0x418] sm:$0xff]
  %v166 = vld [vmem:[%s1 + $0x420] sm:$0xff]
  %v167 = vld [vmem:[%s1 + $0x428] sm:$0xff]
  %v168 = vld [vmem:[%s1 + $0x430] sm:$0xff]
  %v169 = vld [vmem:[%s1 + $0x438] sm:$0xff]
  %v170 = vld [vmem:[%s1 + $0x440] sm:$0xff]
  %v171 = vld [vmem:[%s1 + $0x448] sm:$0xff]
  %v172 = vld [vmem:[%s1 + $0x450] sm:$0xff]
  %v173 = vld [vmem:[%s1 + $0x458] sm:$0xff]
  %v174 = vld [vmem:[%s1 + $0x460] sm:$0xff]
  %v175 = vld [vmem:[%s1 + $0x468] sm:$0xff]
  %v176 = vld [vmem:[%s1 + $0x470] sm:$0xff]
  %v177 = vld [vmem:[%s1 + $0x478] sm:$0xff]
  %v178 = vld [vmem:[%s2] sm:$0x3]
  %v180 = vperm.slane %v178, 0
  %v181 = vperm.slane %v178, 1
  %v204 = vunpack.c.l.b16 %v14
  %v205 = vunpack.c.h.b16 %v14
  %v206 = vunpack.c.l.b16 %v15
  %v207 = vunpack.c.h.b16 %v15
  %v208 = vunpack.c.l.b16 %v16
  %v209 = vunpack.c.h.b16 %v16
  %v210 = vunpack.c.l.b16 %v17
  %v211 = vunpack.c.h.b16 %v17
  %v212 = vunpack.c.l.b16 %v18
  %v213 = vunpack.c.l.b16 %v19
  %v214 = vunpack.c.h.b16 %v19
  %v215 = vunpack.c.l.b16 %v20
  %v216 = vunpack.c.h.b16 %v20
  %v217 = vunpack.c.l.b16 %v21
  %v218 = vunpack.c.h.b16 %v21
  %v219 = vunpack.c.l.b16 %v22
  %v220 = vunpack.c.h.b16 %v22
  %v221 = vunpack.c.l.b16 %v23
  %v222 = vunpack.c.l.b16 %v24
  %v223 = vunpack.c.h.b16 %v24
  %v224 = vunpack.c.l.b16 %v25
  %v225 = vunpack.c.h.b16 %v25
  %v226 = vunpack.c.l.b16 %v26
  %v227 = vunpack.c.h.b16 %v26
  %v228 = vunpack.c.l.b16 %v27
  %v229 = vunpack.c.h.b16 %v27
  %v230 = vunpack.c.l.b16 %v28
  %v231 = vunpack.c.l.b16 %v29
  %v232 = vunpack.c.h.b16 %v29
  %v233 = vunpack.c.l.b16 %v30
  %v234 = vunpack.c.h.b16 %v30
  %v235 = vunpack.c.l.b16 %v31
  %v236 = vunpack.c.h.b16 %v31
  %v237 = vunpack.c.l.b16 %v32
  %v238 = vunpack.c.h.b16 %v32
  %v239 = vunpack.c.l.b16 %v33
  %v240 = vpack.c.b16 %v213, %v204
  %v241 = vpack.c.b16 %v214, %v205
  %v242 = vpack.c.b16 %v215, %v206
  %v243 = vpack.c.b16 %v216, %v207
  %v244 = vpack.c.b16 %v217, %v208
  %v245 = vpack.c.b16 %v218, %v209
  %v246 = vpack.c.b16 %v219, %v210
  %v247 = vpack.c.b16 %v220, %v211
  %v248 = vpack.c.b16 %v221, %v212
  %v249 = vpack.c.b16 %v231, %v222
  %v250 = vpack.c.b16 %v232, %v223
  %v251 = vpack.c.b16 %v233, %v224
  %v252 = vpack.c.b16 %v234, %v225
  %v253 = vpack.c.b16 %v235, %v226
  %v254 = vpack.c.b16 %v236, %v227
  %v255 = vpack.c.b16 %v237, %v228
  %v256 = vpack.c.b16 %v238, %v229
  %v257 = vpack.c.b16 %v239, %v230
  %v420 = vunpack.c.l.b16 %v34
  %v421 = vunpack.c.h.b16 %v34
  %v422 = vunpack.c.l.b16 %v35
  %v423 = vunpack.c.h.b16 %v35
  %v424 = vunpack.c.l.b16 %v36
  %v425 = vunpack.c.h.b16 %v36
  %v426 = vunpack.c.l.b16 %v37
  %v427 = vunpack.c.h.b16 %v37
  %v428 = vunpack.c.l.b16 %v38
  %v429 = vunpack.c.h.b16 %v38
  %v430 = vunpack.c.l.b16 %v39
  %v431 = vunpack.c.h.b16 %v39
  %v432 = vunpack.c.l.b16 %v40
  %v433 = vunpack.c.h.b16 %v40
  %v434 = vunpack.c.l.b16 %v41
  %v435 = vunpack.c.h.b16 %v41
  %v436 = vunpack.c.l.b16 %v42
  %v437 = vunpack.c.h.b16 %v42
  %v438 = vunpack.c.l.b16 %v43
  %v439 = vunpack.c.h.b16 %v43
  %v440 = vunpack.c.l.b16 %v44
  %v441 = vunpack.c.h.b16 %v44
  %v442 = vunpack.c.l.b16 %v45
  %v443 = vunpack.c.h.b16 %v45
  %v444 = vunpack.c.l.b16 %v46
  %v445 = vunpack.c.h.b16 %v46
  %v446 = vunpack.c.l.b16 %v47
  %v447 = vunpack.c.h.b16 %v47
  %v448 = vunpack.c.l.b16 %v48
  %v449 = vunpack.c.h.b16 %v48
  %v450 = vunpack.c.l.b16 %v49
  %v451 = vunpack.c.h.b16 %v49
  %v452 = vunpack.c.l.b16 %v50
  %v453 = vunpack.c.h.b16 %v50
  %v454 = vunpack.c.l.b16 %v51
  %v455 = vunpack.c.h.b16 %v51
  %v456 = vunpack.c.l.b16 %v52
  %v457 = vunpack.c.h.b16 %v52
  %v458 = vunpack.c.l.b16 %v53
  %v459 = vunpack.c.h.b16 %v53
  %v460 = vunpack.c.l.b16 %v54
  %v461 = vunpack.c.h.b16 %v54
  %v462 = vunpack.c.l.b16 %v55
  %v463 = vunpack.c.h.b16 %v55
  %v464 = vunpack.c.l.b16 %v56
  %v465 = vunpack.c.h.b16 %v56
  %v466 = vunpack.c.l.b16 %v57
  %v467 = vunpack.c.h.b16 %v57
  %v468 = vunpack.c.l.b16 %v58
  %v469 = vunpack.c.h.b16 %v58
  %v470 = vunpack.c.l.b16 %v59
  %v471 = vunpack.c.h.b16 %v59
  %v472 = vunpack.c.l.b16 %v60
  %v473 = vunpack.c.h.b16 %v60
  %v474 = vunpack.c.l.b16 %v61
  %v475 = vunpack.c.h.b16 %v61
  %v476 = vunpack.c.l.b16 %v62
  %v477 = vunpack.c.h.b16 %v62
  %v478 = vunpack.c.l.b16 %v63
  %v479 = vunpack.c.h.b16 %v63
  %v480 = vunpack.c.l.b16 %v64
  %v481 = vunpack.c.h.b16 %v64
  %v482 = vunpack.c.l.b16 %v65
  %v483 = vunpack.c.h.b16 %v65
  %v484 = vunpack.c.l.b16 %v66
  %v485 = vunpack.c.h.b16 %v66
  %v486 = vunpack.c.l.b16 %v67
  %v487 = vunpack.c.h.b16 %v67
  %v488 = vunpack.c.l.b16 %v68
  %v489 = vunpack.c.h.b16 %v68
  %v490 = vunpack.c.l.b16 %v69
  %v491 = vunpack.c.h.b16 %v69
  %v492 = vunpack.c.l.b16 %v70
  %v493 = vunpack.c.h.b16 %v70
  %v494 = vunpack.c.l.b16 %v71
  %v495 = vunpack.c.h.b16 %v71
  %v496 = vunpack.c.l.b16 %v72
  %v497 = vunpack.c.h.b16 %v72
  %v498 = vunpack.c.l.b16 %v73
  %v499 = vunpack.c.h.b16 %v73
  %v500 = vunpack.c.l.b16 %v74
  %v501 = vunpack.c.h.b16 %v74
  %v502 = vunpack.c.l.b16 %v75
  %v503 = vunpack.c.h.b16 %v75
  %v504 = vunpack.c.l.b16 %v76
  %v505 = vunpack.c.h.b16 %v76
  %v506 = vunpack.c.l.b16 %v77
  %v507 = vunpack.c.h.b16 %v77
  %v508 = vunpack.c.l.b16 %v78
  %v509 = vunpack.c.h.b16 %v78
  %v510 = vunpack.c.l.b16 %v79
  %v511 = vunpack.c.h.b16 %v79
  %v512 = vunpack.c.l.b16 %v80
  %v513 = vunpack.c.h.b16 %v80
  %v514 = vunpack.c.l.b16 %v81
  %v515 = vunpack.c.h.b16 %v81
  %v516 = vunpack.c.l.b16 %v82
  %v517 = vunpack.c.h.b16 %v82
  %v518 = vunpack.c.l.b16 %v83
  %v519 = vunpack.c.h.b16 %v83
  %v520 = vunpack.c.l.b16 %v84
  %v521 = vunpack.c.h.b16 %v84
  %v522 = vunpack.c.l.b16 %v85
  %v523 = vunpack.c.h.b16 %v85
  %v524 = vunpack.c.l.b16 %v86
  %v525 = vunpack.c.h.b16 %v86
  %v526 = vunpack.c.l.b16 %v87
  %v527 = vunpack.c.h.b16 %v87
  %v528 = vunpack.c.l.b16 %v88
  %v529 = vunpack.c.h.b16 %v88
  %v530 = vunpack.c.l.b16 %v89
  %v531 = vunpack.c.h.b16 %v89
  %v532 = vunpack.c.l.b16 %v90
  %v533 = vunpack.c.h.b16 %v90
  %v534 = vunpack.c.l.b16 %v91
  %v535 = vunpack.c.h.b16 %v91
  %v536 = vunpack.c.l.b16 %v92
  %v537 = vunpack.c.h.b16 %v92
  %v538 = vunpack.c.l.b16 %v93
  %v539 = vunpack.c.h.b16 %v93
  %v540 = vunpack.c.l.b16 %v94
  %v541 = vunpack.c.h.b16 %v94
  %v542 = vunpack.c.l.b16 %v95
  %v543 = vunpack.c.h.b16 %v95
  %v544 = vunpack.c.l.b16 %v96
  %v545 = vunpack.c.h.b16 %v96
  %v546 = vunpack.c.l.b16 %v97
  %v547 = vunpack.c.h.b16 %v97
  %v548 = vunpack.c.l.b16 %v98
  %v549 = vunpack.c.h.b16 %v98
  %v550 = vunpack.c.l.b16 %v99
  %v551 = vunpack.c.h.b16 %v99
  %v552 = vunpack.c.l.b16 %v100
  %v553 = vunpack.c.h.b16 %v100
  %v554 = vunpack.c.l.b16 %v101
  %v555 = vunpack.c.h.b16 %v101
  %v556 = vunpack.c.l.b16 %v102
  %v557 = vunpack.c.h.b16 %v102
  %v558 = vunpack.c.l.b16 %v103
  %v559 = vunpack.c.h.b16 %v103
  %v560 = vunpack.c.l.b16 %v104
  %v561 = vunpack.c.h.b16 %v104
  %v562 = vunpack.c.l.b16 %v105
  %v563 = vunpack.c.h.b16 %v105
  %v564 = vunpack.c.l.b16 %v106
  %v565 = vunpack.c.h.b16 %v106
  %v566 = vunpack.c.l.b16 %v107
  %v567 = vunpack.c.h.b16 %v107
  %v568 = vunpack.c.l.b16 %v108
  %v569 = vunpack.c.h.b16 %v108
  %v570 = vunpack.c.l.b16 %v109
  %v571 = vunpack.c.h.b16 %v109
  %v572 = vunpack.c.l.b16 %v110
  %v573 = vunpack.c.h.b16 %v110
  %v574 = vunpack.c.l.b16 %v111
  %v575 = vunpack.c.h.b16 %v111
  %v576 = vunpack.c.l.b16 %v112
  %v577 = vunpack.c.h.b16 %v112
  %v578 = vunpack.c.l.b16 %v113
  %v579 = vunpack.c.h.b16 %v113
  %v580 = vunpack.c.l.b16 %v114
  %v581 = vunpack.c.h.b16 %v114
  %v582 = vunpack.c.l.b16 %v115
  %v583 = vunpack.c.h.b16 %v115
  %v584 = vunpack.c.l.b16 %v116
  %v585 = vunpack.c.h.b16 %v116
  %v586 = vunpack.c.l.b16 %v117
  %v587 = vunpack.c.h.b16 %v117
  %v588 = vunpack.c.l.b16 %v118
  %v589 = vunpack.c.h.b16 %v118
  %v590 = vunpack.c.l.b16 %v119
  %v591 = vunpack.c.h.b16 %v119
  %v592 = vunpack.c.l.b16 %v120
  %v593 = vunpack.c.h.b16 %v120
  %v594 = vunpack.c.l.b16 %v121
  %v595 = vunpack.c.h.b16 %v121
  %v596 = vunpack.c.l.b16 %v122
  %v597 = vunpack.c.h.b16 %v122
  %v598 = vunpack.c.l.b16 %v123
  %v599 = vunpack.c.h.b16 %v123
  %v600 = vunpack.c.l.b16 %v124
  %v601 = vunpack.c.h.b16 %v124
  %v602 = vunpack.c.l.b16 %v125
  %v603 = vunpack.c.h.b16 %v125
  %v604 = vunpack.c.l.b16 %v126
  %v605 = vunpack.c.h.b16 %v126
  %v606 = vunpack.c.l.b16 %v127
  %v607 = vunpack.c.h.b16 %v127
  %v608 = vunpack.c.l.b16 %v128
  %v609 = vunpack.c.h.b16 %v128
  %v610 = vunpack.c.l.b16 %v129
  %v611 = vunpack.c.h.b16 %v129
  %v612 = vunpack.c.l.b16 %v130
  %v613 = vunpack.c.h.b16 %v130
  %v614 = vunpack.c.l.b16 %v131
  %v615 = vunpack.c.h.b16 %v131
  %v616 = vunpack.c.l.b16 %v132
  %v617 = vunpack.c.h.b16 %v132
  %v618 = vunpack.c.l.b16 %v133
  %v619 = vunpack.c.h.b16 %v133
  %v620 = vunpack.c.l.b16 %v134
  %v621 = vunpack.c.h.b16 %v134
  %v622 = vunpack.c.l.b16 %v135
  %v623 = vunpack.c.h.b16 %v135
  %v624 = vunpack.c.l.b16 %v136
  %v625 = vunpack.c.h.b16 %v136
  %v626 = vunpack.c.l.b16 %v137
  %v627 = vunpack.c.h.b16 %v137
  %v628 = vunpack.c.l.b16 %v138
  %v629 = vunpack.c.h.b16 %v138
  %v630 = vunpack.c.l.b16 %v139
  %v631 = vunpack.c.h.b16 %v139
  %v632 = vunpack.c.l.b16 %v140
  %v633 = vunpack.c.h.b16 %v140
  %v634 = vunpack.c.l.b16 %v141
  %v635 = vunpack.c.h.b16 %v141
  %v636 = vunpack.c.l.b16 %v142
  %v637 = vunpack.c.h.b16 %v142
  %v638 = vunpack.c.l.b16 %v143
  %v639 = vunpack.c.h.b16 %v143
  %v640 = vunpack.c.l.b16 %v144
  %v641 = vunpack.c.h.b16 %v144
  %v642 = vunpack.c.l.b16 %v145
  %v643 = vunpack.c.h.b16 %v145
  %v644 = vunpack.c.l.b16 %v146
  %v645 = vunpack.c.h.b16 %v146
  %v646 = vunpack.c.l.b16 %v147
  %v647 = vunpack.c.h.b16 %v147
  %v648 = vunpack.c.l.b16 %v148
  %v649 = vunpack.c.h.b16 %v148
  %v650 = vunpack.c.l.b16 %v149
  %v651 = vunpack.c.h.b16 %v149
  %v652 = vunpack.c.l.b16 %v150
  %v653 = vunpack.c.h.b16 %v150
  %v654 = vunpack.c.l.b16 %v151
  %v655 = vunpack.c.h.b16 %v151
  %v656 = vunpack.c.l.b16 %v152
  %v657 = vunpack.c.h.b16 %v152
  %v658 = vunpack.c.l.b16 %v153
  %v659 = vunpack.c.h.b16 %v153
  %v660 = vunpack.c.l.b16 %v154
  %v661 = vunpack.c.h.b16 %v154
  %v662 = vunpack.c.l.b16 %v155
  %v663 = vunpack.c.h.b16 %v155
  %v664 = vunpack.c.l.b16 %v156
  %v665 = vunpack.c.h.b16 %v156
  %v666 = vunpack.c.l.b16 %v157
  %v667 = vunpack.c.h.b16 %v157
  %v668 = vunpack.c.l.b16 %v158
  %v669 = vunpack.c.h.b16 %v158
  %v670 = vunpack.c.l.b16 %v159
  %v671 = vunpack.c.h.b16 %v159
  %v672 = vunpack.c.l.b16 %v160
  %v673 = vunpack.c.h.b16 %v160
  %v674 = vunpack.c.l.b16 %v161
  %v675 = vunpack.c.h.b16 %v161
  %v676 = vunpack.c.l.b16 %v162
  %v677 = vunpack.c.h.b16 %v162
  %v678 = vunpack.c.l.b16 %v163
  %v679 = vunpack.c.h.b16 %v163
  %v680 = vunpack.c.l.b16 %v164
  %v681 = vunpack.c.h.b16 %v164
  %v682 = vunpack.c.l.b16 %v165
  %v683 = vunpack.c.h.b16 %v165
  %v684 = vunpack.c.l.b16 %v166
  %v685 = vunpack.c.h.b16 %v166
  %v686 = vunpack.c.l.b16 %v167
  %v687 = vunpack.c.h.b16 %v167
  %v688 = vunpack.c.l.b16 %v168
  %v689 = vunpack.c.h.b16 %v168
  %v690 = vunpack.c.l.b16 %v169
  %v691 = vunpack.c.h.b16 %v169
  %v692 = vunpack.c.l.b16 %v170
  %v693 = vunpack.c.h.b16 %v170
  %v694 = vunpack.c.l.b16 %v171
  %v695 = vunpack.c.h.b16 %v171
  %v696 = vunpack.c.l.b16 %v172
  %v697 = vunpack.c.h.b16 %v172
  %v698 = vunpack.c.l.b16 %v173
  %v699 = vunpack.c.h.b16 %v173
  %v700 = vunpack.c.l.b16 %v174
  %v701 = vunpack.c.h.b16 %v174
  %v702 = vunpack.c.l.b16 %v175
  %v703 = vunpack.c.h.b16 %v175
  %v704 = vunpack.c.l.b16 %v176
  %v705 = vunpack.c.h.b16 %v176
  %v706 = vunpack.c.l.b16 %v177
  %v707 = vunpack.c.h.b16 %v177
  %v708 = vpack.c.b16 %v422, %v420
  %v709 = vpack.c.b16 %v423, %v421
  %v710 = vpack.c.b16 %v426, %v424
  %v711 = vpack.c.b16 %v427, %v425
  %v712 = vpack.c.b16 %v430, %v428
  %v713 = vpack.c.b16 %v431, %v429
  %v714 = vpack.c.b16 %v434, %v432
  %v715 = vpack.c.b16 %v435, %v433
  %v716 = vpack.c.b16 %v438, %v436
  %v717 = vpack.c.b16 %v439, %v437
  %v718 = vpack.c.b16 %v442, %v440
  %v719 = vpack.c.b16 %v443, %v441
  %v720 = vpack.c.b16 %v446, %v444
  %v721 = vpack.c.b16 %v447, %v445
  %v722 = vpack.c.b16 %v450, %v448
  %v723 = vpack.c.b16 %v451, %v449
  %v724 = vpack.c.b16 %v454, %v452
  %v725 = vpack.c.b16 %v455, %v453
  %v726 = vpack.c.b16 %v458, %v456
  %v727 = vpack.c.b16 %v459, %v457
  %v728 = vpack.c.b16 %v462, %v460
  %v729 = vpack.c.b16 %v463, %v461
  %v730 = vpack.c.b16 %v466, %v464
  %v731 = vpack.c.b16 %v467, %v465
  %v732 = vpack.c.b16 %v470, %v468
  %v733 = vpack.c.b16 %v471, %v469
  %v734 = vpack.c.b16 %v474, %v472
  %v735 = vpack.c.b16 %v475, %v473
  %v736 = vpack.c.b16 %v478, %v476
  %v737 = vpack.c.b16 %v479, %v477
  %v738 = vpack.c.b16 %v482, %v480
  %v739 = vpack.c.b16 %v483, %v481
  %v740 = vpack.c.b16 %v486, %v484
  %v741 = vpack.c.b16 %v487, %v485
  %v742 = vpack.c.b16 %v490, %v488
  %v743 = vpack.c.b16 %v491, %v489
  %v744 = vpack.c.b16 %v494, %v492
  %v745 = vpack.c.b16 %v495, %v493
  %v746 = vpack.c.b16 %v498, %v496
  %v747 = vpack.c.b16 %v499, %v497
  %v748 = vpack.c.b16 %v502, %v500
  %v749 = vpack.c.b16 %v503, %v501
  %v750 = vpack.c.b16 %v506, %v504
  %v751 = vpack.c.b16 %v507, %v505
  %v752 = vpack.c.b16 %v510, %v508
  %v753 = vpack.c.b16 %v511, %v509
  %v754 = vpack.c.b16 %v514, %v512
  %v755 = vpack.c.b16 %v515, %v513
  %v756 = vpack.c.b16 %v518, %v516
  %v757 = vpack.c.b16 %v519, %v517
  %v758 = vpack.c.b16 %v522, %v520
  %v759 = vpack.c.b16 %v523, %v521
  %v760 = vpack.c.b16 %v526, %v524
  %v761 = vpack.c.b16 %v527, %v525
  %v762 = vpack.c.b16 %v530, %v528
  %v763 = vpack.c.b16 %v531, %v529
  %v764 = vpack.c.b16 %v534, %v532
  %v765 = vpack.c.b16 %v535, %v533
  %v766 = vpack.c.b16 %v538, %v536
  %v767 = vpack.c.b16 %v539, %v537
  %v768 = vpack.c.b16 %v542, %v540
  %v769 = vpack.c.b16 %v543, %v541
  %v770 = vpack.c.b16 %v546, %v544
  %v771 = vpack.c.b16 %v547, %v545
  %v772 = vpack.c.b16 %v550, %v548
  %v773 = vpack.c.b16 %v551, %v549
  %v774 = vpack.c.b16 %v554, %v552
  %v775 = vpack.c.b16 %v555, %v553
  %v776 = vpack.c.b16 %v558, %v556
  %v777 = vpack.c.b16 %v559, %v557
  %v778 = vpack.c.b16 %v562, %v560
  %v779 = vpack.c.b16 %v563, %v561
  %v780 = vpack.c.b16 %v566, %v564
  %v781 = vpack.c.b16 %v567, %v565
  %v782 = vpack.c.b16 %v570, %v568
  %v783 = vpack.c.b16 %v571, %v569
  %v784 = vpack.c.b16 %v574, %v572
  %v785 = vpack.c.b16 %v575, %v573
  %v786 = vpack.c.b16 %v578, %v576
  %v787 = vpack.c.b16 %v579, %v577
  %v788 = vpack.c.b16 %v582, %v580
  %v789 = vpack.c.b16 %v583, %v581
  %v790 = vpack.c.b16 %v586, %v584
  %v791 = vpack.c.b16 %v587, %v585
  %v792 = vpack.c.b16 %v590, %v588
  %v793 = vpack.c.b16 %v591, %v589
  %v794 = vpack.c.b16 %v594, %v592
  %v795 = vpack.c.b16 %v595, %v593
  %v796 = vpack.c.b16 %v598, %v596
  %v797 = vpack.c.b16 %v599, %v597
  %v798 = vpack.c.b16 %v602, %v600
  %v799 = vpack.c.b16 %v603, %v601
  %v800 = vpack.c.b16 %v606, %v604
  %v801 = vpack.c.b16 %v607, %v605
  %v802 = vpack.c.b16 %v610, %v608
  %v803 = vpack.c.b16 %v611, %v609
  %v804 = vpack.c.b16 %v614, %v612
  %v805 = vpack.c.b16 %v615, %v613
  %v806 = vpack.c.b16 %v618, %v616
  %v807 = vpack.c.b16 %v619, %v617
  %v808 = vpack.c.b16 %v622, %v620
  %v809 = vpack.c.b16 %v623, %v621
  %v810 = vpack.c.b16 %v626, %v624
  %v811 = vpack.c.b16 %v627, %v625
  %v812 = vpack.c.b16 %v630, %v628
  %v813 = vpack.c.b16 %v631, %v629
  %v814 = vpack.c.b16 %v634, %v632
  %v815 = vpack.c.b16 %v635, %v633
  %v816 = vpack.c.b16 %v638, %v636
  %v817 = vpack.c.b16 %v639, %v637
  %v818 = vpack.c.b16 %v642, %v640
  %v819 = vpack.c.b16 %v643, %v641
  %v820 = vpack.c.b16 %v646, %v644
  %v821 = vpack.c.b16 %v647, %v645
  %v822 = vpack.c.b16 %v650, %v648
  %v823 = vpack.c.b16 %v651, %v649
  %v824 = vpack.c.b16 %v654, %v652
  %v825 = vpack.c.b16 %v655, %v653
  %v826 = vpack.c.b16 %v658, %v656
  %v827 = vpack.c.b16 %v659, %v657
  %v828 = vpack.c.b16 %v662, %v660
  %v829 = vpack.c.b16 %v663, %v661
  %v830 = vpack.c.b16 %v666, %v664
  %v831 = vpack.c.b16 %v667, %v665
  %v832 = vpack.c.b16 %v670, %v668
  %v833 = vpack.c.b16 %v671, %v669
  %v834 = vpack.c.b16 %v674, %v672
  %v835 = vpack.c.b16 %v675, %v673
  %v836 = vpack.c.b16 %v678, %v676
  %v837 = vpack.c.b16 %v679, %v677
  %v838 = vpack.c.b16 %v682, %v680
  %v839 = vpack.c.b16 %v683, %v681
  %v840 = vpack.c.b16 %v686, %v684
  %v841 = vpack.c.b16 %v687, %v685
  %v842 = vpack.c.b16 %v690, %v688
  %v843 = vpack.c.b16 %v691, %v689
  %v844 = vpack.c.b16 %v694, %v692
  %v845 = vpack.c.b16 %v695, %v693
  %v846 = vpack.c.b16 %v698, %v696
  %v847 = vpack.c.b16 %v699, %v697
  %v848 = vpack.c.b16 %v702, %v700
  %v849 = vpack.c.b16 %v703, %v701
  %v850 = vpack.c.b16 %v706, %v704
  %v851 = vpack.c.b16 %v707, %v705
  %996 = vmatpush.bf16.msra.mxu0 %v722
  %997 = vmatpush.bf16.msra.mxu0 %v720
  %998 = vmatpush.bf16.msra.mxu0 %v718
  %999 = vmatpush.bf16.msra.mxu0 %v716
  %1000 = vmatpush.bf16.msra.mxu0 %v714
  %1001 = vmatpush.bf16.msra.mxu0 %v712
  %1002 = vmatpush.bf16.msra.mxu0 %v710
  %1003 = vmatpush.bf16.msra.mxu0 %v708
  %1004 = vmatmul.bf16.gmra.mxu0 %v240
  %v1005 = vpop.f32.mrf.mxu0
  %v1006 = vadd.f32 %v180, %v1005
  %v1007 = vpop.f32.mrf.mxu0
  %v1008 = vadd.f32 %v180, %v1007
  %1009 = vmatmul.bf16.gmra.mxu0 %v249
  %v1010 = vpop.f32.mrf.mxu0
  %v1011 = vadd.f32 %v180, %v1010
  %v1012 = vpop.f32.mrf.mxu0
  %v1013 = vadd.f32 %v180, %v1012
  %1014 = vdwg.mxu0
  %1015 = vmatpush.bf16.msra.mxu0 %v738
  %1016 = vmatpush.bf16.msra.mxu0 %v736
  %1017 = vmatpush.bf16.msra.mxu0 %v734
  %1018 = vmatpush.bf16.msra.mxu0 %v732
  %1019 = vmatpush.bf16.msra.mxu0 %v730
  %1020 = vmatpush.bf16.msra.mxu0 %v728
  %1021 = vmatpush.bf16.msra.mxu0 %v726
  %1022 = vmatpush.bf16.msra.mxu0 %v724
  %1023 = vmatmul.bf16.gmra.mxu0 %v241
  %v1024 = vpop.f32.mrf.mxu0
  %v1025 = vadd.f32 %v1006, %v1024
  %v1026 = vpop.f32.mrf.mxu0
  %v1027 = vadd.f32 %v1008, %v1026
  %1028 = vmatmul.bf16.gmra.mxu0 %v250
  %v1029 = vpop.f32.mrf.mxu0
  %v1030 = vadd.f32 %v1011, %v1029
  %v1031 = vpop.f32.mrf.mxu0
  %v1032 = vadd.f32 %v1013, %v1031
  %1033 = vdwg.mxu0
  %1034 = vmatpush.bf16.msra.mxu0 %v754
  %1035 = vmatpush.bf16.msra.mxu0 %v752
  %1036 = vmatpush.bf16.msra.mxu0 %v750
  %1037 = vmatpush.bf16.msra.mxu0 %v748
  %1038 = vmatpush.bf16.msra.mxu0 %v746
  %1039 = vmatpush.bf16.msra.mxu0 %v744
  %1040 = vmatpush.bf16.msra.mxu0 %v742
  %1041 = vmatpush.bf16.msra.mxu0 %v740
  %1042 = vmatmul.bf16.gmra.mxu0 %v242
  %v1043 = vpop.f32.mrf.mxu0
  %v1044 = vadd.f32 %v1025, %v1043
  %v1045 = vpop.f32.mrf.mxu0
  %v1046 = vadd.f32 %v1027, %v1045
  %1047 = vmatmul.bf16.gmra.mxu0 %v251
  %v1048 = vpop.f32.mrf.mxu0
  %v1049 = vadd.f32 %v1030, %v1048
  %v1050 = vpop.f32.mrf.mxu0
  %v1051 = vadd.f32 %v1032, %v1050
  %1052 = vdwg.mxu0
  %1053 = vmatpush.bf16.msra.mxu0 %v770
  %1054 = vmatpush.bf16.msra.mxu0 %v768
  %1055 = vmatpush.bf16.msra.mxu0 %v766
  %1056 = vmatpush.bf16.msra.mxu0 %v764
  %1057 = vmatpush.bf16.msra.mxu0 %v762
  %1058 = vmatpush.bf16.msra.mxu0 %v760
  %1059 = vmatpush.bf16.msra.mxu0 %v758
  %1060 = vmatpush.bf16.msra.mxu0 %v756
  %1061 = vmatmul.bf16.gmra.mxu0 %v243
  %v1062 = vpop.f32.mrf.mxu0
  %v1063 = vadd.f32 %v1044, %v1062
  %v1064 = vpop.f32.mrf.mxu0
  %v1065 = vadd.f32 %v1046, %v1064
  %1066 = vmatmul.bf16.gmra.mxu0 %v252
  %v1067 = vpop.f32.mrf.mxu0
  %v1068 = vadd.f32 %v1049, %v1067
  %v1069 = vpop.f32.mrf.mxu0
  %v1070 = vadd.f32 %v1051, %v1069
  %1071 = vdwg.mxu0
  %1072 = vmatpush.bf16.msra.mxu0 %v786
  %1073 = vmatpush.bf16.msra.mxu0 %v784
  %1074 = vmatpush.bf16.msra.mxu0 %v782
  %1075 = vmatpush.bf16.msra.mxu0 %v780
  %1076 = vmatpush.bf16.msra.mxu0 %v778
  %1077 = vmatpush.bf16.msra.mxu0 %v776
  %1078 = vmatpush.bf16.msra.mxu0 %v774
  %1079 = vmatpush.bf16.msra.mxu0 %v772
  %1080 = vmatmul.bf16.gmra.mxu0 %v244
  %v1081 = vpop.f32.mrf.mxu0
  %v1082 = vadd.f32 %v1063, %v1081
  %v1083 = vpop.f32.mrf.mxu0
  %v1084 = vadd.f32 %v1065, %v1083
  %1085 = vmatmul.bf16.gmra.mxu0 %v253
  %v1086 = vpop.f32.mrf.mxu0
  %v1087 = vadd.f32 %v1068, %v1086
  %v1088 = vpop.f32.mrf.mxu0
  %v1089 = vadd.f32 %v1070, %v1088
  %1090 = vdwg.mxu0
  %1091 = vmatpush.bf16.msra.mxu0 %v802
  %1092 = vmatpush.bf16.msra.mxu0 %v800
  %1093 = vmatpush.bf16.msra.mxu0 %v798
  %1094 = vmatpush.bf16.msra.mxu0 %v796
  %1095 = vmatpush.bf16.msra.mxu0 %v794
  %1096 = vmatpush.bf16.msra.mxu0 %v792
  %1097 = vmatpush.bf16.msra.mxu0 %v790
  %1098 = vmatpush.bf16.msra.mxu0 %v788
  %1099 = vmatmul.bf16.gmra.mxu0 %v245
  %v1100 = vpop.f32.mrf.mxu0
  %v1101 = vadd.f32 %v1082, %v1100
  %v1102 = vpop.f32.mrf.mxu0
  %v1103 = vadd.f32 %v1084, %v1102
  %1104 = vmatmul.bf16.gmra.mxu0 %v254
  %v1105 = vpop.f32.mrf.mxu0
  %v1106 = vadd.f32 %v1087, %v1105
  %v1107 = vpop.f32.mrf.mxu0
  %v1108 = vadd.f32 %v1089, %v1107
  %1109 = vdwg.mxu0
  %1110 = vmatpush.bf16.msra.mxu0 %v818
  %1111 = vmatpush.bf16.msra.mxu0 %v816
  %1112 = vmatpush.bf16.msra.mxu0 %v814
  %1113 = vmatpush.bf16.msra.mxu0 %v812
  %1114 = vmatpush.bf16.msra.mxu0 %v810
  %1115 = vmatpush.bf16.msra.mxu0 %v808
  %1116 = vmatpush.bf16.msra.mxu0 %v806
  %1117 = vmatpush.bf16.msra.mxu0 %v804
  %1118 = vmatmul.bf16.gmra.mxu0 %v246
  %v1119 = vpop.f32.mrf.mxu0
  %v1120 = vadd.f32 %v1101, %v1119
  %v1121 = vpop.f32.mrf.mxu0
  %v1122 = vadd.f32 %v1103, %v1121
  %1123 = vmatmul.bf16.gmra.mxu0 %v255
  %v1124 = vpop.f32.mrf.mxu0
  %v1125 = vadd.f32 %v1106, %v1124
  %v1126 = vpop.f32.mrf.mxu0
  %v1127 = vadd.f32 %v1108, %v1126
  %1128 = vdwg.mxu0
  %1129 = vmatpush.bf16.msra.mxu0 %v834
  %1130 = vmatpush.bf16.msra.mxu0 %v832
  %1131 = vmatpush.bf16.msra.mxu0 %v830
  %1132 = vmatpush.bf16.msra.mxu0 %v828
  %1133 = vmatpush.bf16.msra.mxu0 %v826
  %1134 = vmatpush.bf16.msra.mxu0 %v824
  %1135 = vmatpush.bf16.msra.mxu0 %v822
  %1136 = vmatpush.bf16.msra.mxu0 %v820
  %1137 = vmatmul.bf16.gmra.mxu0 %v247
  %v1138 = vpop.f32.mrf.mxu0
  %v1139 = vadd.f32 %v1120, %v1138
  %v1140 = vpop.f32.mrf.mxu0
  %v1141 = vadd.f32 %v1122, %v1140
  %1142 = vmatmul.bf16.gmra.mxu0 %v256
  %v1143 = vpop.f32.mrf.mxu0
  %v1144 = vadd.f32 %v1125, %v1143
  %v1145 = vpop.f32.mrf.mxu0
  %v1146 = vadd.f32 %v1127, %v1145
  %1147 = vdwg.mxu0
  %1148 = vmatpush.bf16.msra.mxu0 %v850
  %1149 = vmatpush.bf16.msra.mxu0 %v848
  %1150 = vmatpush.bf16.msra.mxu0 %v846
  %1151 = vmatpush.bf16.msra.mxu0 %v844
  %1152 = vmatpush.bf16.msra.mxu0 %v842
  %1153 = vmatpush.bf16.msra.mxu0 %v840
  %1154 = vmatpush.bf16.msra.mxu0 %v838
  %1155 = vmatpush.bf16.msra.mxu0 %v836
  %1156 = vmatmul.bf16.gmra.mxu0 %v248
  %v1157 = vpop.f32.mrf.mxu0
  %v1158 = vadd.f32 %v1139, %v1157
  %v1159 = vpop.f32.mrf.mxu0
  %v1160 = vadd.f32 %v1141, %v1159
  %1161 = vmatmul.bf16.gmra.mxu0 %v257
  %v1162 = vpop.f32.mrf.mxu0
  %v1163 = vadd.f32 %v1144, %v1162
  %v1164 = vpop.f32.mrf.mxu0
  %v1165 = vadd.f32 %v1146, %v1164
  %1166 = vdwg.mxu0
  %1167 = vmatpush.bf16.msra.mxu0 %v723
  %1168 = vmatpush.bf16.msra.mxu0 %v721
  %1169 = vmatpush.bf16.msra.mxu0 %v719
  %1170 = vmatpush.bf16.msra.mxu0 %v717
  %1171 = vmatpush.bf16.msra.mxu0 %v715
  %1172 = vmatpush.bf16.msra.mxu0 %v713
  %1173 = vmatpush.bf16.msra.mxu0 %v711
  %1174 = vmatpush.bf16.msra.mxu0 %v709
  %1175 = vmatmul.bf16.gmra.mxu0 %v240
  %v1176 = vpop.f32.mrf.mxu0
  %v1177 = vadd.f32 %v181, %v1176
  %v1178 = vpop.f32.mrf.mxu0
  %v1179 = vadd.f32 %v181, %v1178
  %1180 = vmatmul.bf16.gmra.mxu0 %v249
  %v1181 = vpop.f32.mrf.mxu0
  %v1182 = vadd.f32 %v181, %v1181
  %v1183 = vpop.f32.mrf.mxu0
  %v1184 = vadd.f32 %v181, %v1183
  %1185 = vdwg.mxu0
  %1186 = vmatpush.bf16.msra.mxu0 %v739
  %1187 = vmatpush.bf16.msra.mxu0 %v737
  %1188 = vmatpush.bf16.msra.mxu0 %v735
  %1189 = vmatpush.bf16.msra.mxu0 %v733
  %1190 = vmatpush.bf16.msra.mxu0 %v731
  %1191 = vmatpush.bf16.msra.mxu0 %v729
  %1192 = vmatpush.bf16.msra.mxu0 %v727
  %1193 = vmatpush.bf16.msra.mxu0 %v725
  %1194 = vmatmul.bf16.gmra.mxu0 %v241
  %v1195 = vpop.f32.mrf.mxu0
  %v1196 = vadd.f32 %v1177, %v1195
  %v1197 = vpop.f32.mrf.mxu0
  %v1198 = vadd.f32 %v1179, %v1197
  %1199 = vmatmul.bf16.gmra.mxu0 %v250
  %v1200 = vpop.f32.mrf.mxu0
  %v1201 = vadd.f32 %v1182, %v1200
  %v1202 = vpop.f32.mrf.mxu0
  %v1203 = vadd.f32 %v1184, %v1202
  %1204 = vdwg.mxu0
  %1205 = vmatpush.bf16.msra.mxu0 %v755
  %1206 = vmatpush.bf16.msra.mxu0 %v753
  %1207 = vmatpush.bf16.msra.mxu0 %v751
  %1208 = vmatpush.bf16.msra.mxu0 %v749
  %1209 = vmatpush.bf16.msra.mxu0 %v747
  %1210 = vmatpush.bf16.msra.mxu0 %v745
  %1211 = vmatpush.bf16.msra.mxu0 %v743
  %1212 = vmatpush.bf16.msra.mxu0 %v741
  %1213 = vmatmul.bf16.gmra.mxu0 %v242
  %v1214 = vpop.f32.mrf.mxu0
  %v1215 = vadd.f32 %v1196, %v1214
  %v1216 = vpop.f32.mrf.mxu0
  %v1217 = vadd.f32 %v1198, %v1216
  %1218 = vmatmul.bf16.gmra.mxu0 %v251
  %v1219 = vpop.f32.mrf.mxu0
  %v1220 = vadd.f32 %v1201, %v1219
  %v1221 = vpop.f32.mrf.mxu0
  %v1222 = vadd.f32 %v1203, %v1221
  %1223 = vdwg.mxu0
  %1224 = vmatpush.bf16.msra.mxu0 %v771
  %1225 = vmatpush.bf16.msra.mxu0 %v769
  %1226 = vmatpush.bf16.msra.mxu0 %v767
  %1227 = vmatpush.bf16.msra.mxu0 %v765
  %1228 = vmatpush.bf16.msra.mxu0 %v763
  %1229 = vmatpush.bf16.msra.mxu0 %v761
  %1230 = vmatpush.bf16.msra.mxu0 %v759
  %1231 = vmatpush.bf16.msra.mxu0 %v757
  %1232 = vmatmul.bf16.gmra.mxu0 %v243
  %v1233 = vpop.f32.mrf.mxu0
  %v1234 = vadd.f32 %v1215, %v1233
  %v1235 = vpop.f32.mrf.mxu0
  %v1236 = vadd.f32 %v1217, %v1235
  %1237 = vmatmul.bf16.gmra.mxu0 %v252
  %v1238 = vpop.f32.mrf.mxu0
  %v1239 = vadd.f32 %v1220, %v1238
  %v1240 = vpop.f32.mrf.mxu0
  %v1241 = vadd.f32 %v1222, %v1240
  %1242 = vdwg.mxu0
  %1243 = vmatpush.bf16.msra.mxu0 %v787
  %1244 = vmatpush.bf16.msra.mxu0 %v785
  %1245 = vmatpush.bf16.msra.mxu0 %v783
  %1246 = vmatpush.bf16.msra.mxu0 %v781
  %1247 = vmatpush.bf16.msra.mxu0 %v779
  %1248 = vmatpush.bf16.msra.mxu0 %v777
  %1249 = vmatpush.bf16.msra.mxu0 %v775
  %1250 = vmatpush.bf16.msra.mxu0 %v773
  %1251 = vmatmul.bf16.gmra.mxu0 %v244
  %v1252 = vpop.f32.mrf.mxu0
  %v1253 = vadd.f32 %v1234, %v1252
  %v1254 = vpop.f32.mrf.mxu0
  %v1255 = vadd.f32 %v1236, %v1254
  %1256 = vmatmul.bf16.gmra.mxu0 %v253
  %v1257 = vpop.f32.mrf.mxu0
  %v1258 = vadd.f32 %v1239, %v1257
  %v1259 = vpop.f32.mrf.mxu0
  %v1260 = vadd.f32 %v1241, %v1259
  %1261 = vdwg.mxu0
  %1262 = vmatpush.bf16.msra.mxu0 %v803
  %1263 = vmatpush.bf16.msra.mxu0 %v801
  %1264 = vmatpush.bf16.msra.mxu0 %v799
  %1265 = vmatpush.bf16.msra.mxu0 %v797
  %1266 = vmatpush.bf16.msra.mxu0 %v795
  %1267 = vmatpush.bf16.msra.mxu0 %v793
  %1268 = vmatpush.bf16.msra.mxu0 %v791
  %1269 = vmatpush.bf16.msra.mxu0 %v789
  %1270 = vmatmul.bf16.gmra.mxu0 %v245
  %v1271 = vpop.f32.mrf.mxu0
  %v1272 = vadd.f32 %v1253, %v1271
  %v1273 = vpop.f32.mrf.mxu0
  %v1274 = vadd.f32 %v1255, %v1273
  %1275 = vmatmul.bf16.gmra.mxu0 %v254
  %v1276 = vpop.f32.mrf.mxu0
  %v1277 = vadd.f32 %v1258, %v1276
  %v1278 = vpop.f32.mrf.mxu0
  %v1279 = vadd.f32 %v1260, %v1278
  %1280 = vdwg.mxu0
  %1281 = vmatpush.bf16.msra.mxu0 %v819
  %1282 = vmatpush.bf16.msra.mxu0 %v817
  %1283 = vmatpush.bf16.msra.mxu0 %v815
  %1284 = vmatpush.bf16.msra.mxu0 %v813
  %1285 = vmatpush.bf16.msra.mxu0 %v811
  %1286 = vmatpush.bf16.msra.mxu0 %v809
  %1287 = vmatpush.bf16.msra.mxu0 %v807
  %1288 = vmatpush.bf16.msra.mxu0 %v805
  %1289 = vmatmul.bf16.gmra.mxu0 %v246
  %v1290 = vpop.f32.mrf.mxu0
  %v1291 = vadd.f32 %v1272, %v1290
  %v1292 = vpop.f32.mrf.mxu0
  %v1293 = vadd.f32 %v1274, %v1292
  %1294 = vmatmul.bf16.gmra.mxu0 %v255
  %v1295 = vpop.f32.mrf.mxu0
  %v1296 = vadd.f32 %v1277, %v1295
  %v1297 = vpop.f32.mrf.mxu0
  %v1298 = vadd.f32 %v1279, %v1297
  %1299 = vdwg.mxu0
  %1300 = vmatpush.bf16.msra.mxu0 %v835
  %1301 = vmatpush.bf16.msra.mxu0 %v833
  %1302 = vmatpush.bf16.msra.mxu0 %v831
  %1303 = vmatpush.bf16.msra.mxu0 %v829
  %1304 = vmatpush.bf16.msra.mxu0 %v827
  %1305 = vmatpush.bf16.msra.mxu0 %v825
  %1306 = vmatpush.bf16.msra.mxu0 %v823
  %1307 = vmatpush.bf16.msra.mxu0 %v821
  %1308 = vmatmul.bf16.gmra.mxu0 %v247
  %v1309 = vpop.f32.mrf.mxu0
  %v1310 = vadd.f32 %v1291, %v1309
  %v1311 = vpop.f32.mrf.mxu0
  %v1312 = vadd.f32 %v1293, %v1311
  %1313 = vmatmul.bf16.gmra.mxu0 %v256
  %v1314 = vpop.f32.mrf.mxu0
  %v1315 = vadd.f32 %v1296, %v1314
  %v1316 = vpop.f32.mrf.mxu0
  %v1317 = vadd.f32 %v1298, %v1316
  %1318 = vdwg.mxu0
  %1319 = vmatpush.bf16.msra.mxu0 %v851
  %1320 = vmatpush.bf16.msra.mxu0 %v849
  %1321 = vmatpush.bf16.msra.mxu0 %v847
  %1322 = vmatpush.bf16.msra.mxu0 %v845
  %1323 = vmatpush.bf16.msra.mxu0 %v843
  %1324 = vmatpush.bf16.msra.mxu0 %v841
  %1325 = vmatpush.bf16.msra.mxu0 %v839
  %1326 = vmatpush.bf16.msra.mxu0 %v837
  %1327 = vmatmul.bf16.gmra.mxu0 %v248
  %v1328 = vpop.f32.mrf.mxu0
  %v1329 = vadd.f32 %v1310, %v1328
  %v1330 = vpop.f32.mrf.mxu0
  %v1331 = vadd.f32 %v1312, %v1330
  %1332 = vmatmul.bf16.gmra.mxu0 %v257
  %v1333 = vpop.f32.mrf.mxu0
  %v1334 = vadd.f32 %v1315, %v1333
  %v1335 = vpop.f32.mrf.mxu0
  %v1336 = vadd.f32 %v1317, %v1335
  %1337 = vdwg.mxu0
  %vm1338 = vcmp.ge.f32.partialorder %v1158, 0.0
  %vm1339 = vcmp.ge.f32.partialorder %v1329, 0.0
  %vm1340 = vcmp.ge.f32.partialorder %v1160, 0.0
  %vm1341 = vcmp.ge.f32.partialorder %v1331, 0.0
  %vm1342 = vcmp.ge.f32.partialorder %v1163, 0.0
  %vm1343 = vcmp.ge.f32.partialorder %v1334, 0.0
  %vm1344 = vcmp.ge.f32.partialorder %v1165, 0.0
  %vm1345 = vcmp.ge.f32.partialorder %v1336, 0.0
  %v1346 = vmul.f32 %v1158, 0.1
  %v1347 = vmul.f32 %v1329, 0.1
  %v1348 = vmul.f32 %v1160, 0.1
  %v1349 = vmul.f32 %v1331, 0.1
  %v1350 = vmul.f32 %v1163, 0.1
  %v1351 = vmul.f32 %v1334, 0.1
  %v1352 = vmul.f32 %v1165, 0.1
  %v1353 = vmul.f32 %v1336, 0.1
  %v1354 = vsel %vm1338, %v1158, %v1346
  %v1355 = vsel %vm1339, %v1329, %v1347
  %v1356 = vsel %vm1340, %v1160, %v1348
  %v1357 = vsel %vm1341, %v1331, %v1349
  %v1358 = vsel %vm1342, %v1163, %v1350
  %v1359 = vsel %vm1343, %v1334, %v1351
  %v1360 = vsel %vm1344, %v1165, %v1352
  %v1361 = vsel %vm1345, %v1336, %v1353
  %v1362 = vpack.c.bf16 %v1355, %v1354
  %v1363 = vpack.c.bf16 %v1357, %v1356
  %v1364 = vpack.c.bf16 %v1359, %v1358
  %v1365 = vpack.c.bf16 %v1361, %v1360
  %1366 = vst [vmem:[%s3] sm:$0xff] %v1362
  %1367 = vst [vmem:[%s3 + $0x8] sm:$0xff] %v1363
  %1368 = vst [vmem:[%s3 + $0x10] sm:$0xff] %v1364
  %1369 = vst [vmem:[%s3 + $0x18] sm:$0xff] %v1365
  // Predicated region
  $region14: #{ed_regression_forward.20} parent=0 // pred_check
    _
  $region15: #{ed_regression_forward.20} parent=0 // pred_check_branch
    %1371 = sbr.rel (0) target = $region17
  $region16: #{ed_regression_forward.20} parent=0 // pred_region
    _
  $region17: #{ed_regression_forward.20} parent=0 // pred_fallthru
    _
  // Predicated region
  $region18: #{ed_regression_forward.20} parent=0 // pred_check
    _
  $region19: #{ed_regression_forward.20} parent=0 // pred_check_branch
    %1373 = sbr.rel (0) target = $region21
  $region20: #{ed_regression_forward.20} parent=0 // pred_region
    _
  $region21: #{ed_regression_forward.20} parent=0 // pred_fallthru
    _

// kernel: ed_regression_forward.21
$region0: #{ed_regression_forward.21}
  #allocation0 [shape = 'u32[]', space=smem, size = 0x4, offset = 0x4, fixed_abs, tag = 'smem constant byte address 0x4 - core index']
  #allocation1 [shape = 'u32[72,128]{1,0:T(1,128)}', space=vmem, size = 0x9000, scoped, tag = 'internal scratch']
  %s0 = inlined_call_operand.vmem [shape: bf16[8,2304], index: 0, kind: input, shape index: {}]
  %s1 = inlined_call_operand.vmem [shape: bf16[2304,256], index: 1, kind: input, shape index: {}]
  %s2 = inlined_call_operand.vmem [shape: f32[1,256], index: 2, kind: input, shape index: {}]
  %s3 = inlined_call_operand.vmem [shape: bf16[8,256], index: 3, kind: output, shape index: {}]
  %s4 = sld [smem:[#allocation0]]
  $region22: #{ed_regression_forward.21} parent=0
    _
  %s6 = ssub.s32 1, %s4
  %s7 = scalar_select 0, %s6, %s4
  // Predicated region
  $region2: #{ed_regression_forward.21} parent=0 // pred_check
    _
  $region3: #{ed_regression_forward.21} parent=0 // pred_check_branch
    %9 = sbr.rel (0) target = $region5
  $region4: #{ed_regression_forward.21} parent=0 // pred_region
    _
  $region5: #{ed_regression_forward.21} parent=0 // pred_fallthru
    _
  // Predicated region
  $region6: #{ed_regression_forward.21} parent=0 // pred_check
    _
  $region7: #{ed_regression_forward.21} parent=0 // pred_check_branch
    %11 = sbr.rel (0) target = $region9
  $region8: #{ed_regression_forward.21} parent=0 // pred_region
    _
  $region9: #{ed_regression_forward.21} parent=0 // pred_fallthru
    _
  // Predicated region
  $region10: #{ed_regression_forward.21} parent=0 // pred_check
    _
  $region11: #{ed_regression_forward.21} parent=0 // pred_check_branch
    %13 = sbr.rel (0) target = $region13
  $region12: #{ed_regression_forward.21} parent=0 // pred_region
    _
  $region13: #{ed_regression_forward.21} parent=0 // pred_fallthru
    _
  %v14 = vld [vmem:[%s0] sm:$0xff]
  %v15 = vld [vmem:[%s0 + $0x8] sm:$0xff]
  %v16 = vld [vmem:[%s0 + $0x10] sm:$0xff]
  %v17 = vld [vmem:[%s0 + $0x18] sm:$0xff]
  %v18 = vld [vmem:[%s0 + $0x20] sm:$0xff]
  %v19 = vld [vmem:[%s0 + $0x28] sm:$0xff]
  %v20 = vld [vmem:[%s0 + $0x30] sm:$0xff]
  %v21 = vld [vmem:[%s0 + $0x38] sm:$0xff]
  %v22 = vld [vmem:[%s0 + $0x40] sm:$0xff]
  %v23 = vld [vmem:[%s1] sm:$0xff]
  %v24 = vld [vmem:[%s1 + $0x8] sm:$0xff]
  %v25 = vld [vmem:[%s1 + $0x10] sm:$0xff]
  %v26 = vld [vmem:[%s1 + $0x18] sm:$0xff]
  %v27 = vld [vmem:[%s1 + $0x20] sm:$0xff]
  %v28 = vld [vmem:[%s1 + $0x28] sm:$0xff]
  %v29 = vld [vmem:[%s1 + $0x30] sm:$0xff]
  %v30 = vld [vmem:[%s1 + $0x38] sm:$0xff]
  %v31 = vld [vmem:[%s1 + $0x40] sm:$0xff]
  %v32 = vld [vmem:[%s1 + $0x48] sm:$0xff]
  %v33 = vld [vmem:[%s1 + $0x50] sm:$0xff]
  %v34 = vld [vmem:[%s1 + $0x58] sm:$0xff]
  %v35 = vld [vmem:[%s1 + $0x60] sm:$0xff]
  %v36 = vld [vmem:[%s1 + $0x68] sm:$0xff]
  %v37 = vld [vmem:[%s1 + $0x70] sm:$0xff]
  %v38 = vld [vmem:[%s1 + $0x78] sm:$0xff]
  %v39 = vld [vmem:[%s1 + $0x80] sm:$0xff]
  %v40 = vld [vmem:[%s1 + $0x88] sm:$0xff]
  %v41 = vld [vmem:[%s1 + $0x90] sm:$0xff]
  %v42 = vld [vmem:[%s1 + $0x98] sm:$0xff]
  %v43 = vld [vmem:[%s1 + $0xa0] sm:$0xff]
  %v44 = vld [vmem:[%s1 + $0xa8] sm:$0xff]
  %v45 = vld [vmem:[%s1 + $0xb0] sm:$0xff]
  %v46 = vld [vmem:[%s1 + $0xb8] sm:$0xff]
  %v47 = vld [vmem:[%s1 + $0xc0] sm:$0xff]
  %v48 = vld [vmem:[%s1 + $0xc8] sm:$0xff]
  %v49 = vld [vmem:[%s1 + $0xd0] sm:$0xff]
  %v50 = vld [vmem:[%s1 + $0xd8] sm:$0xff]
  %v51 = vld [vmem:[%s1 + $0xe0] sm:$0xff]
  %v52 = vld [vmem:[%s1 + $0xe8] sm:$0xff]
  %v53 = vld [vmem:[%s1 + $0xf0] sm:$0xff]
  %v54 = vld [vmem:[%s1 + $0xf8] sm:$0xff]
  %v55 = vld [vmem:[%s1 + $0x100] sm:$0xff]
  %v56 = vld [vmem:[%s1 + $0x108] sm:$0xff]
  %v57 = vld [vmem:[%s1 + $0x110] sm:$0xff]
  %v58 = vld [vmem:[%s1 + $0x118] sm:$0xff]
  %v59 = vld [vmem:[%s1 + $0x120] sm:$0xff]
  %v60 = vld [vmem:[%s1 + $0x128] sm:$0xff]
  %v61 = vld [vmem:[%s1 + $0x130] sm:$0xff]
  %v62 = vld [vmem:[%s1 + $0x138] sm:$0xff]
  %v63 = vld [vmem:[%s1 + $0x140] sm:$0xff]
  %v64 = vld [vmem:[%s1 + $0x148] sm:$0xff]
  %v65 = vld [vmem:[%s1 + $0x150] sm:$0xff]
  %v66 = vld [vmem:[%s1 + $0x158] sm:$0xff]
  %v67 = vld [vmem:[%s1 + $0x160] sm:$0xff]
  %v68 = vld [vmem:[%s1 + $0x168] sm:$0xff]
  %v69 = vld [vmem:[%s1 + $0x170] sm:$0xff]
  %v70 = vld [vmem:[%s1 + $0x178] sm:$0xff]
  %v71 = vld [vmem:[%s1 + $0x180] sm:$0xff]
  %v72 = vld [vmem:[%s1 + $0x188] sm:$0xff]
  %v73 = vld [vmem:[%s1 + $0x190] sm:$0xff]
  %v74 = vld [vmem:[%s1 + $0x198] sm:$0xff]
  %v75 = vld [vmem:[%s1 + $0x1a0] sm:$0xff]
  %v76 = vld [vmem:[%s1 + $0x1a8] sm:$0xff]
  %v77 = vld [vmem:[%s1 + $0x1b0] sm:$0xff]
  %v78 = vld [vmem:[%s1 + $0x1b8] sm:$0xff]
  %v79 = vld [vmem:[%s1 + $0x1c0] sm:$0xff]
  %v80 = vld [vmem:[%s1 + $0x1c8] sm:$0xff]
  %v81 = vld [vmem:[%s1 + $0x1d0] sm:$0xff]
  %v82 = vld [vmem:[%s1 + $0x1d8] sm:$0xff]
  %v83 = vld [vmem:[%s1 + $0x1e0] sm:$0xff]
  %v84 = vld [vmem:[%s1 + $0x1e8] sm:$0xff]
  %v85 = vld [vmem:[%s1 + $0x1f0] sm:$0xff]
  %v86 = vld [vmem:[%s1 + $0x1f8] sm:$0xff]
  %v87 = vld [vmem:[%s1 + $0x200] sm:$0xff]
  %v88 = vld [vmem:[%s1 + $0x208] sm:$0xff]
  %v89 = vld [vmem:[%s1 + $0x210] sm:$0xff]
  %v90 = vld [vmem:[%s1 + $0x218] sm:$0xff]
  %v91 = vld [vmem:[%s1 + $0x220] sm:$0xff]
  %v92 = vld [vmem:[%s1 + $0x228] sm:$0xff]
  %v93 = vld [vmem:[%s1 + $0x230] sm:$0xff]
  %v94 = vld [vmem:[%s1 + $0x238] sm:$0xff]
  %v95 = vld [vmem:[%s1 + $0x240] sm:$0xff]
  %v96 = vld [vmem:[%s1 + $0x248] sm:$0xff]
  %v97 = vld [vmem:[%s1 + $0x250] sm:$0xff]
  %v98 = vld [vmem:[%s1 + $0x258] sm:$0xff]
  %v99 = vld [vmem:[%s1 + $0x260] sm:$0xff]
  %v100 = vld [vmem:[%s1 + $0x268] sm:$0xff]
  %v101 = vld [vmem:[%s1 + $0x270] sm:$0xff]
  %v102 = vld [vmem:[%s1 + $0x278] sm:$0xff]
  %v103 = vld [vmem:[%s1 + $0x280] sm:$0xff]
  %v104 = vld [vmem:[%s1 + $0x288] sm:$0xff]
  %v105 = vld [vmem:[%s1 + $0x290] sm:$0xff]
  %v106 = vld [vmem:[%s1 + $0x298] sm:$0xff]
  %v107 = vld [vmem:[%s1 + $0x2a0] sm:$0xff]
  %v108 = vld [vmem:[%s1 + $0x2a8] sm:$0xff]
  %v109 = vld [vmem:[%s1 + $0x2b0] sm:$0xff]
  %v110 = vld [vmem:[%s1 + $0x2b8] sm:$0xff]
  %v111 = vld [vmem:[%s1 + $0x2c0] sm:$0xff]
  %v112 = vld [vmem:[%s1 + $0x2c8] sm:$0xff]
  %v113 = vld [vmem:[%s1 + $0x2d0] sm:$0xff]
  %v114 = vld [vmem:[%s1 + $0x2d8] sm:$0xff]
  %v115 = vld [vmem:[%s1 + $0x2e0] sm:$0xff]
  %v116 = vld [vmem:[%s1 + $0x2e8] sm:$0xff]
  %v117 = vld [vmem:[%s1 + $0x2f0] sm:$0xff]
  %v118 = vld [vmem:[%s1 + $0x2f8] sm:$0xff]
  %v119 = vld [vmem:[%s1 + $0x300] sm:$0xff]
  %v120 = vld [vmem:[%s1 + $0x308] sm:$0xff]
  %v121 = vld [vmem:[%s1 + $0x310] sm:$0xff]
  %v122 = vld [vmem:[%s1 + $0x318] sm:$0xff]
  %v123 = vld [vmem:[%s1 + $0x320] sm:$0xff]
  %v124 = vld [vmem:[%s1 + $0x328] sm:$0xff]
  %v125 = vld [vmem:[%s1 + $0x330] sm:$0xff]
  %v126 = vld [vmem:[%s1 + $0x338] sm:$0xff]
  %v127 = vld [vmem:[%s1 + $0x340] sm:$0xff]
  %v128 = vld [vmem:[%s1 + $0x348] sm:$0xff]
  %v129 = vld [vmem:[%s1 + $0x350] sm:$0xff]
  %v130 = vld [vmem:[%s1 + $0x358] sm:$0xff]
  %v131 = vld [vmem:[%s1 + $0x360] sm:$0xff]
  %v132 = vld [vmem:[%s1 + $0x368] sm:$0xff]
  %v133 = vld [vmem:[%s1 + $0x370] sm:$0xff]
  %v134 = vld [vmem:[%s1 + $0x378] sm:$0xff]
  %v135 = vld [vmem:[%s1 + $0x380] sm:$0xff]
  %v136 = vld [vmem:[%s1 + $0x388] sm:$0xff]
  %v137 = vld [vmem:[%s1 + $0x390] sm:$0xff]
  %v138 = vld [vmem:[%s1 + $0x398] sm:$0xff]
  %v139 = vld [vmem:[%s1 + $0x3a0] sm:$0xff]
  %v140 = vld [vmem:[%s1 + $0x3a8] sm:$0xff]
  %v141 = vld [vmem:[%s1 + $0x3b0] sm:$0xff]
  %v142 = vld [vmem:[%s1 + $0x3b8] sm:$0xff]
  %v143 = vld [vmem:[%s1 + $0x3c0] sm:$0xff]
  %v144 = vld [vmem:[%s1 + $0x3c8] sm:$0xff]
  %v145 = vld [vmem:[%s1 + $0x3d0] sm:$0xff]
  %v146 = vld [vmem:[%s1 + $0x3d8] sm:$0xff]
  %v147 = vld [vmem:[%s1 + $0x3e0] sm:$0xff]
  %v148 = vld [vmem:[%s1 + $0x3e8] sm:$0xff]
  %v149 = vld [vmem:[%s1 + $0x3f0] sm:$0xff]
  %v150 = vld [vmem:[%s1 + $0x3f8] sm:$0xff]
  %v151 = vld [vmem:[%s1 + $0x400] sm:$0xff]
  %v152 = vld [vmem:[%s1 + $0x408] sm:$0xff]
  %v153 = vld [vmem:[%s1 + $0x410] sm:$0xff]
  %v154 = vld [vmem:[%s1 + $0x418] sm:$0xff]
  %v155 = vld [vmem:[%s1 + $0x420] sm:$0xff]
  %v156 = vld [vmem:[%s1 + $0x428] sm:$0xff]
  %v157 = vld [vmem:[%s1 + $0x430] sm:$0xff]
  %v158 = vld [vmem:[%s1 + $0x438] sm:$0xff]
  %v159 = vld [vmem:[%s1 + $0x440] sm:$0xff]
  %v160 = vld [vmem:[%s1 + $0x448] sm:$0xff]
  %v161 = vld [vmem:[%s1 + $0x450] sm:$0xff]
  %v162 = vld [vmem:[%s1 + $0x458] sm:$0xff]
  %v163 = vld [vmem:[%s1 + $0x460] sm:$0xff]
  %v164 = vld [vmem:[%s1 + $0x468] sm:$0xff]
  %v165 = vld [vmem:[%s1 + $0x470] sm:$0xff]
  %v166 = vld [vmem:[%s1 + $0x478] sm:$0xff]
  %v167 = vld [vmem:[%s1 + $0x480] sm:$0xff]
  %v168 = vld [vmem:[%s1 + $0x488] sm:$0xff]
  %v169 = vld [vmem:[%s1 + $0x490] sm:$0xff]
  %v170 = vld [vmem:[%s1 + $0x498] sm:$0xff]
  %v171 = vld [vmem:[%s1 + $0x4a0] sm:$0xff]
  %v172 = vld [vmem:[%s1 + $0x4a8] sm:$0xff]
  %v173 = vld [vmem:[%s1 + $0x4b0] sm:$0xff]
  %v174 = vld [vmem:[%s1 + $0x4b8] sm:$0xff]
  %v175 = vld [vmem:[%s1 + $0x4c0] sm:$0xff]
  %v176 = vld [vmem:[%s1 + $0x4c8] sm:$0xff]
  %v177 = vld [vmem:[%s1 + $0x4d0] sm:$0xff]
  %v178 = vld [vmem:[%s1 + $0x4d8] sm:$0xff]
  %v179 = vld [vmem:[%s1 + $0x4e0] sm:$0xff]
  %v180 = vld [vmem:[%s1 + $0x4e8] sm:$0xff]
  %v181 = vld [vmem:[%s1 + $0x4f0] sm:$0xff]
  %v182 = vld [vmem:[%s1 + $0x4f8] sm:$0xff]
  %v183 = vld [vmem:[%s1 + $0x500] sm:$0xff]
  %v184 = vld [vmem:[%s1 + $0x508] sm:$0xff]
  %v185 = vld [vmem:[%s1 + $0x510] sm:$0xff]
  %v186 = vld [vmem:[%s1 + $0x518] sm:$0xff]
  %v187 = vld [vmem:[%s1 + $0x520] sm:$0xff]
  %v188 = vld [vmem:[%s1 + $0x528] sm:$0xff]
  %v189 = vld [vmem:[%s1 + $0x530] sm:$0xff]
  %v190 = vld [vmem:[%s1 + $0x538] sm:$0xff]
  %v191 = vld [vmem:[%s1 + $0x540] sm:$0xff]
  %v192 = vld [vmem:[%s1 + $0x548] sm:$0xff]
  %v193 = vld [vmem:[%s1 + $0x550] sm:$0xff]
  %v194 = vld [vmem:[%s1 + $0x558] sm:$0xff]
  %v195 = vld [vmem:[%s1 + $0x560] sm:$0xff]
  %v196 = vld [vmem:[%s1 + $0x568] sm:$0xff]
  %v197 = vld [vmem:[%s1 + $0x570] sm:$0xff]
  %v198 = vld [vmem:[%s1 + $0x578] sm:$0xff]
  %v199 = vld [vmem:[%s1 + $0x580] sm:$0xff]
  %v200 = vld [vmem:[%s1 + $0x588] sm:$0xff]
  %v201 = vld [vmem:[%s1 + $0x590] sm:$0xff]
  %v202 = vld [vmem:[%s1 + $0x598] sm:$0xff]
  %v203 = vld [vmem:[%s1 + $0x5a0] sm:$0xff]
  %v204 = vld [vmem:[%s1 + $0x5a8] sm:$0xff]
  %v205 = vld [vmem:[%s1 + $0x5b0] sm:$0xff]
  %v206 = vld [vmem:[%s1 + $0x5b8] sm:$0xff]
  %v207 = vld [vmem:[%s1 + $0x5c0] sm:$0xff]
  %v208 = vld [vmem:[%s1 + $0x5c8] sm:$0xff]
  %v209 = vld [vmem:[%s1 + $0x5d0] sm:$0xff]
  %v210 = vld [vmem:[%s1 + $0x5d8] sm:$0xff]
  %v211 = vld [vmem:[%s1 + $0x5e0] sm:$0xff]
  %v212 = vld [vmem:[%s1 + $0x5e8] sm:$0xff]
  %v213 = vld [vmem:[%s1 + $0x5f0] sm:$0xff]
  %v214 = vld [vmem:[%s1 + $0x5f8] sm:$0xff]
  %v215 = vld [vmem:[%s1 + $0x600] sm:$0xff]
  %v216 = vld [vmem:[%s1 + $0x608] sm:$0xff]
  %v217 = vld [vmem:[%s1 + $0x610] sm:$0xff]
  %v218 = vld [vmem:[%s1 + $0x618] sm:$0xff]
  %v219 = vld [vmem:[%s1 + $0x620] sm:$0xff]
  %v220 = vld [vmem:[%s1 + $0x628] sm:$0xff]
  %v221 = vld [vmem:[%s1 + $0x630] sm:$0xff]
  %v222 = vld [vmem:[%s1 + $0x638] sm:$0xff]
  %v223 = vld [vmem:[%s1 + $0x640] sm:$0xff]
  %v224 = vld [vmem:[%s1 + $0x648] sm:$0xff]
  %v225 = vld [vmem:[%s1 + $0x650] sm:$0xff]
  %v226 = vld [vmem:[%s1 + $0x658] sm:$0xff]
  %v227 = vld [vmem:[%s1 + $0x660] sm:$0xff]
  %v228 = vld [vmem:[%s1 + $0x668] sm:$0xff]
  %v229 = vld [vmem:[%s1 + $0x670] sm:$0xff]
  %v230 = vld [vmem:[%s1 + $0x678] sm:$0xff]
  %v231 = vld [vmem:[%s1 + $0x680] sm:$0xff]
  %v232 = vld [vmem:[%s1 + $0x688] sm:$0xff]
  %v233 = vld [vmem:[%s1 + $0x690] sm:$0xff]
  %v234 = vld [vmem:[%s1 + $0x698] sm:$0xff]
  %v235 = vld [vmem:[%s1 + $0x6a0] sm:$0xff]
  %v236 = vld [vmem:[%s1 + $0x6a8] sm:$0xff]
  %v237 = vld [vmem:[%s1 + $0x6b0] sm:$0xff]
  %v238 = vld [vmem:[%s1 + $0x6b8] sm:$0xff]
  %v239 = vld [vmem:[%s1 + $0x6c0] sm:$0xff]
  %v240 = vld [vmem:[%s1 + $0x6c8] sm:$0xff]
  %v241 = vld [vmem:[%s1 + $0x6d0] sm:$0xff]
  %v242 = vld [vmem:[%s1 + $0x6d8] sm:$0xff]
  %v243 = vld [vmem:[%s1 + $0x6e0] sm:$0xff]
  %v244 = vld [vmem:[%s1 + $0x6e8] sm:$0xff]
  %v245 = vld [vmem:[%s1 + $0x6f0] sm:$0xff]
  %v246 = vld [vmem:[%s1 + $0x6f8] sm:$0xff]
  %v247 = vld [vmem:[%s1 + $0x700] sm:$0xff]
  %v248 = vld [vmem:[%s1 + $0x708] sm:$0xff]
  %v249 = vld [vmem:[%s1 + $0x710] sm:$0xff]
  %v250 = vld [vmem:[%s1 + $0x718] sm:$0xff]
  %v251 = vld [vmem:[%s1 + $0x720] sm:$0xff]
  %v252 = vld [vmem:[%s1 + $0x728] sm:$0xff]
  %v253 = vld [vmem:[%s1 + $0x730] sm:$0xff]
  %v254 = vld [vmem:[%s1 + $0x738] sm:$0xff]
  %v255 = vld [vmem:[%s1 + $0x740] sm:$0xff]
  %v256 = vld [vmem:[%s1 + $0x748] sm:$0xff]
  %v257 = vld [vmem:[%s1 + $0x750] sm:$0xff]
  %v258 = vld [vmem:[%s1 + $0x758] sm:$0xff]
  %v259 = vld [vmem:[%s1 + $0x760] sm:$0xff]
  %v260 = vld [vmem:[%s1 + $0x768] sm:$0xff]
  %v261 = vld [vmem:[%s1 + $0x770] sm:$0xff]
  %v262 = vld [vmem:[%s1 + $0x778] sm:$0xff]
  %v263 = vld [vmem:[%s1 + $0x780] sm:$0xff]
  %v264 = vld [vmem:[%s1 + $0x788] sm:$0xff]
  %v265 = vld [vmem:[%s1 + $0x790] sm:$0xff]
  %v266 = vld [vmem:[%s1 + $0x798] sm:$0xff]
  %v267 = vld [vmem:[%s1 + $0x7a0] sm:$0xff]
  %v268 = vld [vmem:[%s1 + $0x7a8] sm:$0xff]
  %v269 = vld [vmem:[%s1 + $0x7b0] sm:$0xff]
  %v270 = vld [vmem:[%s1 + $0x7b8] sm:$0xff]
  %v271 = vld [vmem:[%s1 + $0x7c0] sm:$0xff]
  %v272 = vld [vmem:[%s1 + $0x7c8] sm:$0xff]
  %v273 = vld [vmem:[%s1 + $0x7d0] sm:$0xff]
  %v274 = vld [vmem:[%s1 + $0x7d8] sm:$0xff]
  %v275 = vld [vmem:[%s1 + $0x7e0] sm:$0xff]
  %v276 = vld [vmem:[%s1 + $0x7e8] sm:$0xff]
  %v277 = vld [vmem:[%s1 + $0x7f0] sm:$0xff]
  %v278 = vld [vmem:[%s1 + $0x7f8] sm:$0xff]
  %v279 = vld [vmem:[%s1 + $0x800] sm:$0xff]
  %v280 = vld [vmem:[%s1 + $0x808] sm:$0xff]
  %v281 = vld [vmem:[%s1 + $0x810] sm:$0xff]
  %v282 = vld [vmem:[%s1 + $0x818] sm:$0xff]
  %v283 = vld [vmem:[%s1 + $0x820] sm:$0xff]
  %v284 = vld [vmem:[%s1 + $0x828] sm:$0xff]
  %v285 = vld [vmem:[%s1 + $0x830] sm:$0xff]
  %v286 = vld [vmem:[%s1 + $0x838] sm:$0xff]
  %v287 = vld [vmem:[%s1 + $0x840] sm:$0xff]
  %v288 = vld [vmem:[%s1 + $0x848] sm:$0xff]
  %v289 = vld [vmem:[%s1 + $0x850] sm:$0xff]
  %v290 = vld [vmem:[%s1 + $0x858] sm:$0xff]
  %v291 = vld [vmem:[%s1 + $0x860] sm:$0xff]
  %v292 = vld [vmem:[%s1 + $0x868] sm:$0xff]
  %v293 = vld [vmem:[%s1 + $0x870] sm:$0xff]
  %v294 = vld [vmem:[%s1 + $0x878] sm:$0xff]
  %v295 = vld [vmem:[%s1 + $0x880] sm:$0xff]
  %v296 = vld [vmem:[%s1 + $0x888] sm:$0xff]
  %v297 = vld [vmem:[%s1 + $0x890] sm:$0xff]
  %v298 = vld [vmem:[%s1 + $0x898] sm:$0xff]
  %v299 = vld [vmem:[%s1 + $0x8a0] sm:$0xff]
  %v300 = vld [vmem:[%s1 + $0x8a8] sm:$0xff]
  %v301 = vld [vmem:[%s1 + $0x8b0] sm:$0xff]
  %v302 = vld [vmem:[%s1 + $0x8b8] sm:$0xff]
  %v303 = vld [vmem:[%s1 + $0x8c0] sm:$0xff]
  %v304 = vld [vmem:[%s1 + $0x8c8] sm:$0xff]
  %v305 = vld [vmem:[%s1 + $0x8d0] sm:$0xff]
  %v306 = vld [vmem:[%s1 + $0x8d8] sm:$0xff]
  %v307 = vld [vmem:[%s1 + $0x8e0] sm:$0xff]
  %v308 = vld [vmem:[%s1 + $0x8e8] sm:$0xff]
  %v309 = vld [vmem:[%s1 + $0x8f0] sm:$0xff]
  %v310 = vld [vmem:[%s1 + $0x8f8] sm:$0xff]
  %v311 = vld [vmem:[%s2] sm:$0x3]
  %v313 = vperm.slane %v311, 0
  %v314 = vperm.slane %v311, 1
  %v326 = vunpack.c.l.b16 %v14
  %v327 = vunpack.c.h.b16 %v14
  %v328 = vunpack.c.l.b16 %v15
  %v329 = vunpack.c.h.b16 %v15
  %v330 = vunpack.c.l.b16 %v16
  %v331 = vunpack.c.h.b16 %v16
  %v332 = vunpack.c.l.b16 %v17
  %v333 = vunpack.c.h.b16 %v17
  %v334 = vunpack.c.l.b16 %v18
  %v335 = vunpack.c.h.b16 %v18
  %v336 = vunpack.c.l.b16 %v19
  %v337 = vunpack.c.h.b16 %v19
  %v338 = vunpack.c.l.b16 %v20
  %v339 = vunpack.c.h.b16 %v20
  %v340 = vunpack.c.l.b16 %v21
  %v341 = vunpack.c.h.b16 %v21
  %v342 = vunpack.c.l.b16 %v22
  %v343 = vunpack.c.h.b16 %v22
  %v344 = vpack.c.b16 %v326, %v326
  %v345 = vpack.c.b16 %v327, %v327
  %v346 = vpack.c.b16 %v328, %v328
  %v347 = vpack.c.b16 %v329, %v329
  %v348 = vpack.c.b16 %v330, %v330
  %v349 = vpack.c.b16 %v331, %v331
  %v350 = vpack.c.b16 %v332, %v332
  %v351 = vpack.c.b16 %v333, %v333
  %v352 = vpack.c.b16 %v334, %v334
  %v353 = vpack.c.b16 %v335, %v335
  %v354 = vpack.c.b16 %v336, %v336
  %v355 = vpack.c.b16 %v337, %v337
  %v356 = vpack.c.b16 %v338, %v338
  %v357 = vpack.c.b16 %v339, %v339
  %v358 = vpack.c.b16 %v340, %v340
  %v359 = vpack.c.b16 %v341, %v341
  %v360 = vpack.c.b16 %v342, %v342
  %v361 = vpack.c.b16 %v343, %v343
  %v668 = vunpack.c.l.b16 %v23
  %v669 = vunpack.c.h.b16 %v23
  %v670 = vunpack.c.l.b16 %v24
  %v671 = vunpack.c.h.b16 %v24
  %v672 = vunpack.c.l.b16 %v25
  %v673 = vunpack.c.h.b16 %v25
  %v674 = vunpack.c.l.b16 %v26
  %v675 = vunpack.c.h.b16 %v26
  %v676 = vunpack.c.l.b16 %v27
  %v677 = vunpack.c.h.b16 %v27
  %v678 = vunpack.c.l.b16 %v28
  %v679 = vunpack.c.h.b16 %v28
  %v680 = vunpack.c.l.b16 %v29
  %v681 = vunpack.c.h.b16 %v29
  %v682 = vunpack.c.l.b16 %v30
  %v683 = vunpack.c.h.b16 %v30
  %v684 = vunpack.c.l.b16 %v31
  %v685 = vunpack.c.h.b16 %v31
  %v686 = vunpack.c.l.b16 %v32
  %v687 = vunpack.c.h.b16 %v32
  %v688 = vunpack.c.l.b16 %v33
  %v689 = vunpack.c.h.b16 %v33
  %v690 = vunpack.c.l.b16 %v34
  %v691 = vunpack.c.h.b16 %v34
  %v692 = vunpack.c.l.b16 %v35
  %v693 = vunpack.c.h.b16 %v35
  %v694 = vunpack.c.l.b16 %v36
  %v695 = vunpack.c.h.b16 %v36
  %v696 = vunpack.c.l.b16 %v37
  %v697 = vunpack.c.h.b16 %v37
  %v698 = vunpack.c.l.b16 %v38
  %v699 = vunpack.c.h.b16 %v38
  %v700 = vunpack.c.l.b16 %v39
  %v701 = vunpack.c.h.b16 %v39
  %v702 = vunpack.c.l.b16 %v40
  %v703 = vunpack.c.h.b16 %v40
  %v704 = vunpack.c.l.b16 %v41
  %v705 = vunpack.c.h.b16 %v41
  %v706 = vunpack.c.l.b16 %v42
  %v707 = vunpack.c.h.b16 %v42
  %v708 = vunpack.c.l.b16 %v43
  %v709 = vunpack.c.h.b16 %v43
  %v710 = vunpack.c.l.b16 %v44
  %v711 = vunpack.c.h.b16 %v44
  %v712 = vunpack.c.l.b16 %v45
  %v713 = vunpack.c.h.b16 %v45
  %v714 = vunpack.c.l.b16 %v46
  %v715 = vunpack.c.h.b16 %v46
  %v716 = vunpack.c.l.b16 %v47
  %v717 = vunpack.c.h.b16 %v47
  %v718 = vunpack.c.l.b16 %v48
  %v719 = vunpack.c.h.b16 %v48
  %v720 = vunpack.c.l.b16 %v49
  %v721 = vunpack.c.h.b16 %v49
  %v722 = vunpack.c.l.b16 %v50
  %v723 = vunpack.c.h.b16 %v50
  %v724 = vunpack.c.l.b16 %v51
  %v725 = vunpack.c.h.b16 %v51
  %v726 = vunpack.c.l.b16 %v52
  %v727 = vunpack.c.h.b16 %v52
  %v728 = vunpack.c.l.b16 %v53
  %v729 = vunpack.c.h.b16 %v53
  %v730 = vunpack.c.l.b16 %v54
  %v731 = vunpack.c.h.b16 %v54
  %v732 = vunpack.c.l.b16 %v55
  %v733 = vunpack.c.h.b16 %v55
  %v734 = vunpack.c.l.b16 %v56
  %v735 = vunpack.c.h.b16 %v56
  %v736 = vunpack.c.l.b16 %v57
  %v737 = vunpack.c.h.b16 %v57
  %v738 = vunpack.c.l.b16 %v58
  %v739 = vunpack.c.h.b16 %v58
  %v740 = vunpack.c.l.b16 %v59
  %v741 = vunpack.c.h.b16 %v59
  %v742 = vunpack.c.l.b16 %v60
  %v743 = vunpack.c.h.b16 %v60
  %v744 = vunpack.c.l.b16 %v61
  %v745 = vunpack.c.h.b16 %v61
  %v746 = vunpack.c.l.b16 %v62
  %v747 = vunpack.c.h.b16 %v62
  %v748 = vunpack.c.l.b16 %v63
  %v749 = vunpack.c.h.b16 %v63
  %v750 = vunpack.c.l.b16 %v64
  %v751 = vunpack.c.h.b16 %v64
  %v752 = vunpack.c.l.b16 %v65
  %v753 = vunpack.c.h.b16 %v65
  %v754 = vunpack.c.l.b16 %v66
  %v755 = vunpack.c.h.b16 %v66
  %v756 = vunpack.c.l.b16 %v67
  %v757 = vunpack.c.h.b16 %v67
  %v758 = vunpack.c.l.b16 %v68
  %v759 = vunpack.c.h.b16 %v68
  %v760 = vunpack.c.l.b16 %v69
  %v761 = vunpack.c.h.b16 %v69
  %v762 = vunpack.c.l.b16 %v70
  %v763 = vunpack.c.h.b16 %v70
  %v764 = vunpack.c.l.b16 %v71
  %v765 = vunpack.c.h.b16 %v71
  %v766 = vunpack.c.l.b16 %v72
  %v767 = vunpack.c.h.b16 %v72
  %v768 = vunpack.c.l.b16 %v73
  %v769 = vunpack.c.h.b16 %v73
  %v770 = vunpack.c.l.b16 %v74
  %v771 = vunpack.c.h.b16 %v74
  %v772 = vunpack.c.l.b16 %v75
  %v773 = vunpack.c.h.b16 %v75
  %v774 = vunpack.c.l.b16 %v76
  %v775 = vunpack.c.h.b16 %v76
  %v776 = vunpack.c.l.b16 %v77
  %v777 = vunpack.c.h.b16 %v77
  %v778 = vunpack.c.l.b16 %v78
  %v779 = vunpack.c.h.b16 %v78
  %v780 = vunpack.c.l.b16 %v79
  %v781 = vunpack.c.h.b16 %v79
  %v782 = vunpack.c.l.b16 %v80
  %v783 = vunpack.c.h.b16 %v80
  %v784 = vunpack.c.l.b16 %v81
  %v785 = vunpack.c.h.b16 %v81
  %v786 = vunpack.c.l.b16 %v82
  %v787 = vunpack.c.h.b16 %v82
  %v788 = vunpack.c.l.b16 %v83
  %v789 = vunpack.c.h.b16 %v83
  %v790 = vunpack.c.l.b16 %v84
  %v791 = vunpack.c.h.b16 %v84
  %v792 = vunpack.c.l.b16 %v85
  %v793 = vunpack.c.h.b16 %v85
  %v794 = vunpack.c.l.b16 %v86
  %v795 = vunpack.c.h.b16 %v86
  %v796 = vunpack.c.l.b16 %v87
  %v797 = vunpack.c.h.b16 %v87
  %v798 = vunpack.c.l.b16 %v88
  %v799 = vunpack.c.h.b16 %v88
  %v800 = vunpack.c.l.b16 %v89
  %v801 = vunpack.c.h.b16 %v89
  %v802 = vunpack.c.l.b16 %v90
  %v803 = vunpack.c.h.b16 %v90
  %v804 = vunpack.c.l.b16 %v91
  %v805 = vunpack.c.h.b16 %v91
  %v806 = vunpack.c.l.b16 %v92
  %v807 = vunpack.c.h.b16 %v92
  %v808 = vunpack.c.l.b16 %v93
  %v809 = vunpack.c.h.b16 %v93
  %v810 = vunpack.c.l.b16 %v94
  %v811 = vunpack.c.h.b16 %v94
  %v812 = vunpack.c.l.b16 %v95
  %v813 = vunpack.c.h.b16 %v95
  %v814 = vunpack.c.l.b16 %v96
  %v815 = vunpack.c.h.b16 %v96
  %v816 = vunpack.c.l.b16 %v97
  %v817 = vunpack.c.h.b16 %v97
  %v818 = vunpack.c.l.b16 %v98
  %v819 = vunpack.c.h.b16 %v98
  %v820 = vunpack.c.l.b16 %v99
  %v821 = vunpack.c.h.b16 %v99
  %v822 = vunpack.c.l.b16 %v100
  %v823 = vunpack.c.h.b16 %v100
  %v824 = vunpack.c.l.b16 %v101
  %v825 = vunpack.c.h.b16 %v101
  %v826 = vunpack.c.l.b16 %v102
  %v827 = vunpack.c.h.b16 %v102
  %v828 = vunpack.c.l.b16 %v103
  %v829 = vunpack.c.h.b16 %v103
  %v830 = vunpack.c.l.b16 %v104
  %v831 = vunpack.c.h.b16 %v104
  %v832 = vunpack.c.l.b16 %v105
  %v833 = vunpack.c.h.b16 %v105
  %v834 = vunpack.c.l.b16 %v106
  %v835 = vunpack.c.h.b16 %v106
  %v836 = vunpack.c.l.b16 %v107
  %v837 = vunpack.c.h.b16 %v107
  %v838 = vunpack.c.l.b16 %v108
  %v839 = vunpack.c.h.b16 %v108
  %v840 = vunpack.c.l.b16 %v109
  %v841 = vunpack.c.h.b16 %v109
  %v842 = vunpack.c.l.b16 %v110
  %v843 = vunpack.c.h.b16 %v110
  %v844 = vunpack.c.l.b16 %v111
  %v845 = vunpack.c.h.b16 %v111
  %v846 = vunpack.c.l.b16 %v112
  %v847 = vunpack.c.h.b16 %v112
  %v848 = vunpack.c.l.b16 %v113
  %v849 = vunpack.c.h.b16 %v113
  %v850 = vunpack.c.l.b16 %v114
  %v851 = vunpack.c.h.b16 %v114
  %v852 = vunpack.c.l.b16 %v115
  %v853 = vunpack.c.h.b16 %v115
  %v854 = vunpack.c.l.b16 %v116
  %v855 = vunpack.c.h.b16 %v116
  %v856 = vunpack.c.l.b16 %v117
  %v857 = vunpack.c.h.b16 %v117
  %v858 = vunpack.c.l.b16 %v118
  %v859 = vunpack.c.h.b16 %v118
  %v860 = vunpack.c.l.b16 %v119
  %v861 = vunpack.c.h.b16 %v119
  %v862 = vunpack.c.l.b16 %v120
  %v863 = vunpack.c.h.b16 %v120
  %v864 = vunpack.c.l.b16 %v121
  %v865 = vunpack.c.h.b16 %v121
  %v866 = vunpack.c.l.b16 %v122
  %v867 = vunpack.c.h.b16 %v122
  %v868 = vunpack.c.l.b16 %v123
  %v869 = vunpack.c.h.b16 %v123
  %v870 = vunpack.c.l.b16 %v124
  %v871 = vunpack.c.h.b16 %v124
  %v872 = vunpack.c.l.b16 %v125
  %v873 = vunpack.c.h.b16 %v125
  %v874 = vunpack.c.l.b16 %v126
  %v875 = vunpack.c.h.b16 %v126
  %v876 = vunpack.c.l.b16 %v127
  %v877 = vunpack.c.h.b16 %v127
  %v878 = vunpack.c.l.b16 %v128
  %v879 = vunpack.c.h.b16 %v128
  %v880 = vunpack.c.l.b16 %v129
  %v881 = vunpack.c.h.b16 %v129
  %v882 = vunpack.c.l.b16 %v130
  %v883 = vunpack.c.h.b16 %v130
  %v884 = vunpack.c.l.b16 %v131
  %v885 = vunpack.c.h.b16 %v131
  %v886 = vunpack.c.l.b16 %v132
  %v887 = vunpack.c.h.b16 %v132
  %v888 = vunpack.c.l.b16 %v133
  %v889 = vunpack.c.h.b16 %v133
  %v890 = vunpack.c.l.b16 %v134
  %v891 = vunpack.c.h.b16 %v134
  %v892 = vunpack.c.l.b16 %v135
  %v893 = vunpack.c.h.b16 %v135
  %v894 = vunpack.c.l.b16 %v136
  %v895 = vunpack.c.h.b16 %v136
  %v896 = vunpack.c.l.b16 %v137
  %v897 = vunpack.c.h.b16 %v137
  %v898 = vunpack.c.l.b16 %v138
  %v899 = vunpack.c.h.b16 %v138
  %v900 = vunpack.c.l.b16 %v139
  %v901 = vunpack.c.h.b16 %v139
  %v902 = vunpack.c.l.b16 %v140
  %v903 = vunpack.c.h.b16 %v140
  %v904 = vunpack.c.l.b16 %v141
  %v905 = vunpack.c.h.b16 %v141
  %v906 = vunpack.c.l.b16 %v142
  %v907 = vunpack.c.h.b16 %v142
  %v908 = vunpack.c.l.b16 %v143
  %v909 = vunpack.c.h.b16 %v143
  %v910 = vunpack.c.l.b16 %v144
  %v911 = vunpack.c.h.b16 %v144
  %v912 = vunpack.c.l.b16 %v145
  %v913 = vunpack.c.h.b16 %v145
  %v914 = vunpack.c.l.b16 %v146
  %v915 = vunpack.c.h.b16 %v146
  %v916 = vunpack.c.l.b16 %v147
  %v917 = vunpack.c.h.b16 %v147
  %v918 = vunpack.c.l.b16 %v148
  %v919 = vunpack.c.h.b16 %v148
  %v920 = vunpack.c.l.b16 %v149
  %v921 = vunpack.c.h.b16 %v149
  %v922 = vunpack.c.l.b16 %v150
  %v923 = vunpack.c.h.b16 %v150
  %v924 = vunpack.c.l.b16 %v151
  %v925 = vunpack.c.h.b16 %v151
  %v926 = vunpack.c.l.b16 %v152
  %v927 = vunpack.c.h.b16 %v152
  %v928 = vunpack.c.l.b16 %v153
  %v929 = vunpack.c.h.b16 %v153
  %v930 = vunpack.c.l.b16 %v154
  %v931 = vunpack.c.h.b16 %v154
  %v932 = vunpack.c.l.b16 %v155
  %v933 = vunpack.c.h.b16 %v155
  %v934 = vunpack.c.l.b16 %v156
  %v935 = vunpack.c.h.b16 %v156
  %v936 = vunpack.c.l.b16 %v157
  %v937 = vunpack.c.h.b16 %v157
  %v938 = vunpack.c.l.b16 %v158
  %v939 = vunpack.c.h.b16 %v158
  %v940 = vunpack.c.l.b16 %v159
  %v941 = vunpack.c.h.b16 %v159
  %v942 = vunpack.c.l.b16 %v160
  %v943 = vunpack.c.h.b16 %v160
  %v944 = vunpack.c.l.b16 %v161
  %v945 = vunpack.c.h.b16 %v161
  %v946 = vunpack.c.l.b16 %v162
  %v947 = vunpack.c.h.b16 %v162
  %v948 = vunpack.c.l.b16 %v163
  %v949 = vunpack.c.h.b16 %v163
  %v950 = vunpack.c.l.b16 %v164
  %v951 = vunpack.c.h.b16 %v164
  %v952 = vunpack.c.l.b16 %v165
  %v953 = vunpack.c.h.b16 %v165
  %v954 = vunpack.c.l.b16 %v166
  %v955 = vunpack.c.h.b16 %v166
  %v956 = vunpack.c.l.b16 %v167
  %v957 = vunpack.c.h.b16 %v167
  %v958 = vunpack.c.l.b16 %v168
  %v959 = vunpack.c.h.b16 %v168
  %v960 = vunpack.c.l.b16 %v169
  %v961 = vunpack.c.h.b16 %v169
  %v962 = vunpack.c.l.b16 %v170
  %v963 = vunpack.c.h.b16 %v170
  %v964 = vunpack.c.l.b16 %v171
  %v965 = vunpack.c.h.b16 %v171
  %v966 = vunpack.c.l.b16 %v172
  %v967 = vunpack.c.h.b16 %v172
  %v968 = vunpack.c.l.b16 %v173
  %v969 = vunpack.c.h.b16 %v173
  %v970 = vunpack.c.l.b16 %v174
  %v971 = vunpack.c.h.b16 %v174
  %v972 = vunpack.c.l.b16 %v175
  %v973 = vunpack.c.h.b16 %v175
  %v974 = vunpack.c.l.b16 %v176
  %v975 = vunpack.c.h.b16 %v176
  %v976 = vunpack.c.l.b16 %v177
  %v977 = vunpack.c.h.b16 %v177
  %v978 = vunpack.c.l.b16 %v178
  %v979 = vunpack.c.h.b16 %v178
  %v980 = vunpack.c.l.b16 %v179
  %v981 = vunpack.c.h.b16 %v179
  %v982 = vunpack.c.l.b16 %v180
  %v983 = vunpack.c.h.b16 %v180
  %v984 = vunpack.c.l.b16 %v181
  %v985 = vunpack.c.h.b16 %v181
  %v986 = vunpack.c.l.b16 %v182
  %v987 = vunpack.c.h.b16 %v182
  %v988 = vunpack.c.l.b16 %v183
  %v989 = vunpack.c.h.b16 %v183
  %v990 = vunpack.c.l.b16 %v184
  %v991 = vunpack.c.h.b16 %v184
  %v992 = vunpack.c.l.b16 %v185
  %v993 = vunpack.c.h.b16 %v185
  %v994 = vunpack.c.l.b16 %v186
  %v995 = vunpack.c.h.b16 %v186
  %v996 = vunpack.c.l.b16 %v187
  %v997 = vunpack.c.h.b16 %v187
  %v998 = vunpack.c.l.b16 %v188
  %v999 = vunpack.c.h.b16 %v188
  %v1000 = vunpack.c.l.b16 %v189
  %v1001 = vunpack.c.h.b16 %v189
  %v1002 = vunpack.c.l.b16 %v190
  %v1003 = vunpack.c.h.b16 %v190
  %v1004 = vunpack.c.l.b16 %v191
  %v1005 = vunpack.c.h.b16 %v191
  %v1006 = vunpack.c.l.b16 %v192
  %v1007 = vunpack.c.h.b16 %v192
  %v1008 = vunpack.c.l.b16 %v193
  %v1009 = vunpack.c.h.b16 %v193
  %v1010 = vunpack.c.l.b16 %v194
  %v1011 = vunpack.c.h.b16 %v194
  %v1012 = vunpack.c.l.b16 %v195
  %v1013 = vunpack.c.h.b16 %v195
  %v1014 = vunpack.c.l.b16 %v196
  %v1015 = vunpack.c.h.b16 %v196
  %v1016 = vunpack.c.l.b16 %v197
  %v1017 = vunpack.c.h.b16 %v197
  %v1018 = vunpack.c.l.b16 %v198
  %v1019 = vunpack.c.h.b16 %v198
  %v1020 = vunpack.c.l.b16 %v199
  %v1021 = vunpack.c.h.b16 %v199
  %v1022 = vunpack.c.l.b16 %v200
  %v1023 = vunpack.c.h.b16 %v200
  %v1024 = vunpack.c.l.b16 %v201
  %v1025 = vunpack.c.h.b16 %v201
  %v1026 = vunpack.c.l.b16 %v202
  %v1027 = vunpack.c.h.b16 %v202
  %v1028 = vunpack.c.l.b16 %v203
  %v1029 = vunpack.c.h.b16 %v203
  %v1030 = vunpack.c.l.b16 %v204
  %v1031 = vunpack.c.h.b16 %v204
  %v1032 = vunpack.c.l.b16 %v205
  %v1033 = vunpack.c.h.b16 %v205
  %v1034 = vunpack.c.l.b16 %v206
  %v1035 = vunpack.c.h.b16 %v206
  %v1036 = vunpack.c.l.b16 %v207
  %v1037 = vunpack.c.h.b16 %v207
  %v1038 = vunpack.c.l.b16 %v208
  %v1039 = vunpack.c.h.b16 %v208
  %v1040 = vunpack.c.l.b16 %v209
  %v1041 = vunpack.c.h.b16 %v209
  %v1042 = vunpack.c.l.b16 %v210
  %v1043 = vunpack.c.h.b16 %v210
  %v1044 = vunpack.c.l.b16 %v211
  %v1045 = vunpack.c.h.b16 %v211
  %v1046 = vunpack.c.l.b16 %v212
  %v1047 = vunpack.c.h.b16 %v212
  %v1048 = vunpack.c.l.b16 %v213
  %v1049 = vunpack.c.h.b16 %v213
  %v1050 = vunpack.c.l.b16 %v214
  %v1051 = vunpack.c.h.b16 %v214
  %v1052 = vunpack.c.l.b16 %v215
  %v1053 = vunpack.c.h.b16 %v215
  %v1054 = vunpack.c.l.b16 %v216
  %v1055 = vunpack.c.h.b16 %v216
  %v1056 = vunpack.c.l.b16 %v217
  %v1057 = vunpack.c.h.b16 %v217
  %v1058 = vunpack.c.l.b16 %v218
  %v1059 = vunpack.c.h.b16 %v218
  %v1060 = vunpack.c.l.b16 %v219
  %v1061 = vunpack.c.h.b16 %v219
  %v1062 = vunpack.c.l.b16 %v220
  %v1063 = vunpack.c.h.b16 %v220
  %v1064 = vunpack.c.l.b16 %v221
  %v1065 = vunpack.c.h.b16 %v221
  %v1066 = vunpack.c.l.b16 %v222
  %v1067 = vunpack.c.h.b16 %v222
  %v1068 = vunpack.c.l.b16 %v223
  %v1069 = vunpack.c.h.b16 %v223
  %v1070 = vunpack.c.l.b16 %v224
  %v1071 = vunpack.c.h.b16 %v224
  %v1072 = vunpack.c.l.b16 %v225
  %v1073 = vunpack.c.h.b16 %v225
  %v1074 = vunpack.c.l.b16 %v226
  %v1075 = vunpack.c.h.b16 %v226
  %v1076 = vunpack.c.l.b16 %v227
  %v1077 = vunpack.c.h.b16 %v227
  %v1078 = vunpack.c.l.b16 %v228
  %v1079 = vunpack.c.h.b16 %v228
  %v1080 = vunpack.c.l.b16 %v229
  %v1081 = vunpack.c.h.b16 %v229
  %v1082 = vunpack.c.l.b16 %v230
  %v1083 = vunpack.c.h.b16 %v230
  %v1084 = vunpack.c.l.b16 %v231
  %v1085 = vunpack.c.h.b16 %v231
  %v1086 = vunpack.c.l.b16 %v232
  %v1087 = vunpack.c.h.b16 %v232
  %v1088 = vunpack.c.l.b16 %v233
  %v1089 = vunpack.c.h.b16 %v233
  %v1090 = vunpack.c.l.b16 %v234
  %v1091 = vunpack.c.h.b16 %v234
  %v1092 = vunpack.c.l.b16 %v235
  %v1093 = vunpack.c.h.b16 %v235
  %v1094 = vunpack.c.l.b16 %v236
  %v1095 = vunpack.c.h.b16 %v236
  %v1096 = vunpack.c.l.b16 %v237
  %v1097 = vunpack.c.h.b16 %v237
  %v1098 = vunpack.c.l.b16 %v238
  %v1099 = vunpack.c.h.b16 %v238
  %v1100 = vunpack.c.l.b16 %v239
  %v1101 = vunpack.c.h.b16 %v239
  %v1102 = vunpack.c.l.b16 %v240
  %v1103 = vunpack.c.h.b16 %v240
  %v1104 = vunpack.c.l.b16 %v241
  %v1105 = vunpack.c.h.b16 %v241
  %v1106 = vunpack.c.l.b16 %v242
  %v1107 = vunpack.c.h.b16 %v242
  %v1108 = vunpack.c.l.b16 %v243
  %v1109 = vunpack.c.h.b16 %v243
  %v1110 = vunpack.c.l.b16 %v244
  %v1111 = vunpack.c.h.b16 %v244
  %v1112 = vunpack.c.l.b16 %v245
  %v1113 = vunpack.c.h.b16 %v245
  %v1114 = vunpack.c.l.b16 %v246
  %v1115 = vunpack.c.h.b16 %v246
  %v1116 = vunpack.c.l.b16 %v247
  %v1117 = vunpack.c.h.b16 %v247
  %v1118 = vunpack.c.l.b16 %v248
  %v1119 = vunpack.c.h.b16 %v248
  %v1120 = vunpack.c.l.b16 %v249
  %v1121 = vunpack.c.h.b16 %v249
  %v1122 = vunpack.c.l.b16 %v250
  %v1123 = vunpack.c.h.b16 %v250
  %v1124 = vunpack.c.l.b16 %v251
  %v1125 = vunpack.c.h.b16 %v251
  %v1126 = vunpack.c.l.b16 %v252
  %v1127 = vunpack.c.h.b16 %v252
  %v1128 = vunpack.c.l.b16 %v253
  %v1129 = vunpack.c.h.b16 %v253
  %v1130 = vunpack.c.l.b16 %v254
  %v1131 = vunpack.c.h.b16 %v254
  %v1132 = vunpack.c.l.b16 %v255
  %v1133 = vunpack.c.h.b16 %v255
  %v1134 = vunpack.c.l.b16 %v256
  %v1135 = vunpack.c.h.b16 %v256
  %v1136 = vunpack.c.l.b16 %v257
  %v1137 = vunpack.c.h.b16 %v257
  %v1138 = vunpack.c.l.b16 %v258
  %v1139 = vunpack.c.h.b16 %v258
  %v1140 = vunpack.c.l.b16 %v259
  %v1141 = vunpack.c.h.b16 %v259
  %v1142 = vunpack.c.l.b16 %v260
  %v1143 = vunpack.c.h.b16 %v260
  %v1144 = vunpack.c.l.b16 %v261
  %v1145 = vunpack.c.h.b16 %v261
  %v1146 = vunpack.c.l.b16 %v262
  %v1147 = vunpack.c.h.b16 %v262
  %v1148 = vunpack.c.l.b16 %v263
  %v1149 = vunpack.c.h.b16 %v263
  %v1150 = vunpack.c.l.b16 %v264
  %v1151 = vunpack.c.h.b16 %v264
  %v1152 = vunpack.c.l.b16 %v265
  %v1153 = vunpack.c.h.b16 %v265
  %v1154 = vunpack.c.l.b16 %v266
  %v1155 = vunpack.c.h.b16 %v266
  %v1156 = vunpack.c.l.b16 %v267
  %v1157 = vunpack.c.h.b16 %v267
  %v1158 = vunpack.c.l.b16 %v268
  %v1159 = vunpack.c.h.b16 %v268
  %v1160 = vunpack.c.l.b16 %v269
  %v1161 = vunpack.c.h.b16 %v269
  %v1162 = vunpack.c.l.b16 %v270
  %v1163 = vunpack.c.h.b16 %v270
  %v1164 = vunpack.c.l.b16 %v271
  %v1165 = vunpack.c.h.b16 %v271
  %v1166 = vunpack.c.l.b16 %v272
  %v1167 = vunpack.c.h.b16 %v272
  %v1168 = vunpack.c.l.b16 %v273
  %v1169 = vunpack.c.h.b16 %v273
  %v1170 = vunpack.c.l.b16 %v274
  %v1171 = vunpack.c.h.b16 %v274
  %v1172 = vunpack.c.l.b16 %v275
  %v1173 = vunpack.c.h.b16 %v275
  %v1174 = vunpack.c.l.b16 %v276
  %v1175 = vunpack.c.h.b16 %v276
  %v1176 = vunpack.c.l.b16 %v277
  %v1177 = vunpack.c.h.b16 %v277
  %v1178 = vunpack.c.l.b16 %v278
  %v1179 = vunpack.c.h.b16 %v278
  %v1180 = vunpack.c.l.b16 %v279
  %v1181 = vunpack.c.h.b16 %v279
  %v1182 = vunpack.c.l.b16 %v280
  %v1183 = vunpack.c.h.b16 %v280
  %v1184 = vunpack.c.l.b16 %v281
  %v1185 = vunpack.c.h.b16 %v281
  %v1186 = vunpack.c.l.b16 %v282
  %v1187 = vunpack.c.h.b16 %v282
  %v1188 = vunpack.c.l.b16 %v283
  %v1189 = vunpack.c.h.b16 %v283
  %v1190 = vunpack.c.l.b16 %v284
  %v1191 = vunpack.c.h.b16 %v284
  %v1192 = vunpack.c.l.b16 %v285
  %v1193 = vunpack.c.h.b16 %v285
  %v1194 = vunpack.c.l.b16 %v286
  %v1195 = vunpack.c.h.b16 %v286
  %v1196 = vunpack.c.l.b16 %v287
  %v1197 = vunpack.c.h.b16 %v287
  %v1198 = vunpack.c.l.b16 %v288
  %v1199 = vunpack.c.h.b16 %v288
  %v1200 = vunpack.c.l.b16 %v289
  %v1201 = vunpack.c.h.b16 %v289
  %v1202 = vunpack.c.l.b16 %v290
  %v1203 = vunpack.c.h.b16 %v290
  %v1204 = vunpack.c.l.b16 %v291
  %v1205 = vunpack.c.h.b16 %v291
  %v1206 = vunpack.c.l.b16 %v292
  %v1207 = vunpack.c.h.b16 %v292
  %v1208 = vunpack.c.l.b16 %v293
  %v1209 = vunpack.c.h.b16 %v293
  %v1210 = vunpack.c.l.b16 %v294
  %v1211 = vunpack.c.h.b16 %v294
  %v1212 = vunpack.c.l.b16 %v295
  %v1213 = vunpack.c.h.b16 %v295
  %v1214 = vunpack.c.l.b16 %v296
  %v1215 = vunpack.c.h.b16 %v296
  %v1216 = vunpack.c.l.b16 %v297
  %v1217 = vunpack.c.h.b16 %v297
  %v1218 = vunpack.c.l.b16 %v298
  %v1219 = vunpack.c.h.b16 %v298
  %v1220 = vunpack.c.l.b16 %v299
  %v1221 = vunpack.c.h.b16 %v299
  %v1222 = vunpack.c.l.b16 %v300
  %v1223 = vunpack.c.h.b16 %v300
  %v1224 = vunpack.c.l.b16 %v301
  %v1225 = vunpack.c.h.b16 %v301
  %v1226 = vunpack.c.l.b16 %v302
  %v1227 = vunpack.c.h.b16 %v302
  %v1228 = vunpack.c.l.b16 %v303
  %v1229 = vunpack.c.h.b16 %v303
  %v1230 = vunpack.c.l.b16 %v304
  %v1231 = vunpack.c.h.b16 %v304
  %v1232 = vunpack.c.l.b16 %v305
  %v1233 = vunpack.c.h.b16 %v305
  %v1234 = vunpack.c.l.b16 %v306
  %v1235 = vunpack.c.h.b16 %v306
  %v1236 = vunpack.c.l.b16 %v307
  %v1237 = vunpack.c.h.b16 %v307
  %v1238 = vunpack.c.l.b16 %v308
  %v1239 = vunpack.c.h.b16 %v308
  %v1240 = vunpack.c.l.b16 %v309
  %v1241 = vunpack.c.h.b16 %v309
  %v1242 = vunpack.c.l.b16 %v310
  %v1243 = vunpack.c.h.b16 %v310
  %v1244 = vpack.c.b16 %v670, %v668
  %v1245 = vpack.c.b16 %v671, %v669
  %v1246 = vpack.c.b16 %v674, %v672
  %v1247 = vpack.c.b16 %v675, %v673
  %v1248 = vpack.c.b16 %v678, %v676
  %v1249 = vpack.c.b16 %v679, %v677
  %v1250 = vpack.c.b16 %v682, %v680
  %v1251 = vpack.c.b16 %v683, %v681
  %v1252 = vpack.c.b16 %v686, %v684
  %v1253 = vpack.c.b16 %v687, %v685
  %v1254 = vpack.c.b16 %v690, %v688
  %v1255 = vpack.c.b16 %v691, %v689
  %v1256 = vpack.c.b16 %v694, %v692
  %v1257 = vpack.c.b16 %v695, %v693
  %v1258 = vpack.c.b16 %v698, %v696
  %v1259 = vpack.c.b16 %v699, %v697
  %v1260 = vpack.c.b16 %v702, %v700
  %v1261 = vpack.c.b16 %v703, %v701
  %v1262 = vpack.c.b16 %v706, %v704
  %v1263 = vpack.c.b16 %v707, %v705
  %v1264 = vpack.c.b16 %v710, %v708
  %v1265 = vpack.c.b16 %v711, %v709
  %v1266 = vpack.c.b16 %v714, %v712
  %v1267 = vpack.c.b16 %v715, %v713
  %v1268 = vpack.c.b16 %v718, %v716
  %v1269 = vpack.c.b16 %v719, %v717
  %v1270 = vpack.c.b16 %v722, %v720
  %v1271 = vpack.c.b16 %v723, %v721
  %v1272 = vpack.c.b16 %v726, %v724
  %v1273 = vpack.c.b16 %v727, %v725
  %v1274 = vpack.c.b16 %v730, %v728
  %v1275 = vpack.c.b16 %v731, %v729
  %v1276 = vpack.c.b16 %v734, %v732
  %v1277 = vpack.c.b16 %v735, %v733
  %v1278 = vpack.c.b16 %v738, %v736
  %v1279 = vpack.c.b16 %v739, %v737
  %v1280 = vpack.c.b16 %v742, %v740
  %v1281 = vpack.c.b16 %v743, %v741
  %v1282 = vpack.c.b16 %v746, %v744
  %v1283 = vpack.c.b16 %v747, %v745
  %v1284 = vpack.c.b16 %v750, %v748
  %v1285 = vpack.c.b16 %v751, %v749
  %v1286 = vpack.c.b16 %v754, %v752
  %v1287 = vpack.c.b16 %v755, %v753
  %v1288 = vpack.c.b16 %v758, %v756
  %v1289 = vpack.c.b16 %v759, %v757
  %v1290 = vpack.c.b16 %v762, %v760
  %v1291 = vpack.c.b16 %v763, %v761
  %v1292 = vpack.c.b16 %v766, %v764
  %v1293 = vpack.c.b16 %v767, %v765
  %v1294 = vpack.c.b16 %v770, %v768
  %v1295 = vpack.c.b16 %v771, %v769
  %v1296 = vpack.c.b16 %v774, %v772
  %v1297 = vpack.c.b16 %v775, %v773
  %v1298 = vpack.c.b16 %v778, %v776
  %v1299 = vpack.c.b16 %v779, %v777
  %v1300 = vpack.c.b16 %v782, %v780
  %v1301 = vpack.c.b16 %v783, %v781
  %v1302 = vpack.c.b16 %v786, %v784
  %v1303 = vpack.c.b16 %v787, %v785
  %v1304 = vpack.c.b16 %v790, %v788
  %v1305 = vpack.c.b16 %v791, %v789
  %v1306 = vpack.c.b16 %v794, %v792
  %v1307 = vpack.c.b16 %v795, %v793
  %v1308 = vpack.c.b16 %v798, %v796
  %v1309 = vpack.c.b16 %v799, %v797
  %v1310 = vpack.c.b16 %v802, %v800
  %v1311 = vpack.c.b16 %v803, %v801
  %v1312 = vpack.c.b16 %v806, %v804
  %v1313 = vpack.c.b16 %v807, %v805
  %v1314 = vpack.c.b16 %v810, %v808
  %v1315 = vpack.c.b16 %v811, %v809
  %v1316 = vpack.c.b16 %v814, %v812
  %v1317 = vpack.c.b16 %v815, %v813
  %v1318 = vpack.c.b16 %v818, %v816
  %v1319 = vpack.c.b16 %v819, %v817
  %v1320 = vpack.c.b16 %v822, %v820
  %v1321 = vpack.c.b16 %v823, %v821
  %v1322 = vpack.c.b16 %v826, %v824
  %v1323 = vpack.c.b16 %v827, %v825
  %v1324 = vpack.c.b16 %v830, %v828
  %v1325 = vpack.c.b16 %v831, %v829
  %v1326 = vpack.c.b16 %v834, %v832
  %v1327 = vpack.c.b16 %v835, %v833
  %v1328 = vpack.c.b16 %v838, %v836
  %v1329 = vpack.c.b16 %v839, %v837
  %v1330 = vpack.c.b16 %v842, %v840
  %v1331 = vpack.c.b16 %v843, %v841
  %v1332 = vpack.c.b16 %v846, %v844
  %v1333 = vpack.c.b16 %v847, %v845
  %v1334 = vpack.c.b16 %v850, %v848
  %v1335 = vpack.c.b16 %v851, %v849
  %v1336 = vpack.c.b16 %v854, %v852
  %v1337 = vpack.c.b16 %v855, %v853
  %v1338 = vpack.c.b16 %v858, %v856
  %v1339 = vpack.c.b16 %v859, %v857
  %v1340 = vpack.c.b16 %v862, %v860
  %v1341 = vpack.c.b16 %v863, %v861
  %v1342 = vpack.c.b16 %v866, %v864
  %v1343 = vpack.c.b16 %v867, %v865
  %v1344 = vpack.c.b16 %v870, %v868
  %v1345 = vpack.c.b16 %v871, %v869
  %v1346 = vpack.c.b16 %v874, %v872
  %v1347 = vpack.c.b16 %v875, %v873
  %v1348 = vpack.c.b16 %v878, %v876
  %v1349 = vpack.c.b16 %v879, %v877
  %v1350 = vpack.c.b16 %v882, %v880
  %v1351 = vpack.c.b16 %v883, %v881
  %v1352 = vpack.c.b16 %v886, %v884
  %v1353 = vpack.c.b16 %v887, %v885
  %v1354 = vpack.c.b16 %v890, %v888
  %v1355 = vpack.c.b16 %v891, %v889
  %v1356 = vpack.c.b16 %v894, %v892
  %v1357 = vpack.c.b16 %v895, %v893
  %v1358 = vpack.c.b16 %v898, %v896
  %v1359 = vpack.c.b16 %v899, %v897
  %v1360 = vpack.c.b16 %v902, %v900
  %v1361 = vpack.c.b16 %v903, %v901
  %v1362 = vpack.c.b16 %v906, %v904
  %v1363 = vpack.c.b16 %v907, %v905
  %v1364 = vpack.c.b16 %v910, %v908
  %v1365 = vpack.c.b16 %v911, %v909
  %v1366 = vpack.c.b16 %v914, %v912
  %v1367 = vpack.c.b16 %v915, %v913
  %v1368 = vpack.c.b16 %v918, %v916
  %v1369 = vpack.c.b16 %v919, %v917
  %v1370 = vpack.c.b16 %v922, %v920
  %v1371 = vpack.c.b16 %v923, %v921
  %v1372 = vpack.c.b16 %v926, %v924
  %v1373 = vpack.c.b16 %v927, %v925
  %v1374 = vpack.c.b16 %v930, %v928
  %v1375 = vpack.c.b16 %v931, %v929
  %v1376 = vpack.c.b16 %v934, %v932
  %v1377 = vpack.c.b16 %v935, %v933
  %v1378 = vpack.c.b16 %v938, %v936
  %v1379 = vpack.c.b16 %v939, %v937
  %v1380 = vpack.c.b16 %v942, %v940
  %v1381 = vpack.c.b16 %v943, %v941
  %v1382 = vpack.c.b16 %v946, %v944
  %v1383 = vpack.c.b16 %v947, %v945
  %v1384 = vpack.c.b16 %v950, %v948
  %v1385 = vpack.c.b16 %v951, %v949
  %v1386 = vpack.c.b16 %v954, %v952
  %v1387 = vpack.c.b16 %v955, %v953
  %v1388 = vpack.c.b16 %v958, %v956
  %v1389 = vpack.c.b16 %v959, %v957
  %v1390 = vpack.c.b16 %v962, %v960
  %v1391 = vpack.c.b16 %v963, %v961
  %v1392 = vpack.c.b16 %v966, %v964
  %v1393 = vpack.c.b16 %v967, %v965
  %v1394 = vpack.c.b16 %v970, %v968
  %v1395 = vpack.c.b16 %v971, %v969
  %v1396 = vpack.c.b16 %v974, %v972
  %v1397 = vpack.c.b16 %v975, %v973
  %v1398 = vpack.c.b16 %v978, %v976
  %v1399 = vpack.c.b16 %v979, %v977
  %v1400 = vpack.c.b16 %v982, %v980
  %v1401 = vpack.c.b16 %v983, %v981
  %v1402 = vpack.c.b16 %v986, %v984
  %v1403 = vpack.c.b16 %v987, %v985
  %v1404 = vpack.c.b16 %v990, %v988
  %v1405 = vpack.c.b16 %v991, %v989
  %v1406 = vpack.c.b16 %v994, %v992
  %v1407 = vpack.c.b16 %v995, %v993
  %v1408 = vpack.c.b16 %v998, %v996
  %v1409 = vpack.c.b16 %v999, %v997
  %v1410 = vpack.c.b16 %v1002, %v1000
  %v1411 = vpack.c.b16 %v1003, %v1001
  %v1412 = vpack.c.b16 %v1006, %v1004
  %v1413 = vpack.c.b16 %v1007, %v1005
  %v1414 = vpack.c.b16 %v1010, %v1008
  %v1415 = vpack.c.b16 %v1011, %v1009
  %v1416 = vpack.c.b16 %v1014, %v1012
  %v1417 = vpack.c.b16 %v1015, %v1013
  %v1418 = vpack.c.b16 %v1018, %v1016
  %v1419 = vpack.c.b16 %v1019, %v1017
  %v1420 = vpack.c.b16 %v1022, %v1020
  %v1421 = vpack.c.b16 %v1023, %v1021
  %v1422 = vpack.c.b16 %v1026, %v1024
  %v1423 = vpack.c.b16 %v1027, %v1025
  %v1424 = vpack.c.b16 %v1030, %v1028
  %v1425 = vpack.c.b16 %v1031, %v1029
  %v1426 = vpack.c.b16 %v1034, %v1032
  %v1427 = vpack.c.b16 %v1035, %v1033
  %v1428 = vpack.c.b16 %v1038, %v1036
  %v1429 = vpack.c.b16 %v1039, %v1037
  %v1430 = vpack.c.b16 %v1042, %v1040
  %v1431 = vpack.c.b16 %v1043, %v1041
  %v1432 = vpack.c.b16 %v1046, %v1044
  %v1433 = vpack.c.b16 %v1047, %v1045
  %v1434 = vpack.c.b16 %v1050, %v1048
  %v1435 = vpack.c.b16 %v1051, %v1049
  %v1436 = vpack.c.b16 %v1054, %v1052
  %v1437 = vpack.c.b16 %v1055, %v1053
  %v1438 = vpack.c.b16 %v1058, %v1056
  %v1439 = vpack.c.b16 %v1059, %v1057
  %v1440 = vpack.c.b16 %v1062, %v1060
  %v1441 = vpack.c.b16 %v1063, %v1061
  %v1442 = vpack.c.b16 %v1066, %v1064
  %v1443 = vpack.c.b16 %v1067, %v1065
  %v1444 = vpack.c.b16 %v1070, %v1068
  %v1445 = vpack.c.b16 %v1071, %v1069
  %v1446 = vpack.c.b16 %v1074, %v1072
  %v1447 = vpack.c.b16 %v1075, %v1073
  %v1448 = vpack.c.b16 %v1078, %v1076
  %v1449 = vpack.c.b16 %v1079, %v1077
  %v1450 = vpack.c.b16 %v1082, %v1080
  %v1451 = vpack.c.b16 %v1083, %v1081
  %v1452 = vpack.c.b16 %v1086, %v1084
  %v1453 = vpack.c.b16 %v1087, %v1085
  %v1454 = vpack.c.b16 %v1090, %v1088
  %v1455 = vpack.c.b16 %v1091, %v1089
  %v1456 = vpack.c.b16 %v1094, %v1092
  %v1457 = vpack.c.b16 %v1095, %v1093
  %v1458 = vpack.c.b16 %v1098, %v1096
  %v1459 = vpack.c.b16 %v1099, %v1097
  %v1460 = vpack.c.b16 %v1102, %v1100
  %v1461 = vpack.c.b16 %v1103, %v1101
  %v1462 = vpack.c.b16 %v1106, %v1104
  %v1463 = vpack.c.b16 %v1107, %v1105
  %v1464 = vpack.c.b16 %v1110, %v1108
  %v1465 = vpack.c.b16 %v1111, %v1109
  %v1466 = vpack.c.b16 %v1114, %v1112
  %v1467 = vpack.c.b16 %v1115, %v1113
  %v1468 = vpack.c.b16 %v1118, %v1116
  %v1469 = vpack.c.b16 %v1119, %v1117
  %v1470 = vpack.c.b16 %v1122, %v1120
  %v1471 = vpack.c.b16 %v1123, %v1121
  %v1472 = vpack.c.b16 %v1126, %v1124
  %v1473 = vpack.c.b16 %v1127, %v1125
  %v1474 = vpack.c.b16 %v1130, %v1128
  %v1475 = vpack.c.b16 %v1131, %v1129
  %v1476 = vpack.c.b16 %v1134, %v1132
  %v1477 = vpack.c.b16 %v1135, %v1133
  %v1478 = vpack.c.b16 %v1138, %v1136
  %v1479 = vpack.c.b16 %v1139, %v1137
  %v1480 = vpack.c.b16 %v1142, %v1140
  %v1481 = vpack.c.b16 %v1143, %v1141
  %v1482 = vpack.c.b16 %v1146, %v1144
  %v1483 = vpack.c.b16 %v1147, %v1145
  %v1484 = vpack.c.b16 %v1150, %v1148
  %v1485 = vpack.c.b16 %v1151, %v1149
  %v1486 = vpack.c.b16 %v1154, %v1152
  %v1487 = vpack.c.b16 %v1155, %v1153
  %v1488 = vpack.c.b16 %v1158, %v1156
  %v1489 = vpack.c.b16 %v1159, %v1157
  %v1490 = vpack.c.b16 %v1162, %v1160
  %v1491 = vpack.c.b16 %v1163, %v1161
  %v1492 = vpack.c.b16 %v1166, %v1164
  %v1493 = vpack.c.b16 %v1167, %v1165
  %v1494 = vpack.c.b16 %v1170, %v1168
  %v1495 = vpack.c.b16 %v1171, %v1169
  %v1496 = vpack.c.b16 %v1174, %v1172
  %v1497 = vpack.c.b16 %v1175, %v1173
  %v1498 = vpack.c.b16 %v1178, %v1176
  %v1499 = vpack.c.b16 %v1179, %v1177
  %v1500 = vpack.c.b16 %v1182, %v1180
  %v1501 = vpack.c.b16 %v1183, %v1181
  %v1502 = vpack.c.b16 %v1186, %v1184
  %v1503 = vpack.c.b16 %v1187, %v1185
  %v1504 = vpack.c.b16 %v1190, %v1188
  %v1505 = vpack.c.b16 %v1191, %v1189
  %v1506 = vpack.c.b16 %v1194, %v1192
  %v1507 = vpack.c.b16 %v1195, %v1193
  %v1508 = vpack.c.b16 %v1198, %v1196
  %v1509 = vpack.c.b16 %v1199, %v1197
  %v1510 = vpack.c.b16 %v1202, %v1200
  %v1511 = vpack.c.b16 %v1203, %v1201
  %v1512 = vpack.c.b16 %v1206, %v1204
  %v1513 = vpack.c.b16 %v1207, %v1205
  %v1514 = vpack.c.b16 %v1210, %v1208
  %v1515 = vpack.c.b16 %v1211, %v1209
  %v1516 = vpack.c.b16 %v1214, %v1212
  %v1517 = vpack.c.b16 %v1215, %v1213
  %v1518 = vpack.c.b16 %v1218, %v1216
  %v1519 = vpack.c.b16 %v1219, %v1217
  %v1520 = vpack.c.b16 %v1222, %v1220
  %v1521 = vpack.c.b16 %v1223, %v1221
  %v1522 = vpack.c.b16 %v1226, %v1224
  %v1523 = vpack.c.b16 %v1227, %v1225
  %v1524 = vpack.c.b16 %v1230, %v1228
  %v1525 = vpack.c.b16 %v1231, %v1229
  %v1526 = vpack.c.b16 %v1234, %v1232
  %v1527 = vpack.c.b16 %v1235, %v1233
  %v1528 = vpack.c.b16 %v1238, %v1236
  %v1529 = vpack.c.b16 %v1239, %v1237
  %v1530 = vpack.c.b16 %v1242, %v1240
  %v1531 = vpack.c.b16 %v1243, %v1241
  %1820 = vmatpush.bf16.msra.mxu0 %v1258
  %1821 = vmatpush.bf16.msra.mxu0 %v1256
  %1822 = vmatpush.bf16.msra.mxu0 %v1254
  %1823 = vmatpush.bf16.msra.mxu0 %v1252
  %1824 = vmatpush.bf16.msra.mxu0 %v1250
  %1825 = vmatpush.bf16.msra.mxu0 %v1248
  %1826 = vmatpush.bf16.msra.mxu0 %v1246
  %1827 = vmatpush.bf16.msra.mxu0 %v1244
  %1828 = vmatmul.bf16.gmra.mxu0 %v344
  %v1829 = vpop.f32.mrf.mxu0
  %v1830 = vadd.f32 %v313, %v1829
  %v1831 = vpop.f32.mrf.mxu0
  %1832 = vdwg.mxu0
  %1833 = vmatpush.bf16.msra.mxu0 %v1274
  %1834 = vmatpush.bf16.msra.mxu0 %v1272
  %1835 = vmatpush.bf16.msra.mxu0 %v1270
  %1836 = vmatpush.bf16.msra.mxu0 %v1268
  %1837 = vmatpush.bf16.msra.mxu0 %v1266
  %1838 = vmatpush.bf16.msra.mxu0 %v1264
  %1839 = vmatpush.bf16.msra.mxu0 %v1262
  %1840 = vmatpush.bf16.msra.mxu0 %v1260
  %1841 = vmatmul.bf16.gmra.mxu0 %v345
  %v1842 = vpop.f32.mrf.mxu0
  %v1843 = vadd.f32 %v1830, %v1842
  %v1844 = vpop.f32.mrf.mxu0
  %1845 = vdwg.mxu0
  %1846 = vmatpush.bf16.msra.mxu0 %v1290
  %1847 = vmatpush.bf16.msra.mxu0 %v1288
  %1848 = vmatpush.bf16.msra.mxu0 %v1286
  %1849 = vmatpush.bf16.msra.mxu0 %v1284
  %1850 = vmatpush.bf16.msra.mxu0 %v1282
  %1851 = vmatpush.bf16.msra.mxu0 %v1280
  %1852 = vmatpush.bf16.msra.mxu0 %v1278
  %1853 = vmatpush.bf16.msra.mxu0 %v1276
  %1854 = vmatmul.bf16.gmra.mxu0 %v346
  %v1855 = vpop.f32.mrf.mxu0
  %v1856 = vadd.f32 %v1843, %v1855
  %v1857 = vpop.f32.mrf.mxu0
  %1858 = vdwg.mxu0
  %1859 = vmatpush.bf16.msra.mxu0 %v1306
  %1860 = vmatpush.bf16.msra.mxu0 %v1304
  %1861 = vmatpush.bf16.msra.mxu0 %v1302
  %1862 = vmatpush.bf16.msra.mxu0 %v1300
  %1863 = vmatpush.bf16.msra.mxu0 %v1298
  %1864 = vmatpush.bf16.msra.mxu0 %v1296
  %1865 = vmatpush.bf16.msra.mxu0 %v1294
  %1866 = vmatpush.bf16.msra.mxu0 %v1292
  %1867 = vmatmul.bf16.gmra.mxu0 %v347
  %v1868 = vpop.f32.mrf.mxu0
  %v1869 = vadd.f32 %v1856, %v1868
  %v1870 = vpop.f32.mrf.mxu0
  %1871 = vdwg.mxu0
  %1872 = vmatpush.bf16.msra.mxu0 %v1322
  %1873 = vmatpush.bf16.msra.mxu0 %v1320
  %1874 = vmatpush.bf16.msra.mxu0 %v1318
  %1875 = vmatpush.bf16.msra.mxu0 %v1316
  %1876 = vmatpush.bf16.msra.mxu0 %v1314
  %1877 = vmatpush.bf16.msra.mxu0 %v1312
  %1878 = vmatpush.bf16.msra.mxu0 %v1310
  %1879 = vmatpush.bf16.msra.mxu0 %v1308
  %1880 = vmatmul.bf16.gmra.mxu0 %v348
  %v1881 = vpop.f32.mrf.mxu0
  %v1882 = vadd.f32 %v1869, %v1881
  %v1883 = vpop.f32.mrf.mxu0
  %1884 = vdwg.mxu0
  %1885 = vmatpush.bf16.msra.mxu0 %v1338
  %1886 = vmatpush.bf16.msra.mxu0 %v1336
  %1887 = vmatpush.bf16.msra.mxu0 %v1334
  %1888 = vmatpush.bf16.msra.mxu0 %v1332
  %1889 = vmatpush.bf16.msra.mxu0 %v1330
  %1890 = vmatpush.bf16.msra.mxu0 %v1328
  %1891 = vmatpush.bf16.msra.mxu0 %v1326
  %1892 = vmatpush.bf16.msra.mxu0 %v1324
  %1893 = vmatmul.bf16.gmra.mxu0 %v349
  %v1894 = vpop.f32.mrf.mxu0
  %v1895 = vadd.f32 %v1882, %v1894
  %v1896 = vpop.f32.mrf.mxu0
  %1897 = vdwg.mxu0
  %1898 = vmatpush.bf16.msra.mxu0 %v1354
  %1899 = vmatpush.bf16.msra.mxu0 %v1352
  %1900 = vmatpush.bf16.msra.mxu0 %v1350
  %1901 = vmatpush.bf16.msra.mxu0 %v1348
  %1902 = vmatpush.bf16.msra.mxu0 %v1346
  %1903 = vmatpush.bf16.msra.mxu0 %v1344
  %1904 = vmatpush.bf16.msra.mxu0 %v1342
  %1905 = vmatpush.bf16.msra.mxu0 %v1340
  %1906 = vmatmul.bf16.gmra.mxu0 %v350
  %v1907 = vpop.f32.mrf.mxu0
  %v1908 = vadd.f32 %v1895, %v1907
  %v1909 = vpop.f32.mrf.mxu0
  %1910 = vdwg.mxu0
  %1911 = vmatpush.bf16.msra.mxu0 %v1370
  %1912 = vmatpush.bf16.msra.mxu0 %v1368
  %1913 = vmatpush.bf16.msra.mxu0 %v1366
  %1914 = vmatpush.bf16.msra.mxu0 %v1364
  %1915 = vmatpush.bf16.msra.mxu0 %v1362
  %1916 = vmatpush.bf16.msra.mxu0 %v1360
  %1917 = vmatpush.bf16.msra.mxu0 %v1358
  %1918 = vmatpush.bf16.msra.mxu0 %v1356
  %1919 = vmatmul.bf16.gmra.mxu0 %v351
  %v1920 = vpop.f32.mrf.mxu0
  %v1921 = vadd.f32 %v1908, %v1920
  %v1922 = vpop.f32.mrf.mxu0
  %1923 = vdwg.mxu0
  %1924 = vmatpush.bf16.msra.mxu0 %v1386
  %1925 = vmatpush.bf16.msra.mxu0 %v1384
  %1926 = vmatpush.bf16.msra.mxu0 %v1382
  %1927 = vmatpush.bf16.msra.mxu0 %v1380
  %1928 = vmatpush.bf16.msra.mxu0 %v1378
  %1929 = vmatpush.bf16.msra.mxu0 %v1376
  %1930 = vmatpush.bf16.msra.mxu0 %v1374
  %1931 = vmatpush.bf16.msra.mxu0 %v1372
  %1932 = vmatmul.bf16.gmra.mxu0 %v352
  %v1933 = vpop.f32.mrf.mxu0
  %v1934 = vadd.f32 %v1921, %v1933
  %v1935 = vpop.f32.mrf.mxu0
  %1936 = vdwg.mxu0
  %1937 = vmatpush.bf16.msra.mxu0 %v1402
  %1938 = vmatpush.bf16.msra.mxu0 %v1400
  %1939 = vmatpush.bf16.msra.mxu0 %v1398
  %1940 = vmatpush.bf16.msra.mxu0 %v1396
  %1941 = vmatpush.bf16.msra.mxu0 %v1394
  %1942 = vmatpush.bf16.msra.mxu0 %v1392
  %1943 = vmatpush.bf16.msra.mxu0 %v1390
  %1944 = vmatpush.bf16.msra.mxu0 %v1388
  %1945 = vmatmul.bf16.gmra.mxu0 %v353
  %v1946 = vpop.f32.mrf.mxu0
  %v1947 = vadd.f32 %v1934, %v1946
  %v1948 = vpop.f32.mrf.mxu0
  %1949 = vdwg.mxu0
  %1950 = vmatpush.bf16.msra.mxu0 %v1418
  %1951 = vmatpush.bf16.msra.mxu0 %v1416
  %1952 = vmatpush.bf16.msra.mxu0 %v1414
  %1953 = vmatpush.bf16.msra.mxu0 %v1412
  %1954 = vmatpush.bf16.msra.mxu0 %v1410
  %1955 = vmatpush.bf16.msra.mxu0 %v1408
  %1956 = vmatpush.bf16.msra.mxu0 %v1406
  %1957 = vmatpush.bf16.msra.mxu0 %v1404
  %1958 = vmatmul.bf16.gmra.mxu0 %v354
  %v1959 = vpop.f32.mrf.mxu0
  %v1960 = vadd.f32 %v1947, %v1959
  %v1961 = vpop.f32.mrf.mxu0
  %1962 = vdwg.mxu0
  %1963 = vmatpush.bf16.msra.mxu0 %v1434
  %1964 = vmatpush.bf16.msra.mxu0 %v1432
  %1965 = vmatpush.bf16.msra.mxu0 %v1430
  %1966 = vmatpush.bf16.msra.mxu0 %v1428
  %1967 = vmatpush.bf16.msra.mxu0 %v1426
  %1968 = vmatpush.bf16.msra.mxu0 %v1424
  %1969 = vmatpush.bf16.msra.mxu0 %v1422
  %1970 = vmatpush.bf16.msra.mxu0 %v1420
  %1971 = vmatmul.bf16.gmra.mxu0 %v355
  %v1972 = vpop.f32.mrf.mxu0
  %v1973 = vadd.f32 %v1960, %v1972
  %v1974 = vpop.f32.mrf.mxu0
  %1975 = vdwg.mxu0
  %1976 = vmatpush.bf16.msra.mxu0 %v1450
  %1977 = vmatpush.bf16.msra.mxu0 %v1448
  %1978 = vmatpush.bf16.msra.mxu0 %v1446
  %1979 = vmatpush.bf16.msra.mxu0 %v1444
  %1980 = vmatpush.bf16.msra.mxu0 %v1442
  %1981 = vmatpush.bf16.msra.mxu0 %v1440
  %1982 = vmatpush.bf16.msra.mxu0 %v1438
  %1983 = vmatpush.bf16.msra.mxu0 %v1436
  %1984 = vmatmul.bf16.gmra.mxu0 %v356
  %v1985 = vpop.f32.mrf.mxu0
  %v1986 = vadd.f32 %v1973, %v1985
  %v1987 = vpop.f32.mrf.mxu0
  %1988 = vdwg.mxu0
  %1989 = vmatpush.bf16.msra.mxu0 %v1466
  %1990 = vmatpush.bf16.msra.mxu0 %v1464
  %1991 = vmatpush.bf16.msra.mxu0 %v1462
  %1992 = vmatpush.bf16.msra.mxu0 %v1460
  %1993 = vmatpush.bf16.msra.mxu0 %v1458
  %1994 = vmatpush.bf16.msra.mxu0 %v1456
  %1995 = vmatpush.bf16.msra.mxu0 %v1454
  %1996 = vmatpush.bf16.msra.mxu0 %v1452
  %1997 = vmatmul.bf16.gmra.mxu0 %v357
  %v1998 = vpop.f32.mrf.mxu0
  %v1999 = vadd.f32 %v1986, %v1998
  %v2000 = vpop.f32.mrf.mxu0
  %2001 = vdwg.mxu0
  %2002 = vmatpush.bf16.msra.mxu0 %v1482
  %2003 = vmatpush.bf16.msra.mxu0 %v1480
  %2004 = vmatpush.bf16.msra.mxu0 %v1478
  %2005 = vmatpush.bf16.msra.mxu0 %v1476
  %2006 = vmatpush.bf16.msra.mxu0 %v1474
  %2007 = vmatpush.bf16.msra.mxu0 %v1472
  %2008 = vmatpush.bf16.msra.mxu0 %v1470
  %2009 = vmatpush.bf16.msra.mxu0 %v1468
  %2010 = vmatmul.bf16.gmra.mxu0 %v358
  %v2011 = vpop.f32.mrf.mxu0
  %v2012 = vadd.f32 %v1999, %v2011
  %v2013 = vpop.f32.mrf.mxu0
  %2014 = vdwg.mxu0
  %2015 = vmatpush.bf16.msra.mxu0 %v1498
  %2016 = vmatpush.bf16.msra.mxu0 %v1496
  %2017 = vmatpush.bf16.msra.mxu0 %v1494
  %2018 = vmatpush.bf16.msra.mxu0 %v1492
  %2019 = vmatpush.bf16.msra.mxu0 %v1490
  %2020 = vmatpush.bf16.msra.mxu0 %v1488
  %2021 = vmatpush.bf16.msra.mxu0 %v1486
  %2022 = vmatpush.bf16.msra.mxu0 %v1484
  %2023 = vmatmul.bf16.gmra.mxu0 %v359
  %v2024 = vpop.f32.mrf.mxu0
  %v2025 = vadd.f32 %v2012, %v2024
  %v2026 = vpop.f32.mrf.mxu0
  %2027 = vdwg.mxu0
  %2028 = vmatpush.bf16.msra.mxu0 %v1514
  %2029 = vmatpush.bf16.msra.mxu0 %v1512
  %2030 = vmatpush.bf16.msra.mxu0 %v1510
  %2031 = vmatpush.bf16.msra.mxu0 %v1508
  %2032 = vmatpush.bf16.msra.mxu0 %v1506
  %2033 = vmatpush.bf16.msra.mxu0 %v1504
  %2034 = vmatpush.bf16.msra.mxu0 %v1502
  %2035 = vmatpush.bf16.msra.mxu0 %v1500
  %2036 = vmatmul.bf16.gmra.mxu0 %v360
  %v2037 = vpop.f32.mrf.mxu0
  %v2038 = vadd.f32 %v2025, %v2037
  %v2039 = vpop.f32.mrf.mxu0
  %2040 = vdwg.mxu0
  %2041 = vmatpush.bf16.msra.mxu0 %v1530
  %2042 = vmatpush.bf16.msra.mxu0 %v1528
  %2043 = vmatpush.bf16.msra.mxu0 %v1526
  %2044 = vmatpush.bf16.msra.mxu0 %v1524
  %2045 = vmatpush.bf16.msra.mxu0 %v1522
  %2046 = vmatpush.bf16.msra.mxu0 %v1520
  %2047 = vmatpush.bf16.msra.mxu0 %v1518
  %2048 = vmatpush.bf16.msra.mxu0 %v1516
  %2049 = vmatmul.bf16.gmra.mxu0 %v361
  %v2050 = vpop.f32.mrf.mxu0
  %v2051 = vadd.f32 %v2038, %v2050
  %v2052 = vpop.f32.mrf.mxu0
  %2053 = vdwg.mxu0
  %2054 = vmatpush.bf16.msra.mxu0 %v1259
  %2055 = vmatpush.bf16.msra.mxu0 %v1257
  %2056 = vmatpush.bf16.msra.mxu0 %v1255
  %2057 = vmatpush.bf16.msra.mxu0 %v1253
  %2058 = vmatpush.bf16.msra.mxu0 %v1251
  %2059 = vmatpush.bf16.msra.mxu0 %v1249
  %2060 = vmatpush.bf16.msra.mxu0 %v1247
  %2061 = vmatpush.bf16.msra.mxu0 %v1245
  %2062 = vmatmul.bf16.gmra.mxu0 %v344
  %v2063 = vpop.f32.mrf.mxu0
  %v2064 = vadd.f32 %v314, %v2063
  %v2065 = vpop.f32.mrf.mxu0
  %2066 = vdwg.mxu0
  %2067 = vmatpush.bf16.msra.mxu0 %v1275
  %2068 = vmatpush.bf16.msra.mxu0 %v1273
  %2069 = vmatpush.bf16.msra.mxu0 %v1271
  %2070 = vmatpush.bf16.msra.mxu0 %v1269
  %2071 = vmatpush.bf16.msra.mxu0 %v1267
  %2072 = vmatpush.bf16.msra.mxu0 %v1265
  %2073 = vmatpush.bf16.msra.mxu0 %v1263
  %2074 = vmatpush.bf16.msra.mxu0 %v1261
  %2075 = vmatmul.bf16.gmra.mxu0 %v345
  %v2076 = vpop.f32.mrf.mxu0
  %v2077 = vadd.f32 %v2064, %v2076
  %v2078 = vpop.f32.mrf.mxu0
  %2079 = vdwg.mxu0
  %2080 = vmatpush.bf16.msra.mxu0 %v1291
  %2081 = vmatpush.bf16.msra.mxu0 %v1289
  %2082 = vmatpush.bf16.msra.mxu0 %v1287
  %2083 = vmatpush.bf16.msra.mxu0 %v1285
  %2084 = vmatpush.bf16.msra.mxu0 %v1283
  %2085 = vmatpush.bf16.msra.mxu0 %v1281
  %2086 = vmatpush.bf16.msra.mxu0 %v1279
  %2087 = vmatpush.bf16.msra.mxu0 %v1277
  %2088 = vmatmul.bf16.gmra.mxu0 %v346
  %v2089 = vpop.f32.mrf.mxu0
  %v2090 = vadd.f32 %v2077, %v2089
  %v2091 = vpop.f32.mrf.mxu0
  %2092 = vdwg.mxu0
  %2093 = vmatpush.bf16.msra.mxu0 %v1307
  %2094 = vmatpush.bf16.msra.mxu0 %v1305
  %2095 = vmatpush.bf16.msra.mxu0 %v1303
  %2096 = vmatpush.bf16.msra.mxu0 %v1301
  %2097 = vmatpush.bf16.msra.mxu0 %v1299
  %2098 = vmatpush.bf16.msra.mxu0 %v1297
  %2099 = vmatpush.bf16.msra.mxu0 %v1295
  %2100 = vmatpush.bf16.msra.mxu0 %v1293
  %2101 = vmatmul.bf16.gmra.mxu0 %v347
  %v2102 = vpop.f32.mrf.mxu0
  %v2103 = vadd.f32 %v2090, %v2102
  %v2104 = vpop.f32.mrf.mxu0
  %2105 = vdwg.mxu0
  %2106 = vmatpush.bf16.msra.mxu0 %v1323
  %2107 = vmatpush.bf16.msra.mxu0 %v1321
  %2108 = vmatpush.bf16.msra.mxu0 %v1319
  %2109 = vmatpush.bf16.msra.mxu0 %v1317
  %2110 = vmatpush.bf16.msra.mxu0 %v1315
  %2111 = vmatpush.bf16.msra.mxu0 %v1313
  %2112 = vmatpush.bf16.msra.mxu0 %v1311
  %2113 = vmatpush.bf16.msra.mxu0 %v1309
  %2114 = vmatmul.bf16.gmra.mxu0 %v348
  %v2115 = vpop.f32.mrf.mxu0
  %v2116 = vadd.f32 %v2103, %v2115
  %v2117 = vpop.f32.mrf.mxu0
  %2118 = vdwg.mxu0
  %2119 = vmatpush.bf16.msra.mxu0 %v1339
  %2120 = vmatpush.bf16.msra.mxu0 %v1337
  %2121 = vmatpush.bf16.msra.mxu0 %v1335
  %2122 = vmatpush.bf16.msra.mxu0 %v1333
  %2123 = vmatpush.bf16.msra.mxu0 %v1331
  %2124 = vmatpush.bf16.msra.mxu0 %v1329
  %2125 = vmatpush.bf16.msra.mxu0 %v1327
  %2126 = vmatpush.bf16.msra.mxu0 %v1325
  %2127 = vmatmul.bf16.gmra.mxu0 %v349
  %v2128 = vpop.f32.mrf.mxu0
  %v2129 = vadd.f32 %v2116, %v2128
  %v2130 = vpop.f32.mrf.mxu0
  %2131 = vdwg.mxu0
  %2132 = vmatpush.bf16.msra.mxu0 %v1355
  %2133 = vmatpush.bf16.msra.mxu0 %v1353
  %2134 = vmatpush.bf16.msra.mxu0 %v1351
  %2135 = vmatpush.bf16.msra.mxu0 %v1349
  %2136 = vmatpush.bf16.msra.mxu0 %v1347
  %2137 = vmatpush.bf16.msra.mxu0 %v1345
  %2138 = vmatpush.bf16.msra.mxu0 %v1343
  %2139 = vmatpush.bf16.msra.mxu0 %v1341
  %2140 = vmatmul.bf16.gmra.mxu0 %v350
  %v2141 = vpop.f32.mrf.mxu0
  %v2142 = vadd.f32 %v2129, %v2141
  %v2143 = vpop.f32.mrf.mxu0
  %2144 = vdwg.mxu0
  %2145 = vmatpush.bf16.msra.mxu0 %v1371
  %2146 = vmatpush.bf16.msra.mxu0 %v1369
  %2147 = vmatpush.bf16.msra.mxu0 %v1367
  %2148 = vmatpush.bf16.msra.mxu0 %v1365
  %2149 = vmatpush.bf16.msra.mxu0 %v1363
  %2150 = vmatpush.bf16.msra.mxu0 %v1361
  %2151 = vmatpush.bf16.msra.mxu0 %v1359
  %2152 = vmatpush.bf16.msra.mxu0 %v1357
  %2153 = vmatmul.bf16.gmra.mxu0 %v351
  %v2154 = vpop.f32.mrf.mxu0
  %v2155 = vadd.f32 %v2142, %v2154
  %v2156 = vpop.f32.mrf.mxu0
  %2157 = vdwg.mxu0
  %2158 = vmatpush.bf16.msra.mxu0 %v1387
  %2159 = vmatpush.bf16.msra.mxu0 %v1385
  %2160 = vmatpush.bf16.msra.mxu0 %v1383
  %2161 = vmatpush.bf16.msra.mxu0 %v1381
  %2162 = vmatpush.bf16.msra.mxu0 %v1379
  %2163 = vmatpush.bf16.msra.mxu0 %v1377
  %2164 = vmatpush.bf16.msra.mxu0 %v1375
  %2165 = vmatpush.bf16.msra.mxu0 %v1373
  %2166 = vmatmul.bf16.gmra.mxu0 %v352
  %v2167 = vpop.f32.mrf.mxu0
  %v2168 = vadd.f32 %v2155, %v2167
  %v2169 = vpop.f32.mrf.mxu0
  %2170 = vdwg.mxu0
  %2171 = vmatpush.bf16.msra.mxu0 %v1403
  %2172 = vmatpush.bf16.msra.mxu0 %v1401
  %2173 = vmatpush.bf16.msra.mxu0 %v1399
  %2174 = vmatpush.bf16.msra.mxu0 %v1397
  %2175 = vmatpush.bf16.msra.mxu0 %v1395
  %2176 = vmatpush.bf16.msra.mxu0 %v1393
  %2177 = vmatpush.bf16.msra.mxu0 %v1391
  %2178 = vmatpush.bf16.msra.mxu0 %v1389
  %2179 = vmatmul.bf16.gmra.mxu0 %v353
  %v2180 = vpop.f32.mrf.mxu0
  %v2181 = vadd.f32 %v2168, %v2180
  %v2182 = vpop.f32.mrf.mxu0
  %2183 = vdwg.mxu0
  %2184 = vmatpush.bf16.msra.mxu0 %v1419
  %2185 = vmatpush.bf16.msra.mxu0 %v1417
  %2186 = vmatpush.bf16.msra.mxu0 %v1415
  %2187 = vmatpush.bf16.msra.mxu0 %v1413
  %2188 = vmatpush.bf16.msra.mxu0 %v1411
  %2189 = vmatpush.bf16.msra.mxu0 %v1409
  %2190 = vmatpush.bf16.msra.mxu0 %v1407
  %2191 = vmatpush.bf16.msra.mxu0 %v1405
  %2192 = vmatmul.bf16.gmra.mxu0 %v354
  %v2193 = vpop.f32.mrf.mxu0
  %v2194 = vadd.f32 %v2181, %v2193
  %v2195 = vpop.f32.mrf.mxu0
  %2196 = vdwg.mxu0
  %2197 = vmatpush.bf16.msra.mxu0 %v1435
  %2198 = vmatpush.bf16.msra.mxu0 %v1433
  %2199 = vmatpush.bf16.msra.mxu0 %v1431
  %2200 = vmatpush.bf16.msra.mxu0 %v1429
  %2201 = vmatpush.bf16.msra.mxu0 %v1427
  %2202 = vmatpush.bf16.msra.mxu0 %v1425
  %2203 = vmatpush.bf16.msra.mxu0 %v1423
  %2204 = vmatpush.bf16.msra.mxu0 %v1421
  %2205 = vmatmul.bf16.gmra.mxu0 %v355
  %v2206 = vpop.f32.mrf.mxu0
  %v2207 = vadd.f32 %v2194, %v2206
  %v2208 = vpop.f32.mrf.mxu0
  %2209 = vdwg.mxu0
  %2210 = vmatpush.bf16.msra.mxu0 %v1451
  %2211 = vmatpush.bf16.msra.mxu0 %v1449
  %2212 = vmatpush.bf16.msra.mxu0 %v1447
  %2213 = vmatpush.bf16.msra.mxu0 %v1445
  %2214 = vmatpush.bf16.msra.mxu0 %v1443
  %2215 = vmatpush.bf16.msra.mxu0 %v1441
  %2216 = vmatpush.bf16.msra.mxu0 %v1439
  %2217 = vmatpush.bf16.msra.mxu0 %v1437
  %2218 = vmatmul.bf16.gmra.mxu0 %v356
  %v2219 = vpop.f32.mrf.mxu0
  %v2220 = vadd.f32 %v2207, %v2219
  %v2221 = vpop.f32.mrf.mxu0
  %2222 = vdwg.mxu0
  %2223 = vmatpush.bf16.msra.mxu0 %v1467
  %2224 = vmatpush.bf16.msra.mxu0 %v1465
  %2225 = vmatpush.bf16.msra.mxu0 %v1463
  %2226 = vmatpush.bf16.msra.mxu0 %v1461
  %2227 = vmatpush.bf16.msra.mxu0 %v1459
  %2228 = vmatpush.bf16.msra.mxu0 %v1457
  %2229 = vmatpush.bf16.msra.mxu0 %v1455
  %2230 = vmatpush.bf16.msra.mxu0 %v1453
  %2231 = vmatmul.bf16.gmra.mxu0 %v357
  %v2232 = vpop.f32.mrf.mxu0
  %v2233 = vadd.f32 %v2220, %v2232
  %v2234 = vpop.f32.mrf.mxu0
  %2235 = vdwg.mxu0
  %2236 = vmatpush.bf16.msra.mxu0 %v1483
  %2237 = vmatpush.bf16.msra.mxu0 %v1481
  %2238 = vmatpush.bf16.msra.mxu0 %v1479
  %2239 = vmatpush.bf16.msra.mxu0 %v1477
  %2240 = vmatpush.bf16.msra.mxu0 %v1475
  %2241 = vmatpush.bf16.msra.mxu0 %v1473
  %2242 = vmatpush.bf16.msra.mxu0 %v1471
  %2243 = vmatpush.bf16.msra.mxu0 %v1469
  %2244 = vmatmul.bf16.gmra.mxu0 %v358
  %v2245 = vpop.f32.mrf.mxu0
  %v2246 = vadd.f32 %v2233, %v2245
  %v2247 = vpop.f32.mrf.mxu0
  %2248 = vdwg.mxu0
  %2249 = vmatpush.bf16.msra.mxu0 %v1499
  %2250 = vmatpush.bf16.msra.mxu0 %v1497
  %2251 = vmatpush.bf16.msra.mxu0 %v1495
  %2252 = vmatpush.bf16.msra.mxu0 %v1493
  %2253 = vmatpush.bf16.msra.mxu0 %v1491
  %2254 = vmatpush.bf16.msra.mxu0 %v1489
  %2255 = vmatpush.bf16.msra.mxu0 %v1487
  %2256 = vmatpush.bf16.msra.mxu0 %v1485
  %2257 = vmatmul.bf16.gmra.mxu0 %v359
  %v2258 = vpop.f32.mrf.mxu0
  %v2259 = vadd.f32 %v2246, %v2258
  %v2260 = vpop.f32.mrf.mxu0
  %2261 = vdwg.mxu0
  %2262 = vmatpush.bf16.msra.mxu0 %v1515
  %2263 = vmatpush.bf16.msra.mxu0 %v1513
  %2264 = vmatpush.bf16.msra.mxu0 %v1511
  %2265 = vmatpush.bf16.msra.mxu0 %v1509
  %2266 = vmatpush.bf16.msra.mxu0 %v1507
  %2267 = vmatpush.bf16.msra.mxu0 %v1505
  %2268 = vmatpush.bf16.msra.mxu0 %v1503
  %2269 = vmatpush.bf16.msra.mxu0 %v1501
  %2270 = vmatmul.bf16.gmra.mxu0 %v360
  %v2271 = vpop.f32.mrf.mxu0
  %v2272 = vadd.f32 %v2259, %v2271
  %v2273 = vpop.f32.mrf.mxu0
  %2274 = vdwg.mxu0
  %2275 = vmatpush.bf16.msra.mxu0 %v1531
  %2276 = vmatpush.bf16.msra.mxu0 %v1529
  %2277 = vmatpush.bf16.msra.mxu0 %v1527
  %2278 = vmatpush.bf16.msra.mxu0 %v1525
  %2279 = vmatpush.bf16.msra.mxu0 %v1523
  %2280 = vmatpush.bf16.msra.mxu0 %v1521
  %2281 = vmatpush.bf16.msra.mxu0 %v1519
  %2282 = vmatpush.bf16.msra.mxu0 %v1517
  %2283 = vmatmul.bf16.gmra.mxu0 %v361
  %v2284 = vpop.f32.mrf.mxu0
  %v2285 = vadd.f32 %v2272, %v2284
  %v2286 = vpop.f32.mrf.mxu0
  %2287 = vdwg.mxu0
  %vm2288 = vcmp.ge.f32.partialorder %v2051, 0.0
  %vm2289 = vcmp.ge.f32.partialorder %v2285, 0.0
  %v2290 = vmul.f32 %v2051, 0.1
  %v2291 = vmul.f32 %v2285, 0.1
  %v2292 = vsel %vm2288, %v2051, %v2290
  %v2293 = vsel %vm2289, %v2285, %v2291
  %v2294 = vpack.c.bf16 %v2293, %v2292
  %2295 = vst [vmem:[%s3] sm:$0xff] %v2294
  // Predicated region
  $region14: #{ed_regression_forward.21} parent=0 // pred_check
    _
  $region15: #{ed_regression_forward.21} parent=0 // pred_check_branch
    %2297 = sbr.rel (0) target = $region17
  $region16: #{ed_regression_forward.21} parent=0 // pred_region
    _
  $region17: #{ed_regression_forward.21} parent=0 // pred_fallthru
    _
  // Predicated region
  $region18: #{ed_regression_forward.21} parent=0 // pred_check
    _
  $region19: #{ed_regression_forward.21} parent=0 // pred_check_branch
    %2299 = sbr.rel (0) target = $region21
  $region20: #{ed_regression_forward.21} parent=0 // pred_region
    _
  $region21: #{ed_regression_forward.21} parent=0 // pred_fallthru
    _

// kernel: ed_regression_forward.22
$region0: #{ed_regression_forward.22}
  #allocation0 [shape = 'u32[]', space=smem, size = 0x4, offset = 0x4, fixed_abs, tag = 'smem constant byte address 0x4 - core index']
  #allocation1 [shape = 'u32[72,128]{1,0:T(1,128)}', space=vmem, size = 0x9000, scoped, tag = 'internal scratch']
  %s0 = inlined_call_operand.vmem [shape: bf16[8,2304], index: 0, kind: input, shape index: {}]
  %s1 = inlined_call_operand.vmem [shape: bf16[2304,128], index: 1, kind: input, shape index: {}]
  %s2 = inlined_call_operand.vmem [shape: f32[1,128], index: 2, kind: input, shape index: {}]
  %s3 = inlined_call_operand.vmem [shape: bf16[8,128], index: 3, kind: output, shape index: {}]
  %s4 = sld [smem:[#allocation0]]
  $region22: #{ed_regression_forward.22} parent=0
    _
  %s6 = ssub.s32 1, %s4
  %s7 = scalar_select 0, %s6, %s4
  // Predicated region
  $region2: #{ed_regression_forward.22} parent=0 // pred_check
    _
  $region3: #{ed_regression_forward.22} parent=0 // pred_check_branch
    %9 = sbr.rel (0) target = $region5
  $region4: #{ed_regression_forward.22} parent=0 // pred_region
    _
  $region5: #{ed_regression_forward.22} parent=0 // pred_fallthru
    _
  // Predicated region
  $region6: #{ed_regression_forward.22} parent=0 // pred_check
    _
  $region7: #{ed_regression_forward.22} parent=0 // pred_check_branch
    %11 = sbr.rel (0) target = $region9
  $region8: #{ed_regression_forward.22} parent=0 // pred_region
    _
  $region9: #{ed_regression_forward.22} parent=0 // pred_fallthru
    _
  // Predicated region
  $region10: #{ed_regression_forward.22} parent=0 // pred_check
    _
  $region11: #{ed_regression_forward.22} parent=0 // pred_check_branch
    %13 = sbr.rel (0) target = $region13
  $region12: #{ed_regression_forward.22} parent=0 // pred_region
    _
  $region13: #{ed_regression_forward.22} parent=0 // pred_fallthru
    _
  %v14 = vld [vmem:[%s0] sm:$0xff]
  %v15 = vld [vmem:[%s0 + $0x8] sm:$0xff]
  %v16 = vld [vmem:[%s0 + $0x10] sm:$0xff]
  %v17 = vld [vmem:[%s0 + $0x18] sm:$0xff]
  %v18 = vld [vmem:[%s0 + $0x20] sm:$0xff]
  %v19 = vld [vmem:[%s0 + $0x28] sm:$0xff]
  %v20 = vld [vmem:[%s0 + $0x30] sm:$0xff]
  %v21 = vld [vmem:[%s0 + $0x38] sm:$0xff]
  %v22 = vld [vmem:[%s0 + $0x40] sm:$0xff]
  %v23 = vld [vmem:[%s1] sm:$0xf]
  %v24 = vld [vmem:[%s1 + $0x4] sm:$0xf]
  %v25 = vld [vmem:[%s1 + $0x8] sm:$0xf]
  %v26 = vld [vmem:[%s1 + $0xc] sm:$0xf]
  %v27 = vld [vmem:[%s1 + $0x10] sm:$0xf]
  %v28 = vld [vmem:[%s1 + $0x14] sm:$0xf]
  %v29 = vld [vmem:[%s1 + $0x18] sm:$0xf]
  %v30 = vld [vmem:[%s1 + $0x1c] sm:$0xf]
  %v31 = vld [vmem:[%s1 + $0x20] sm:$0xf]
  %v32 = vld [vmem:[%s1 + $0x24] sm:$0xf]
  %v33 = vld [vmem:[%s1 + $0x28] sm:$0xf]
  %v34 = vld [vmem:[%s1 + $0x2c] sm:$0xf]
  %v35 = vld [vmem:[%s1 + $0x30] sm:$0xf]
  %v36 = vld [vmem:[%s1 + $0x34] sm:$0xf]
  %v37 = vld [vmem:[%s1 + $0x38] sm:$0xf]
  %v38 = vld [vmem:[%s1 + $0x3c] sm:$0xf]
  %v39 = vld [vmem:[%s1 + $0x40] sm:$0xf]
  %v40 = vld [vmem:[%s1 + $0x44] sm:$0xf]
  %v41 = vld [vmem:[%s1 + $0x48] sm:$0xf]
  %v42 = vld [vmem:[%s1 + $0x4c] sm:$0xf]
  %v43 = vld [vmem:[%s1 + $0x50] sm:$0xf]
  %v44 = vld [vmem:[%s1 + $0x54] sm:$0xf]
  %v45 = vld [vmem:[%s1 + $0x58] sm:$0xf]
  %v46 = vld [vmem:[%s1 + $0x5c] sm:$0xf]
  %v47 = vld [vmem:[%s1 + $0x60] sm:$0xf]
  %v48 = vld [vmem:[%s1 + $0x64] sm:$0xf]
  %v49 = vld [vmem:[%s1 + $0x68] sm:$0xf]
  %v50 = vld [vmem:[%s1 + $0x6c] sm:$0xf]
  %v51 = vld [vmem:[%s1 + $0x70] sm:$0xf]
  %v52 = vld [vmem:[%s1 + $0x74] sm:$0xf]
  %v53 = vld [vmem:[%s1 + $0x78] sm:$0xf]
  %v54 = vld [vmem:[%s1 + $0x7c] sm:$0xf]
  %v55 = vld [vmem:[%s1 + $0x80] sm:$0xf]
  %v56 = vld [vmem:[%s1 + $0x84] sm:$0xf]
  %v57 = vld [vmem:[%s1 + $0x88] sm:$0xf]
  %v58 = vld [vmem:[%s1 + $0x8c] sm:$0xf]
  %v59 = vld [vmem:[%s1 + $0x90] sm:$0xf]
  %v60 = vld [vmem:[%s1 + $0x94] sm:$0xf]
  %v61 = vld [vmem:[%s1 + $0x98] sm:$0xf]
  %v62 = vld [vmem:[%s1 + $0x9c] sm:$0xf]
  %v63 = vld [vmem:[%s1 + $0xa0] sm:$0xf]
  %v64 = vld [vmem:[%s1 + $0xa4] sm:$0xf]
  %v65 = vld [vmem:[%s1 + $0xa8] sm:$0xf]
  %v66 = vld [vmem:[%s1 + $0xac] sm:$0xf]
  %v67 = vld [vmem:[%s1 + $0xb0] sm:$0xf]
  %v68 = vld [vmem:[%s1 + $0xb4] sm:$0xf]
  %v69 = vld [vmem:[%s1 + $0xb8] sm:$0xf]
  %v70 = vld [vmem:[%s1 + $0xbc] sm:$0xf]
  %v71 = vld [vmem:[%s1 + $0xc0] sm:$0xf]
  %v72 = vld [vmem:[%s1 + $0xc4] sm:$0xf]
  %v73 = vld [vmem:[%s1 + $0xc8] sm:$0xf]
  %v74 = vld [vmem:[%s1 + $0xcc] sm:$0xf]
  %v75 = vld [vmem:[%s1 + $0xd0] sm:$0xf]
  %v76 = vld [vmem:[%s1 + $0xd4] sm:$0xf]
  %v77 = vld [vmem:[%s1 + $0xd8] sm:$0xf]
  %v78 = vld [vmem:[%s1 + $0xdc] sm:$0xf]
  %v79 = vld [vmem:[%s1 + $0xe0] sm:$0xf]
  %v80 = vld [vmem:[%s1 + $0xe4] sm:$0xf]
  %v81 = vld [vmem:[%s1 + $0xe8] sm:$0xf]
  %v82 = vld [vmem:[%s1 + $0xec] sm:$0xf]
  %v83 = vld [vmem:[%s1 + $0xf0] sm:$0xf]
  %v84 = vld [vmem:[%s1 + $0xf4] sm:$0xf]
  %v85 = vld [vmem:[%s1 + $0xf8] sm:$0xf]
  %v86 = vld [vmem:[%s1 + $0xfc] sm:$0xf]
  %v87 = vld [vmem:[%s1 + $0x100] sm:$0xf]
  %v88 = vld [vmem:[%s1 + $0x104] sm:$0xf]
  %v89 = vld [vmem:[%s1 + $0x108] sm:$0xf]
  %v90 = vld [vmem:[%s1 + $0x10c] sm:$0xf]
  %v91 = vld [vmem:[%s1 + $0x110] sm:$0xf]
  %v92 = vld [vmem:[%s1 + $0x114] sm:$0xf]
  %v93 = vld [vmem:[%s1 + $0x118] sm:$0xf]
  %v94 = vld [vmem:[%s1 + $0x11c] sm:$0xf]
  %v95 = vld [vmem:[%s1 + $0x120] sm:$0xf]
  %v96 = vld [vmem:[%s1 + $0x124] sm:$0xf]
  %v97 = vld [vmem:[%s1 + $0x128] sm:$0xf]
  %v98 = vld [vmem:[%s1 + $0x12c] sm:$0xf]
  %v99 = vld [vmem:[%s1 + $0x130] sm:$0xf]
  %v100 = vld [vmem:[%s1 + $0x134] sm:$0xf]
  %v101 = vld [vmem:[%s1 + $0x138] sm:$0xf]
  %v102 = vld [vmem:[%s1 + $0x13c] sm:$0xf]
  %v103 = vld [vmem:[%s1 + $0x140] sm:$0xf]
  %v104 = vld [vmem:[%s1 + $0x144] sm:$0xf]
  %v105 = vld [vmem:[%s1 + $0x148] sm:$0xf]
  %v106 = vld [vmem:[%s1 + $0x14c] sm:$0xf]
  %v107 = vld [vmem:[%s1 + $0x150] sm:$0xf]
  %v108 = vld [vmem:[%s1 + $0x154] sm:$0xf]
  %v109 = vld [vmem:[%s1 + $0x158] sm:$0xf]
  %v110 = vld [vmem:[%s1 + $0x15c] sm:$0xf]
  %v111 = vld [vmem:[%s1 + $0x160] sm:$0xf]
  %v112 = vld [vmem:[%s1 + $0x164] sm:$0xf]
  %v113 = vld [vmem:[%s1 + $0x168] sm:$0xf]
  %v114 = vld [vmem:[%s1 + $0x16c] sm:$0xf]
  %v115 = vld [vmem:[%s1 + $0x170] sm:$0xf]
  %v116 = vld [vmem:[%s1 + $0x174] sm:$0xf]
  %v117 = vld [vmem:[%s1 + $0x178] sm:$0xf]
  %v118 = vld [vmem:[%s1 + $0x17c] sm:$0xf]
  %v119 = vld [vmem:[%s1 + $0x180] sm:$0xf]
  %v120 = vld [vmem:[%s1 + $0x184] sm:$0xf]
  %v121 = vld [vmem:[%s1 + $0x188] sm:$0xf]
  %v122 = vld [vmem:[%s1 + $0x18c] sm:$0xf]
  %v123 = vld [vmem:[%s1 + $0x190] sm:$0xf]
  %v124 = vld [vmem:[%s1 + $0x194] sm:$0xf]
  %v125 = vld [vmem:[%s1 + $0x198] sm:$0xf]
  %v126 = vld [vmem:[%s1 + $0x19c] sm:$0xf]
  %v127 = vld [vmem:[%s1 + $0x1a0] sm:$0xf]
  %v128 = vld [vmem:[%s1 + $0x1a4] sm:$0xf]
  %v129 = vld [vmem:[%s1 + $0x1a8] sm:$0xf]
  %v130 = vld [vmem:[%s1 + $0x1ac] sm:$0xf]
  %v131 = vld [vmem:[%s1 + $0x1b0] sm:$0xf]
  %v132 = vld [vmem:[%s1 + $0x1b4] sm:$0xf]
  %v133 = vld [vmem:[%s1 + $0x1b8] sm:$0xf]
  %v134 = vld [vmem:[%s1 + $0x1bc] sm:$0xf]
  %v135 = vld [vmem:[%s1 + $0x1c0] sm:$0xf]
  %v136 = vld [vmem:[%s1 + $0x1c4] sm:$0xf]
  %v137 = vld [vmem:[%s1 + $0x1c8] sm:$0xf]
  %v138 = vld [vmem:[%s1 + $0x1cc] sm:$0xf]
  %v139 = vld [vmem:[%s1 + $0x1d0] sm:$0xf]
  %v140 = vld [vmem:[%s1 + $0x1d4] sm:$0xf]
  %v141 = vld [vmem:[%s1 + $0x1d8] sm:$0xf]
  %v142 = vld [vmem:[%s1 + $0x1dc] sm:$0xf]
  %v143 = vld [vmem:[%s1 + $0x1e0] sm:$0xf]
  %v144 = vld [vmem:[%s1 + $0x1e4] sm:$0xf]
  %v145 = vld [vmem:[%s1 + $0x1e8] sm:$0xf]
  %v146 = vld [vmem:[%s1 + $0x1ec] sm:$0xf]
  %v147 = vld [vmem:[%s1 + $0x1f0] sm:$0xf]
  %v148 = vld [vmem:[%s1 + $0x1f4] sm:$0xf]
  %v149 = vld [vmem:[%s1 + $0x1f8] sm:$0xf]
  %v150 = vld [vmem:[%s1 + $0x1fc] sm:$0xf]
  %v151 = vld [vmem:[%s1 + $0x200] sm:$0xf]
  %v152 = vld [vmem:[%s1 + $0x204] sm:$0xf]
  %v153 = vld [vmem:[%s1 + $0x208] sm:$0xf]
  %v154 = vld [vmem:[%s1 + $0x20c] sm:$0xf]
  %v155 = vld [vmem:[%s1 + $0x210] sm:$0xf]
  %v156 = vld [vmem:[%s1 + $0x214] sm:$0xf]
  %v157 = vld [vmem:[%s1 + $0x218] sm:$0xf]
  %v158 = vld [vmem:[%s1 + $0x21c] sm:$0xf]
  %v159 = vld [vmem:[%s1 + $0x220] sm:$0xf]
  %v160 = vld [vmem:[%s1 + $0x224] sm:$0xf]
  %v161 = vld [vmem:[%s1 + $0x228] sm:$0xf]
  %v162 = vld [vmem:[%s1 + $0x22c] sm:$0xf]
  %v163 = vld [vmem:[%s1 + $0x230] sm:$0xf]
  %v164 = vld [vmem:[%s1 + $0x234] sm:$0xf]
  %v165 = vld [vmem:[%s1 + $0x238] sm:$0xf]
  %v166 = vld [vmem:[%s1 + $0x23c] sm:$0xf]
  %v167 = vld [vmem:[%s1 + $0x240] sm:$0xf]
  %v168 = vld [vmem:[%s1 + $0x244] sm:$0xf]
  %v169 = vld [vmem:[%s1 + $0x248] sm:$0xf]
  %v170 = vld [vmem:[%s1 + $0x24c] sm:$0xf]
  %v171 = vld [vmem:[%s1 + $0x250] sm:$0xf]
  %v172 = vld [vmem:[%s1 + $0x254] sm:$0xf]
  %v173 = vld [vmem:[%s1 + $0x258] sm:$0xf]
  %v174 = vld [vmem:[%s1 + $0x25c] sm:$0xf]
  %v175 = vld [vmem:[%s1 + $0x260] sm:$0xf]
  %v176 = vld [vmem:[%s1 + $0x264] sm:$0xf]
  %v177 = vld [vmem:[%s1 + $0x268] sm:$0xf]
  %v178 = vld [vmem:[%s1 + $0x26c] sm:$0xf]
  %v179 = vld [vmem:[%s1 + $0x270] sm:$0xf]
  %v180 = vld [vmem:[%s1 + $0x274] sm:$0xf]
  %v181 = vld [vmem:[%s1 + $0x278] sm:$0xf]
  %v182 = vld [vmem:[%s1 + $0x27c] sm:$0xf]
  %v183 = vld [vmem:[%s1 + $0x280] sm:$0xf]
  %v184 = vld [vmem:[%s1 + $0x284] sm:$0xf]
  %v185 = vld [vmem:[%s1 + $0x288] sm:$0xf]
  %v186 = vld [vmem:[%s1 + $0x28c] sm:$0xf]
  %v187 = vld [vmem:[%s1 + $0x290] sm:$0xf]
  %v188 = vld [vmem:[%s1 + $0x294] sm:$0xf]
  %v189 = vld [vmem:[%s1 + $0x298] sm:$0xf]
  %v190 = vld [vmem:[%s1 + $0x29c] sm:$0xf]
  %v191 = vld [vmem:[%s1 + $0x2a0] sm:$0xf]
  %v192 = vld [vmem:[%s1 + $0x2a4] sm:$0xf]
  %v193 = vld [vmem:[%s1 + $0x2a8] sm:$0xf]
  %v194 = vld [vmem:[%s1 + $0x2ac] sm:$0xf]
  %v195 = vld [vmem:[%s1 + $0x2b0] sm:$0xf]
  %v196 = vld [vmem:[%s1 + $0x2b4] sm:$0xf]
  %v197 = vld [vmem:[%s1 + $0x2b8] sm:$0xf]
  %v198 = vld [vmem:[%s1 + $0x2bc] sm:$0xf]
  %v199 = vld [vmem:[%s1 + $0x2c0] sm:$0xf]
  %v200 = vld [vmem:[%s1 + $0x2c4] sm:$0xf]
  %v201 = vld [vmem:[%s1 + $0x2c8] sm:$0xf]
  %v202 = vld [vmem:[%s1 + $0x2cc] sm:$0xf]
  %v203 = vld [vmem:[%s1 + $0x2d0] sm:$0xf]
  %v204 = vld [vmem:[%s1 + $0x2d4] sm:$0xf]
  %v205 = vld [vmem:[%s1 + $0x2d8] sm:$0xf]
  %v206 = vld [vmem:[%s1 + $0x2dc] sm:$0xf]
  %v207 = vld [vmem:[%s1 + $0x2e0] sm:$0xf]
  %v208 = vld [vmem:[%s1 + $0x2e4] sm:$0xf]
  %v209 = vld [vmem:[%s1 + $0x2e8] sm:$0xf]
  %v210 = vld [vmem:[%s1 + $0x2ec] sm:$0xf]
  %v211 = vld [vmem:[%s1 + $0x2f0] sm:$0xf]
  %v212 = vld [vmem:[%s1 + $0x2f4] sm:$0xf]
  %v213 = vld [vmem:[%s1 + $0x2f8] sm:$0xf]
  %v214 = vld [vmem:[%s1 + $0x2fc] sm:$0xf]
  %v215 = vld [vmem:[%s1 + $0x300] sm:$0xf]
  %v216 = vld [vmem:[%s1 + $0x304] sm:$0xf]
  %v217 = vld [vmem:[%s1 + $0x308] sm:$0xf]
  %v218 = vld [vmem:[%s1 + $0x30c] sm:$0xf]
  %v219 = vld [vmem:[%s1 + $0x310] sm:$0xf]
  %v220 = vld [vmem:[%s1 + $0x314] sm:$0xf]
  %v221 = vld [vmem:[%s1 + $0x318] sm:$0xf]
  %v222 = vld [vmem:[%s1 + $0x31c] sm:$0xf]
  %v223 = vld [vmem:[%s1 + $0x320] sm:$0xf]
  %v224 = vld [vmem:[%s1 + $0x324] sm:$0xf]
  %v225 = vld [vmem:[%s1 + $0x328] sm:$0xf]
  %v226 = vld [vmem:[%s1 + $0x32c] sm:$0xf]
  %v227 = vld [vmem:[%s1 + $0x330] sm:$0xf]
  %v228 = vld [vmem:[%s1 + $0x334] sm:$0xf]
  %v229 = vld [vmem:[%s1 + $0x338] sm:$0xf]
  %v230 = vld [vmem:[%s1 + $0x33c] sm:$0xf]
  %v231 = vld [vmem:[%s1 + $0x340] sm:$0xf]
  %v232 = vld [vmem:[%s1 + $0x344] sm:$0xf]
  %v233 = vld [vmem:[%s1 + $0x348] sm:$0xf]
  %v234 = vld [vmem:[%s1 + $0x34c] sm:$0xf]
  %v235 = vld [vmem:[%s1 + $0x350] sm:$0xf]
  %v236 = vld [vmem:[%s1 + $0x354] sm:$0xf]
  %v237 = vld [vmem:[%s1 + $0x358] sm:$0xf]
  %v238 = vld [vmem:[%s1 + $0x35c] sm:$0xf]
  %v239 = vld [vmem:[%s1 + $0x360] sm:$0xf]
  %v240 = vld [vmem:[%s1 + $0x364] sm:$0xf]
  %v241 = vld [vmem:[%s1 + $0x368] sm:$0xf]
  %v242 = vld [vmem:[%s1 + $0x36c] sm:$0xf]
  %v243 = vld [vmem:[%s1 + $0x370] sm:$0xf]
  %v244 = vld [vmem:[%s1 + $0x374] sm:$0xf]
  %v245 = vld [vmem:[%s1 + $0x378] sm:$0xf]
  %v246 = vld [vmem:[%s1 + $0x37c] sm:$0xf]
  %v247 = vld [vmem:[%s1 + $0x380] sm:$0xf]
  %v248 = vld [vmem:[%s1 + $0x384] sm:$0xf]
  %v249 = vld [vmem:[%s1 + $0x388] sm:$0xf]
  %v250 = vld [vmem:[%s1 + $0x38c] sm:$0xf]
  %v251 = vld [vmem:[%s1 + $0x390] sm:$0xf]
  %v252 = vld [vmem:[%s1 + $0x394] sm:$0xf]
  %v253 = vld [vmem:[%s1 + $0x398] sm:$0xf]
  %v254 = vld [vmem:[%s1 + $0x39c] sm:$0xf]
  %v255 = vld [vmem:[%s1 + $0x3a0] sm:$0xf]
  %v256 = vld [vmem:[%s1 + $0x3a4] sm:$0xf]
  %v257 = vld [vmem:[%s1 + $0x3a8] sm:$0xf]
  %v258 = vld [vmem:[%s1 + $0x3ac] sm:$0xf]
  %v259 = vld [vmem:[%s1 + $0x3b0] sm:$0xf]
  %v260 = vld [vmem:[%s1 + $0x3b4] sm:$0xf]
  %v261 = vld [vmem:[%s1 + $0x3b8] sm:$0xf]
  %v262 = vld [vmem:[%s1 + $0x3bc] sm:$0xf]
  %v263 = vld [vmem:[%s1 + $0x3c0] sm:$0xf]
  %v264 = vld [vmem:[%s1 + $0x3c4] sm:$0xf]
  %v265 = vld [vmem:[%s1 + $0x3c8] sm:$0xf]
  %v266 = vld [vmem:[%s1 + $0x3cc] sm:$0xf]
  %v267 = vld [vmem:[%s1 + $0x3d0] sm:$0xf]
  %v268 = vld [vmem:[%s1 + $0x3d4] sm:$0xf]
  %v269 = vld [vmem:[%s1 + $0x3d8] sm:$0xf]
  %v270 = vld [vmem:[%s1 + $0x3dc] sm:$0xf]
  %v271 = vld [vmem:[%s1 + $0x3e0] sm:$0xf]
  %v272 = vld [vmem:[%s1 + $0x3e4] sm:$0xf]
  %v273 = vld [vmem:[%s1 + $0x3e8] sm:$0xf]
  %v274 = vld [vmem:[%s1 + $0x3ec] sm:$0xf]
  %v275 = vld [vmem:[%s1 + $0x3f0] sm:$0xf]
  %v276 = vld [vmem:[%s1 + $0x3f4] sm:$0xf]
  %v277 = vld [vmem:[%s1 + $0x3f8] sm:$0xf]
  %v278 = vld [vmem:[%s1 + $0x3fc] sm:$0xf]
  %v279 = vld [vmem:[%s1 + $0x400] sm:$0xf]
  %v280 = vld [vmem:[%s1 + $0x404] sm:$0xf]
  %v281 = vld [vmem:[%s1 + $0x408] sm:$0xf]
  %v282 = vld [vmem:[%s1 + $0x40c] sm:$0xf]
  %v283 = vld [vmem:[%s1 + $0x410] sm:$0xf]
  %v284 = vld [vmem:[%s1 + $0x414] sm:$0xf]
  %v285 = vld [vmem:[%s1 + $0x418] sm:$0xf]
  %v286 = vld [vmem:[%s1 + $0x41c] sm:$0xf]
  %v287 = vld [vmem:[%s1 + $0x420] sm:$0xf]
  %v288 = vld [vmem:[%s1 + $0x424] sm:$0xf]
  %v289 = vld [vmem:[%s1 + $0x428] sm:$0xf]
  %v290 = vld [vmem:[%s1 + $0x42c] sm:$0xf]
  %v291 = vld [vmem:[%s1 + $0x430] sm:$0xf]
  %v292 = vld [vmem:[%s1 + $0x434] sm:$0xf]
  %v293 = vld [vmem:[%s1 + $0x438] sm:$0xf]
  %v294 = vld [vmem:[%s1 + $0x43c] sm:$0xf]
  %v295 = vld [vmem:[%s1 + $0x440] sm:$0xf]
  %v296 = vld [vmem:[%s1 + $0x444] sm:$0xf]
  %v297 = vld [vmem:[%s1 + $0x448] sm:$0xf]
  %v298 = vld [vmem:[%s1 + $0x44c] sm:$0xf]
  %v299 = vld [vmem:[%s1 + $0x450] sm:$0xf]
  %v300 = vld [vmem:[%s1 + $0x454] sm:$0xf]
  %v301 = vld [vmem:[%s1 + $0x458] sm:$0xf]
  %v302 = vld [vmem:[%s1 + $0x45c] sm:$0xf]
  %v303 = vld [vmem:[%s1 + $0x460] sm:$0xf]
  %v304 = vld [vmem:[%s1 + $0x464] sm:$0xf]
  %v305 = vld [vmem:[%s1 + $0x468] sm:$0xf]
  %v306 = vld [vmem:[%s1 + $0x46c] sm:$0xf]
  %v307 = vld [vmem:[%s1 + $0x470] sm:$0xf]
  %v308 = vld [vmem:[%s1 + $0x474] sm:$0xf]
  %v309 = vld [vmem:[%s1 + $0x478] sm:$0xf]
  %v310 = vld [vmem:[%s1 + $0x47c] sm:$0xf]
  %v311 = vld [vmem:[%s2] sm:$0x1]
  %v313 = vperm.slane %v311, 0
  %v324 = vunpack.c.l.b16 %v14
  %v325 = vunpack.c.h.b16 %v14
  %v326 = vunpack.c.l.b16 %v15
  %v327 = vunpack.c.h.b16 %v15
  %v328 = vunpack.c.l.b16 %v16
  %v329 = vunpack.c.h.b16 %v16
  %v330 = vunpack.c.l.b16 %v17
  %v331 = vunpack.c.h.b16 %v17
  %v332 = vunpack.c.l.b16 %v18
  %v333 = vunpack.c.h.b16 %v18
  %v334 = vunpack.c.l.b16 %v19
  %v335 = vunpack.c.h.b16 %v19
  %v336 = vunpack.c.l.b16 %v20
  %v337 = vunpack.c.h.b16 %v20
  %v338 = vunpack.c.l.b16 %v21
  %v339 = vunpack.c.h.b16 %v21
  %v340 = vunpack.c.l.b16 %v22
  %v341 = vunpack.c.h.b16 %v22
  %v342 = vpack.c.b16 %v324, %v324
  %v343 = vpack.c.b16 %v325, %v325
  %v344 = vpack.c.b16 %v326, %v326
  %v345 = vpack.c.b16 %v327, %v327
  %v346 = vpack.c.b16 %v328, %v328
  %v347 = vpack.c.b16 %v329, %v329
  %v348 = vpack.c.b16 %v330, %v330
  %v349 = vpack.c.b16 %v331, %v331
  %v350 = vpack.c.b16 %v332, %v332
  %v351 = vpack.c.b16 %v333, %v333
  %v352 = vpack.c.b16 %v334, %v334
  %v353 = vpack.c.b16 %v335, %v335
  %v354 = vpack.c.b16 %v336, %v336
  %v355 = vpack.c.b16 %v337, %v337
  %v356 = vpack.c.b16 %v338, %v338
  %v357 = vpack.c.b16 %v339, %v339
  %v358 = vpack.c.b16 %v340, %v340
  %v359 = vpack.c.b16 %v341, %v341
  %v666 = vunpack.c.l.b16 %v23
  %v667 = vunpack.c.l.b16 %v24
  %v668 = vunpack.c.l.b16 %v25
  %v669 = vunpack.c.l.b16 %v26
  %v670 = vunpack.c.l.b16 %v27
  %v671 = vunpack.c.l.b16 %v28
  %v672 = vunpack.c.l.b16 %v29
  %v673 = vunpack.c.l.b16 %v30
  %v674 = vunpack.c.l.b16 %v31
  %v675 = vunpack.c.l.b16 %v32
  %v676 = vunpack.c.l.b16 %v33
  %v677 = vunpack.c.l.b16 %v34
  %v678 = vunpack.c.l.b16 %v35
  %v679 = vunpack.c.l.b16 %v36
  %v680 = vunpack.c.l.b16 %v37
  %v681 = vunpack.c.l.b16 %v38
  %v682 = vunpack.c.l.b16 %v39
  %v683 = vunpack.c.l.b16 %v40
  %v684 = vunpack.c.l.b16 %v41
  %v685 = vunpack.c.l.b16 %v42
  %v686 = vunpack.c.l.b16 %v43
  %v687 = vunpack.c.l.b16 %v44
  %v688 = vunpack.c.l.b16 %v45
  %v689 = vunpack.c.l.b16 %v46
  %v690 = vunpack.c.l.b16 %v47
  %v691 = vunpack.c.l.b16 %v48
  %v692 = vunpack.c.l.b16 %v49
  %v693 = vunpack.c.l.b16 %v50
  %v694 = vunpack.c.l.b16 %v51
  %v695 = vunpack.c.l.b16 %v52
  %v696 = vunpack.c.l.b16 %v53
  %v697 = vunpack.c.l.b16 %v54
  %v698 = vunpack.c.l.b16 %v55
  %v699 = vunpack.c.l.b16 %v56
  %v700 = vunpack.c.l.b16 %v57
  %v701 = vunpack.c.l.b16 %v58
  %v702 = vunpack.c.l.b16 %v59
  %v703 = vunpack.c.l.b16 %v60
  %v704 = vunpack.c.l.b16 %v61
  %v705 = vunpack.c.l.b16 %v62
  %v706 = vunpack.c.l.b16 %v63
  %v707 = vunpack.c.l.b16 %v64
  %v708 = vunpack.c.l.b16 %v65
  %v709 = vunpack.c.l.b16 %v66
  %v710 = vunpack.c.l.b16 %v67
  %v711 = vunpack.c.l.b16 %v68
  %v712 = vunpack.c.l.b16 %v69
  %v713 = vunpack.c.l.b16 %v70
  %v714 = vunpack.c.l.b16 %v71
  %v715 = vunpack.c.l.b16 %v72
  %v716 = vunpack.c.l.b16 %v73
  %v717 = vunpack.c.l.b16 %v74
  %v718 = vunpack.c.l.b16 %v75
  %v719 = vunpack.c.l.b16 %v76
  %v720 = vunpack.c.l.b16 %v77
  %v721 = vunpack.c.l.b16 %v78
  %v722 = vunpack.c.l.b16 %v79
  %v723 = vunpack.c.l.b16 %v80
  %v724 = vunpack.c.l.b16 %v81
  %v725 = vunpack.c.l.b16 %v82
  %v726 = vunpack.c.l.b16 %v83
  %v727 = vunpack.c.l.b16 %v84
  %v728 = vunpack.c.l.b16 %v85
  %v729 = vunpack.c.l.b16 %v86
  %v730 = vunpack.c.l.b16 %v87
  %v731 = vunpack.c.l.b16 %v88
  %v732 = vunpack.c.l.b16 %v89
  %v733 = vunpack.c.l.b16 %v90
  %v734 = vunpack.c.l.b16 %v91
  %v735 = vunpack.c.l.b16 %v92
  %v736 = vunpack.c.l.b16 %v93
  %v737 = vunpack.c.l.b16 %v94
  %v738 = vunpack.c.l.b16 %v95
  %v739 = vunpack.c.l.b16 %v96
  %v740 = vunpack.c.l.b16 %v97
  %v741 = vunpack.c.l.b16 %v98
  %v742 = vunpack.c.l.b16 %v99
  %v743 = vunpack.c.l.b16 %v100
  %v744 = vunpack.c.l.b16 %v101
  %v745 = vunpack.c.l.b16 %v102
  %v746 = vunpack.c.l.b16 %v103
  %v747 = vunpack.c.l.b16 %v104
  %v748 = vunpack.c.l.b16 %v105
  %v749 = vunpack.c.l.b16 %v106
  %v750 = vunpack.c.l.b16 %v107
  %v751 = vunpack.c.l.b16 %v108
  %v752 = vunpack.c.l.b16 %v109
  %v753 = vunpack.c.l.b16 %v110
  %v754 = vunpack.c.l.b16 %v111
  %v755 = vunpack.c.l.b16 %v112
  %v756 = vunpack.c.l.b16 %v113
  %v757 = vunpack.c.l.b16 %v114
  %v758 = vunpack.c.l.b16 %v115
  %v759 = vunpack.c.l.b16 %v116
  %v760 = vunpack.c.l.b16 %v117
  %v761 = vunpack.c.l.b16 %v118
  %v762 = vunpack.c.l.b16 %v119
  %v763 = vunpack.c.l.b16 %v120
  %v764 = vunpack.c.l.b16 %v121
  %v765 = vunpack.c.l.b16 %v122
  %v766 = vunpack.c.l.b16 %v123
  %v767 = vunpack.c.l.b16 %v124
  %v768 = vunpack.c.l.b16 %v125
  %v769 = vunpack.c.l.b16 %v126
  %v770 = vunpack.c.l.b16 %v127
  %v771 = vunpack.c.l.b16 %v128
  %v772 = vunpack.c.l.b16 %v129
  %v773 = vunpack.c.l.b16 %v130
  %v774 = vunpack.c.l.b16 %v131
  %v775 = vunpack.c.l.b16 %v132
  %v776 = vunpack.c.l.b16 %v133
  %v777 = vunpack.c.l.b16 %v134
  %v778 = vunpack.c.l.b16 %v135
  %v779 = vunpack.c.l.b16 %v136
  %v780 = vunpack.c.l.b16 %v137
  %v781 = vunpack.c.l.b16 %v138
  %v782 = vunpack.c.l.b16 %v139
  %v783 = vunpack.c.l.b16 %v140
  %v784 = vunpack.c.l.b16 %v141
  %v785 = vunpack.c.l.b16 %v142
  %v786 = vunpack.c.l.b16 %v143
  %v787 = vunpack.c.l.b16 %v144
  %v788 = vunpack.c.l.b16 %v145
  %v789 = vunpack.c.l.b16 %v146
  %v790 = vunpack.c.l.b16 %v147
  %v791 = vunpack.c.l.b16 %v148
  %v792 = vunpack.c.l.b16 %v149
  %v793 = vunpack.c.l.b16 %v150
  %v794 = vunpack.c.l.b16 %v151
  %v795 = vunpack.c.l.b16 %v152
  %v796 = vunpack.c.l.b16 %v153
  %v797 = vunpack.c.l.b16 %v154
  %v798 = vunpack.c.l.b16 %v155
  %v799 = vunpack.c.l.b16 %v156
  %v800 = vunpack.c.l.b16 %v157
  %v801 = vunpack.c.l.b16 %v158
  %v802 = vunpack.c.l.b16 %v159
  %v803 = vunpack.c.l.b16 %v160
  %v804 = vunpack.c.l.b16 %v161
  %v805 = vunpack.c.l.b16 %v162
  %v806 = vunpack.c.l.b16 %v163
  %v807 = vunpack.c.l.b16 %v164
  %v808 = vunpack.c.l.b16 %v165
  %v809 = vunpack.c.l.b16 %v166
  %v810 = vunpack.c.l.b16 %v167
  %v811 = vunpack.c.l.b16 %v168
  %v812 = vunpack.c.l.b16 %v169
  %v813 = vunpack.c.l.b16 %v170
  %v814 = vunpack.c.l.b16 %v171
  %v815 = vunpack.c.l.b16 %v172
  %v816 = vunpack.c.l.b16 %v173
  %v817 = vunpack.c.l.b16 %v174
  %v818 = vunpack.c.l.b16 %v175
  %v819 = vunpack.c.l.b16 %v176
  %v820 = vunpack.c.l.b16 %v177
  %v821 = vunpack.c.l.b16 %v178
  %v822 = vunpack.c.l.b16 %v179
  %v823 = vunpack.c.l.b16 %v180
  %v824 = vunpack.c.l.b16 %v181
  %v825 = vunpack.c.l.b16 %v182
  %v826 = vunpack.c.l.b16 %v183
  %v827 = vunpack.c.l.b16 %v184
  %v828 = vunpack.c.l.b16 %v185
  %v829 = vunpack.c.l.b16 %v186
  %v830 = vunpack.c.l.b16 %v187
  %v831 = vunpack.c.l.b16 %v188
  %v832 = vunpack.c.l.b16 %v189
  %v833 = vunpack.c.l.b16 %v190
  %v834 = vunpack.c.l.b16 %v191
  %v835 = vunpack.c.l.b16 %v192
  %v836 = vunpack.c.l.b16 %v193
  %v837 = vunpack.c.l.b16 %v194
  %v838 = vunpack.c.l.b16 %v195
  %v839 = vunpack.c.l.b16 %v196
  %v840 = vunpack.c.l.b16 %v197
  %v841 = vunpack.c.l.b16 %v198
  %v842 = vunpack.c.l.b16 %v199
  %v843 = vunpack.c.l.b16 %v200
  %v844 = vunpack.c.l.b16 %v201
  %v845 = vunpack.c.l.b16 %v202
  %v846 = vunpack.c.l.b16 %v203
  %v847 = vunpack.c.l.b16 %v204
  %v848 = vunpack.c.l.b16 %v205
  %v849 = vunpack.c.l.b16 %v206
  %v850 = vunpack.c.l.b16 %v207
  %v851 = vunpack.c.l.b16 %v208
  %v852 = vunpack.c.l.b16 %v209
  %v853 = vunpack.c.l.b16 %v210
  %v854 = vunpack.c.l.b16 %v211
  %v855 = vunpack.c.l.b16 %v212
  %v856 = vunpack.c.l.b16 %v213
  %v857 = vunpack.c.l.b16 %v214
  %v858 = vunpack.c.l.b16 %v215
  %v859 = vunpack.c.l.b16 %v216
  %v860 = vunpack.c.l.b16 %v217
  %v861 = vunpack.c.l.b16 %v218
  %v862 = vunpack.c.l.b16 %v219
  %v863 = vunpack.c.l.b16 %v220
  %v864 = vunpack.c.l.b16 %v221
  %v865 = vunpack.c.l.b16 %v222
  %v866 = vunpack.c.l.b16 %v223
  %v867 = vunpack.c.l.b16 %v224
  %v868 = vunpack.c.l.b16 %v225
  %v869 = vunpack.c.l.b16 %v226
  %v870 = vunpack.c.l.b16 %v227
  %v871 = vunpack.c.l.b16 %v228
  %v872 = vunpack.c.l.b16 %v229
  %v873 = vunpack.c.l.b16 %v230
  %v874 = vunpack.c.l.b16 %v231
  %v875 = vunpack.c.l.b16 %v232
  %v876 = vunpack.c.l.b16 %v233
  %v877 = vunpack.c.l.b16 %v234
  %v878 = vunpack.c.l.b16 %v235
  %v879 = vunpack.c.l.b16 %v236
  %v880 = vunpack.c.l.b16 %v237
  %v881 = vunpack.c.l.b16 %v238
  %v882 = vunpack.c.l.b16 %v239
  %v883 = vunpack.c.l.b16 %v240
  %v884 = vunpack.c.l.b16 %v241
  %v885 = vunpack.c.l.b16 %v242
  %v886 = vunpack.c.l.b16 %v243
  %v887 = vunpack.c.l.b16 %v244
  %v888 = vunpack.c.l.b16 %v245
  %v889 = vunpack.c.l.b16 %v246
  %v890 = vunpack.c.l.b16 %v247
  %v891 = vunpack.c.l.b16 %v248
  %v892 = vunpack.c.l.b16 %v249
  %v893 = vunpack.c.l.b16 %v250
  %v894 = vunpack.c.l.b16 %v251
  %v895 = vunpack.c.l.b16 %v252
  %v896 = vunpack.c.l.b16 %v253
  %v897 = vunpack.c.l.b16 %v254
  %v898 = vunpack.c.l.b16 %v255
  %v899 = vunpack.c.l.b16 %v256
  %v900 = vunpack.c.l.b16 %v257
  %v901 = vunpack.c.l.b16 %v258
  %v902 = vunpack.c.l.b16 %v259
  %v903 = vunpack.c.l.b16 %v260
  %v904 = vunpack.c.l.b16 %v261
  %v905 = vunpack.c.l.b16 %v262
  %v906 = vunpack.c.l.b16 %v263
  %v907 = vunpack.c.l.b16 %v264
  %v908 = vunpack.c.l.b16 %v265
  %v909 = vunpack.c.l.b16 %v266
  %v910 = vunpack.c.l.b16 %v267
  %v911 = vunpack.c.l.b16 %v268
  %v912 = vunpack.c.l.b16 %v269
  %v913 = vunpack.c.l.b16 %v270
  %v914 = vunpack.c.l.b16 %v271
  %v915 = vunpack.c.l.b16 %v272
  %v916 = vunpack.c.l.b16 %v273
  %v917 = vunpack.c.l.b16 %v274
  %v918 = vunpack.c.l.b16 %v275
  %v919 = vunpack.c.l.b16 %v276
  %v920 = vunpack.c.l.b16 %v277
  %v921 = vunpack.c.l.b16 %v278
  %v922 = vunpack.c.l.b16 %v279
  %v923 = vunpack.c.l.b16 %v280
  %v924 = vunpack.c.l.b16 %v281
  %v925 = vunpack.c.l.b16 %v282
  %v926 = vunpack.c.l.b16 %v283
  %v927 = vunpack.c.l.b16 %v284
  %v928 = vunpack.c.l.b16 %v285
  %v929 = vunpack.c.l.b16 %v286
  %v930 = vunpack.c.l.b16 %v287
  %v931 = vunpack.c.l.b16 %v288
  %v932 = vunpack.c.l.b16 %v289
  %v933 = vunpack.c.l.b16 %v290
  %v934 = vunpack.c.l.b16 %v291
  %v935 = vunpack.c.l.b16 %v292
  %v936 = vunpack.c.l.b16 %v293
  %v937 = vunpack.c.l.b16 %v294
  %v938 = vunpack.c.l.b16 %v295
  %v939 = vunpack.c.l.b16 %v296
  %v940 = vunpack.c.l.b16 %v297
  %v941 = vunpack.c.l.b16 %v298
  %v942 = vunpack.c.l.b16 %v299
  %v943 = vunpack.c.l.b16 %v300
  %v944 = vunpack.c.l.b16 %v301
  %v945 = vunpack.c.l.b16 %v302
  %v946 = vunpack.c.l.b16 %v303
  %v947 = vunpack.c.l.b16 %v304
  %v948 = vunpack.c.l.b16 %v305
  %v949 = vunpack.c.l.b16 %v306
  %v950 = vunpack.c.l.b16 %v307
  %v951 = vunpack.c.l.b16 %v308
  %v952 = vunpack.c.l.b16 %v309
  %v953 = vunpack.c.l.b16 %v310
  %v954 = vpack.c.b16 %v667, %v666
  %v955 = vpack.c.b16 %v669, %v668
  %v956 = vpack.c.b16 %v671, %v670
  %v957 = vpack.c.b16 %v673, %v672
  %v958 = vpack.c.b16 %v675, %v674
  %v959 = vpack.c.b16 %v677, %v676
  %v960 = vpack.c.b16 %v679, %v678
  %v961 = vpack.c.b16 %v681, %v680
  %v962 = vpack.c.b16 %v683, %v682
  %v963 = vpack.c.b16 %v685, %v684
  %v964 = vpack.c.b16 %v687, %v686
  %v965 = vpack.c.b16 %v689, %v688
  %v966 = vpack.c.b16 %v691, %v690
  %v967 = vpack.c.b16 %v693, %v692
  %v968 = vpack.c.b16 %v695, %v694
  %v969 = vpack.c.b16 %v697, %v696
  %v970 = vpack.c.b16 %v699, %v698
  %v971 = vpack.c.b16 %v701, %v700
  %v972 = vpack.c.b16 %v703, %v702
  %v973 = vpack.c.b16 %v705, %v704
  %v974 = vpack.c.b16 %v707, %v706
  %v975 = vpack.c.b16 %v709, %v708
  %v976 = vpack.c.b16 %v711, %v710
  %v977 = vpack.c.b16 %v713, %v712
  %v978 = vpack.c.b16 %v715, %v714
  %v979 = vpack.c.b16 %v717, %v716
  %v980 = vpack.c.b16 %v719, %v718
  %v981 = vpack.c.b16 %v721, %v720
  %v982 = vpack.c.b16 %v723, %v722
  %v983 = vpack.c.b16 %v725, %v724
  %v984 = vpack.c.b16 %v727, %v726
  %v985 = vpack.c.b16 %v729, %v728
  %v986 = vpack.c.b16 %v731, %v730
  %v987 = vpack.c.b16 %v733, %v732
  %v988 = vpack.c.b16 %v735, %v734
  %v989 = vpack.c.b16 %v737, %v736
  %v990 = vpack.c.b16 %v739, %v738
  %v991 = vpack.c.b16 %v741, %v740
  %v992 = vpack.c.b16 %v743, %v742
  %v993 = vpack.c.b16 %v745, %v744
  %v994 = vpack.c.b16 %v747, %v746
  %v995 = vpack.c.b16 %v749, %v748
  %v996 = vpack.c.b16 %v751, %v750
  %v997 = vpack.c.b16 %v753, %v752
  %v998 = vpack.c.b16 %v755, %v754
  %v999 = vpack.c.b16 %v757, %v756
  %v1000 = vpack.c.b16 %v759, %v758
  %v1001 = vpack.c.b16 %v761, %v760
  %v1002 = vpack.c.b16 %v763, %v762
  %v1003 = vpack.c.b16 %v765, %v764
  %v1004 = vpack.c.b16 %v767, %v766
  %v1005 = vpack.c.b16 %v769, %v768
  %v1006 = vpack.c.b16 %v771, %v770
  %v1007 = vpack.c.b16 %v773, %v772
  %v1008 = vpack.c.b16 %v775, %v774
  %v1009 = vpack.c.b16 %v777, %v776
  %v1010 = vpack.c.b16 %v779, %v778
  %v1011 = vpack.c.b16 %v781, %v780
  %v1012 = vpack.c.b16 %v783, %v782
  %v1013 = vpack.c.b16 %v785, %v784
  %v1014 = vpack.c.b16 %v787, %v786
  %v1015 = vpack.c.b16 %v789, %v788
  %v1016 = vpack.c.b16 %v791, %v790
  %v1017 = vpack.c.b16 %v793, %v792
  %v1018 = vpack.c.b16 %v795, %v794
  %v1019 = vpack.c.b16 %v797, %v796
  %v1020 = vpack.c.b16 %v799, %v798
  %v1021 = vpack.c.b16 %v801, %v800
  %v1022 = vpack.c.b16 %v803, %v802
  %v1023 = vpack.c.b16 %v805, %v804
  %v1024 = vpack.c.b16 %v807, %v806
  %v1025 = vpack.c.b16 %v809, %v808
  %v1026 = vpack.c.b16 %v811, %v810
  %v1027 = vpack.c.b16 %v813, %v812
  %v1028 = vpack.c.b16 %v815, %v814
  %v1029 = vpack.c.b16 %v817, %v816
  %v1030 = vpack.c.b16 %v819, %v818
  %v1031 = vpack.c.b16 %v821, %v820
  %v1032 = vpack.c.b16 %v823, %v822
  %v1033 = vpack.c.b16 %v825, %v824
  %v1034 = vpack.c.b16 %v827, %v826
  %v1035 = vpack.c.b16 %v829, %v828
  %v1036 = vpack.c.b16 %v831, %v830
  %v1037 = vpack.c.b16 %v833, %v832
  %v1038 = vpack.c.b16 %v835, %v834
  %v1039 = vpack.c.b16 %v837, %v836
  %v1040 = vpack.c.b16 %v839, %v838
  %v1041 = vpack.c.b16 %v841, %v840
  %v1042 = vpack.c.b16 %v843, %v842
  %v1043 = vpack.c.b16 %v845, %v844
  %v1044 = vpack.c.b16 %v847, %v846
  %v1045 = vpack.c.b16 %v849, %v848
  %v1046 = vpack.c.b16 %v851, %v850
  %v1047 = vpack.c.b16 %v853, %v852
  %v1048 = vpack.c.b16 %v855, %v854
  %v1049 = vpack.c.b16 %v857, %v856
  %v1050 = vpack.c.b16 %v859, %v858
  %v1051 = vpack.c.b16 %v861, %v860
  %v1052 = vpack.c.b16 %v863, %v862
  %v1053 = vpack.c.b16 %v865, %v864
  %v1054 = vpack.c.b16 %v867, %v866
  %v1055 = vpack.c.b16 %v869, %v868
  %v1056 = vpack.c.b16 %v871, %v870
  %v1057 = vpack.c.b16 %v873, %v872
  %v1058 = vpack.c.b16 %v875, %v874
  %v1059 = vpack.c.b16 %v877, %v876
  %v1060 = vpack.c.b16 %v879, %v878
  %v1061 = vpack.c.b16 %v881, %v880
  %v1062 = vpack.c.b16 %v883, %v882
  %v1063 = vpack.c.b16 %v885, %v884
  %v1064 = vpack.c.b16 %v887, %v886
  %v1065 = vpack.c.b16 %v889, %v888
  %v1066 = vpack.c.b16 %v891, %v890
  %v1067 = vpack.c.b16 %v893, %v892
  %v1068 = vpack.c.b16 %v895, %v894
  %v1069 = vpack.c.b16 %v897, %v896
  %v1070 = vpack.c.b16 %v899, %v898
  %v1071 = vpack.c.b16 %v901, %v900
  %v1072 = vpack.c.b16 %v903, %v902
  %v1073 = vpack.c.b16 %v905, %v904
  %v1074 = vpack.c.b16 %v907, %v906
  %v1075 = vpack.c.b16 %v909, %v908
  %v1076 = vpack.c.b16 %v911, %v910
  %v1077 = vpack.c.b16 %v913, %v912
  %v1078 = vpack.c.b16 %v915, %v914
  %v1079 = vpack.c.b16 %v917, %v916
  %v1080 = vpack.c.b16 %v919, %v918
  %v1081 = vpack.c.b16 %v921, %v920
  %v1082 = vpack.c.b16 %v923, %v922
  %v1083 = vpack.c.b16 %v925, %v924
  %v1084 = vpack.c.b16 %v927, %v926
  %v1085 = vpack.c.b16 %v929, %v928
  %v1086 = vpack.c.b16 %v931, %v930
  %v1087 = vpack.c.b16 %v933, %v932
  %v1088 = vpack.c.b16 %v935, %v934
  %v1089 = vpack.c.b16 %v937, %v936
  %v1090 = vpack.c.b16 %v939, %v938
  %v1091 = vpack.c.b16 %v941, %v940
  %v1092 = vpack.c.b16 %v943, %v942
  %v1093 = vpack.c.b16 %v945, %v944
  %v1094 = vpack.c.b16 %v947, %v946
  %v1095 = vpack.c.b16 %v949, %v948
  %v1096 = vpack.c.b16 %v951, %v950
  %v1097 = vpack.c.b16 %v953, %v952
  %1242 = vmatpush.bf16.msra.mxu0 %v961
  %1243 = vmatpush.bf16.msra.mxu0 %v960
  %1244 = vmatpush.bf16.msra.mxu0 %v959
  %1245 = vmatpush.bf16.msra.mxu0 %v958
  %1246 = vmatpush.bf16.msra.mxu0 %v957
  %1247 = vmatpush.bf16.msra.mxu0 %v956
  %1248 = vmatpush.bf16.msra.mxu0 %v955
  %1249 = vmatpush.bf16.msra.mxu0 %v954
  %1250 = vmatmul.bf16.gmra.mxu0 %v342
  %v1251 = vpop.f32.mrf.mxu0
  %v1252 = vadd.f32 %v313, %v1251
  %v1253 = vpop.f32.mrf.mxu0
  %1254 = vdwg.mxu0
  %1255 = vmatpush.bf16.msra.mxu0 %v969
  %1256 = vmatpush.bf16.msra.mxu0 %v968
  %1257 = vmatpush.bf16.msra.mxu0 %v967
  %1258 = vmatpush.bf16.msra.mxu0 %v966
  %1259 = vmatpush.bf16.msra.mxu0 %v965
  %1260 = vmatpush.bf16.msra.mxu0 %v964
  %1261 = vmatpush.bf16.msra.mxu0 %v963
  %1262 = vmatpush.bf16.msra.mxu0 %v962
  %1263 = vmatmul.bf16.gmra.mxu0 %v343
  %v1264 = vpop.f32.mrf.mxu0
  %v1265 = vadd.f32 %v1252, %v1264
  %v1266 = vpop.f32.mrf.mxu0
  %1267 = vdwg.mxu0
  %1268 = vmatpush.bf16.msra.mxu0 %v977
  %1269 = vmatpush.bf16.msra.mxu0 %v976
  %1270 = vmatpush.bf16.msra.mxu0 %v975
  %1271 = vmatpush.bf16.msra.mxu0 %v974
  %1272 = vmatpush.bf16.msra.mxu0 %v973
  %1273 = vmatpush.bf16.msra.mxu0 %v972
  %1274 = vmatpush.bf16.msra.mxu0 %v971
  %1275 = vmatpush.bf16.msra.mxu0 %v970
  %1276 = vmatmul.bf16.gmra.mxu0 %v344
  %v1277 = vpop.f32.mrf.mxu0
  %v1278 = vadd.f32 %v1265, %v1277
  %v1279 = vpop.f32.mrf.mxu0
  %1280 = vdwg.mxu0
  %1281 = vmatpush.bf16.msra.mxu0 %v985
  %1282 = vmatpush.bf16.msra.mxu0 %v984
  %1283 = vmatpush.bf16.msra.mxu0 %v983
  %1284 = vmatpush.bf16.msra.mxu0 %v982
  %1285 = vmatpush.bf16.msra.mxu0 %v981
  %1286 = vmatpush.bf16.msra.mxu0 %v980
  %1287 = vmatpush.bf16.msra.mxu0 %v979
  %1288 = vmatpush.bf16.msra.mxu0 %v978
  %1289 = vmatmul.bf16.gmra.mxu0 %v345
  %v1290 = vpop.f32.mrf.mxu0
  %v1291 = vadd.f32 %v1278, %v1290
  %v1292 = vpop.f32.mrf.mxu0
  %1293 = vdwg.mxu0
  %1294 = vmatpush.bf16.msra.mxu0 %v993
  %1295 = vmatpush.bf16.msra.mxu0 %v992
  %1296 = vmatpush.bf16.msra.mxu0 %v991
  %1297 = vmatpush.bf16.msra.mxu0 %v990
  %1298 = vmatpush.bf16.msra.mxu0 %v989
  %1299 = vmatpush.bf16.msra.mxu0 %v988
  %1300 = vmatpush.bf16.msra.mxu0 %v987
  %1301 = vmatpush.bf16.msra.mxu0 %v986
  %1302 = vmatmul.bf16.gmra.mxu0 %v346
  %v1303 = vpop.f32.mrf.mxu0
  %v1304 = vadd.f32 %v1291, %v1303
  %v1305 = vpop.f32.mrf.mxu0
  %1306 = vdwg.mxu0
  %1307 = vmatpush.bf16.msra.mxu0 %v1001
  %1308 = vmatpush.bf16.msra.mxu0 %v1000
  %1309 = vmatpush.bf16.msra.mxu0 %v999
  %1310 = vmatpush.bf16.msra.mxu0 %v998
  %1311 = vmatpush.bf16.msra.mxu0 %v997
  %1312 = vmatpush.bf16.msra.mxu0 %v996
  %1313 = vmatpush.bf16.msra.mxu0 %v995
  %1314 = vmatpush.bf16.msra.mxu0 %v994
  %1315 = vmatmul.bf16.gmra.mxu0 %v347
  %v1316 = vpop.f32.mrf.mxu0
  %v1317 = vadd.f32 %v1304, %v1316
  %v1318 = vpop.f32.mrf.mxu0
  %1319 = vdwg.mxu0
  %1320 = vmatpush.bf16.msra.mxu0 %v1009
  %1321 = vmatpush.bf16.msra.mxu0 %v1008
  %1322 = vmatpush.bf16.msra.mxu0 %v1007
  %1323 = vmatpush.bf16.msra.mxu0 %v1006
  %1324 = vmatpush.bf16.msra.mxu0 %v1005
  %1325 = vmatpush.bf16.msra.mxu0 %v1004
  %1326 = vmatpush.bf16.msra.mxu0 %v1003
  %1327 = vmatpush.bf16.msra.mxu0 %v1002
  %1328 = vmatmul.bf16.gmra.mxu0 %v348
  %v1329 = vpop.f32.mrf.mxu0
  %v1330 = vadd.f32 %v1317, %v1329
  %v1331 = vpop.f32.mrf.mxu0
  %1332 = vdwg.mxu0
  %1333 = vmatpush.bf16.msra.mxu0 %v1017
  %1334 = vmatpush.bf16.msra.mxu0 %v1016
  %1335 = vmatpush.bf16.msra.mxu0 %v1015
  %1336 = vmatpush.bf16.msra.mxu0 %v1014
  %1337 = vmatpush.bf16.msra.mxu0 %v1013
  %1338 = vmatpush.bf16.msra.mxu0 %v1012
  %1339 = vmatpush.bf16.msra.mxu0 %v1011
  %1340 = vmatpush.bf16.msra.mxu0 %v1010
  %1341 = vmatmul.bf16.gmra.mxu0 %v349
  %v1342 = vpop.f32.mrf.mxu0
  %v1343 = vadd.f32 %v1330, %v1342
  %v1344 = vpop.f32.mrf.mxu0
  %1345 = vdwg.mxu0
  %1346 = vmatpush.bf16.msra.mxu0 %v1025
  %1347 = vmatpush.bf16.msra.mxu0 %v1024
  %1348 = vmatpush.bf16.msra.mxu0 %v1023
  %1349 = vmatpush.bf16.msra.mxu0 %v1022
  %1350 = vmatpush.bf16.msra.mxu0 %v1021
  %1351 = vmatpush.bf16.msra.mxu0 %v1020
  %1352 = vmatpush.bf16.msra.mxu0 %v1019
  %1353 = vmatpush.bf16.msra.mxu0 %v1018
  %1354 = vmatmul.bf16.gmra.mxu0 %v350
  %v1355 = vpop.f32.mrf.mxu0
  %v1356 = vadd.f32 %v1343, %v1355
  %v1357 = vpop.f32.mrf.mxu0
  %1358 = vdwg.mxu0
  %1359 = vmatpush.bf16.msra.mxu0 %v1033
  %1360 = vmatpush.bf16.msra.mxu0 %v1032
  %1361 = vmatpush.bf16.msra.mxu0 %v1031
  %1362 = vmatpush.bf16.msra.mxu0 %v1030
  %1363 = vmatpush.bf16.msra.mxu0 %v1029
  %1364 = vmatpush.bf16.msra.mxu0 %v1028
  %1365 = vmatpush.bf16.msra.mxu0 %v1027
  %1366 = vmatpush.bf16.msra.mxu0 %v1026
  %1367 = vmatmul.bf16.gmra.mxu0 %v351
  %v1368 = vpop.f32.mrf.mxu0
  %v1369 = vadd.f32 %v1356, %v1368
  %v1370 = vpop.f32.mrf.mxu0
  %1371 = vdwg.mxu0
  %1372 = vmatpush.bf16.msra.mxu0 %v1041
  %1373 = vmatpush.bf16.msra.mxu0 %v1040
  %1374 = vmatpush.bf16.msra.mxu0 %v1039
  %1375 = vmatpush.bf16.msra.mxu0 %v1038
  %1376 = vmatpush.bf16.msra.mxu0 %v1037
  %1377 = vmatpush.bf16.msra.mxu0 %v1036
  %1378 = vmatpush.bf16.msra.mxu0 %v1035
  %1379 = vmatpush.bf16.msra.mxu0 %v1034
  %1380 = vmatmul.bf16.gmra.mxu0 %v352
  %v1381 = vpop.f32.mrf.mxu0
  %v1382 = vadd.f32 %v1369, %v1381
  %v1383 = vpop.f32.mrf.mxu0
  %1384 = vdwg.mxu0
  %1385 = vmatpush.bf16.msra.mxu0 %v1049
  %1386 = vmatpush.bf16.msra.mxu0 %v1048
  %1387 = vmatpush.bf16.msra.mxu0 %v1047
  %1388 = vmatpush.bf16.msra.mxu0 %v1046
  %1389 = vmatpush.bf16.msra.mxu0 %v1045
  %1390 = vmatpush.bf16.msra.mxu0 %v1044
  %1391 = vmatpush.bf16.msra.mxu0 %v1043
  %1392 = vmatpush.bf16.msra.mxu0 %v1042
  %1393 = vmatmul.bf16.gmra.mxu0 %v353
  %v1394 = vpop.f32.mrf.mxu0
  %v1395 = vadd.f32 %v1382, %v1394
  %v1396 = vpop.f32.mrf.mxu0
  %1397 = vdwg.mxu0
  %1398 = vmatpush.bf16.msra.mxu0 %v1057
  %1399 = vmatpush.bf16.msra.mxu0 %v1056
  %1400 = vmatpush.bf16.msra.mxu0 %v1055
  %1401 = vmatpush.bf16.msra.mxu0 %v1054
  %1402 = vmatpush.bf16.msra.mxu0 %v1053
  %1403 = vmatpush.bf16.msra.mxu0 %v1052
  %1404 = vmatpush.bf16.msra.mxu0 %v1051
  %1405 = vmatpush.bf16.msra.mxu0 %v1050
  %1406 = vmatmul.bf16.gmra.mxu0 %v354
  %v1407 = vpop.f32.mrf.mxu0
  %v1408 = vadd.f32 %v1395, %v1407
  %v1409 = vpop.f32.mrf.mxu0
  %1410 = vdwg.mxu0
  %1411 = vmatpush.bf16.msra.mxu0 %v1065
  %1412 = vmatpush.bf16.msra.mxu0 %v1064
  %1413 = vmatpush.bf16.msra.mxu0 %v1063
  %1414 = vmatpush.bf16.msra.mxu0 %v1062
  %1415 = vmatpush.bf16.msra.mxu0 %v1061
  %1416 = vmatpush.bf16.msra.mxu0 %v1060
  %1417 = vmatpush.bf16.msra.mxu0 %v1059
  %1418 = vmatpush.bf16.msra.mxu0 %v1058
  %1419 = vmatmul.bf16.gmra.mxu0 %v355
  %v1420 = vpop.f32.mrf.mxu0
  %v1421 = vadd.f32 %v1408, %v1420
  %v1422 = vpop.f32.mrf.mxu0
  %1423 = vdwg.mxu0
  %1424 = vmatpush.bf16.msra.mxu0 %v1073
  %1425 = vmatpush.bf16.msra.mxu0 %v1072
  %1426 = vmatpush.bf16.msra.mxu0 %v1071
  %1427 = vmatpush.bf16.msra.mxu0 %v1070
  %1428 = vmatpush.bf16.msra.mxu0 %v1069
  %1429 = vmatpush.bf16.msra.mxu0 %v1068
  %1430 = vmatpush.bf16.msra.mxu0 %v1067
  %1431 = vmatpush.bf16.msra.mxu0 %v1066
  %1432 = vmatmul.bf16.gmra.mxu0 %v356
  %v1433 = vpop.f32.mrf.mxu0
  %v1434 = vadd.f32 %v1421, %v1433
  %v1435 = vpop.f32.mrf.mxu0
  %1436 = vdwg.mxu0
  %1437 = vmatpush.bf16.msra.mxu0 %v1081
  %1438 = vmatpush.bf16.msra.mxu0 %v1080
  %1439 = vmatpush.bf16.msra.mxu0 %v1079
  %1440 = vmatpush.bf16.msra.mxu0 %v1078
  %1441 = vmatpush.bf16.msra.mxu0 %v1077
  %1442 = vmatpush.bf16.msra.mxu0 %v1076
  %1443 = vmatpush.bf16.msra.mxu0 %v1075
  %1444 = vmatpush.bf16.msra.mxu0 %v1074
  %1445 = vmatmul.bf16.gmra.mxu0 %v357
  %v1446 = vpop.f32.mrf.mxu0
  %v1447 = vadd.f32 %v1434, %v1446
  %v1448 = vpop.f32.mrf.mxu0
  %1449 = vdwg.mxu0
  %1450 = vmatpush.bf16.msra.mxu0 %v1089
  %1451 = vmatpush.bf16.msra.mxu0 %v1088
  %1452 = vmatpush.bf16.msra.mxu0 %v1087
  %1453 = vmatpush.bf16.msra.mxu0 %v1086
  %1454 = vmatpush.bf16.msra.mxu0 %v1085
  %1455 = vmatpush.bf16.msra.mxu0 %v1084
  %1456 = vmatpush.bf16.msra.mxu0 %v1083
  %1457 = vmatpush.bf16.msra.mxu0 %v1082
  %1458 = vmatmul.bf16.gmra.mxu0 %v358
  %v1459 = vpop.f32.mrf.mxu0
  %v1460 = vadd.f32 %v1447, %v1459
  %v1461 = vpop.f32.mrf.mxu0
  %1462 = vdwg.mxu0
  %1463 = vmatpush.bf16.msra.mxu0 %v1097
  %1464 = vmatpush.bf16.msra.mxu0 %v1096
  %1465 = vmatpush.bf16.msra.mxu0 %v1095
  %1466 = vmatpush.bf16.msra.mxu0 %v1094
  %1467 = vmatpush.bf16.msra.mxu0 %v1093
  %1468 = vmatpush.bf16.msra.mxu0 %v1092
  %1469 = vmatpush.bf16.msra.mxu0 %v1091
  %1470 = vmatpush.bf16.msra.mxu0 %v1090
  %1471 = vmatmul.bf16.gmra.mxu0 %v359
  %v1472 = vpop.f32.mrf.mxu0
  %v1473 = vadd.f32 %v1460, %v1472
  %v1474 = vpop.f32.mrf.mxu0
  %1475 = vdwg.mxu0
  %vm1476 = vcmp.ge.f32.partialorder %v1473, 0.0
  %v1477 = vmul.f32 %v1473, 0.1
  %v1478 = vsel %vm1476, %v1473, %v1477
  %v1479 = vpack.c.bf16 %v1478, %v1478
  %1480 = vst [vmem:[%s3] sm:$0xf] %v1479
  // Predicated region
  $region14: #{ed_regression_forward.22} parent=0 // pred_check
    _
  $region15: #{ed_regression_forward.22} parent=0 // pred_check_branch
    %1482 = sbr.rel (0) target = $region17
  $region16: #{ed_regression_forward.22} parent=0 // pred_region
    _
  $region17: #{ed_regression_forward.22} parent=0 // pred_fallthru
    _
  // Predicated region
  $region18: #{ed_regression_forward.22} parent=0 // pred_check
    _
  $region19: #{ed_regression_forward.22} parent=0 // pred_check_branch
    %1484 = sbr.rel (0) target = $region21
  $region20: #{ed_regression_forward.22} parent=0 // pred_region
    _
  $region21: #{ed_regression_forward.22} parent=0 // pred_fallthru
    _

// kernel: ed_regression_forward.24
$region0: #{ed_regression_forward.24}
  #allocation0 [shape = 'u32[]', space=smem, size = 0x4, offset = 0x4, fixed_abs, tag = 'smem constant byte address 0x4 - core index']
  #allocation1 [shape = 'u32[72,128]{1,0:T(1,128)}', space=vmem, size = 0x9000, scoped, tag = 'internal scratch']
  %s0 = inlined_call_operand.vmem [shape: bf16[8,512], index: 0, kind: input, shape index: {}]
  %s1 = inlined_call_operand.vmem [shape: bf16[512,128], index: 1, kind: input, shape index: {}]
  %s2 = inlined_call_operand.vmem [shape: f32[1,128], index: 2, kind: input, shape index: {}]
  %s3 = inlined_call_operand.vmem [shape: bf16[8,128], index: 3, kind: output, shape index: {}]
  %s4 = sld [smem:[#allocation0]]
  $region22: #{ed_regression_forward.24} parent=0
    _
  %s6 = ssub.s32 1, %s4
  %s7 = scalar_select 0, %s6, %s4
  // Predicated region
  $region2: #{ed_regression_forward.24} parent=0 // pred_check
    _
  $region3: #{ed_regression_forward.24} parent=0 // pred_check_branch
    %9 = sbr.rel (0) target = $region5
  $region4: #{ed_regression_forward.24} parent=0 // pred_region
    _
  $region5: #{ed_regression_forward.24} parent=0 // pred_fallthru
    _
  // Predicated region
  $region6: #{ed_regression_forward.24} parent=0 // pred_check
    _
  $region7: #{ed_regression_forward.24} parent=0 // pred_check_branch
    %11 = sbr.rel (0) target = $region9
  $region8: #{ed_regression_forward.24} parent=0 // pred_region
    _
  $region9: #{ed_regression_forward.24} parent=0 // pred_fallthru
    _
  // Predicated region
  $region10: #{ed_regression_forward.24} parent=0 // pred_check
    _
  $region11: #{ed_regression_forward.24} parent=0 // pred_check_branch
    %13 = sbr.rel (0) target = $region13
  $region12: #{ed_regression_forward.24} parent=0 // pred_region
    _
  $region13: #{ed_regression_forward.24} parent=0 // pred_fallthru
    _
  %v14 = vld [vmem:[%s0] sm:$0xff]
  %v15 = vld [vmem:[%s0 + $0x8] sm:$0xff]
  %v16 = vld [vmem:[%s1] sm:$0xf]
  %v17 = vld [vmem:[%s1 + $0x4] sm:$0xf]
  %v18 = vld [vmem:[%s1 + $0x8] sm:$0xf]
  %v19 = vld [vmem:[%s1 + $0xc] sm:$0xf]
  %v20 = vld [vmem:[%s1 + $0x10] sm:$0xf]
  %v21 = vld [vmem:[%s1 + $0x14] sm:$0xf]
  %v22 = vld [vmem:[%s1 + $0x18] sm:$0xf]
  %v23 = vld [vmem:[%s1 + $0x1c] sm:$0xf]
  %v24 = vld [vmem:[%s1 + $0x20] sm:$0xf]
  %v25 = vld [vmem:[%s1 + $0x24] sm:$0xf]
  %v26 = vld [vmem:[%s1 + $0x28] sm:$0xf]
  %v27 = vld [vmem:[%s1 + $0x2c] sm:$0xf]
  %v28 = vld [vmem:[%s1 + $0x30] sm:$0xf]
  %v29 = vld [vmem:[%s1 + $0x34] sm:$0xf]
  %v30 = vld [vmem:[%s1 + $0x38] sm:$0xf]
  %v31 = vld [vmem:[%s1 + $0x3c] sm:$0xf]
  %v32 = vld [vmem:[%s1 + $0x40] sm:$0xf]
  %v33 = vld [vmem:[%s1 + $0x44] sm:$0xf]
  %v34 = vld [vmem:[%s1 + $0x48] sm:$0xf]
  %v35 = vld [vmem:[%s1 + $0x4c] sm:$0xf]
  %v36 = vld [vmem:[%s1 + $0x50] sm:$0xf]
  %v37 = vld [vmem:[%s1 + $0x54] sm:$0xf]
  %v38 = vld [vmem:[%s1 + $0x58] sm:$0xf]
  %v39 = vld [vmem:[%s1 + $0x5c] sm:$0xf]
  %v40 = vld [vmem:[%s1 + $0x60] sm:$0xf]
  %v41 = vld [vmem:[%s1 + $0x64] sm:$0xf]
  %v42 = vld [vmem:[%s1 + $0x68] sm:$0xf]
  %v43 = vld [vmem:[%s1 + $0x6c] sm:$0xf]
  %v44 = vld [vmem:[%s1 + $0x70] sm:$0xf]
  %v45 = vld [vmem:[%s1 + $0x74] sm:$0xf]
  %v46 = vld [vmem:[%s1 + $0x78] sm:$0xf]
  %v47 = vld [vmem:[%s1 + $0x7c] sm:$0xf]
  %v48 = vld [vmem:[%s1 + $0x80] sm:$0xf]
  %v49 = vld [vmem:[%s1 + $0x84] sm:$0xf]
  %v50 = vld [vmem:[%s1 + $0x88] sm:$0xf]
  %v51 = vld [vmem:[%s1 + $0x8c] sm:$0xf]
  %v52 = vld [vmem:[%s1 + $0x90] sm:$0xf]
  %v53 = vld [vmem:[%s1 + $0x94] sm:$0xf]
  %v54 = vld [vmem:[%s1 + $0x98] sm:$0xf]
  %v55 = vld [vmem:[%s1 + $0x9c] sm:$0xf]
  %v56 = vld [vmem:[%s1 + $0xa0] sm:$0xf]
  %v57 = vld [vmem:[%s1 + $0xa4] sm:$0xf]
  %v58 = vld [vmem:[%s1 + $0xa8] sm:$0xf]
  %v59 = vld [vmem:[%s1 + $0xac] sm:$0xf]
  %v60 = vld [vmem:[%s1 + $0xb0] sm:$0xf]
  %v61 = vld [vmem:[%s1 + $0xb4] sm:$0xf]
  %v62 = vld [vmem:[%s1 + $0xb8] sm:$0xf]
  %v63 = vld [vmem:[%s1 + $0xbc] sm:$0xf]
  %v64 = vld [vmem:[%s1 + $0xc0] sm:$0xf]
  %v65 = vld [vmem:[%s1 + $0xc4] sm:$0xf]
  %v66 = vld [vmem:[%s1 + $0xc8] sm:$0xf]
  %v67 = vld [vmem:[%s1 + $0xcc] sm:$0xf]
  %v68 = vld [vmem:[%s1 + $0xd0] sm:$0xf]
  %v69 = vld [vmem:[%s1 + $0xd4] sm:$0xf]
  %v70 = vld [vmem:[%s1 + $0xd8] sm:$0xf]
  %v71 = vld [vmem:[%s1 + $0xdc] sm:$0xf]
  %v72 = vld [vmem:[%s1 + $0xe0] sm:$0xf]
  %v73 = vld [vmem:[%s1 + $0xe4] sm:$0xf]
  %v74 = vld [vmem:[%s1 + $0xe8] sm:$0xf]
  %v75 = vld [vmem:[%s1 + $0xec] sm:$0xf]
  %v76 = vld [vmem:[%s1 + $0xf0] sm:$0xf]
  %v77 = vld [vmem:[%s1 + $0xf4] sm:$0xf]
  %v78 = vld [vmem:[%s1 + $0xf8] sm:$0xf]
  %v79 = vld [vmem:[%s1 + $0xfc] sm:$0xf]
  %v80 = vld [vmem:[%s2] sm:$0x1]
  %v82 = vperm.slane %v80, 0
  %v86 = vunpack.c.l.b16 %v14
  %v87 = vunpack.c.h.b16 %v14
  %v88 = vunpack.c.l.b16 %v15
  %v89 = vunpack.c.h.b16 %v15
  %v90 = vpack.c.b16 %v86, %v86
  %v91 = vpack.c.b16 %v87, %v87
  %v92 = vpack.c.b16 %v88, %v88
  %v93 = vpack.c.b16 %v89, %v89
  %v162 = vunpack.c.l.b16 %v16
  %v163 = vunpack.c.l.b16 %v17
  %v164 = vunpack.c.l.b16 %v18
  %v165 = vunpack.c.l.b16 %v19
  %v166 = vunpack.c.l.b16 %v20
  %v167 = vunpack.c.l.b16 %v21
  %v168 = vunpack.c.l.b16 %v22
  %v169 = vunpack.c.l.b16 %v23
  %v170 = vunpack.c.l.b16 %v24
  %v171 = vunpack.c.l.b16 %v25
  %v172 = vunpack.c.l.b16 %v26
  %v173 = vunpack.c.l.b16 %v27
  %v174 = vunpack.c.l.b16 %v28
  %v175 = vunpack.c.l.b16 %v29
  %v176 = vunpack.c.l.b16 %v30
  %v177 = vunpack.c.l.b16 %v31
  %v178 = vunpack.c.l.b16 %v32
  %v179 = vunpack.c.l.b16 %v33
  %v180 = vunpack.c.l.b16 %v34
  %v181 = vunpack.c.l.b16 %v35
  %v182 = vunpack.c.l.b16 %v36
  %v183 = vunpack.c.l.b16 %v37
  %v184 = vunpack.c.l.b16 %v38
  %v185 = vunpack.c.l.b16 %v39
  %v186 = vunpack.c.l.b16 %v40
  %v187 = vunpack.c.l.b16 %v41
  %v188 = vunpack.c.l.b16 %v42
  %v189 = vunpack.c.l.b16 %v43
  %v190 = vunpack.c.l.b16 %v44
  %v191 = vunpack.c.l.b16 %v45
  %v192 = vunpack.c.l.b16 %v46
  %v193 = vunpack.c.l.b16 %v47
  %v194 = vunpack.c.l.b16 %v48
  %v195 = vunpack.c.l.b16 %v49
  %v196 = vunpack.c.l.b16 %v50
  %v197 = vunpack.c.l.b16 %v51
  %v198 = vunpack.c.l.b16 %v52
  %v199 = vunpack.c.l.b16 %v53
  %v200 = vunpack.c.l.b16 %v54
  %v201 = vunpack.c.l.b16 %v55
  %v202 = vunpack.c.l.b16 %v56
  %v203 = vunpack.c.l.b16 %v57
  %v204 = vunpack.c.l.b16 %v58
  %v205 = vunpack.c.l.b16 %v59
  %v206 = vunpack.c.l.b16 %v60
  %v207 = vunpack.c.l.b16 %v61
  %v208 = vunpack.c.l.b16 %v62
  %v209 = vunpack.c.l.b16 %v63
  %v210 = vunpack.c.l.b16 %v64
  %v211 = vunpack.c.l.b16 %v65
  %v212 = vunpack.c.l.b16 %v66
  %v213 = vunpack.c.l.b16 %v67
  %v214 = vunpack.c.l.b16 %v68
  %v215 = vunpack.c.l.b16 %v69
  %v216 = vunpack.c.l.b16 %v70
  %v217 = vunpack.c.l.b16 %v71
  %v218 = vunpack.c.l.b16 %v72
  %v219 = vunpack.c.l.b16 %v73
  %v220 = vunpack.c.l.b16 %v74
  %v221 = vunpack.c.l.b16 %v75
  %v222 = vunpack.c.l.b16 %v76
  %v223 = vunpack.c.l.b16 %v77
  %v224 = vunpack.c.l.b16 %v78
  %v225 = vunpack.c.l.b16 %v79
  %v226 = vpack.c.b16 %v163, %v162
  %v227 = vpack.c.b16 %v165, %v164
  %v228 = vpack.c.b16 %v167, %v166
  %v229 = vpack.c.b16 %v169, %v168
  %v230 = vpack.c.b16 %v171, %v170
  %v231 = vpack.c.b16 %v173, %v172
  %v232 = vpack.c.b16 %v175, %v174
  %v233 = vpack.c.b16 %v177, %v176
  %v234 = vpack.c.b16 %v179, %v178
  %v235 = vpack.c.b16 %v181, %v180
  %v236 = vpack.c.b16 %v183, %v182
  %v237 = vpack.c.b16 %v185, %v184
  %v238 = vpack.c.b16 %v187, %v186
  %v239 = vpack.c.b16 %v189, %v188
  %v240 = vpack.c.b16 %v191, %v190
  %v241 = vpack.c.b16 %v193, %v192
  %v242 = vpack.c.b16 %v195, %v194
  %v243 = vpack.c.b16 %v197, %v196
  %v244 = vpack.c.b16 %v199, %v198
  %v245 = vpack.c.b16 %v201, %v200
  %v246 = vpack.c.b16 %v203, %v202
  %v247 = vpack.c.b16 %v205, %v204
  %v248 = vpack.c.b16 %v207, %v206
  %v249 = vpack.c.b16 %v209, %v208
  %v250 = vpack.c.b16 %v211, %v210
  %v251 = vpack.c.b16 %v213, %v212
  %v252 = vpack.c.b16 %v215, %v214
  %v253 = vpack.c.b16 %v217, %v216
  %v254 = vpack.c.b16 %v219, %v218
  %v255 = vpack.c.b16 %v221, %v220
  %v256 = vpack.c.b16 %v223, %v222
  %v257 = vpack.c.b16 %v225, %v224
  %290 = vmatpush.bf16.msra.mxu0 %v233
  %291 = vmatpush.bf16.msra.mxu0 %v232
  %292 = vmatpush.bf16.msra.mxu0 %v231
  %293 = vmatpush.bf16.msra.mxu0 %v230
  %294 = vmatpush.bf16.msra.mxu0 %v229
  %295 = vmatpush.bf16.msra.mxu0 %v228
  %296 = vmatpush.bf16.msra.mxu0 %v227
  %297 = vmatpush.bf16.msra.mxu0 %v226
  %298 = vmatmul.bf16.gmra.mxu0 %v90
  %v299 = vpop.f32.mrf.mxu0
  %v300 = vadd.f32 %v82, %v299
  %v301 = vpop.f32.mrf.mxu0
  %302 = vdwg.mxu0
  %303 = vmatpush.bf16.msra.mxu0 %v241
  %304 = vmatpush.bf16.msra.mxu0 %v240
  %305 = vmatpush.bf16.msra.mxu0 %v239
  %306 = vmatpush.bf16.msra.mxu0 %v238
  %307 = vmatpush.bf16.msra.mxu0 %v237
  %308 = vmatpush.bf16.msra.mxu0 %v236
  %309 = vmatpush.bf16.msra.mxu0 %v235
  %310 = vmatpush.bf16.msra.mxu0 %v234
  %311 = vmatmul.bf16.gmra.mxu0 %v91
  %v312 = vpop.f32.mrf.mxu0
  %v313 = vadd.f32 %v300, %v312
  %v314 = vpop.f32.mrf.mxu0
  %315 = vdwg.mxu0
  %316 = vmatpush.bf16.msra.mxu0 %v249
  %317 = vmatpush.bf16.msra.mxu0 %v248
  %318 = vmatpush.bf16.msra.mxu0 %v247
  %319 = vmatpush.bf16.msra.mxu0 %v246
  %320 = vmatpush.bf16.msra.mxu0 %v245
  %321 = vmatpush.bf16.msra.mxu0 %v244
  %322 = vmatpush.bf16.msra.mxu0 %v243
  %323 = vmatpush.bf16.msra.mxu0 %v242
  %324 = vmatmul.bf16.gmra.mxu0 %v92
  %v325 = vpop.f32.mrf.mxu0
  %v326 = vadd.f32 %v313, %v325
  %v327 = vpop.f32.mrf.mxu0
  %328 = vdwg.mxu0
  %329 = vmatpush.bf16.msra.mxu0 %v257
  %330 = vmatpush.bf16.msra.mxu0 %v256
  %331 = vmatpush.bf16.msra.mxu0 %v255
  %332 = vmatpush.bf16.msra.mxu0 %v254
  %333 = vmatpush.bf16.msra.mxu0 %v253
  %334 = vmatpush.bf16.msra.mxu0 %v252
  %335 = vmatpush.bf16.msra.mxu0 %v251
  %336 = vmatpush.bf16.msra.mxu0 %v250
  %337 = vmatmul.bf16.gmra.mxu0 %v93
  %v338 = vpop.f32.mrf.mxu0
  %v339 = vadd.f32 %v326, %v338
  %v340 = vpop.f32.mrf.mxu0
  %341 = vdwg.mxu0
  %vm342 = vcmp.ge.f32.partialorder %v339, 0.0
  %v343 = vmul.f32 %v339, 0.1
  %v344 = vsel %vm342, %v339, %v343
  %v345 = vpack.c.bf16 %v344, %v344
  %346 = vst [vmem:[%s3] sm:$0xf] %v345
  // Predicated region
  $region14: #{ed_regression_forward.24} parent=0 // pred_check
    _
  $region15: #{ed_regression_forward.24} parent=0 // pred_check_branch
    %348 = sbr.rel (0) target = $region17
  $region16: #{ed_regression_forward.24} parent=0 // pred_region
    _
  $region17: #{ed_regression_forward.24} parent=0 // pred_fallthru
    _
  // Predicated region
  $region18: #{ed_regression_forward.24} parent=0 // pred_check
    _
  $region19: #{ed_regression_forward.24} parent=0 // pred_check_branch
    %350 = sbr.rel (0) target = $region21
  $region20: #{ed_regression_forward.24} parent=0 // pred_region
    _
  $region21: #{ed_regression_forward.24} parent=0 // pred_fallthru
    _

// kernel: ed_regression_forward.28
$region0: #{ed_regression_forward.28}
  #allocation0 [shape = 'u32[]', space=smem, size = 0x4, offset = 0x4, fixed_abs, tag = 'smem constant byte address 0x4 - core index']
  #allocation1 [shape = 'u32[72,128]{1,0:T(1,128)}', space=vmem, size = 0x9000, scoped, tag = 'internal scratch']
  %s0 = inlined_call_operand.vmem [shape: bf16[32,1536], index: 0, kind: input, shape index: {}]
  %s1 = inlined_call_operand.vmem [shape: bf16[1536,128], index: 1, kind: input, shape index: {}]
  %s2 = inlined_call_operand.vmem [shape: f32[1,128], index: 2, kind: input, shape index: {}]
  %s3 = inlined_call_operand.vmem [shape: bf16[32,128], index: 3, kind: output, shape index: {}]
  %s4 = sld [smem:[#allocation0]]
  $region22: #{ed_regression_forward.28} parent=0
    _
  %s6 = ssub.s32 1, %s4
  %s7 = scalar_select 0, %s6, %s4
  // Predicated region
  $region2: #{ed_regression_forward.28} parent=0 // pred_check
    _
  $region3: #{ed_regression_forward.28} parent=0 // pred_check_branch
    %9 = sbr.rel (0) target = $region5
  $region4: #{ed_regression_forward.28} parent=0 // pred_region
    _
  $region5: #{ed_regression_forward.28} parent=0 // pred_fallthru
    _
  // Predicated region
  $region6: #{ed_regression_forward.28} parent=0 // pred_check
    _
  $region7: #{ed_regression_forward.28} parent=0 // pred_check_branch
    %11 = sbr.rel (0) target = $region9
  $region8: #{ed_regression_forward.28} parent=0 // pred_region
    _
  $region9: #{ed_regression_forward.28} parent=0 // pred_fallthru
    _
  // Predicated region
  $region10: #{ed_regression_forward.28} parent=0 // pred_check
    _
  $region11: #{ed_regression_forward.28} parent=0 // pred_check_branch
    %13 = sbr.rel (0) target = $region13
  $region12: #{ed_regression_forward.28} parent=0 // pred_region
    _
  $region13: #{ed_regression_forward.28} parent=0 // pred_fallthru
    _
  %v14 = vld [vmem:[%s0] sm:$0xff]
  %v15 = vld [vmem:[%s0 + $0x8] sm:$0xff]
  %v16 = vld [vmem:[%s0 + $0x10] sm:$0xff]
  %v17 = vld [vmem:[%s0 + $0x18] sm:$0xff]
  %v18 = vld [vmem:[%s0 + $0x20] sm:$0xff]
  %v19 = vld [vmem:[%s0 + $0x28] sm:$0xff]
  %v20 = vld [vmem:[%s0 + $0x30] sm:$0xff]
  %v21 = vld [vmem:[%s0 + $0x38] sm:$0xff]
  %v22 = vld [vmem:[%s0 + $0x40] sm:$0xff]
  %v23 = vld [vmem:[%s0 + $0x48] sm:$0xff]
  %v24 = vld [vmem:[%s0 + $0x50] sm:$0xff]
  %v25 = vld [vmem:[%s0 + $0x58] sm:$0xff]
  %v26 = vld [vmem:[%s0 + $0x60] sm:$0xff]
  %v27 = vld [vmem:[%s0 + $0x68] sm:$0xff]
  %v28 = vld [vmem:[%s0 + $0x70] sm:$0xff]
  %v29 = vld [vmem:[%s0 + $0x78] sm:$0xff]
  %v30 = vld [vmem:[%s0 + $0x80] sm:$0xff]
  %v31 = vld [vmem:[%s0 + $0x88] sm:$0xff]
  %v32 = vld [vmem:[%s0 + $0x90] sm:$0xff]
  %v33 = vld [vmem:[%s0 + $0x98] sm:$0xff]
  %v34 = vld [vmem:[%s0 + $0xa0] sm:$0xff]
  %v35 = vld [vmem:[%s0 + $0xa8] sm:$0xff]
  %v36 = vld [vmem:[%s0 + $0xb0] sm:$0xff]
  %v37 = vld [vmem:[%s0 + $0xb8] sm:$0xff]
  %v38 = vld [vmem:[%s1] sm:$0xf]
  %v39 = vld [vmem:[%s1 + $0x4] sm:$0xf]
  %v40 = vld [vmem:[%s1 + $0x8] sm:$0xf]
  %v41 = vld [vmem:[%s1 + $0xc] sm:$0xf]
  %v42 = vld [vmem:[%s1 + $0x10] sm:$0xf]
  %v43 = vld [vmem:[%s1 + $0x14] sm:$0xf]
  %v44 = vld [vmem:[%s1 + $0x18] sm:$0xf]
  %v45 = vld [vmem:[%s1 + $0x1c] sm:$0xf]
  %v46 = vld [vmem:[%s1 + $0x20] sm:$0xf]
  %v47 = vld [vmem:[%s1 + $0x24] sm:$0xf]
  %v48 = vld [vmem:[%s1 + $0x28] sm:$0xf]
  %v49 = vld [vmem:[%s1 + $0x2c] sm:$0xf]
  %v50 = vld [vmem:[%s1 + $0x30] sm:$0xf]
  %v51 = vld [vmem:[%s1 + $0x34] sm:$0xf]
  %v52 = vld [vmem:[%s1 + $0x38] sm:$0xf]
  %v53 = vld [vmem:[%s1 + $0x3c] sm:$0xf]
  %v54 = vld [vmem:[%s1 + $0x40] sm:$0xf]
  %v55 = vld [vmem:[%s1 + $0x44] sm:$0xf]
  %v56 = vld [vmem:[%s1 + $0x48] sm:$0xf]
  %v57 = vld [vmem:[%s1 + $0x4c] sm:$0xf]
  %v58 = vld [vmem:[%s1 + $0x50] sm:$0xf]
  %v59 = vld [vmem:[%s1 + $0x54] sm:$0xf]
  %v60 = vld [vmem:[%s1 + $0x58] sm:$0xf]
  %v61 = vld [vmem:[%s1 + $0x5c] sm:$0xf]
  %v62 = vld [vmem:[%s1 + $0x60] sm:$0xf]
  %v63 = vld [vmem:[%s1 + $0x64] sm:$0xf]
  %v64 = vld [vmem:[%s1 + $0x68] sm:$0xf]
  %v65 = vld [vmem:[%s1 + $0x6c] sm:$0xf]
  %v66 = vld [vmem:[%s1 + $0x70] sm:$0xf]
  %v67 = vld [vmem:[%s1 + $0x74] sm:$0xf]
  %v68 = vld [vmem:[%s1 + $0x78] sm:$0xf]
  %v69 = vld [vmem:[%s1 + $0x7c] sm:$0xf]
  %v70 = vld [vmem:[%s1 + $0x80] sm:$0xf]
  %v71 = vld [vmem:[%s1 + $0x84] sm:$0xf]
  %v72 = vld [vmem:[%s1 + $0x88] sm:$0xf]
  %v73 = vld [vmem:[%s1 + $0x8c] sm:$0xf]
  %v74 = vld [vmem:[%s1 + $0x90] sm:$0xf]
  %v75 = vld [vmem:[%s1 + $0x94] sm:$0xf]
  %v76 = vld [vmem:[%s1 + $0x98] sm:$0xf]
  %v77 = vld [vmem:[%s1 + $0x9c] sm:$0xf]
  %v78 = vld [vmem:[%s1 + $0xa0] sm:$0xf]
  %v79 = vld [vmem:[%s1 + $0xa4] sm:$0xf]
  %v80 = vld [vmem:[%s1 + $0xa8] sm:$0xf]
  %v81 = vld [vmem:[%s1 + $0xac] sm:$0xf]
  %v82 = vld [vmem:[%s1 + $0xb0] sm:$0xf]
  %v83 = vld [vmem:[%s1 + $0xb4] sm:$0xf]
  %v84 = vld [vmem:[%s1 + $0xb8] sm:$0xf]
  %v85 = vld [vmem:[%s1 + $0xbc] sm:$0xf]
  %v86 = vld [vmem:[%s1 + $0xc0] sm:$0xf]
  %v87 = vld [vmem:[%s1 + $0xc4] sm:$0xf]
  %v88 = vld [vmem:[%s1 + $0xc8] sm:$0xf]
  %v89 = vld [vmem:[%s1 + $0xcc] sm:$0xf]
  %v90 = vld [vmem:[%s1 + $0xd0] sm:$0xf]
  %v91 = vld [vmem:[%s1 + $0xd4] sm:$0xf]
  %v92 = vld [vmem:[%s1 + $0xd8] sm:$0xf]
  %v93 = vld [vmem:[%s1 + $0xdc] sm:$0xf]
  %v94 = vld [vmem:[%s1 + $0xe0] sm:$0xf]
  %v95 = vld [vmem:[%s1 + $0xe4] sm:$0xf]
  %v96 = vld [vmem:[%s1 + $0xe8] sm:$0xf]
  %v97 = vld [vmem:[%s1 + $0xec] sm:$0xf]
  %v98 = vld [vmem:[%s1 + $0xf0] sm:$0xf]
  %v99 = vld [vmem:[%s1 + $0xf4] sm:$0xf]
  %v100 = vld [vmem:[%s1 + $0xf8] sm:$0xf]
  %v101 = vld [vmem:[%s1 + $0xfc] sm:$0xf]
  %v102 = vld [vmem:[%s1 + $0x100] sm:$0xf]
  %v103 = vld [vmem:[%s1 + $0x104] sm:$0xf]
  %v104 = vld [vmem:[%s1 + $0x108] sm:$0xf]
  %v105 = vld [vmem:[%s1 + $0x10c] sm:$0xf]
  %v106 = vld [vmem:[%s1 + $0x110] sm:$0xf]
  %v107 = vld [vmem:[%s1 + $0x114] sm:$0xf]
  %v108 = vld [vmem:[%s1 + $0x118] sm:$0xf]
  %v109 = vld [vmem:[%s1 + $0x11c] sm:$0xf]
  %v110 = vld [vmem:[%s1 + $0x120] sm:$0xf]
  %v111 = vld [vmem:[%s1 + $0x124] sm:$0xf]
  %v112 = vld [vmem:[%s1 + $0x128] sm:$0xf]
  %v113 = vld [vmem:[%s1 + $0x12c] sm:$0xf]
  %v114 = vld [vmem:[%s1 + $0x130] sm:$0xf]
  %v115 = vld [vmem:[%s1 + $0x134] sm:$0xf]
  %v116 = vld [vmem:[%s1 + $0x138] sm:$0xf]
  %v117 = vld [vmem:[%s1 + $0x13c] sm:$0xf]
  %v118 = vld [vmem:[%s1 + $0x140] sm:$0xf]
  %v119 = vld [vmem:[%s1 + $0x144] sm:$0xf]
  %v120 = vld [vmem:[%s1 + $0x148] sm:$0xf]
  %v121 = vld [vmem:[%s1 + $0x14c] sm:$0xf]
  %v122 = vld [vmem:[%s1 + $0x150] sm:$0xf]
  %v123 = vld [vmem:[%s1 + $0x154] sm:$0xf]
  %v124 = vld [vmem:[%s1 + $0x158] sm:$0xf]
  %v125 = vld [vmem:[%s1 + $0x15c] sm:$0xf]
  %v126 = vld [vmem:[%s1 + $0x160] sm:$0xf]
  %v127 = vld [vmem:[%s1 + $0x164] sm:$0xf]
  %v128 = vld [vmem:[%s1 + $0x168] sm:$0xf]
  %v129 = vld [vmem:[%s1 + $0x16c] sm:$0xf]
  %v130 = vld [vmem:[%s1 + $0x170] sm:$0xf]
  %v131 = vld [vmem:[%s1 + $0x174] sm:$0xf]
  %v132 = vld [vmem:[%s1 + $0x178] sm:$0xf]
  %v133 = vld [vmem:[%s1 + $0x17c] sm:$0xf]
  %v134 = vld [vmem:[%s1 + $0x180] sm:$0xf]
  %v135 = vld [vmem:[%s1 + $0x184] sm:$0xf]
  %v136 = vld [vmem:[%s1 + $0x188] sm:$0xf]
  %v137 = vld [vmem:[%s1 + $0x18c] sm:$0xf]
  %v138 = vld [vmem:[%s1 + $0x190] sm:$0xf]
  %v139 = vld [vmem:[%s1 + $0x194] sm:$0xf]
  %v140 = vld [vmem:[%s1 + $0x198] sm:$0xf]
  %v141 = vld [vmem:[%s1 + $0x19c] sm:$0xf]
  %v142 = vld [vmem:[%s1 + $0x1a0] sm:$0xf]
  %v143 = vld [vmem:[%s1 + $0x1a4] sm:$0xf]
  %v144 = vld [vmem:[%s1 + $0x1a8] sm:$0xf]
  %v145 = vld [vmem:[%s1 + $0x1ac] sm:$0xf]
  %v146 = vld [vmem:[%s1 + $0x1b0] sm:$0xf]
  %v147 = vld [vmem:[%s1 + $0x1b4] sm:$0xf]
  %v148 = vld [vmem:[%s1 + $0x1b8] sm:$0xf]
  %v149 = vld [vmem:[%s1 + $0x1bc] sm:$0xf]
  %v150 = vld [vmem:[%s1 + $0x1c0] sm:$0xf]
  %v151 = vld [vmem:[%s1 + $0x1c4] sm:$0xf]
  %v152 = vld [vmem:[%s1 + $0x1c8] sm:$0xf]
  %v153 = vld [vmem:[%s1 + $0x1cc] sm:$0xf]
  %v154 = vld [vmem:[%s1 + $0x1d0] sm:$0xf]
  %v155 = vld [vmem:[%s1 + $0x1d4] sm:$0xf]
  %v156 = vld [vmem:[%s1 + $0x1d8] sm:$0xf]
  %v157 = vld [vmem:[%s1 + $0x1dc] sm:$0xf]
  %v158 = vld [vmem:[%s1 + $0x1e0] sm:$0xf]
  %v159 = vld [vmem:[%s1 + $0x1e4] sm:$0xf]
  %v160 = vld [vmem:[%s1 + $0x1e8] sm:$0xf]
  %v161 = vld [vmem:[%s1 + $0x1ec] sm:$0xf]
  %v162 = vld [vmem:[%s1 + $0x1f0] sm:$0xf]
  %v163 = vld [vmem:[%s1 + $0x1f4] sm:$0xf]
  %v164 = vld [vmem:[%s1 + $0x1f8] sm:$0xf]
  %v165 = vld [vmem:[%s1 + $0x1fc] sm:$0xf]
  %v166 = vld [vmem:[%s1 + $0x200] sm:$0xf]
  %v167 = vld [vmem:[%s1 + $0x204] sm:$0xf]
  %v168 = vld [vmem:[%s1 + $0x208] sm:$0xf]
  %v169 = vld [vmem:[%s1 + $0x20c] sm:$0xf]
  %v170 = vld [vmem:[%s1 + $0x210] sm:$0xf]
  %v171 = vld [vmem:[%s1 + $0x214] sm:$0xf]
  %v172 = vld [vmem:[%s1 + $0x218] sm:$0xf]
  %v173 = vld [vmem:[%s1 + $0x21c] sm:$0xf]
  %v174 = vld [vmem:[%s1 + $0x220] sm:$0xf]
  %v175 = vld [vmem:[%s1 + $0x224] sm:$0xf]
  %v176 = vld [vmem:[%s1 + $0x228] sm:$0xf]
  %v177 = vld [vmem:[%s1 + $0x22c] sm:$0xf]
  %v178 = vld [vmem:[%s1 + $0x230] sm:$0xf]
  %v179 = vld [vmem:[%s1 + $0x234] sm:$0xf]
  %v180 = vld [vmem:[%s1 + $0x238] sm:$0xf]
  %v181 = vld [vmem:[%s1 + $0x23c] sm:$0xf]
  %v182 = vld [vmem:[%s1 + $0x240] sm:$0xf]
  %v183 = vld [vmem:[%s1 + $0x244] sm:$0xf]
  %v184 = vld [vmem:[%s1 + $0x248] sm:$0xf]
  %v185 = vld [vmem:[%s1 + $0x24c] sm:$0xf]
  %v186 = vld [vmem:[%s1 + $0x250] sm:$0xf]
  %v187 = vld [vmem:[%s1 + $0x254] sm:$0xf]
  %v188 = vld [vmem:[%s1 + $0x258] sm:$0xf]
  %v189 = vld [vmem:[%s1 + $0x25c] sm:$0xf]
  %v190 = vld [vmem:[%s1 + $0x260] sm:$0xf]
  %v191 = vld [vmem:[%s1 + $0x264] sm:$0xf]
  %v192 = vld [vmem:[%s1 + $0x268] sm:$0xf]
  %v193 = vld [vmem:[%s1 + $0x26c] sm:$0xf]
  %v194 = vld [vmem:[%s1 + $0x270] sm:$0xf]
  %v195 = vld [vmem:[%s1 + $0x274] sm:$0xf]
  %v196 = vld [vmem:[%s1 + $0x278] sm:$0xf]
  %v197 = vld [vmem:[%s1 + $0x27c] sm:$0xf]
  %v198 = vld [vmem:[%s1 + $0x280] sm:$0xf]
  %v199 = vld [vmem:[%s1 + $0x284] sm:$0xf]
  %v200 = vld [vmem:[%s1 + $0x288] sm:$0xf]
  %v201 = vld [vmem:[%s1 + $0x28c] sm:$0xf]
  %v202 = vld [vmem:[%s1 + $0x290] sm:$0xf]
  %v203 = vld [vmem:[%s1 + $0x294] sm:$0xf]
  %v204 = vld [vmem:[%s1 + $0x298] sm:$0xf]
  %v205 = vld [vmem:[%s1 + $0x29c] sm:$0xf]
  %v206 = vld [vmem:[%s1 + $0x2a0] sm:$0xf]
  %v207 = vld [vmem:[%s1 + $0x2a4] sm:$0xf]
  %v208 = vld [vmem:[%s1 + $0x2a8] sm:$0xf]
  %v209 = vld [vmem:[%s1 + $0x2ac] sm:$0xf]
  %v210 = vld [vmem:[%s1 + $0x2b0] sm:$0xf]
  %v211 = vld [vmem:[%s1 + $0x2b4] sm:$0xf]
  %v212 = vld [vmem:[%s1 + $0x2b8] sm:$0xf]
  %v213 = vld [vmem:[%s1 + $0x2bc] sm:$0xf]
  %v214 = vld [vmem:[%s1 + $0x2c0] sm:$0xf]
  %v215 = vld [vmem:[%s1 + $0x2c4] sm:$0xf]
  %v216 = vld [vmem:[%s1 + $0x2c8] sm:$0xf]
  %v217 = vld [vmem:[%s1 + $0x2cc] sm:$0xf]
  %v218 = vld [vmem:[%s1 + $0x2d0] sm:$0xf]
  %v219 = vld [vmem:[%s1 + $0x2d4] sm:$0xf]
  %v220 = vld [vmem:[%s1 + $0x2d8] sm:$0xf]
  %v221 = vld [vmem:[%s1 + $0x2dc] sm:$0xf]
  %v222 = vld [vmem:[%s1 + $0x2e0] sm:$0xf]
  %v223 = vld [vmem:[%s1 + $0x2e4] sm:$0xf]
  %v224 = vld [vmem:[%s1 + $0x2e8] sm:$0xf]
  %v225 = vld [vmem:[%s1 + $0x2ec] sm:$0xf]
  %v226 = vld [vmem:[%s1 + $0x2f0] sm:$0xf]
  %v227 = vld [vmem:[%s1 + $0x2f4] sm:$0xf]
  %v228 = vld [vmem:[%s1 + $0x2f8] sm:$0xf]
  %v229 = vld [vmem:[%s1 + $0x2fc] sm:$0xf]
  %v230 = vld [vmem:[%s2] sm:$0x1]
  %v232 = vperm.slane %v230, 0
  %v258 = vunpack.c.l.b16 %v14
  %v259 = vunpack.c.h.b16 %v14
  %v260 = vunpack.c.l.b16 %v15
  %v261 = vunpack.c.h.b16 %v15
  %v262 = vunpack.c.l.b16 %v16
  %v263 = vunpack.c.h.b16 %v16
  %v264 = vunpack.c.l.b16 %v17
  %v265 = vunpack.c.h.b16 %v17
  %v266 = vunpack.c.l.b16 %v18
  %v267 = vunpack.c.h.b16 %v18
  %v268 = vunpack.c.l.b16 %v19
  %v269 = vunpack.c.h.b16 %v19
  %v270 = vunpack.c.l.b16 %v20
  %v271 = vunpack.c.h.b16 %v20
  %v272 = vunpack.c.l.b16 %v21
  %v273 = vunpack.c.h.b16 %v21
  %v274 = vunpack.c.l.b16 %v22
  %v275 = vunpack.c.h.b16 %v22
  %v276 = vunpack.c.l.b16 %v23
  %v277 = vunpack.c.h.b16 %v23
  %v278 = vunpack.c.l.b16 %v24
  %v279 = vunpack.c.h.b16 %v24
  %v280 = vunpack.c.l.b16 %v25
  %v281 = vunpack.c.h.b16 %v25
  %v282 = vunpack.c.l.b16 %v26
  %v283 = vunpack.c.h.b16 %v26
  %v284 = vunpack.c.l.b16 %v27
  %v285 = vunpack.c.h.b16 %v27
  %v286 = vunpack.c.l.b16 %v28
  %v287 = vunpack.c.h.b16 %v28
  %v288 = vunpack.c.l.b16 %v29
  %v289 = vunpack.c.h.b16 %v29
  %v290 = vunpack.c.l.b16 %v30
  %v291 = vunpack.c.h.b16 %v30
  %v292 = vunpack.c.l.b16 %v31
  %v293 = vunpack.c.h.b16 %v31
  %v294 = vunpack.c.l.b16 %v32
  %v295 = vunpack.c.h.b16 %v32
  %v296 = vunpack.c.l.b16 %v33
  %v297 = vunpack.c.h.b16 %v33
  %v298 = vunpack.c.l.b16 %v34
  %v299 = vunpack.c.h.b16 %v34
  %v300 = vunpack.c.l.b16 %v35
  %v301 = vunpack.c.h.b16 %v35
  %v302 = vunpack.c.l.b16 %v36
  %v303 = vunpack.c.h.b16 %v36
  %v304 = vunpack.c.l.b16 %v37
  %v305 = vunpack.c.h.b16 %v37
  %v306 = vpack.c.b16 %v270, %v258
  %v307 = vpack.c.b16 %v271, %v259
  %v308 = vpack.c.b16 %v272, %v260
  %v309 = vpack.c.b16 %v273, %v261
  %v310 = vpack.c.b16 %v274, %v262
  %v311 = vpack.c.b16 %v275, %v263
  %v312 = vpack.c.b16 %v276, %v264
  %v313 = vpack.c.b16 %v277, %v265
  %v314 = vpack.c.b16 %v278, %v266
  %v315 = vpack.c.b16 %v279, %v267
  %v316 = vpack.c.b16 %v280, %v268
  %v317 = vpack.c.b16 %v281, %v269
  %v318 = vpack.c.b16 %v294, %v282
  %v319 = vpack.c.b16 %v295, %v283
  %v320 = vpack.c.b16 %v296, %v284
  %v321 = vpack.c.b16 %v297, %v285
  %v322 = vpack.c.b16 %v298, %v286
  %v323 = vpack.c.b16 %v299, %v287
  %v324 = vpack.c.b16 %v300, %v288
  %v325 = vpack.c.b16 %v301, %v289
  %v326 = vpack.c.b16 %v302, %v290
  %v327 = vpack.c.b16 %v303, %v291
  %v328 = vpack.c.b16 %v304, %v292
  %v329 = vpack.c.b16 %v305, %v293
  %v546 = vunpack.c.l.b16 %v38
  %v547 = vunpack.c.l.b16 %v39
  %v548 = vunpack.c.l.b16 %v40
  %v549 = vunpack.c.l.b16 %v41
  %v550 = vunpack.c.l.b16 %v42
  %v551 = vunpack.c.l.b16 %v43
  %v552 = vunpack.c.l.b16 %v44
  %v553 = vunpack.c.l.b16 %v45
  %v554 = vunpack.c.l.b16 %v46
  %v555 = vunpack.c.l.b16 %v47
  %v556 = vunpack.c.l.b16 %v48
  %v557 = vunpack.c.l.b16 %v49
  %v558 = vunpack.c.l.b16 %v50
  %v559 = vunpack.c.l.b16 %v51
  %v560 = vunpack.c.l.b16 %v52
  %v561 = vunpack.c.l.b16 %v53
  %v562 = vunpack.c.l.b16 %v54
  %v563 = vunpack.c.l.b16 %v55
  %v564 = vunpack.c.l.b16 %v56
  %v565 = vunpack.c.l.b16 %v57
  %v566 = vunpack.c.l.b16 %v58
  %v567 = vunpack.c.l.b16 %v59
  %v568 = vunpack.c.l.b16 %v60
  %v569 = vunpack.c.l.b16 %v61
  %v570 = vunpack.c.l.b16 %v62
  %v571 = vunpack.c.l.b16 %v63
  %v572 = vunpack.c.l.b16 %v64
  %v573 = vunpack.c.l.b16 %v65
  %v574 = vunpack.c.l.b16 %v66
  %v575 = vunpack.c.l.b16 %v67
  %v576 = vunpack.c.l.b16 %v68
  %v577 = vunpack.c.l.b16 %v69
  %v578 = vunpack.c.l.b16 %v70
  %v579 = vunpack.c.l.b16 %v71
  %v580 = vunpack.c.l.b16 %v72
  %v581 = vunpack.c.l.b16 %v73
  %v582 = vunpack.c.l.b16 %v74
  %v583 = vunpack.c.l.b16 %v75
  %v584 = vunpack.c.l.b16 %v76
  %v585 = vunpack.c.l.b16 %v77
  %v586 = vunpack.c.l.b16 %v78
  %v587 = vunpack.c.l.b16 %v79
  %v588 = vunpack.c.l.b16 %v80
  %v589 = vunpack.c.l.b16 %v81
  %v590 = vunpack.c.l.b16 %v82
  %v591 = vunpack.c.l.b16 %v83
  %v592 = vunpack.c.l.b16 %v84
  %v593 = vunpack.c.l.b16 %v85
  %v594 = vunpack.c.l.b16 %v86
  %v595 = vunpack.c.l.b16 %v87
  %v596 = vunpack.c.l.b16 %v88
  %v597 = vunpack.c.l.b16 %v89
  %v598 = vunpack.c.l.b16 %v90
  %v599 = vunpack.c.l.b16 %v91
  %v600 = vunpack.c.l.b16 %v92
  %v601 = vunpack.c.l.b16 %v93
  %v602 = vunpack.c.l.b16 %v94
  %v603 = vunpack.c.l.b16 %v95
  %v604 = vunpack.c.l.b16 %v96
  %v605 = vunpack.c.l.b16 %v97
  %v606 = vunpack.c.l.b16 %v98
  %v607 = vunpack.c.l.b16 %v99
  %v608 = vunpack.c.l.b16 %v100
  %v609 = vunpack.c.l.b16 %v101
  %v610 = vunpack.c.l.b16 %v102
  %v611 = vunpack.c.l.b16 %v103
  %v612 = vunpack.c.l.b16 %v104
  %v613 = vunpack.c.l.b16 %v105
  %v614 = vunpack.c.l.b16 %v106
  %v615 = vunpack.c.l.b16 %v107
  %v616 = vunpack.c.l.b16 %v108
  %v617 = vunpack.c.l.b16 %v109
  %v618 = vunpack.c.l.b16 %v110
  %v619 = vunpack.c.l.b16 %v111
  %v620 = vunpack.c.l.b16 %v112
  %v621 = vunpack.c.l.b16 %v113
  %v622 = vunpack.c.l.b16 %v114
  %v623 = vunpack.c.l.b16 %v115
  %v624 = vunpack.c.l.b16 %v116
  %v625 = vunpack.c.l.b16 %v117
  %v626 = vunpack.c.l.b16 %v118
  %v627 = vunpack.c.l.b16 %v119
  %v628 = vunpack.c.l.b16 %v120
  %v629 = vunpack.c.l.b16 %v121
  %v630 = vunpack.c.l.b16 %v122
  %v631 = vunpack.c.l.b16 %v123
  %v632 = vunpack.c.l.b16 %v124
  %v633 = vunpack.c.l.b16 %v125
  %v634 = vunpack.c.l.b16 %v126
  %v635 = vunpack.c.l.b16 %v127
  %v636 = vunpack.c.l.b16 %v128
  %v637 = vunpack.c.l.b16 %v129
  %v638 = vunpack.c.l.b16 %v130
  %v639 = vunpack.c.l.b16 %v131
  %v640 = vunpack.c.l.b16 %v132
  %v641 = vunpack.c.l.b16 %v133
  %v642 = vunpack.c.l.b16 %v134
  %v643 = vunpack.c.l.b16 %v135
  %v644 = vunpack.c.l.b16 %v136
  %v645 = vunpack.c.l.b16 %v137
  %v646 = vunpack.c.l.b16 %v138
  %v647 = vunpack.c.l.b16 %v139
  %v648 = vunpack.c.l.b16 %v140
  %v649 = vunpack.c.l.b16 %v141
  %v650 = vunpack.c.l.b16 %v142
  %v651 = vunpack.c.l.b16 %v143
  %v652 = vunpack.c.l.b16 %v144
  %v653 = vunpack.c.l.b16 %v145
  %v654 = vunpack.c.l.b16 %v146
  %v655 = vunpack.c.l.b16 %v147
  %v656 = vunpack.c.l.b16 %v148
  %v657 = vunpack.c.l.b16 %v149
  %v658 = vunpack.c.l.b16 %v150
  %v659 = vunpack.c.l.b16 %v151
  %v660 = vunpack.c.l.b16 %v152
  %v661 = vunpack.c.l.b16 %v153
  %v662 = vunpack.c.l.b16 %v154
  %v663 = vunpack.c.l.b16 %v155
  %v664 = vunpack.c.l.b16 %v156
  %v665 = vunpack.c.l.b16 %v157
  %v666 = vunpack.c.l.b16 %v158
  %v667 = vunpack.c.l.b16 %v159
  %v668 = vunpack.c.l.b16 %v160
  %v669 = vunpack.c.l.b16 %v161
  %v670 = vunpack.c.l.b16 %v162
  %v671 = vunpack.c.l.b16 %v163
  %v672 = vunpack.c.l.b16 %v164
  %v673 = vunpack.c.l.b16 %v165
  %v674 = vunpack.c.l.b16 %v166
  %v675 = vunpack.c.l.b16 %v167
  %v676 = vunpack.c.l.b16 %v168
  %v677 = vunpack.c.l.b16 %v169
  %v678 = vunpack.c.l.b16 %v170
  %v679 = vunpack.c.l.b16 %v171
  %v680 = vunpack.c.l.b16 %v172
  %v681 = vunpack.c.l.b16 %v173
  %v682 = vunpack.c.l.b16 %v174
  %v683 = vunpack.c.l.b16 %v175
  %v684 = vunpack.c.l.b16 %v176
  %v685 = vunpack.c.l.b16 %v177
  %v686 = vunpack.c.l.b16 %v178
  %v687 = vunpack.c.l.b16 %v179
  %v688 = vunpack.c.l.b16 %v180
  %v689 = vunpack.c.l.b16 %v181
  %v690 = vunpack.c.l.b16 %v182
  %v691 = vunpack.c.l.b16 %v183
  %v692 = vunpack.c.l.b16 %v184
  %v693 = vunpack.c.l.b16 %v185
  %v694 = vunpack.c.l.b16 %v186
  %v695 = vunpack.c.l.b16 %v187
  %v696 = vunpack.c.l.b16 %v188
  %v697 = vunpack.c.l.b16 %v189
  %v698 = vunpack.c.l.b16 %v190
  %v699 = vunpack.c.l.b16 %v191
  %v700 = vunpack.c.l.b16 %v192
  %v701 = vunpack.c.l.b16 %v193
  %v702 = vunpack.c.l.b16 %v194
  %v703 = vunpack.c.l.b16 %v195
  %v704 = vunpack.c.l.b16 %v196
  %v705 = vunpack.c.l.b16 %v197
  %v706 = vunpack.c.l.b16 %v198
  %v707 = vunpack.c.l.b16 %v199
  %v708 = vunpack.c.l.b16 %v200
  %v709 = vunpack.c.l.b16 %v201
  %v710 = vunpack.c.l.b16 %v202
  %v711 = vunpack.c.l.b16 %v203
  %v712 = vunpack.c.l.b16 %v204
  %v713 = vunpack.c.l.b16 %v205
  %v714 = vunpack.c.l.b16 %v206
  %v715 = vunpack.c.l.b16 %v207
  %v716 = vunpack.c.l.b16 %v208
  %v717 = vunpack.c.l.b16 %v209
  %v718 = vunpack.c.l.b16 %v210
  %v719 = vunpack.c.l.b16 %v211
  %v720 = vunpack.c.l.b16 %v212
  %v721 = vunpack.c.l.b16 %v213
  %v722 = vunpack.c.l.b16 %v214
  %v723 = vunpack.c.l.b16 %v215
  %v724 = vunpack.c.l.b16 %v216
  %v725 = vunpack.c.l.b16 %v217
  %v726 = vunpack.c.l.b16 %v218
  %v727 = vunpack.c.l.b16 %v219
  %v728 = vunpack.c.l.b16 %v220
  %v729 = vunpack.c.l.b16 %v221
  %v730 = vunpack.c.l.b16 %v222
  %v731 = vunpack.c.l.b16 %v223
  %v732 = vunpack.c.l.b16 %v224
  %v733 = vunpack.c.l.b16 %v225
  %v734 = vunpack.c.l.b16 %v226
  %v735 = vunpack.c.l.b16 %v227
  %v736 = vunpack.c.l.b16 %v228
  %v737 = vunpack.c.l.b16 %v229
  %v738 = vpack.c.b16 %v547, %v546
  %v739 = vpack.c.b16 %v549, %v548
  %v740 = vpack.c.b16 %v551, %v550
  %v741 = vpack.c.b16 %v553, %v552
  %v742 = vpack.c.b16 %v555, %v554
  %v743 = vpack.c.b16 %v557, %v556
  %v744 = vpack.c.b16 %v559, %v558
  %v745 = vpack.c.b16 %v561, %v560
  %v746 = vpack.c.b16 %v563, %v562
  %v747 = vpack.c.b16 %v565, %v564
  %v748 = vpack.c.b16 %v567, %v566
  %v749 = vpack.c.b16 %v569, %v568
  %v750 = vpack.c.b16 %v571, %v570
  %v751 = vpack.c.b16 %v573, %v572
  %v752 = vpack.c.b16 %v575, %v574
  %v753 = vpack.c.b16 %v577, %v576
  %v754 = vpack.c.b16 %v579, %v578
  %v755 = vpack.c.b16 %v581, %v580
  %v756 = vpack.c.b16 %v583, %v582
  %v757 = vpack.c.b16 %v585, %v584
  %v758 = vpack.c.b16 %v587, %v586
  %v759 = vpack.c.b16 %v589, %v588
  %v760 = vpack.c.b16 %v591, %v590
  %v761 = vpack.c.b16 %v593, %v592
  %v762 = vpack.c.b16 %v595, %v594
  %v763 = vpack.c.b16 %v597, %v596
  %v764 = vpack.c.b16 %v599, %v598
  %v765 = vpack.c.b16 %v601, %v600
  %v766 = vpack.c.b16 %v603, %v602
  %v767 = vpack.c.b16 %v605, %v604
  %v768 = vpack.c.b16 %v607, %v606
  %v769 = vpack.c.b16 %v609, %v608
  %v770 = vpack.c.b16 %v611, %v610
  %v771 = vpack.c.b16 %v613, %v612
  %v772 = vpack.c.b16 %v615, %v614
  %v773 = vpack.c.b16 %v617, %v616
  %v774 = vpack.c.b16 %v619, %v618
  %v775 = vpack.c.b16 %v621, %v620
  %v776 = vpack.c.b16 %v623, %v622
  %v777 = vpack.c.b16 %v625, %v624
  %v778 = vpack.c.b16 %v627, %v626
  %v779 = vpack.c.b16 %v629, %v628
  %v780 = vpack.c.b16 %v631, %v630
  %v781 = vpack.c.b16 %v633, %v632
  %v782 = vpack.c.b16 %v635, %v634
  %v783 = vpack.c.b16 %v637, %v636
  %v784 = vpack.c.b16 %v639, %v638
  %v785 = vpack.c.b16 %v641, %v640
  %v786 = vpack.c.b16 %v643, %v642
  %v787 = vpack.c.b16 %v645, %v644
  %v788 = vpack.c.b16 %v647, %v646
  %v789 = vpack.c.b16 %v649, %v648
  %v790 = vpack.c.b16 %v651, %v650
  %v791 = vpack.c.b16 %v653, %v652
  %v792 = vpack.c.b16 %v655, %v654
  %v793 = vpack.c.b16 %v657, %v656
  %v794 = vpack.c.b16 %v659, %v658
  %v795 = vpack.c.b16 %v661, %v660
  %v796 = vpack.c.b16 %v663, %v662
  %v797 = vpack.c.b16 %v665, %v664
  %v798 = vpack.c.b16 %v667, %v666
  %v799 = vpack.c.b16 %v669, %v668
  %v800 = vpack.c.b16 %v671, %v670
  %v801 = vpack.c.b16 %v673, %v672
  %v802 = vpack.c.b16 %v675, %v674
  %v803 = vpack.c.b16 %v677, %v676
  %v804 = vpack.c.b16 %v679, %v678
  %v805 = vpack.c.b16 %v681, %v680
  %v806 = vpack.c.b16 %v683, %v682
  %v807 = vpack.c.b16 %v685, %v684
  %v808 = vpack.c.b16 %v687, %v686
  %v809 = vpack.c.b16 %v689, %v688
  %v810 = vpack.c.b16 %v691, %v690
  %v811 = vpack.c.b16 %v693, %v692
  %v812 = vpack.c.b16 %v695, %v694
  %v813 = vpack.c.b16 %v697, %v696
  %v814 = vpack.c.b16 %v699, %v698
  %v815 = vpack.c.b16 %v701, %v700
  %v816 = vpack.c.b16 %v703, %v702
  %v817 = vpack.c.b16 %v705, %v704
  %v818 = vpack.c.b16 %v707, %v706
  %v819 = vpack.c.b16 %v709, %v708
  %v820 = vpack.c.b16 %v711, %v710
  %v821 = vpack.c.b16 %v713, %v712
  %v822 = vpack.c.b16 %v715, %v714
  %v823 = vpack.c.b16 %v717, %v716
  %v824 = vpack.c.b16 %v719, %v718
  %v825 = vpack.c.b16 %v721, %v720
  %v826 = vpack.c.b16 %v723, %v722
  %v827 = vpack.c.b16 %v725, %v724
  %v828 = vpack.c.b16 %v727, %v726
  %v829 = vpack.c.b16 %v729, %v728
  %v830 = vpack.c.b16 %v731, %v730
  %v831 = vpack.c.b16 %v733, %v732
  %v832 = vpack.c.b16 %v735, %v734
  %v833 = vpack.c.b16 %v737, %v736
  %930 = vmatpush.bf16.msra.mxu0 %v745
  %931 = vmatpush.bf16.msra.mxu0 %v744
  %932 = vmatpush.bf16.msra.mxu0 %v743
  %933 = vmatpush.bf16.msra.mxu0 %v742
  %934 = vmatpush.bf16.msra.mxu0 %v741
  %935 = vmatpush.bf16.msra.mxu0 %v740
  %936 = vmatpush.bf16.msra.mxu0 %v739
  %937 = vmatpush.bf16.msra.mxu0 %v738
  %938 = vmatmul.bf16.gmra.mxu0 %v306
  %v939 = vpop.f32.mrf.mxu0
  %v940 = vadd.f32 %v232, %v939
  %v941 = vpop.f32.mrf.mxu0
  %v942 = vadd.f32 %v232, %v941
  %943 = vmatmul.bf16.gmra.mxu0 %v318
  %v944 = vpop.f32.mrf.mxu0
  %v945 = vadd.f32 %v232, %v944
  %v946 = vpop.f32.mrf.mxu0
  %v947 = vadd.f32 %v232, %v946
  %948 = vdwg.mxu0
  %949 = vmatpush.bf16.msra.mxu0 %v753
  %950 = vmatpush.bf16.msra.mxu0 %v752
  %951 = vmatpush.bf16.msra.mxu0 %v751
  %952 = vmatpush.bf16.msra.mxu0 %v750
  %953 = vmatpush.bf16.msra.mxu0 %v749
  %954 = vmatpush.bf16.msra.mxu0 %v748
  %955 = vmatpush.bf16.msra.mxu0 %v747
  %956 = vmatpush.bf16.msra.mxu0 %v746
  %957 = vmatmul.bf16.gmra.mxu0 %v307
  %v958 = vpop.f32.mrf.mxu0
  %v959 = vadd.f32 %v940, %v958
  %v960 = vpop.f32.mrf.mxu0
  %v961 = vadd.f32 %v942, %v960
  %962 = vmatmul.bf16.gmra.mxu0 %v319
  %v963 = vpop.f32.mrf.mxu0
  %v964 = vadd.f32 %v945, %v963
  %v965 = vpop.f32.mrf.mxu0
  %v966 = vadd.f32 %v947, %v965
  %967 = vdwg.mxu0
  %968 = vmatpush.bf16.msra.mxu0 %v761
  %969 = vmatpush.bf16.msra.mxu0 %v760
  %970 = vmatpush.bf16.msra.mxu0 %v759
  %971 = vmatpush.bf16.msra.mxu0 %v758
  %972 = vmatpush.bf16.msra.mxu0 %v757
  %973 = vmatpush.bf16.msra.mxu0 %v756
  %974 = vmatpush.bf16.msra.mxu0 %v755
  %975 = vmatpush.bf16.msra.mxu0 %v754
  %976 = vmatmul.bf16.gmra.mxu0 %v308
  %v977 = vpop.f32.mrf.mxu0
  %v978 = vadd.f32 %v959, %v977
  %v979 = vpop.f32.mrf.mxu0
  %v980 = vadd.f32 %v961, %v979
  %981 = vmatmul.bf16.gmra.mxu0 %v320
  %v982 = vpop.f32.mrf.mxu0
  %v983 = vadd.f32 %v964, %v982
  %v984 = vpop.f32.mrf.mxu0
  %v985 = vadd.f32 %v966, %v984
  %986 = vdwg.mxu0
  %987 = vmatpush.bf16.msra.mxu0 %v769
  %988 = vmatpush.bf16.msra.mxu0 %v768
  %989 = vmatpush.bf16.msra.mxu0 %v767
  %990 = vmatpush.bf16.msra.mxu0 %v766
  %991 = vmatpush.bf16.msra.mxu0 %v765
  %992 = vmatpush.bf16.msra.mxu0 %v764
  %993 = vmatpush.bf16.msra.mxu0 %v763
  %994 = vmatpush.bf16.msra.mxu0 %v762
  %995 = vmatmul.bf16.gmra.mxu0 %v309
  %v996 = vpop.f32.mrf.mxu0
  %v997 = vadd.f32 %v978, %v996
  %v998 = vpop.f32.mrf.mxu0
  %v999 = vadd.f32 %v980, %v998
  %1000 = vmatmul.bf16.gmra.mxu0 %v321
  %v1001 = vpop.f32.mrf.mxu0
  %v1002 = vadd.f32 %v983, %v1001
  %v1003 = vpop.f32.mrf.mxu0
  %v1004 = vadd.f32 %v985, %v1003
  %1005 = vdwg.mxu0
  %1006 = vmatpush.bf16.msra.mxu0 %v777
  %1007 = vmatpush.bf16.msra.mxu0 %v776
  %1008 = vmatpush.bf16.msra.mxu0 %v775
  %1009 = vmatpush.bf16.msra.mxu0 %v774
  %1010 = vmatpush.bf16.msra.mxu0 %v773
  %1011 = vmatpush.bf16.msra.mxu0 %v772
  %1012 = vmatpush.bf16.msra.mxu0 %v771
  %1013 = vmatpush.bf16.msra.mxu0 %v770
  %1014 = vmatmul.bf16.gmra.mxu0 %v310
  %v1015 = vpop.f32.mrf.mxu0
  %v1016 = vadd.f32 %v997, %v1015
  %v1017 = vpop.f32.mrf.mxu0
  %v1018 = vadd.f32 %v999, %v1017
  %1019 = vmatmul.bf16.gmra.mxu0 %v322
  %v1020 = vpop.f32.mrf.mxu0
  %v1021 = vadd.f32 %v1002, %v1020
  %v1022 = vpop.f32.mrf.mxu0
  %v1023 = vadd.f32 %v1004, %v1022
  %1024 = vdwg.mxu0
  %1025 = vmatpush.bf16.msra.mxu0 %v785
  %1026 = vmatpush.bf16.msra.mxu0 %v784
  %1027 = vmatpush.bf16.msra.mxu0 %v783
  %1028 = vmatpush.bf16.msra.mxu0 %v782
  %1029 = vmatpush.bf16.msra.mxu0 %v781
  %1030 = vmatpush.bf16.msra.mxu0 %v780
  %1031 = vmatpush.bf16.msra.mxu0 %v779
  %1032 = vmatpush.bf16.msra.mxu0 %v778
  %1033 = vmatmul.bf16.gmra.mxu0 %v311
  %v1034 = vpop.f32.mrf.mxu0
  %v1035 = vadd.f32 %v1016, %v1034
  %v1036 = vpop.f32.mrf.mxu0
  %v1037 = vadd.f32 %v1018, %v1036
  %1038 = vmatmul.bf16.gmra.mxu0 %v323
  %v1039 = vpop.f32.mrf.mxu0
  %v1040 = vadd.f32 %v1021, %v1039
  %v1041 = vpop.f32.mrf.mxu0
  %v1042 = vadd.f32 %v1023, %v1041
  %1043 = vdwg.mxu0
  %1044 = vmatpush.bf16.msra.mxu0 %v793
  %1045 = vmatpush.bf16.msra.mxu0 %v792
  %1046 = vmatpush.bf16.msra.mxu0 %v791
  %1047 = vmatpush.bf16.msra.mxu0 %v790
  %1048 = vmatpush.bf16.msra.mxu0 %v789
  %1049 = vmatpush.bf16.msra.mxu0 %v788
  %1050 = vmatpush.bf16.msra.mxu0 %v787
  %1051 = vmatpush.bf16.msra.mxu0 %v786
  %1052 = vmatmul.bf16.gmra.mxu0 %v312
  %v1053 = vpop.f32.mrf.mxu0
  %v1054 = vadd.f32 %v1035, %v1053
  %v1055 = vpop.f32.mrf.mxu0
  %v1056 = vadd.f32 %v1037, %v1055
  %1057 = vmatmul.bf16.gmra.mxu0 %v324
  %v1058 = vpop.f32.mrf.mxu0
  %v1059 = vadd.f32 %v1040, %v1058
  %v1060 = vpop.f32.mrf.mxu0
  %v1061 = vadd.f32 %v1042, %v1060
  %1062 = vdwg.mxu0
  %1063 = vmatpush.bf16.msra.mxu0 %v801
  %1064 = vmatpush.bf16.msra.mxu0 %v800
  %1065 = vmatpush.bf16.msra.mxu0 %v799
  %1066 = vmatpush.bf16.msra.mxu0 %v798
  %1067 = vmatpush.bf16.msra.mxu0 %v797
  %1068 = vmatpush.bf16.msra.mxu0 %v796
  %1069 = vmatpush.bf16.msra.mxu0 %v795
  %1070 = vmatpush.bf16.msra.mxu0 %v794
  %1071 = vmatmul.bf16.gmra.mxu0 %v313
  %v1072 = vpop.f32.mrf.mxu0
  %v1073 = vadd.f32 %v1054, %v1072
  %v1074 = vpop.f32.mrf.mxu0
  %v1075 = vadd.f32 %v1056, %v1074
  %1076 = vmatmul.bf16.gmra.mxu0 %v325
  %v1077 = vpop.f32.mrf.mxu0
  %v1078 = vadd.f32 %v1059, %v1077
  %v1079 = vpop.f32.mrf.mxu0
  %v1080 = vadd.f32 %v1061, %v1079
  %1081 = vdwg.mxu0
  %1082 = vmatpush.bf16.msra.mxu0 %v809
  %1083 = vmatpush.bf16.msra.mxu0 %v808
  %1084 = vmatpush.bf16.msra.mxu0 %v807
  %1085 = vmatpush.bf16.msra.mxu0 %v806
  %1086 = vmatpush.bf16.msra.mxu0 %v805
  %1087 = vmatpush.bf16.msra.mxu0 %v804
  %1088 = vmatpush.bf16.msra.mxu0 %v803
  %1089 = vmatpush.bf16.msra.mxu0 %v802
  %1090 = vmatmul.bf16.gmra.mxu0 %v314
  %v1091 = vpop.f32.mrf.mxu0
  %v1092 = vadd.f32 %v1073, %v1091
  %v1093 = vpop.f32.mrf.mxu0
  %v1094 = vadd.f32 %v1075, %v1093
  %1095 = vmatmul.bf16.gmra.mxu0 %v326
  %v1096 = vpop.f32.mrf.mxu0
  %v1097 = vadd.f32 %v1078, %v1096
  %v1098 = vpop.f32.mrf.mxu0
  %v1099 = vadd.f32 %v1080, %v1098
  %1100 = vdwg.mxu0
  %1101 = vmatpush.bf16.msra.mxu0 %v817
  %1102 = vmatpush.bf16.msra.mxu0 %v816
  %1103 = vmatpush.bf16.msra.mxu0 %v815
  %1104 = vmatpush.bf16.msra.mxu0 %v814
  %1105 = vmatpush.bf16.msra.mxu0 %v813
  %1106 = vmatpush.bf16.msra.mxu0 %v812
  %1107 = vmatpush.bf16.msra.mxu0 %v811
  %1108 = vmatpush.bf16.msra.mxu0 %v810
  %1109 = vmatmul.bf16.gmra.mxu0 %v315
  %v1110 = vpop.f32.mrf.mxu0
  %v1111 = vadd.f32 %v1092, %v1110
  %v1112 = vpop.f32.mrf.mxu0
  %v1113 = vadd.f32 %v1094, %v1112
  %1114 = vmatmul.bf16.gmra.mxu0 %v327
  %v1115 = vpop.f32.mrf.mxu0
  %v1116 = vadd.f32 %v1097, %v1115
  %v1117 = vpop.f32.mrf.mxu0
  %v1118 = vadd.f32 %v1099, %v1117
  %1119 = vdwg.mxu0
  %1120 = vmatpush.bf16.msra.mxu0 %v825
  %1121 = vmatpush.bf16.msra.mxu0 %v824
  %1122 = vmatpush.bf16.msra.mxu0 %v823
  %1123 = vmatpush.bf16.msra.mxu0 %v822
  %1124 = vmatpush.bf16.msra.mxu0 %v821
  %1125 = vmatpush.bf16.msra.mxu0 %v820
  %1126 = vmatpush.bf16.msra.mxu0 %v819
  %1127 = vmatpush.bf16.msra.mxu0 %v818
  %1128 = vmatmul.bf16.gmra.mxu0 %v316
  %v1129 = vpop.f32.mrf.mxu0
  %v1130 = vadd.f32 %v1111, %v1129
  %v1131 = vpop.f32.mrf.mxu0
  %v1132 = vadd.f32 %v1113, %v1131
  %1133 = vmatmul.bf16.gmra.mxu0 %v328
  %v1134 = vpop.f32.mrf.mxu0
  %v1135 = vadd.f32 %v1116, %v1134
  %v1136 = vpop.f32.mrf.mxu0
  %v1137 = vadd.f32 %v1118, %v1136
  %1138 = vdwg.mxu0
  %1139 = vmatpush.bf16.msra.mxu0 %v833
  %1140 = vmatpush.bf16.msra.mxu0 %v832
  %1141 = vmatpush.bf16.msra.mxu0 %v831
  %1142 = vmatpush.bf16.msra.mxu0 %v830
  %1143 = vmatpush.bf16.msra.mxu0 %v829
  %1144 = vmatpush.bf16.msra.mxu0 %v828
  %1145 = vmatpush.bf16.msra.mxu0 %v827
  %1146 = vmatpush.bf16.msra.mxu0 %v826
  %1147 = vmatmul.bf16.gmra.mxu0 %v317
  %v1148 = vpop.f32.mrf.mxu0
  %v1149 = vadd.f32 %v1130, %v1148
  %v1150 = vpop.f32.mrf.mxu0
  %v1151 = vadd.f32 %v1132, %v1150
  %1152 = vmatmul.bf16.gmra.mxu0 %v329
  %v1153 = vpop.f32.mrf.mxu0
  %v1154 = vadd.f32 %v1135, %v1153
  %v1155 = vpop.f32.mrf.mxu0
  %v1156 = vadd.f32 %v1137, %v1155
  %1157 = vdwg.mxu0
  %vm1158 = vcmp.ge.f32.partialorder %v1149, 0.0
  %vm1159 = vcmp.ge.f32.partialorder %v1151, 0.0
  %vm1160 = vcmp.ge.f32.partialorder %v1154, 0.0
  %vm1161 = vcmp.ge.f32.partialorder %v1156, 0.0
  %v1162 = vmul.f32 %v1149, 0.1
  %v1163 = vmul.f32 %v1151, 0.1
  %v1164 = vmul.f32 %v1154, 0.1
  %v1165 = vmul.f32 %v1156, 0.1
  %v1166 = vsel %vm1158, %v1149, %v1162
  %v1167 = vsel %vm1159, %v1151, %v1163
  %v1168 = vsel %vm1160, %v1154, %v1164
  %v1169 = vsel %vm1161, %v1156, %v1165
  %v1170 = vpack.c.bf16 %v1166, %v1166
  %v1171 = vpack.c.bf16 %v1167, %v1167
  %v1172 = vpack.c.bf16 %v1168, %v1168
  %v1173 = vpack.c.bf16 %v1169, %v1169
  %1174 = vst [vmem:[%s3] sm:$0xf] %v1170
  %1175 = vst [vmem:[%s3 + $0x4] sm:$0xf] %v1171
  %1176 = vst [vmem:[%s3 + $0x8] sm:$0xf] %v1172
  %1177 = vst [vmem:[%s3 + $0xc] sm:$0xf] %v1173
  // Predicated region
  $region14: #{ed_regression_forward.28} parent=0 // pred_check
    _
  $region15: #{ed_regression_forward.28} parent=0 // pred_check_branch
    %1179 = sbr.rel (0) target = $region17
  $region16: #{ed_regression_forward.28} parent=0 // pred_region
    _
  $region17: #{ed_regression_forward.28} parent=0 // pred_fallthru
    _
  // Predicated region
  $region18: #{ed_regression_forward.28} parent=0 // pred_check
    _
  $region19: #{ed_regression_forward.28} parent=0 // pred_check_branch
    %1181 = sbr.rel (0) target = $region21
  $region20: #{ed_regression_forward.28} parent=0 // pred_region
    _
  $region21: #{ed_regression_forward.28} parent=0 // pred_fallthru
    _

// kernel: ed_regression_forward.23
$region0: #{ed_regression_forward.23}
  #allocation0 [shape = 'u32[]', space=smem, size = 0x4, offset = 0x4, fixed_abs, tag = 'smem constant byte address 0x4 - core index']
  #allocation1 [shape = 'u32[72,128]{1,0:T(1,128)}', space=vmem, size = 0x9000, scoped, tag = 'internal scratch']
  %s0 = inlined_call_operand.vmem [shape: bf16[512,36], index: 0, kind: input, shape index: {}]
  %s1 = inlined_call_operand.vmem [shape: bf16[36,128], index: 1, kind: input, shape index: {}]
  %s2 = inlined_call_operand.vmem [shape: f32[1,128], index: 2, kind: input, shape index: {}]
  %s3 = inlined_call_operand.vmem [shape: bf16[512,128], index: 3, kind: output, shape index: {}]
  %s4 = sld [smem:[#allocation0]]
  $region45: #{ed_regression_forward.23} parent=0
    _
  %s6 = ssub.s32 1, %s4
  %s7 = scalar_select 0, %s6, %s4
  loop: start=0, step=1, limit=4
  $region2: #{ed_regression_forward.23} parent=0 // loop_pre_header
    _
  $region3: #{ed_regression_forward.23} parent=0 // loop_header
    %s9 = sphi 0, %s13
    %p10 = scmp.ge.s32.totalorder %s9, 4
    %s19 = sphi 0, %s21
    %s22 = sphi 0, %s19
    %s23 = sphi 0, %s22
    %s39 = sphi 0, %s23
    %s43 = sphi 0, %s43
    %s45 = sphi 0, %s43
    %s46 = sphi 0, %s45
    %s60 = sphi 0, %s46
    %s64 = sphi 0, %s64
    %s66 = sphi 0, %s64
    %s67 = sphi 0, %s66
    %s81 = sphi 0, %s67
    %s87 = sphi 0, %s89
    %s90 = sphi 0, %s87
    %s91 = sphi 0, %s90
    %s107 = sphi 0, %s91
  $region4: #{ed_regression_forward.23} parent=0 // loop_header_branch
    %12 = sbr.rel (%p10) target = $region8
  $region5: #{ed_regression_forward.23} parent=0 // loop_body
    %s14 = ssub.s32 %s9, 1
    %s15 = ssub.s32 %s9, 2
    %s16 = sadd.s32 %s9, 1
    %s17 = ssub.s32 %s9, %s16
    %p18 = scmp.eq.s32.totalorder %s17, 0
    %s20 = sadd.s32 %s19, 1
    %s21 = scalar_select %p18, %s19, %s20
    %p24 = pneg %p18
    %p25 = scmp.eq.s32.totalorder %s9, 1
    %p26 = por %p24, %p25
    %p27 = scmp.ne.s32.totalorder %s19, %s22
    %p28 = scmp.eq.s32.totalorder %s9, 0
    %p29 = por %p27, %p28
    %p30 = scmp.ne.s32.totalorder %s19, %s22
    %p31 = scmp.eq.s32.totalorder %s14, 1
    %p32 = por %p30, %p31
    %p33 = scmp.ne.s32.totalorder %s22, %s23
    %p34 = scmp.eq.s32.totalorder %s14, 0
    %p35 = por %p33, %p34
    %p36 = scmp.ne.s32.totalorder %s22, %s23
    %p37 = scmp.eq.s32.totalorder %s15, 1
    %p38 = por %p36, %p37
    %p40 = scmp.ne.s32.totalorder %s23, %s39
    %p41 = scmp.eq.s32.totalorder %s15, 0
    %p42 = por %p40, %p41
    %s44 = sadd.s32 %s43, 1
    %p47 = scmp.eq.s32.totalorder %s9, 1
    %p48 = scmp.ne.s32.totalorder %s43, %s45
    %p49 = scmp.eq.s32.totalorder %s9, 0
    %p50 = por %p48, %p49
    %p51 = scmp.ne.s32.totalorder %s43, %s45
    %p52 = scmp.eq.s32.totalorder %s14, 1
    %p53 = por %p51, %p52
    %p54 = scmp.ne.s32.totalorder %s45, %s46
    %p55 = scmp.eq.s32.totalorder %s14, 0
    %p56 = por %p54, %p55
    %p57 = scmp.ne.s32.totalorder %s45, %s46
    %p58 = scmp.eq.s32.totalorder %s15, 1
    %p59 = por %p57, %p58
    %p61 = scmp.ne.s32.totalorder %s46, %s60
    %p62 = scmp.eq.s32.totalorder %s15, 0
    %p63 = por %p61, %p62
    %s65 = sadd.s32 %s64, 1
    %p68 = scmp.eq.s32.totalorder %s9, 1
    %p69 = scmp.ne.s32.totalorder %s64, %s66
    %p70 = scmp.eq.s32.totalorder %s9, 0
    %p71 = por %p69, %p70
    %p72 = scmp.ne.s32.totalorder %s64, %s66
    %p73 = scmp.eq.s32.totalorder %s14, 1
    %p74 = por %p72, %p73
    %p75 = scmp.ne.s32.totalorder %s66, %s67
    %p76 = scmp.eq.s32.totalorder %s14, 0
    %p77 = por %p75, %p76
    %p78 = scmp.ne.s32.totalorder %s66, %s67
    %p79 = scmp.eq.s32.totalorder %s15, 1
    %p80 = por %p78, %p79
    %p82 = scmp.ne.s32.totalorder %s67, %s81
    %p83 = scmp.eq.s32.totalorder %s15, 0
    %p84 = por %p82, %p83
    %s85 = ssub.s32 %s9, %s16
    %p86 = scmp.eq.s32.totalorder %s85, 0
    %s88 = sadd.s32 %s87, 1
    %s89 = scalar_select %p86, %s87, %s88
    %p92 = pneg %p86
    %p93 = scmp.eq.s32.totalorder %s9, 1
    %p94 = por %p92, %p93
    %p95 = scmp.ne.s32.totalorder %s87, %s90
    %p96 = scmp.eq.s32.totalorder %s9, 0
    %p97 = por %p95, %p96
    %p98 = scmp.ne.s32.totalorder %s87, %s90
    %p99 = scmp.eq.s32.totalorder %s14, 1
    %p100 = por %p98, %p99
    %p101 = scmp.ne.s32.totalorder %s90, %s91
    %p102 = scmp.eq.s32.totalorder %s14, 0
    %p103 = por %p101, %p102
    %p104 = scmp.ne.s32.totalorder %s90, %s91
    %p105 = scmp.eq.s32.totalorder %s15, 1
    %p106 = por %p104, %p105
    %p108 = scmp.ne.s32.totalorder %s91, %s107
    %p109 = scmp.eq.s32.totalorder %s15, 0
    %p110 = por %p108, %p109
    %p111 = scmp.le.s32.totalorder 1, %s9
    %p112 = scmp.lt.s32.totalorder %s9, 3
    %p113 = pnand %p111, %p112
    %p114 = pneg %p113
    // Predicated region
    $region9: #{ed_regression_forward.23} parent=5 // pred_check
      _
    $region10: #{ed_regression_forward.23} parent=5 // pred_check_branch
      %116 = sbr.rel (%p113) target = $region12
    $region11: #{ed_regression_forward.23} parent=5 // pred_region
      %s117 = ssub.s32 %s9, 1
      // Predicated region
      $region13: #{ed_regression_forward.23} parent=11 // pred_check
        %p118 = pneg %p56
      $region14: #{ed_regression_forward.23} parent=11 // pred_check_branch
        %120 = sbr.rel (%p118) target = $region16
      $region15: #{ed_regression_forward.23} parent=11 // pred_region
        _
      $region16: #{ed_regression_forward.23} parent=11 // pred_fallthru
        _
      // Predicated region
      $region17: #{ed_regression_forward.23} parent=11 // pred_check
        %p121 = pneg %p77
      $region18: #{ed_regression_forward.23} parent=11 // pred_check_branch
        %123 = sbr.rel (%p121) target = $region20
      $region19: #{ed_regression_forward.23} parent=11 // pred_region
        _
      $region20: #{ed_regression_forward.23} parent=11 // pred_fallthru
        _
    $region12: #{ed_regression_forward.23} parent=5 // pred_fallthru
      _
    %p124 = scmp.lt.s32.totalorder %s9, 2
    // Predicated region
    $region21: #{ed_regression_forward.23} parent=5 // pred_check
      %p125 = pneg %p124
    $region22: #{ed_regression_forward.23} parent=5 // pred_check_branch
      %127 = sbr.rel (%p125) target = $region24
    $region23: #{ed_regression_forward.23} parent=5 // pred_region
      // Predicated region
      $region25: #{ed_regression_forward.23} parent=23 // pred_check
        %p128 = pneg %p29
      $region26: #{ed_regression_forward.23} parent=23 // pred_check_branch
        %130 = sbr.rel (%p128) target = $region28
      $region27: #{ed_regression_forward.23} parent=23 // pred_region
        %s131 = smul.u32 32, %s9
        %p132 = scmp.lt.s32.totalorder %s131, 63
        %s133 = scalar_select %p132, %s131, 63
        %s134 = smul.addr %s133, 4
        %s135 = scalar_lea.vmem %s0, %s134
        %s136 = smul.u32 32, %s9
      $region28: #{ed_regression_forward.23} parent=23 // pred_fallthru
        _
    $region24: #{ed_regression_forward.23} parent=5 // pred_fallthru
      _
    %p137 = scmp.le.s32.totalorder 1, %s9
    %p138 = scmp.lt.s32.totalorder %s9, 3
    %p139 = pnand %p137, %p138
    %p140 = pneg %p139
    // Predicated region
    $region29: #{ed_regression_forward.23} parent=5 // pred_check
      _
    $region30: #{ed_regression_forward.23} parent=5 // pred_check_branch
      %142 = sbr.rel (%p139) target = $region32
    $region31: #{ed_regression_forward.23} parent=5 // pred_region
      %s143 = ssub.s32 %s9, 1
      %s144 = smul.u32 32, %s14
      %p145 = scmp.lt.s32.totalorder %s144, 63
      %s146 = scalar_select %p145, %s144, 63
      %s147 = smul.addr %s146, 4
      %s148 = scalar_lea.vmem %s0, %s147
      %p149 = pneg %p35
      %p150 = pneg %p32
      %p151 = pneg %p56
      %p152 = pneg %p53
      %p153 = pneg %p77
      %p154 = pneg %p74
      %p155 = pneg %p103
      %p156 = pneg %p100
      %s157 = smul.u32 32, %s14
      %p158 = scmp.lt.s32.totalorder %s157, 63
      %s159 = scalar_select %p158, %s157, 63
      %s160 = smul.addr %s159, 4
      %s161 = scalar_lea.vmem %s3, %s160
      %s162 = smul.u32 32, %s14
      %p163 = scmp.lt.s32.totalorder %s162, 63
      %s164 = scalar_select %p163, %s162, 63
      %s165 = smul.addr %s164, 4
      %s166 = scalar_lea.vmem %s0, %s165
      %s167 = smul.u32 32, %s14
      %s168 = smul.u32 32, %s14
      %p169 = scmp.lt.s32.totalorder %s168, 63
      %s170 = scalar_select %p169, %s168, 63
      %s171 = smul.addr %s170, 4
      %s172 = scalar_lea.vmem %s3, %s171
      %s173 = smul.u32 32, %s14
      %v175 = vld [vmem:[%s166] sm:$0xf]
      %v176 = vld [vmem:[%s166 + $0x4] sm:$0xf]
      %v177 = vld [vmem:[%s166 + $0x8] sm:$0xf]
      %v178 = vld [vmem:[%s166 + $0xc] sm:$0xf]
      %v179 = vld [vmem:[%s166 + $0x10] sm:$0xf]
      %v180 = vld [vmem:[%s166 + $0x14] sm:$0xf]
      %v181 = vld [vmem:[%s166 + $0x18] sm:$0xf]
      %v182 = vld [vmem:[%s166 + $0x1c] sm:$0xf]
      %v183 = vld [vmem:[%s166 + $0x20] sm:$0xf]
      %v184 = vld [vmem:[%s166 + $0x24] sm:$0xf]
      %v185 = vld [vmem:[%s166 + $0x28] sm:$0xf]
      %v186 = vld [vmem:[%s166 + $0x2c] sm:$0xf]
      %v187 = vld [vmem:[%s166 + $0x30] sm:$0xf]
      %v188 = vld [vmem:[%s166 + $0x34] sm:$0xf]
      %v189 = vld [vmem:[%s166 + $0x38] sm:$0xf]
      %v190 = vld [vmem:[%s166 + $0x3c] sm:$0xf]
      %v191 = vld [vmem:[%s166 + $0x40] sm:$0xf]
      %v192 = vld [vmem:[%s166 + $0x44] sm:$0xf]
      %v193 = vld [vmem:[%s166 + $0x48] sm:$0xf]
      %v194 = vld [vmem:[%s166 + $0x4c] sm:$0xf]
      %v195 = vld [vmem:[%s166 + $0x50] sm:$0xf]
      %v196 = vld [vmem:[%s166 + $0x54] sm:$0xf]
      %v197 = vld [vmem:[%s166 + $0x58] sm:$0xf]
      %v198 = vld [vmem:[%s166 + $0x5c] sm:$0xf]
      %v199 = vld [vmem:[%s166 + $0x60] sm:$0xf]
      %v200 = vld [vmem:[%s166 + $0x64] sm:$0xf]
      %v201 = vld [vmem:[%s166 + $0x68] sm:$0xf]
      %v202 = vld [vmem:[%s166 + $0x6c] sm:$0xf]
      %v203 = vld [vmem:[%s166 + $0x70] sm:$0xf]
      %v204 = vld [vmem:[%s166 + $0x74] sm:$0xf]
      %v205 = vld [vmem:[%s166 + $0x78] sm:$0xf]
      %v206 = vld [vmem:[%s166 + $0x7c] sm:$0xf]
      %v207 = vld [vmem:[%s1] sm:$0xf]
      %v208 = vld [vmem:[%s1 + $0x4] sm:$0xf]
      %v209 = vld [vmem:[%s1 + $0x8] sm:$0xf]
      %v210 = vld [vmem:[%s1 + $0xc] sm:$0xf]
      %v211 = vld [vmem:[%s1 + $0x10] sm:$0x3]
      %v212 = vld [vmem:[%s2] sm:$0x1]
      %v214 = vperm.slane %v212, 0
      %v248 = vunpack.c.l.b16 %v175
      %v249 = vunpack.c.l.b16 %v176
      %v250 = vunpack.c.l.b16 %v177
      %v251 = vunpack.c.l.b16 %v178
      %v252 = vunpack.c.l.b16 %v179
      %v253 = vunpack.c.l.b16 %v180
      %v254 = vunpack.c.l.b16 %v181
      %v255 = vunpack.c.l.b16 %v182
      %v256 = vunpack.c.l.b16 %v183
      %v257 = vunpack.c.l.b16 %v184
      %v258 = vunpack.c.l.b16 %v185
      %v259 = vunpack.c.l.b16 %v186
      %v260 = vunpack.c.l.b16 %v187
      %v261 = vunpack.c.l.b16 %v188
      %v262 = vunpack.c.l.b16 %v189
      %v263 = vunpack.c.l.b16 %v190
      %v264 = vunpack.c.l.b16 %v191
      %v265 = vunpack.c.l.b16 %v192
      %v266 = vunpack.c.l.b16 %v193
      %v267 = vunpack.c.l.b16 %v194
      %v268 = vunpack.c.l.b16 %v195
      %v269 = vunpack.c.l.b16 %v196
      %v270 = vunpack.c.l.b16 %v197
      %v271 = vunpack.c.l.b16 %v198
      %v272 = vunpack.c.l.b16 %v199
      %v273 = vunpack.c.l.b16 %v200
      %v274 = vunpack.c.l.b16 %v201
      %v275 = vunpack.c.l.b16 %v202
      %v276 = vunpack.c.l.b16 %v203
      %v277 = vunpack.c.l.b16 %v204
      %v278 = vunpack.c.l.b16 %v205
      %v279 = vunpack.c.l.b16 %v206
      %v280 = vpack.c.b16 %v249, %v248
      %v281 = vpack.c.b16 %v251, %v250
      %v282 = vpack.c.b16 %v253, %v252
      %v283 = vpack.c.b16 %v255, %v254
      %v284 = vpack.c.b16 %v257, %v256
      %v285 = vpack.c.b16 %v259, %v258
      %v286 = vpack.c.b16 %v261, %v260
      %v287 = vpack.c.b16 %v263, %v262
      %v288 = vpack.c.b16 %v265, %v264
      %v289 = vpack.c.b16 %v267, %v266
      %v290 = vpack.c.b16 %v269, %v268
      %v291 = vpack.c.b16 %v271, %v270
      %v292 = vpack.c.b16 %v273, %v272
      %v293 = vpack.c.b16 %v275, %v274
      %v294 = vpack.c.b16 %v277, %v276
      %v295 = vpack.c.b16 %v279, %v278
      %v301 = vunpack.c.l.b16 %v207
      %v302 = vunpack.c.l.b16 %v208
      %v303 = vunpack.c.l.b16 %v209
      %v304 = vunpack.c.l.b16 %v210
      %v305 = vunpack.c.l.b16 %v211
      %v306 = vpack.c.b16 %v302, %v301
      %v307 = vpack.c.b16 %v304, %v303
      %v308 = vpack.c.b16 %v305, %v305
      %vm311 = vcmask 293888
      %v313 = vsel %vm311, %v280, 0
      %v316 = vsel %vm311, %v281, 0
      %v319 = vsel %vm311, %v282, 0
      %v322 = vsel %vm311, %v283, 0
      %v325 = vsel %vm311, %v284, 0
      %v328 = vsel %vm311, %v285, 0
      %v331 = vsel %vm311, %v286, 0
      %v334 = vsel %vm311, %v287, 0
      %v337 = vsel %vm311, %v288, 0
      %v340 = vsel %vm311, %v289, 0
      %v343 = vsel %vm311, %v290, 0
      %v346 = vsel %vm311, %v291, 0
      %v349 = vsel %vm311, %v292, 0
      %v352 = vsel %vm311, %v293, 0
      %v355 = vsel %vm311, %v294, 0
      %v358 = vsel %vm311, %v295, 0
      %vm360 = vcmask 1041408
      %v362 = vsel %vm360, %v308, 0
      %364 = vmatpush.bf16.msra.mxu0 0
      %365 = vmatpush.bf16.msra.mxu0 0
      %366 = vmatpush.bf16.msra.mxu0 0
      %367 = vmatpush.bf16.msra.mxu0 0
      %368 = vmatpush.bf16.msra.mxu0 0
      %369 = vmatpush.bf16.msra.mxu0 %v362
      %370 = vmatpush.bf16.msra.mxu0 %v307
      %371 = vmatpush.bf16.msra.mxu0 %v306
      %372 = vmatmul.bf16.gmra.mxu0 %v313
      %v373 = vpop.f32.mrf.mxu0
      %v374 = vadd.f32 %v214, %v373
      %v375 = vpop.f32.mrf.mxu0
      %v376 = vadd.f32 %v214, %v375
      %377 = vmatmul.bf16.gmra.mxu0 %v316
      %v378 = vpop.f32.mrf.mxu0
      %v379 = vadd.f32 %v214, %v378
      %v380 = vpop.f32.mrf.mxu0
      %v381 = vadd.f32 %v214, %v380
      %382 = vmatmul.bf16.gmra.mxu0 %v319
      %v383 = vpop.f32.mrf.mxu0
      %v384 = vadd.f32 %v214, %v383
      %v385 = vpop.f32.mrf.mxu0
      %v386 = vadd.f32 %v214, %v385
      %387 = vmatmul.bf16.gmra.mxu0 %v322
      %v388 = vpop.f32.mrf.mxu0
      %v389 = vadd.f32 %v214, %v388
      %v390 = vpop.f32.mrf.mxu0
      %v391 = vadd.f32 %v214, %v390
      %392 = vmatmul.bf16.gmra.mxu0 %v325
      %v393 = vpop.f32.mrf.mxu0
      %v394 = vadd.f32 %v214, %v393
      %v395 = vpop.f32.mrf.mxu0
      %v396 = vadd.f32 %v214, %v395
      %397 = vmatmul.bf16.gmra.mxu0 %v328
      %v398 = vpop.f32.mrf.mxu0
      %v399 = vadd.f32 %v214, %v398
      %v400 = vpop.f32.mrf.mxu0
      %v401 = vadd.f32 %v214, %v400
      %402 = vmatmul.bf16.gmra.mxu0 %v331
      %v403 = vpop.f32.mrf.mxu0
      %v404 = vadd.f32 %v214, %v403
      %v405 = vpop.f32.mrf.mxu0
      %v406 = vadd.f32 %v214, %v405
      %407 = vmatmul.bf16.gmra.mxu0 %v334
      %v408 = vpop.f32.mrf.mxu0
      %v409 = vadd.f32 %v214, %v408
      %v410 = vpop.f32.mrf.mxu0
      %v411 = vadd.f32 %v214, %v410
      %412 = vmatmul.bf16.gmra.mxu0 %v337
      %v413 = vpop.f32.mrf.mxu0
      %v414 = vadd.f32 %v214, %v413
      %v415 = vpop.f32.mrf.mxu0
      %v416 = vadd.f32 %v214, %v415
      %417 = vmatmul.bf16.gmra.mxu0 %v340
      %v418 = vpop.f32.mrf.mxu0
      %v419 = vadd.f32 %v214, %v418
      %v420 = vpop.f32.mrf.mxu0
      %v421 = vadd.f32 %v214, %v420
      %422 = vmatmul.bf16.gmra.mxu0 %v343
      %v423 = vpop.f32.mrf.mxu0
      %v424 = vadd.f32 %v214, %v423
      %v425 = vpop.f32.mrf.mxu0
      %v426 = vadd.f32 %v214, %v425
      %427 = vmatmul.bf16.gmra.mxu0 %v346
      %v428 = vpop.f32.mrf.mxu0
      %v429 = vadd.f32 %v214, %v428
      %v430 = vpop.f32.mrf.mxu0
      %v431 = vadd.f32 %v214, %v430
      %432 = vmatmul.bf16.gmra.mxu0 %v349
      %v433 = vpop.f32.mrf.mxu0
      %v434 = vadd.f32 %v214, %v433
      %v435 = vpop.f32.mrf.mxu0
      %v436 = vadd.f32 %v214, %v435
      %437 = vmatmul.bf16.gmra.mxu0 %v352
      %v438 = vpop.f32.mrf.mxu0
      %v439 = vadd.f32 %v214, %v438
      %v440 = vpop.f32.mrf.mxu0
      %v441 = vadd.f32 %v214, %v440
      %442 = vmatmul.bf16.gmra.mxu0 %v355
      %v443 = vpop.f32.mrf.mxu0
      %v444 = vadd.f32 %v214, %v443
      %v445 = vpop.f32.mrf.mxu0
      %v446 = vadd.f32 %v214, %v445
      %447 = vmatmul.bf16.gmra.mxu0 %v358
      %v448 = vpop.f32.mrf.mxu0
      %v449 = vadd.f32 %v214, %v448
      %v450 = vpop.f32.mrf.mxu0
      %v451 = vadd.f32 %v214, %v450
      %452 = vdwg.mxu0
      %vm453 = vcmp.ge.f32.partialorder %v374, 0.0
      %vm454 = vcmp.ge.f32.partialorder %v376, 0.0
      %vm455 = vcmp.ge.f32.partialorder %v379, 0.0
      %vm456 = vcmp.ge.f32.partialorder %v381, 0.0
      %vm457 = vcmp.ge.f32.partialorder %v384, 0.0
      %vm458 = vcmp.ge.f32.partialorder %v386, 0.0
      %vm459 = vcmp.ge.f32.partialorder %v389, 0.0
      %vm460 = vcmp.ge.f32.partialorder %v391, 0.0
      %vm461 = vcmp.ge.f32.partialorder %v394, 0.0
      %vm462 = vcmp.ge.f32.partialorder %v396, 0.0
      %vm463 = vcmp.ge.f32.partialorder %v399, 0.0
      %vm464 = vcmp.ge.f32.partialorder %v401, 0.0
      %vm465 = vcmp.ge.f32.partialorder %v404, 0.0
      %vm466 = vcmp.ge.f32.partialorder %v406, 0.0
      %vm467 = vcmp.ge.f32.partialorder %v409, 0.0
      %vm468 = vcmp.ge.f32.partialorder %v411, 0.0
      %vm469 = vcmp.ge.f32.partialorder %v414, 0.0
      %vm470 = vcmp.ge.f32.partialorder %v416, 0.0
      %vm471 = vcmp.ge.f32.partialorder %v419, 0.0
      %vm472 = vcmp.ge.f32.partialorder %v421, 0.0
      %vm473 = vcmp.ge.f32.partialorder %v424, 0.0
      %vm474 = vcmp.ge.f32.partialorder %v426, 0.0
      %vm475 = vcmp.ge.f32.partialorder %v429, 0.0
      %vm476 = vcmp.ge.f32.partialorder %v431, 0.0
      %vm477 = vcmp.ge.f32.partialorder %v434, 0.0
      %vm478 = vcmp.ge.f32.partialorder %v436, 0.0
      %vm479 = vcmp.ge.f32.partialorder %v439, 0.0
      %vm480 = vcmp.ge.f32.partialorder %v441, 0.0
      %vm481 = vcmp.ge.f32.partialorder %v444, 0.0
      %vm482 = vcmp.ge.f32.partialorder %v446, 0.0
      %vm483 = vcmp.ge.f32.partialorder %v449, 0.0
      %vm484 = vcmp.ge.f32.partialorder %v451, 0.0
      %v485 = vmul.f32 %v374, 0.1
      %v486 = vmul.f32 %v376, 0.1
      %v487 = vmul.f32 %v379, 0.1
      %v488 = vmul.f32 %v381, 0.1
      %v489 = vmul.f32 %v384, 0.1
      %v490 = vmul.f32 %v386, 0.1
      %v491 = vmul.f32 %v389, 0.1
      %v492 = vmul.f32 %v391, 0.1
      %v493 = vmul.f32 %v394, 0.1
      %v494 = vmul.f32 %v396, 0.1
      %v495 = vmul.f32 %v399, 0.1
      %v496 = vmul.f32 %v401, 0.1
      %v497 = vmul.f32 %v404, 0.1
      %v498 = vmul.f32 %v406, 0.1
      %v499 = vmul.f32 %v409, 0.1
      %v500 = vmul.f32 %v411, 0.1
      %v501 = vmul.f32 %v414, 0.1
      %v502 = vmul.f32 %v416, 0.1
      %v503 = vmul.f32 %v419, 0.1
      %v504 = vmul.f32 %v421, 0.1
      %v505 = vmul.f32 %v424, 0.1
      %v506 = vmul.f32 %v426, 0.1
      %v507 = vmul.f32 %v429, 0.1
      %v508 = vmul.f32 %v431, 0.1
      %v509 = vmul.f32 %v434, 0.1
      %v510 = vmul.f32 %v436, 0.1
      %v511 = vmul.f32 %v439, 0.1
      %v512 = vmul.f32 %v441, 0.1
      %v513 = vmul.f32 %v444, 0.1
      %v514 = vmul.f32 %v446, 0.1
      %v515 = vmul.f32 %v449, 0.1
      %v516 = vmul.f32 %v451, 0.1
      %v517 = vsel %vm453, %v374, %v485
      %v518 = vsel %vm454, %v376, %v486
      %v519 = vsel %vm455, %v379, %v487
      %v520 = vsel %vm456, %v381, %v488
      %v521 = vsel %vm457, %v384, %v489
      %v522 = vsel %vm458, %v386, %v490
      %v523 = vsel %vm459, %v389, %v491
      %v524 = vsel %vm460, %v391, %v492
      %v525 = vsel %vm461, %v394, %v493
      %v526 = vsel %vm462, %v396, %v494
      %v527 = vsel %vm463, %v399, %v495
      %v528 = vsel %vm464, %v401, %v496
      %v529 = vsel %vm465, %v404, %v497
      %v530 = vsel %vm466, %v406, %v498
      %v531 = vsel %vm467, %v409, %v499
      %v532 = vsel %vm468, %v411, %v500
      %v533 = vsel %vm469, %v414, %v501
      %v534 = vsel %vm470, %v416, %v502
      %v535 = vsel %vm471, %v419, %v503
      %v536 = vsel %vm472, %v421, %v504
      %v537 = vsel %vm473, %v424, %v505
      %v538 = vsel %vm474, %v426, %v506
      %v539 = vsel %vm475, %v429, %v507
      %v540 = vsel %vm476, %v431, %v508
      %v541 = vsel %vm477, %v434, %v509
      %v542 = vsel %vm478, %v436, %v510
      %v543 = vsel %vm479, %v439, %v511
      %v544 = vsel %vm480, %v441, %v512
      %v545 = vsel %vm481, %v444, %v513
      %v546 = vsel %vm482, %v446, %v514
      %v547 = vsel %vm483, %v449, %v515
      %v548 = vsel %vm484, %v451, %v516
      %v549 = vpack.c.bf16 %v517, %v517
      %v550 = vpack.c.bf16 %v518, %v518
      %v551 = vpack.c.bf16 %v519, %v519
      %v552 = vpack.c.bf16 %v520, %v520
      %v553 = vpack.c.bf16 %v521, %v521
      %v554 = vpack.c.bf16 %v522, %v522
      %v555 = vpack.c.bf16 %v523, %v523
      %v556 = vpack.c.bf16 %v524, %v524
      %v557 = vpack.c.bf16 %v525, %v525
      %v558 = vpack.c.bf16 %v526, %v526
      %v559 = vpack.c.bf16 %v527, %v527
      %v560 = vpack.c.bf16 %v528, %v528
      %v561 = vpack.c.bf16 %v529, %v529
      %v562 = vpack.c.bf16 %v530, %v530
      %v563 = vpack.c.bf16 %v531, %v531
      %v564 = vpack.c.bf16 %v532, %v532
      %v565 = vpack.c.bf16 %v533, %v533
      %v566 = vpack.c.bf16 %v534, %v534
      %v567 = vpack.c.bf16 %v535, %v535
      %v568 = vpack.c.bf16 %v536, %v536
      %v569 = vpack.c.bf16 %v537, %v537
      %v570 = vpack.c.bf16 %v538, %v538
      %v571 = vpack.c.bf16 %v539, %v539
      %v572 = vpack.c.bf16 %v540, %v540
      %v573 = vpack.c.bf16 %v541, %v541
      %v574 = vpack.c.bf16 %v542, %v542
      %v575 = vpack.c.bf16 %v543, %v543
      %v576 = vpack.c.bf16 %v544, %v544
      %v577 = vpack.c.bf16 %v545, %v545
      %v578 = vpack.c.bf16 %v546, %v546
      %v579 = vpack.c.bf16 %v547, %v547
      %v580 = vpack.c.bf16 %v548, %v548
      %581 = vst [vmem:[%s172] sm:$0xf] %v549
      %582 = vst [vmem:[%s172 + $0x4] sm:$0xf] %v550
      %583 = vst [vmem:[%s172 + $0x8] sm:$0xf] %v551
      %584 = vst [vmem:[%s172 + $0xc] sm:$0xf] %v552
      %585 = vst [vmem:[%s172 + $0x10] sm:$0xf] %v553
      %586 = vst [vmem:[%s172 + $0x14] sm:$0xf] %v554
      %587 = vst [vmem:[%s172 + $0x18] sm:$0xf] %v555
      %588 = vst [vmem:[%s172 + $0x1c] sm:$0xf] %v556
      %589 = vst [vmem:[%s172 + $0x20] sm:$0xf] %v557
      %590 = vst [vmem:[%s172 + $0x24] sm:$0xf] %v558
      %591 = vst [vmem:[%s172 + $0x28] sm:$0xf] %v559
      %592 = vst [vmem:[%s172 + $0x2c] sm:$0xf] %v560
      %593 = vst [vmem:[%s172 + $0x30] sm:$0xf] %v561
      %594 = vst [vmem:[%s172 + $0x34] sm:$0xf] %v562
      %595 = vst [vmem:[%s172 + $0x38] sm:$0xf] %v563
      %596 = vst [vmem:[%s172 + $0x3c] sm:$0xf] %v564
      %597 = vst [vmem:[%s172 + $0x40] sm:$0xf] %v565
      %598 = vst [vmem:[%s172 + $0x44] sm:$0xf] %v566
      %599 = vst [vmem:[%s172 + $0x48] sm:$0xf] %v567
      %600 = vst [vmem:[%s172 + $0x4c] sm:$0xf] %v568
      %601 = vst [vmem:[%s172 + $0x50] sm:$0xf] %v569
      %602 = vst [vmem:[%s172 + $0x54] sm:$0xf] %v570
      %603 = vst [vmem:[%s172 + $0x58] sm:$0xf] %v571
      %604 = vst [vmem:[%s172 + $0x5c] sm:$0xf] %v572
      %605 = vst [vmem:[%s172 + $0x60] sm:$0xf] %v573
      %606 = vst [vmem:[%s172 + $0x64] sm:$0xf] %v574
      %607 = vst [vmem:[%s172 + $0x68] sm:$0xf] %v575
      %608 = vst [vmem:[%s172 + $0x6c] sm:$0xf] %v576
      %609 = vst [vmem:[%s172 + $0x70] sm:$0xf] %v577
      %610 = vst [vmem:[%s172 + $0x74] sm:$0xf] %v578
      %611 = vst [vmem:[%s172 + $0x78] sm:$0xf] %v579
      %612 = vst [vmem:[%s172 + $0x7c] sm:$0xf] %v580
      %s613 = smul.u32 32, %s14
      %p614 = scmp.lt.s32.totalorder %s613, 63
      %s615 = scalar_select %p614, %s613, 63
      %s616 = smul.addr %s615, 4
      %s617 = scalar_lea.vmem %s3, %s616
      // Predicated region
      $region33: #{ed_regression_forward.23} parent=31 // pred_check
        %p618 = pneg %p100
      $region34: #{ed_regression_forward.23} parent=31 // pred_check_branch
        %620 = sbr.rel (%p618) target = $region36
      $region35: #{ed_regression_forward.23} parent=31 // pred_region
        %s621 = smul.u32 32, %s14
      $region36: #{ed_regression_forward.23} parent=31 // pred_fallthru
        _
    $region32: #{ed_regression_forward.23} parent=5 // pred_fallthru
      _
    %p622 = scmp.le.s32.totalorder 2, %s9
    // Predicated region
    $region37: #{ed_regression_forward.23} parent=5 // pred_check
      %p623 = pneg %p622
    $region38: #{ed_regression_forward.23} parent=5 // pred_check_branch
      %625 = sbr.rel (%p623) target = $region40
    $region39: #{ed_regression_forward.23} parent=5 // pred_region
      %s626 = ssub.s32 %s9, 2
      // Predicated region
      $region41: #{ed_regression_forward.23} parent=39 // pred_check
        %p627 = pneg %p106
      $region42: #{ed_regression_forward.23} parent=39 // pred_check_branch
        %629 = sbr.rel (%p627) target = $region44
      $region43: #{ed_regression_forward.23} parent=39 // pred_region
        %s630 = smul.u32 32, %s15
        %p631 = scmp.lt.s32.totalorder %s630, 63
        %s632 = scalar_select %p631, %s630, 63
        %s633 = smul.addr %s632, 4
        %s634 = scalar_lea.vmem %s3, %s633
      $region44: #{ed_regression_forward.23} parent=39 // pred_fallthru
        _
    $region40: #{ed_regression_forward.23} parent=5 // pred_fallthru
      _
  $region6: #{ed_regression_forward.23} parent=0 // loop_footer
    %s13 = sadd.s32 1, %s9
  $region7: #{ed_regression_forward.23} parent=0 // loop_footer_branch
    %8 = sbr.rel target = $region3
  $region8: #{ed_regression_forward.23} parent=0 // loop_exit
    _

// kernel: ed_regression_forward.32
$region0: #{ed_regression_forward.32}
  #allocation0 [shape = 'u32[]', space=smem, size = 0x4, offset = 0x4, fixed_abs, tag = 'smem constant byte address 0x4 - core index']
  #allocation1 [shape = 'u32[72,128]{1,0:T(1,128)}', space=vmem, size = 0x9000, scoped, tag = 'internal scratch']
  %s0 = inlined_call_operand.vmem [shape: bf16[128,1024], index: 0, kind: input, shape index: {}]
  %s1 = inlined_call_operand.vmem [shape: bf16[1024,128], index: 1, kind: input, shape index: {}]
  %s2 = inlined_call_operand.vmem [shape: f32[1,128], index: 2, kind: input, shape index: {}]
  %s3 = inlined_call_operand.vmem [shape: bf16[128,128], index: 3, kind: input, shape index: {}]
  %s4 = inlined_call_operand.vmem [shape: bf16[128,128], index: 4, kind: output, shape index: {}]
  %s5 = sld [smem:[#allocation0]]
  $region26: #{ed_regression_forward.32} parent=0
    _
  %s7 = ssub.s32 1, %s5
  %s8 = scalar_select 0, %s7, %s5
  // Predicated region
  $region2: #{ed_regression_forward.32} parent=0 // pred_check
    _
  $region3: #{ed_regression_forward.32} parent=0 // pred_check_branch
    %10 = sbr.rel (0) target = $region5
  $region4: #{ed_regression_forward.32} parent=0 // pred_region
    _
  $region5: #{ed_regression_forward.32} parent=0 // pred_fallthru
    _
  // Predicated region
  $region6: #{ed_regression_forward.32} parent=0 // pred_check
    _
  $region7: #{ed_regression_forward.32} parent=0 // pred_check_branch
    %12 = sbr.rel (0) target = $region9
  $region8: #{ed_regression_forward.32} parent=0 // pred_region
    _
  $region9: #{ed_regression_forward.32} parent=0 // pred_fallthru
    _
  // Predicated region
  $region10: #{ed_regression_forward.32} parent=0 // pred_check
    _
  $region11: #{ed_regression_forward.32} parent=0 // pred_check_branch
    %14 = sbr.rel (0) target = $region13
  $region12: #{ed_regression_forward.32} parent=0 // pred_region
    _
  $region13: #{ed_regression_forward.32} parent=0 // pred_fallthru
    _
  // Predicated region
  $region14: #{ed_regression_forward.32} parent=0 // pred_check
    _
  $region15: #{ed_regression_forward.32} parent=0 // pred_check_branch
    %16 = sbr.rel (0) target = $region17
  $region16: #{ed_regression_forward.32} parent=0 // pred_region
    _
  $region17: #{ed_regression_forward.32} parent=0 // pred_fallthru
    _
  %v17 = vld [vmem:[%s0] sm:$0xff]
  %v18 = vld [vmem:[%s0 + $0x8] sm:$0xff]
  %v19 = vld [vmem:[%s0 + $0x10] sm:$0xff]
  %v20 = vld [vmem:[%s0 + $0x18] sm:$0xff]
  %v21 = vld [vmem:[%s0 + $0x20] sm:$0xff]
  %v22 = vld [vmem:[%s0 + $0x28] sm:$0xff]
  %v23 = vld [vmem:[%s0 + $0x30] sm:$0xff]
  %v24 = vld [vmem:[%s0 + $0x38] sm:$0xff]
  %v25 = vld [vmem:[%s0 + $0x40] sm:$0xff]
  %v26 = vld [vmem:[%s0 + $0x48] sm:$0xff]
  %v27 = vld [vmem:[%s0 + $0x50] sm:$0xff]
  %v28 = vld [vmem:[%s0 + $0x58] sm:$0xff]
  %v29 = vld [vmem:[%s0 + $0x60] sm:$0xff]
  %v30 = vld [vmem:[%s0 + $0x68] sm:$0xff]
  %v31 = vld [vmem:[%s0 + $0x70] sm:$0xff]
  %v32 = vld [vmem:[%s0 + $0x78] sm:$0xff]
  %v33 = vld [vmem:[%s0 + $0x80] sm:$0xff]
  %v34 = vld [vmem:[%s0 + $0x88] sm:$0xff]
  %v35 = vld [vmem:[%s0 + $0x90] sm:$0xff]
  %v36 = vld [vmem:[%s0 + $0x98] sm:$0xff]
  %v37 = vld [vmem:[%s0 + $0xa0] sm:$0xff]
  %v38 = vld [vmem:[%s0 + $0xa8] sm:$0xff]
  %v39 = vld [vmem:[%s0 + $0xb0] sm:$0xff]
  %v40 = vld [vmem:[%s0 + $0xb8] sm:$0xff]
  %v41 = vld [vmem:[%s0 + $0xc0] sm:$0xff]
  %v42 = vld [vmem:[%s0 + $0xc8] sm:$0xff]
  %v43 = vld [vmem:[%s0 + $0xd0] sm:$0xff]
  %v44 = vld [vmem:[%s0 + $0xd8] sm:$0xff]
  %v45 = vld [vmem:[%s0 + $0xe0] sm:$0xff]
  %v46 = vld [vmem:[%s0 + $0xe8] sm:$0xff]
  %v47 = vld [vmem:[%s0 + $0xf0] sm:$0xff]
  %v48 = vld [vmem:[%s0 + $0xf8] sm:$0xff]
  %v49 = vld [vmem:[%s0 + $0x100] sm:$0xff]
  %v50 = vld [vmem:[%s0 + $0x108] sm:$0xff]
  %v51 = vld [vmem:[%s0 + $0x110] sm:$0xff]
  %v52 = vld [vmem:[%s0 + $0x118] sm:$0xff]
  %v53 = vld [vmem:[%s0 + $0x120] sm:$0xff]
  %v54 = vld [vmem:[%s0 + $0x128] sm:$0xff]
  %v55 = vld [vmem:[%s0 + $0x130] sm:$0xff]
  %v56 = vld [vmem:[%s0 + $0x138] sm:$0xff]
  %v57 = vld [vmem:[%s0 + $0x140] sm:$0xff]
  %v58 = vld [vmem:[%s0 + $0x148] sm:$0xff]
  %v59 = vld [vmem:[%s0 + $0x150] sm:$0xff]
  %v60 = vld [vmem:[%s0 + $0x158] sm:$0xff]
  %v61 = vld [vmem:[%s0 + $0x160] sm:$0xff]
  %v62 = vld [vmem:[%s0 + $0x168] sm:$0xff]
  %v63 = vld [vmem:[%s0 + $0x170] sm:$0xff]
  %v64 = vld [vmem:[%s0 + $0x178] sm:$0xff]
  %v65 = vld [vmem:[%s0 + $0x180] sm:$0xff]
  %v66 = vld [vmem:[%s0 + $0x188] sm:$0xff]
  %v67 = vld [vmem:[%s0 + $0x190] sm:$0xff]
  %v68 = vld [vmem:[%s0 + $0x198] sm:$0xff]
  %v69 = vld [vmem:[%s0 + $0x1a0] sm:$0xff]
  %v70 = vld [vmem:[%s0 + $0x1a8] sm:$0xff]
  %v71 = vld [vmem:[%s0 + $0x1b0] sm:$0xff]
  %v72 = vld [vmem:[%s0 + $0x1b8] sm:$0xff]
  %v73 = vld [vmem:[%s0 + $0x1c0] sm:$0xff]
  %v74 = vld [vmem:[%s0 + $0x1c8] sm:$0xff]
  %v75 = vld [vmem:[%s0 + $0x1d0] sm:$0xff]
  %v76 = vld [vmem:[%s0 + $0x1d8] sm:$0xff]
  %v77 = vld [vmem:[%s0 + $0x1e0] sm:$0xff]
  %v78 = vld [vmem:[%s0 + $0x1e8] sm:$0xff]
  %v79 = vld [vmem:[%s0 + $0x1f0] sm:$0xff]
  %v80 = vld [vmem:[%s0 + $0x1f8] sm:$0xff]
  %v81 = vld [vmem:[%s1] sm:$0xf]
  %v82 = vld [vmem:[%s1 + $0x4] sm:$0xf]
  %v83 = vld [vmem:[%s1 + $0x8] sm:$0xf]
  %v84 = vld [vmem:[%s1 + $0xc] sm:$0xf]
  %v85 = vld [vmem:[%s1 + $0x10] sm:$0xf]
  %v86 = vld [vmem:[%s1 + $0x14] sm:$0xf]
  %v87 = vld [vmem:[%s1 + $0x18] sm:$0xf]
  %v88 = vld [vmem:[%s1 + $0x1c] sm:$0xf]
  %v89 = vld [vmem:[%s1 + $0x20] sm:$0xf]
  %v90 = vld [vmem:[%s1 + $0x24] sm:$0xf]
  %v91 = vld [vmem:[%s1 + $0x28] sm:$0xf]
  %v92 = vld [vmem:[%s1 + $0x2c] sm:$0xf]
  %v93 = vld [vmem:[%s1 + $0x30] sm:$0xf]
  %v94 = vld [vmem:[%s1 + $0x34] sm:$0xf]
  %v95 = vld [vmem:[%s1 + $0x38] sm:$0xf]
  %v96 = vld [vmem:[%s1 + $0x3c] sm:$0xf]
  %v97 = vld [vmem:[%s1 + $0x40] sm:$0xf]
  %v98 = vld [vmem:[%s1 + $0x44] sm:$0xf]
  %v99 = vld [vmem:[%s1 + $0x48] sm:$0xf]
  %v100 = vld [vmem:[%s1 + $0x4c] sm:$0xf]
  %v101 = vld [vmem:[%s1 + $0x50] sm:$0xf]
  %v102 = vld [vmem:[%s1 + $0x54] sm:$0xf]
  %v103 = vld [vmem:[%s1 + $0x58] sm:$0xf]
  %v104 = vld [vmem:[%s1 + $0x5c] sm:$0xf]
  %v105 = vld [vmem:[%s1 + $0x60] sm:$0xf]
  %v106 = vld [vmem:[%s1 + $0x64] sm:$0xf]
  %v107 = vld [vmem:[%s1 + $0x68] sm:$0xf]
  %v108 = vld [vmem:[%s1 + $0x6c] sm:$0xf]
  %v109 = vld [vmem:[%s1 + $0x70] sm:$0xf]
  %v110 = vld [vmem:[%s1 + $0x74] sm:$0xf]
  %v111 = vld [vmem:[%s1 + $0x78] sm:$0xf]
  %v112 = vld [vmem:[%s1 + $0x7c] sm:$0xf]
  %v113 = vld [vmem:[%s1 + $0x80] sm:$0xf]
  %v114 = vld [vmem:[%s1 + $0x84] sm:$0xf]
  %v115 = vld [vmem:[%s1 + $0x88] sm:$0xf]
  %v116 = vld [vmem:[%s1 + $0x8c] sm:$0xf]
  %v117 = vld [vmem:[%s1 + $0x90] sm:$0xf]
  %v118 = vld [vmem:[%s1 + $0x94] sm:$0xf]
  %v119 = vld [vmem:[%s1 + $0x98] sm:$0xf]
  %v120 = vld [vmem:[%s1 + $0x9c] sm:$0xf]
  %v121 = vld [vmem:[%s1 + $0xa0] sm:$0xf]
  %v122 = vld [vmem:[%s1 + $0xa4] sm:$0xf]
  %v123 = vld [vmem:[%s1 + $0xa8] sm:$0xf]
  %v124 = vld [vmem:[%s1 + $0xac] sm:$0xf]
  %v125 = vld [vmem:[%s1 + $0xb0] sm:$0xf]
  %v126 = vld [vmem:[%s1 + $0xb4] sm:$0xf]
  %v127 = vld [vmem:[%s1 + $0xb8] sm:$0xf]
  %v128 = vld [vmem:[%s1 + $0xbc] sm:$0xf]
  %v129 = vld [vmem:[%s1 + $0xc0] sm:$0xf]
  %v130 = vld [vmem:[%s1 + $0xc4] sm:$0xf]
  %v131 = vld [vmem:[%s1 + $0xc8] sm:$0xf]
  %v132 = vld [vmem:[%s1 + $0xcc] sm:$0xf]
  %v133 = vld [vmem:[%s1 + $0xd0] sm:$0xf]
  %v134 = vld [vmem:[%s1 + $0xd4] sm:$0xf]
  %v135 = vld [vmem:[%s1 + $0xd8] sm:$0xf]
  %v136 = vld [vmem:[%s1 + $0xdc] sm:$0xf]
  %v137 = vld [vmem:[%s1 + $0xe0] sm:$0xf]
  %v138 = vld [vmem:[%s1 + $0xe4] sm:$0xf]
  %v139 = vld [vmem:[%s1 + $0xe8] sm:$0xf]
  %v140 = vld [vmem:[%s1 + $0xec] sm:$0xf]
  %v141 = vld [vmem:[%s1 + $0xf0] sm:$0xf]
  %v142 = vld [vmem:[%s1 + $0xf4] sm:$0xf]
  %v143 = vld [vmem:[%s1 + $0xf8] sm:$0xf]
  %v144 = vld [vmem:[%s1 + $0xfc] sm:$0xf]
  %v145 = vld [vmem:[%s1 + $0x100] sm:$0xf]
  %v146 = vld [vmem:[%s1 + $0x104] sm:$0xf]
  %v147 = vld [vmem:[%s1 + $0x108] sm:$0xf]
  %v148 = vld [vmem:[%s1 + $0x10c] sm:$0xf]
  %v149 = vld [vmem:[%s1 + $0x110] sm:$0xf]
  %v150 = vld [vmem:[%s1 + $0x114] sm:$0xf]
  %v151 = vld [vmem:[%s1 + $0x118] sm:$0xf]
  %v152 = vld [vmem:[%s1 + $0x11c] sm:$0xf]
  %v153 = vld [vmem:[%s1 + $0x120] sm:$0xf]
  %v154 = vld [vmem:[%s1 + $0x124] sm:$0xf]
  %v155 = vld [vmem:[%s1 + $0x128] sm:$0xf]
  %v156 = vld [vmem:[%s1 + $0x12c] sm:$0xf]
  %v157 = vld [vmem:[%s1 + $0x130] sm:$0xf]
  %v158 = vld [vmem:[%s1 + $0x134] sm:$0xf]
  %v159 = vld [vmem:[%s1 + $0x138] sm:$0xf]
  %v160 = vld [vmem:[%s1 + $0x13c] sm:$0xf]
  %v161 = vld [vmem:[%s1 + $0x140] sm:$0xf]
  %v162 = vld [vmem:[%s1 + $0x144] sm:$0xf]
  %v163 = vld [vmem:[%s1 + $0x148] sm:$0xf]
  %v164 = vld [vmem:[%s1 + $0x14c] sm:$0xf]
  %v165 = vld [vmem:[%s1 + $0x150] sm:$0xf]
  %v166 = vld [vmem:[%s1 + $0x154] sm:$0xf]
  %v167 = vld [vmem:[%s1 + $0x158] sm:$0xf]
  %v168 = vld [vmem:[%s1 + $0x15c] sm:$0xf]
  %v169 = vld [vmem:[%s1 + $0x160] sm:$0xf]
  %v170 = vld [vmem:[%s1 + $0x164] sm:$0xf]
  %v171 = vld [vmem:[%s1 + $0x168] sm:$0xf]
  %v172 = vld [vmem:[%s1 + $0x16c] sm:$0xf]
  %v173 = vld [vmem:[%s1 + $0x170] sm:$0xf]
  %v174 = vld [vmem:[%s1 + $0x174] sm:$0xf]
  %v175 = vld [vmem:[%s1 + $0x178] sm:$0xf]
  %v176 = vld [vmem:[%s1 + $0x17c] sm:$0xf]
  %v177 = vld [vmem:[%s1 + $0x180] sm:$0xf]
  %v178 = vld [vmem:[%s1 + $0x184] sm:$0xf]
  %v179 = vld [vmem:[%s1 + $0x188] sm:$0xf]
  %v180 = vld [vmem:[%s1 + $0x18c] sm:$0xf]
  %v181 = vld [vmem:[%s1 + $0x190] sm:$0xf]
  %v182 = vld [vmem:[%s1 + $0x194] sm:$0xf]
  %v183 = vld [vmem:[%s1 + $0x198] sm:$0xf]
  %v184 = vld [vmem:[%s1 + $0x19c] sm:$0xf]
  %v185 = vld [vmem:[%s1 + $0x1a0] sm:$0xf]
  %v186 = vld [vmem:[%s1 + $0x1a4] sm:$0xf]
  %v187 = vld [vmem:[%s1 + $0x1a8] sm:$0xf]
  %v188 = vld [vmem:[%s1 + $0x1ac] sm:$0xf]
  %v189 = vld [vmem:[%s1 + $0x1b0] sm:$0xf]
  %v190 = vld [vmem:[%s1 + $0x1b4] sm:$0xf]
  %v191 = vld [vmem:[%s1 + $0x1b8] sm:$0xf]
  %v192 = vld [vmem:[%s1 + $0x1bc] sm:$0xf]
  %v193 = vld [vmem:[%s1 + $0x1c0] sm:$0xf]
  %v194 = vld [vmem:[%s1 + $0x1c4] sm:$0xf]
  %v195 = vld [vmem:[%s1 + $0x1c8] sm:$0xf]
  %v196 = vld [vmem:[%s1 + $0x1cc] sm:$0xf]
  %v197 = vld [vmem:[%s1 + $0x1d0] sm:$0xf]
  %v198 = vld [vmem:[%s1 + $0x1d4] sm:$0xf]
  %v199 = vld [vmem:[%s1 + $0x1d8] sm:$0xf]
  %v200 = vld [vmem:[%s1 + $0x1dc] sm:$0xf]
  %v201 = vld [vmem:[%s1 + $0x1e0] sm:$0xf]
  %v202 = vld [vmem:[%s1 + $0x1e4] sm:$0xf]
  %v203 = vld [vmem:[%s1 + $0x1e8] sm:$0xf]
  %v204 = vld [vmem:[%s1 + $0x1ec] sm:$0xf]
  %v205 = vld [vmem:[%s1 + $0x1f0] sm:$0xf]
  %v206 = vld [vmem:[%s1 + $0x1f4] sm:$0xf]
  %v207 = vld [vmem:[%s1 + $0x1f8] sm:$0xf]
  %v208 = vld [vmem:[%s1 + $0x1fc] sm:$0xf]
  %v209 = vld [vmem:[%s2] sm:$0x1]
  %v211 = vperm.slane %v209, 0
  %v277 = vunpack.c.l.b16 %v17
  %v278 = vunpack.c.h.b16 %v17
  %v279 = vunpack.c.l.b16 %v18
  %v280 = vunpack.c.h.b16 %v18
  %v281 = vunpack.c.l.b16 %v19
  %v282 = vunpack.c.h.b16 %v19
  %v283 = vunpack.c.l.b16 %v20
  %v284 = vunpack.c.h.b16 %v20
  %v285 = vunpack.c.l.b16 %v21
  %v286 = vunpack.c.h.b16 %v21
  %v287 = vunpack.c.l.b16 %v22
  %v288 = vunpack.c.h.b16 %v22
  %v289 = vunpack.c.l.b16 %v23
  %v290 = vunpack.c.h.b16 %v23
  %v291 = vunpack.c.l.b16 %v24
  %v292 = vunpack.c.h.b16 %v24
  %v293 = vunpack.c.l.b16 %v25
  %v294 = vunpack.c.h.b16 %v25
  %v295 = vunpack.c.l.b16 %v26
  %v296 = vunpack.c.h.b16 %v26
  %v297 = vunpack.c.l.b16 %v27
  %v298 = vunpack.c.h.b16 %v27
  %v299 = vunpack.c.l.b16 %v28
  %v300 = vunpack.c.h.b16 %v28
  %v301 = vunpack.c.l.b16 %v29
  %v302 = vunpack.c.h.b16 %v29
  %v303 = vunpack.c.l.b16 %v30
  %v304 = vunpack.c.h.b16 %v30
  %v305 = vunpack.c.l.b16 %v31
  %v306 = vunpack.c.h.b16 %v31
  %v307 = vunpack.c.l.b16 %v32
  %v308 = vunpack.c.h.b16 %v32
  %v309 = vunpack.c.l.b16 %v33
  %v310 = vunpack.c.h.b16 %v33
  %v311 = vunpack.c.l.b16 %v34
  %v312 = vunpack.c.h.b16 %v34
  %v313 = vunpack.c.l.b16 %v35
  %v314 = vunpack.c.h.b16 %v35
  %v315 = vunpack.c.l.b16 %v36
  %v316 = vunpack.c.h.b16 %v36
  %v317 = vunpack.c.l.b16 %v37
  %v318 = vunpack.c.h.b16 %v37
  %v319 = vunpack.c.l.b16 %v38
  %v320 = vunpack.c.h.b16 %v38
  %v321 = vunpack.c.l.b16 %v39
  %v322 = vunpack.c.h.b16 %v39
  %v323 = vunpack.c.l.b16 %v40
  %v324 = vunpack.c.h.b16 %v40
  %v325 = vunpack.c.l.b16 %v41
  %v326 = vunpack.c.h.b16 %v41
  %v327 = vunpack.c.l.b16 %v42
  %v328 = vunpack.c.h.b16 %v42
  %v329 = vunpack.c.l.b16 %v43
  %v330 = vunpack.c.h.b16 %v43
  %v331 = vunpack.c.l.b16 %v44
  %v332 = vunpack.c.h.b16 %v44
  %v333 = vunpack.c.l.b16 %v45
  %v334 = vunpack.c.h.b16 %v45
  %v335 = vunpack.c.l.b16 %v46
  %v336 = vunpack.c.h.b16 %v46
  %v337 = vunpack.c.l.b16 %v47
  %v338 = vunpack.c.h.b16 %v47
  %v339 = vunpack.c.l.b16 %v48
  %v340 = vunpack.c.h.b16 %v48
  %v341 = vunpack.c.l.b16 %v49
  %v342 = vunpack.c.h.b16 %v49
  %v343 = vunpack.c.l.b16 %v50
  %v344 = vunpack.c.h.b16 %v50
  %v345 = vunpack.c.l.b16 %v51
  %v346 = vunpack.c.h.b16 %v51
  %v347 = vunpack.c.l.b16 %v52
  %v348 = vunpack.c.h.b16 %v52
  %v349 = vunpack.c.l.b16 %v53
  %v350 = vunpack.c.h.b16 %v53
  %v351 = vunpack.c.l.b16 %v54
  %v352 = vunpack.c.h.b16 %v54
  %v353 = vunpack.c.l.b16 %v55
  %v354 = vunpack.c.h.b16 %v55
  %v355 = vunpack.c.l.b16 %v56
  %v356 = vunpack.c.h.b16 %v56
  %v357 = vunpack.c.l.b16 %v57
  %v358 = vunpack.c.h.b16 %v57
  %v359 = vunpack.c.l.b16 %v58
  %v360 = vunpack.c.h.b16 %v58
  %v361 = vunpack.c.l.b16 %v59
  %v362 = vunpack.c.h.b16 %v59
  %v363 = vunpack.c.l.b16 %v60
  %v364 = vunpack.c.h.b16 %v60
  %v365 = vunpack.c.l.b16 %v61
  %v366 = vunpack.c.h.b16 %v61
  %v367 = vunpack.c.l.b16 %v62
  %v368 = vunpack.c.h.b16 %v62
  %v369 = vunpack.c.l.b16 %v63
  %v370 = vunpack.c.h.b16 %v63
  %v371 = vunpack.c.l.b16 %v64
  %v372 = vunpack.c.h.b16 %v64
  %v373 = vunpack.c.l.b16 %v65
  %v374 = vunpack.c.h.b16 %v65
  %v375 = vunpack.c.l.b16 %v66
  %v376 = vunpack.c.h.b16 %v66
  %v377 = vunpack.c.l.b16 %v67
  %v378 = vunpack.c.h.b16 %v67
  %v379 = vunpack.c.l.b16 %v68
  %v380 = vunpack.c.h.b16 %v68
  %v381 = vunpack.c.l.b16 %v69
  %v382 = vunpack.c.h.b16 %v69
  %v383 = vunpack.c.l.b16 %v70
  %v384 = vunpack.c.h.b16 %v70
  %v385 = vunpack.c.l.b16 %v71
  %v386 = vunpack.c.h.b16 %v71
  %v387 = vunpack.c.l.b16 %v72
  %v388 = vunpack.c.h.b16 %v72
  %v389 = vunpack.c.l.b16 %v73
  %v390 = vunpack.c.h.b16 %v73
  %v391 = vunpack.c.l.b16 %v74
  %v392 = vunpack.c.h.b16 %v74
  %v393 = vunpack.c.l.b16 %v75
  %v394 = vunpack.c.h.b16 %v75
  %v395 = vunpack.c.l.b16 %v76
  %v396 = vunpack.c.h.b16 %v76
  %v397 = vunpack.c.l.b16 %v77
  %v398 = vunpack.c.h.b16 %v77
  %v399 = vunpack.c.l.b16 %v78
  %v400 = vunpack.c.h.b16 %v78
  %v401 = vunpack.c.l.b16 %v79
  %v402 = vunpack.c.h.b16 %v79
  %v403 = vunpack.c.l.b16 %v80
  %v404 = vunpack.c.h.b16 %v80
  %v405 = vpack.c.b16 %v285, %v277
  %v406 = vpack.c.b16 %v286, %v278
  %v407 = vpack.c.b16 %v287, %v279
  %v408 = vpack.c.b16 %v288, %v280
  %v409 = vpack.c.b16 %v289, %v281
  %v410 = vpack.c.b16 %v290, %v282
  %v411 = vpack.c.b16 %v291, %v283
  %v412 = vpack.c.b16 %v292, %v284
  %v413 = vpack.c.b16 %v301, %v293
  %v414 = vpack.c.b16 %v302, %v294
  %v415 = vpack.c.b16 %v303, %v295
  %v416 = vpack.c.b16 %v304, %v296
  %v417 = vpack.c.b16 %v305, %v297
  %v418 = vpack.c.b16 %v306, %v298
  %v419 = vpack.c.b16 %v307, %v299
  %v420 = vpack.c.b16 %v308, %v300
  %v421 = vpack.c.b16 %v317, %v309
  %v422 = vpack.c.b16 %v318, %v310
  %v423 = vpack.c.b16 %v319, %v311
  %v424 = vpack.c.b16 %v320, %v312
  %v425 = vpack.c.b16 %v321, %v313
  %v426 = vpack.c.b16 %v322, %v314
  %v427 = vpack.c.b16 %v323, %v315
  %v428 = vpack.c.b16 %v324, %v316
  %v429 = vpack.c.b16 %v333, %v325
  %v430 = vpack.c.b16 %v334, %v326
  %v431 = vpack.c.b16 %v335, %v327
  %v432 = vpack.c.b16 %v336, %v328
  %v433 = vpack.c.b16 %v337, %v329
  %v434 = vpack.c.b16 %v338, %v330
  %v435 = vpack.c.b16 %v339, %v331
  %v436 = vpack.c.b16 %v340, %v332
  %v437 = vpack.c.b16 %v349, %v341
  %v438 = vpack.c.b16 %v350, %v342
  %v439 = vpack.c.b16 %v351, %v343
  %v440 = vpack.c.b16 %v352, %v344
  %v441 = vpack.c.b16 %v353, %v345
  %v442 = vpack.c.b16 %v354, %v346
  %v443 = vpack.c.b16 %v355, %v347
  %v444 = vpack.c.b16 %v356, %v348
  %v445 = vpack.c.b16 %v365, %v357
  %v446 = vpack.c.b16 %v366, %v358
  %v447 = vpack.c.b16 %v367, %v359
  %v448 = vpack.c.b16 %v368, %v360
  %v449 = vpack.c.b16 %v369, %v361
  %v450 = vpack.c.b16 %v370, %v362
  %v451 = vpack.c.b16 %v371, %v363
  %v452 = vpack.c.b16 %v372, %v364
  %v453 = vpack.c.b16 %v381, %v373
  %v454 = vpack.c.b16 %v382, %v374
  %v455 = vpack.c.b16 %v383, %v375
  %v456 = vpack.c.b16 %v384, %v376
  %v457 = vpack.c.b16 %v385, %v377
  %v458 = vpack.c.b16 %v386, %v378
  %v459 = vpack.c.b16 %v387, %v379
  %v460 = vpack.c.b16 %v388, %v380
  %v461 = vpack.c.b16 %v397, %v389
  %v462 = vpack.c.b16 %v398, %v390
  %v463 = vpack.c.b16 %v399, %v391
  %v464 = vpack.c.b16 %v400, %v392
  %v465 = vpack.c.b16 %v401, %v393
  %v466 = vpack.c.b16 %v402, %v394
  %v467 = vpack.c.b16 %v403, %v395
  %v468 = vpack.c.b16 %v404, %v396
  %v661 = vunpack.c.l.b16 %v81
  %v662 = vunpack.c.l.b16 %v82
  %v663 = vunpack.c.l.b16 %v83
  %v664 = vunpack.c.l.b16 %v84
  %v665 = vunpack.c.l.b16 %v85
  %v666 = vunpack.c.l.b16 %v86
  %v667 = vunpack.c.l.b16 %v87
  %v668 = vunpack.c.l.b16 %v88
  %v669 = vunpack.c.l.b16 %v89
  %v670 = vunpack.c.l.b16 %v90
  %v671 = vunpack.c.l.b16 %v91
  %v672 = vunpack.c.l.b16 %v92
  %v673 = vunpack.c.l.b16 %v93
  %v674 = vunpack.c.l.b16 %v94
  %v675 = vunpack.c.l.b16 %v95
  %v676 = vunpack.c.l.b16 %v96
  %v677 = vunpack.c.l.b16 %v97
  %v678 = vunpack.c.l.b16 %v98
  %v679 = vunpack.c.l.b16 %v99
  %v680 = vunpack.c.l.b16 %v100
  %v681 = vunpack.c.l.b16 %v101
  %v682 = vunpack.c.l.b16 %v102
  %v683 = vunpack.c.l.b16 %v103
  %v684 = vunpack.c.l.b16 %v104
  %v685 = vunpack.c.l.b16 %v105
  %v686 = vunpack.c.l.b16 %v106
  %v687 = vunpack.c.l.b16 %v107
  %v688 = vunpack.c.l.b16 %v108
  %v689 = vunpack.c.l.b16 %v109
  %v690 = vunpack.c.l.b16 %v110
  %v691 = vunpack.c.l.b16 %v111
  %v692 = vunpack.c.l.b16 %v112
  %v693 = vunpack.c.l.b16 %v113
  %v694 = vunpack.c.l.b16 %v114
  %v695 = vunpack.c.l.b16 %v115
  %v696 = vunpack.c.l.b16 %v116
  %v697 = vunpack.c.l.b16 %v117
  %v698 = vunpack.c.l.b16 %v118
  %v699 = vunpack.c.l.b16 %v119
  %v700 = vunpack.c.l.b16 %v120
  %v701 = vunpack.c.l.b16 %v121
  %v702 = vunpack.c.l.b16 %v122
  %v703 = vunpack.c.l.b16 %v123
  %v704 = vunpack.c.l.b16 %v124
  %v705 = vunpack.c.l.b16 %v125
  %v706 = vunpack.c.l.b16 %v126
  %v707 = vunpack.c.l.b16 %v127
  %v708 = vunpack.c.l.b16 %v128
  %v709 = vunpack.c.l.b16 %v129
  %v710 = vunpack.c.l.b16 %v130
  %v711 = vunpack.c.l.b16 %v131
  %v712 = vunpack.c.l.b16 %v132
  %v713 = vunpack.c.l.b16 %v133
  %v714 = vunpack.c.l.b16 %v134
  %v715 = vunpack.c.l.b16 %v135
  %v716 = vunpack.c.l.b16 %v136
  %v717 = vunpack.c.l.b16 %v137
  %v718 = vunpack.c.l.b16 %v138
  %v719 = vunpack.c.l.b16 %v139
  %v720 = vunpack.c.l.b16 %v140
  %v721 = vunpack.c.l.b16 %v141
  %v722 = vunpack.c.l.b16 %v142
  %v723 = vunpack.c.l.b16 %v143
  %v724 = vunpack.c.l.b16 %v144
  %v725 = vunpack.c.l.b16 %v145
  %v726 = vunpack.c.l.b16 %v146
  %v727 = vunpack.c.l.b16 %v147
  %v728 = vunpack.c.l.b16 %v148
  %v729 = vunpack.c.l.b16 %v149
  %v730 = vunpack.c.l.b16 %v150
  %v731 = vunpack.c.l.b16 %v151
  %v732 = vunpack.c.l.b16 %v152
  %v733 = vunpack.c.l.b16 %v153
  %v734 = vunpack.c.l.b16 %v154
  %v735 = vunpack.c.l.b16 %v155
  %v736 = vunpack.c.l.b16 %v156
  %v737 = vunpack.c.l.b16 %v157
  %v738 = vunpack.c.l.b16 %v158
  %v739 = vunpack.c.l.b16 %v159
  %v740 = vunpack.c.l.b16 %v160
  %v741 = vunpack.c.l.b16 %v161
  %v742 = vunpack.c.l.b16 %v162
  %v743 = vunpack.c.l.b16 %v163
  %v744 = vunpack.c.l.b16 %v164
  %v745 = vunpack.c.l.b16 %v165
  %v746 = vunpack.c.l.b16 %v166
  %v747 = vunpack.c.l.b16 %v167
  %v748 = vunpack.c.l.b16 %v168
  %v749 = vunpack.c.l.b16 %v169
  %v750 = vunpack.c.l.b16 %v170
  %v751 = vunpack.c.l.b16 %v171
  %v752 = vunpack.c.l.b16 %v172
  %v753 = vunpack.c.l.b16 %v173
  %v754 = vunpack.c.l.b16 %v174
  %v755 = vunpack.c.l.b16 %v175
  %v756 = vunpack.c.l.b16 %v176
  %v757 = vunpack.c.l.b16 %v177
  %v758 = vunpack.c.l.b16 %v178
  %v759 = vunpack.c.l.b16 %v179
  %v760 = vunpack.c.l.b16 %v180
  %v761 = vunpack.c.l.b16 %v181
  %v762 = vunpack.c.l.b16 %v182
  %v763 = vunpack.c.l.b16 %v183
  %v764 = vunpack.c.l.b16 %v184
  %v765 = vunpack.c.l.b16 %v185
  %v766 = vunpack.c.l.b16 %v186
  %v767 = vunpack.c.l.b16 %v187
  %v768 = vunpack.c.l.b16 %v188
  %v769 = vunpack.c.l.b16 %v189
  %v770 = vunpack.c.l.b16 %v190
  %v771 = vunpack.c.l.b16 %v191
  %v772 = vunpack.c.l.b16 %v192
  %v773 = vunpack.c.l.b16 %v193
  %v774 = vunpack.c.l.b16 %v194
  %v775 = vunpack.c.l.b16 %v195
  %v776 = vunpack.c.l.b16 %v196
  %v777 = vunpack.c.l.b16 %v197
  %v778 = vunpack.c.l.b16 %v198
  %v779 = vunpack.c.l.b16 %v199
  %v780 = vunpack.c.l.b16 %v200
  %v781 = vunpack.c.l.b16 %v201
  %v782 = vunpack.c.l.b16 %v202
  %v783 = vunpack.c.l.b16 %v203
  %v784 = vunpack.c.l.b16 %v204
  %v785 = vunpack.c.l.b16 %v205
  %v786 = vunpack.c.l.b16 %v206
  %v787 = vunpack.c.l.b16 %v207
  %v788 = vunpack.c.l.b16 %v208
  %v789 = vpack.c.b16 %v662, %v661
  %v790 = vpack.c.b16 %v664, %v663
  %v791 = vpack.c.b16 %v666, %v665
  %v792 = vpack.c.b16 %v668, %v667
  %v793 = vpack.c.b16 %v670, %v669
  %v794 = vpack.c.b16 %v672, %v671
  %v795 = vpack.c.b16 %v674, %v673
  %v796 = vpack.c.b16 %v676, %v675
  %v797 = vpack.c.b16 %v678, %v677
  %v798 = vpack.c.b16 %v680, %v679
  %v799 = vpack.c.b16 %v682, %v681
  %v800 = vpack.c.b16 %v684, %v683
  %v801 = vpack.c.b16 %v686, %v685
  %v802 = vpack.c.b16 %v688, %v687
  %v803 = vpack.c.b16 %v690, %v689
  %v804 = vpack.c.b16 %v692, %v691
  %v805 = vpack.c.b16 %v694, %v693
  %v806 = vpack.c.b16 %v696, %v695
  %v807 = vpack.c.b16 %v698, %v697
  %v808 = vpack.c.b16 %v700, %v699
  %v809 = vpack.c.b16 %v702, %v701
  %v810 = vpack.c.b16 %v704, %v703
  %v811 = vpack.c.b16 %v706, %v705
  %v812 = vpack.c.b16 %v708, %v707
  %v813 = vpack.c.b16 %v710, %v709
  %v814 = vpack.c.b16 %v712, %v711
  %v815 = vpack.c.b16 %v714, %v713
  %v816 = vpack.c.b16 %v716, %v715
  %v817 = vpack.c.b16 %v718, %v717
  %v818 = vpack.c.b16 %v720, %v719
  %v819 = vpack.c.b16 %v722, %v721
  %v820 = vpack.c.b16 %v724, %v723
  %v821 = vpack.c.b16 %v726, %v725
  %v822 = vpack.c.b16 %v728, %v727
  %v823 = vpack.c.b16 %v730, %v729
  %v824 = vpack.c.b16 %v732, %v731
  %v825 = vpack.c.b16 %v734, %v733
  %v826 = vpack.c.b16 %v736, %v735
  %v827 = vpack.c.b16 %v738, %v737
  %v828 = vpack.c.b16 %v740, %v739
  %v829 = vpack.c.b16 %v742, %v741
  %v830 = vpack.c.b16 %v744, %v743
  %v831 = vpack.c.b16 %v746, %v745
  %v832 = vpack.c.b16 %v748, %v747
  %v833 = vpack.c.b16 %v750, %v749
  %v834 = vpack.c.b16 %v752, %v751
  %v835 = vpack.c.b16 %v754, %v753
  %v836 = vpack.c.b16 %v756, %v755
  %v837 = vpack.c.b16 %v758, %v757
  %v838 = vpack.c.b16 %v760, %v759
  %v839 = vpack.c.b16 %v762, %v761
  %v840 = vpack.c.b16 %v764, %v763
  %v841 = vpack.c.b16 %v766, %v765
  %v842 = vpack.c.b16 %v768, %v767
  %v843 = vpack.c.b16 %v770, %v769
  %v844 = vpack.c.b16 %v772, %v771
  %v845 = vpack.c.b16 %v774, %v773
  %v846 = vpack.c.b16 %v776, %v775
  %v847 = vpack.c.b16 %v778, %v777
  %v848 = vpack.c.b16 %v780, %v779
  %v849 = vpack.c.b16 %v782, %v781
  %v850 = vpack.c.b16 %v784, %v783
  %v851 = vpack.c.b16 %v786, %v785
  %v852 = vpack.c.b16 %v788, %v787
  %917 = vmatpush.bf16.msra.mxu0 %v796
  %918 = vmatpush.bf16.msra.mxu0 %v795
  %919 = vmatpush.bf16.msra.mxu0 %v794
  %920 = vmatpush.bf16.msra.mxu0 %v793
  %921 = vmatpush.bf16.msra.mxu0 %v792
  %922 = vmatpush.bf16.msra.mxu0 %v791
  %923 = vmatpush.bf16.msra.mxu0 %v790
  %924 = vmatpush.bf16.msra.mxu0 %v789
  %925 = vmatmul.bf16.gmra.mxu0 %v405
  %v926 = vpop.f32.mrf.mxu0
  %v927 = vadd.f32 %v211, %v926
  %v928 = vpop.f32.mrf.mxu0
  %v929 = vadd.f32 %v211, %v928
  %930 = vmatmul.bf16.gmra.mxu0 %v413
  %v931 = vpop.f32.mrf.mxu0
  %v932 = vadd.f32 %v211, %v931
  %v933 = vpop.f32.mrf.mxu0
  %v934 = vadd.f32 %v211, %v933
  %935 = vmatmul.bf16.gmra.mxu0 %v421
  %v936 = vpop.f32.mrf.mxu0
  %v937 = vadd.f32 %v211, %v936
  %v938 = vpop.f32.mrf.mxu0
  %v939 = vadd.f32 %v211, %v938
  %940 = vmatmul.bf16.gmra.mxu0 %v429
  %v941 = vpop.f32.mrf.mxu0
  %v942 = vadd.f32 %v211, %v941
  %v943 = vpop.f32.mrf.mxu0
  %v944 = vadd.f32 %v211, %v943
  %945 = vmatmul.bf16.gmra.mxu0 %v437
  %v946 = vpop.f32.mrf.mxu0
  %v947 = vadd.f32 %v211, %v946
  %v948 = vpop.f32.mrf.mxu0
  %v949 = vadd.f32 %v211, %v948
  %950 = vmatmul.bf16.gmra.mxu0 %v445
  %v951 = vpop.f32.mrf.mxu0
  %v952 = vadd.f32 %v211, %v951
  %v953 = vpop.f32.mrf.mxu0
  %v954 = vadd.f32 %v211, %v953
  %955 = vmatmul.bf16.gmra.mxu0 %v453
  %v956 = vpop.f32.mrf.mxu0
  %v957 = vadd.f32 %v211, %v956
  %v958 = vpop.f32.mrf.mxu0
  %v959 = vadd.f32 %v211, %v958
  %960 = vmatmul.bf16.gmra.mxu0 %v461
  %v961 = vpop.f32.mrf.mxu0
  %v962 = vadd.f32 %v211, %v961
  %v963 = vpop.f32.mrf.mxu0
  %v964 = vadd.f32 %v211, %v963
  %965 = vdwg.mxu0
  %966 = vmatpush.bf16.msra.mxu0 %v804
  %967 = vmatpush.bf16.msra.mxu0 %v803
  %968 = vmatpush.bf16.msra.mxu0 %v802
  %969 = vmatpush.bf16.msra.mxu0 %v801
  %970 = vmatpush.bf16.msra.mxu0 %v800
  %971 = vmatpush.bf16.msra.mxu0 %v799
  %972 = vmatpush.bf16.msra.mxu0 %v798
  %973 = vmatpush.bf16.msra.mxu0 %v797
  %974 = vmatmul.bf16.gmra.mxu0 %v406
  %v975 = vpop.f32.mrf.mxu0
  %v976 = vadd.f32 %v927, %v975
  %v977 = vpop.f32.mrf.mxu0
  %v978 = vadd.f32 %v929, %v977
  %979 = vmatmul.bf16.gmra.mxu0 %v414
  %v980 = vpop.f32.mrf.mxu0
  %v981 = vadd.f32 %v932, %v980
  %v982 = vpop.f32.mrf.mxu0
  %v983 = vadd.f32 %v934, %v982
  %984 = vmatmul.bf16.gmra.mxu0 %v422
  %v985 = vpop.f32.mrf.mxu0
  %v986 = vadd.f32 %v937, %v985
  %v987 = vpop.f32.mrf.mxu0
  %v988 = vadd.f32 %v939, %v987
  %989 = vmatmul.bf16.gmra.mxu0 %v430
  %v990 = vpop.f32.mrf.mxu0
  %v991 = vadd.f32 %v942, %v990
  %v992 = vpop.f32.mrf.mxu0
  %v993 = vadd.f32 %v944, %v992
  %994 = vmatmul.bf16.gmra.mxu0 %v438
  %v995 = vpop.f32.mrf.mxu0
  %v996 = vadd.f32 %v947, %v995
  %v997 = vpop.f32.mrf.mxu0
  %v998 = vadd.f32 %v949, %v997
  %999 = vmatmul.bf16.gmra.mxu0 %v446
  %v1000 = vpop.f32.mrf.mxu0
  %v1001 = vadd.f32 %v952, %v1000
  %v1002 = vpop.f32.mrf.mxu0
  %v1003 = vadd.f32 %v954, %v1002
  %1004 = vmatmul.bf16.gmra.mxu0 %v454
  %v1005 = vpop.f32.mrf.mxu0
  %v1006 = vadd.f32 %v957, %v1005
  %v1007 = vpop.f32.mrf.mxu0
  %v1008 = vadd.f32 %v959, %v1007
  %1009 = vmatmul.bf16.gmra.mxu0 %v462
  %v1010 = vpop.f32.mrf.mxu0
  %v1011 = vadd.f32 %v962, %v1010
  %v1012 = vpop.f32.mrf.mxu0
  %v1013 = vadd.f32 %v964, %v1012
  %1014 = vdwg.mxu0
  %1015 = vmatpush.bf16.msra.mxu0 %v812
  %1016 = vmatpush.bf16.msra.mxu0 %v811
  %1017 = vmatpush.bf16.msra.mxu0 %v810
  %1018 = vmatpush.bf16.msra.mxu0 %v809
  %1019 = vmatpush.bf16.msra.mxu0 %v808
  %1020 = vmatpush.bf16.msra.mxu0 %v807
  %1021 = vmatpush.bf16.msra.mxu0 %v806
  %1022 = vmatpush.bf16.msra.mxu0 %v805
  %1023 = vmatmul.bf16.gmra.mxu0 %v407
  %v1024 = vpop.f32.mrf.mxu0
  %v1025 = vadd.f32 %v976, %v1024
  %v1026 = vpop.f32.mrf.mxu0
  %v1027 = vadd.f32 %v978, %v1026
  %1028 = vmatmul.bf16.gmra.mxu0 %v415
  %v1029 = vpop.f32.mrf.mxu0
  %v1030 = vadd.f32 %v981, %v1029
  %v1031 = vpop.f32.mrf.mxu0
  %v1032 = vadd.f32 %v983, %v1031
  %1033 = vmatmul.bf16.gmra.mxu0 %v423
  %v1034 = vpop.f32.mrf.mxu0
  %v1035 = vadd.f32 %v986, %v1034
  %v1036 = vpop.f32.mrf.mxu0
  %v1037 = vadd.f32 %v988, %v1036
  %1038 = vmatmul.bf16.gmra.mxu0 %v431
  %v1039 = vpop.f32.mrf.mxu0
  %v1040 = vadd.f32 %v991, %v1039
  %v1041 = vpop.f32.mrf.mxu0
  %v1042 = vadd.f32 %v993, %v1041
  %1043 = vmatmul.bf16.gmra.mxu0 %v439
  %v1044 = vpop.f32.mrf.mxu0
  %v1045 = vadd.f32 %v996, %v1044
  %v1046 = vpop.f32.mrf.mxu0
  %v1047 = vadd.f32 %v998, %v1046
  %1048 = vmatmul.bf16.gmra.mxu0 %v447
  %v1049 = vpop.f32.mrf.mxu0
  %v1050 = vadd.f32 %v1001, %v1049
  %v1051 = vpop.f32.mrf.mxu0
  %v1052 = vadd.f32 %v1003, %v1051
  %1053 = vmatmul.bf16.gmra.mxu0 %v455
  %v1054 = vpop.f32.mrf.mxu0
  %v1055 = vadd.f32 %v1006, %v1054
  %v1056 = vpop.f32.mrf.mxu0
  %v1057 = vadd.f32 %v1008, %v1056
  %1058 = vmatmul.bf16.gmra.mxu0 %v463
  %v1059 = vpop.f32.mrf.mxu0
  %v1060 = vadd.f32 %v1011, %v1059
  %v1061 = vpop.f32.mrf.mxu0
  %v1062 = vadd.f32 %v1013, %v1061
  %1063 = vdwg.mxu0
  %1064 = vmatpush.bf16.msra.mxu0 %v820
  %1065 = vmatpush.bf16.msra.mxu0 %v819
  %1066 = vmatpush.bf16.msra.mxu0 %v818
  %1067 = vmatpush.bf16.msra.mxu0 %v817
  %1068 = vmatpush.bf16.msra.mxu0 %v816
  %1069 = vmatpush.bf16.msra.mxu0 %v815
  %1070 = vmatpush.bf16.msra.mxu0 %v814
  %1071 = vmatpush.bf16.msra.mxu0 %v813
  %1072 = vmatmul.bf16.gmra.mxu0 %v408
  %v1073 = vpop.f32.mrf.mxu0
  %v1074 = vadd.f32 %v1025, %v1073
  %v1075 = vpop.f32.mrf.mxu0
  %v1076 = vadd.f32 %v1027, %v1075
  %1077 = vmatmul.bf16.gmra.mxu0 %v416
  %v1078 = vpop.f32.mrf.mxu0
  %v1079 = vadd.f32 %v1030, %v1078
  %v1080 = vpop.f32.mrf.mxu0
  %v1081 = vadd.f32 %v1032, %v1080
  %1082 = vmatmul.bf16.gmra.mxu0 %v424
  %v1083 = vpop.f32.mrf.mxu0
  %v1084 = vadd.f32 %v1035, %v1083
  %v1085 = vpop.f32.mrf.mxu0
  %v1086 = vadd.f32 %v1037, %v1085
  %1087 = vmatmul.bf16.gmra.mxu0 %v432
  %v1088 = vpop.f32.mrf.mxu0
  %v1089 = vadd.f32 %v1040, %v1088
  %v1090 = vpop.f32.mrf.mxu0
  %v1091 = vadd.f32 %v1042, %v1090
  %1092 = vmatmul.bf16.gmra.mxu0 %v440
  %v1093 = vpop.f32.mrf.mxu0
  %v1094 = vadd.f32 %v1045, %v1093
  %v1095 = vpop.f32.mrf.mxu0
  %v1096 = vadd.f32 %v1047, %v1095
  %1097 = vmatmul.bf16.gmra.mxu0 %v448
  %v1098 = vpop.f32.mrf.mxu0
  %v1099 = vadd.f32 %v1050, %v1098
  %v1100 = vpop.f32.mrf.mxu0
  %v1101 = vadd.f32 %v1052, %v1100
  %1102 = vmatmul.bf16.gmra.mxu0 %v456
  %v1103 = vpop.f32.mrf.mxu0
  %v1104 = vadd.f32 %v1055, %v1103
  %v1105 = vpop.f32.mrf.mxu0
  %v1106 = vadd.f32 %v1057, %v1105
  %1107 = vmatmul.bf16.gmra.mxu0 %v464
  %v1108 = vpop.f32.mrf.mxu0
  %v1109 = vadd.f32 %v1060, %v1108
  %v1110 = vpop.f32.mrf.mxu0
  %v1111 = vadd.f32 %v1062, %v1110
  %1112 = vdwg.mxu0
  %1113 = vmatpush.bf16.msra.mxu0 %v828
  %1114 = vmatpush.bf16.msra.mxu0 %v827
  %1115 = vmatpush.bf16.msra.mxu0 %v826
  %1116 = vmatpush.bf16.msra.mxu0 %v825
  %1117 = vmatpush.bf16.msra.mxu0 %v824
  %1118 = vmatpush.bf16.msra.mxu0 %v823
  %1119 = vmatpush.bf16.msra.mxu0 %v822
  %1120 = vmatpush.bf16.msra.mxu0 %v821
  %1121 = vmatmul.bf16.gmra.mxu0 %v409
  %v1122 = vpop.f32.mrf.mxu0
  %v1123 = vadd.f32 %v1074, %v1122
  %v1124 = vpop.f32.mrf.mxu0
  %v1125 = vadd.f32 %v1076, %v1124
  %1126 = vmatmul.bf16.gmra.mxu0 %v417
  %v1127 = vpop.f32.mrf.mxu0
  %v1128 = vadd.f32 %v1079, %v1127
  %v1129 = vpop.f32.mrf.mxu0
  %v1130 = vadd.f32 %v1081, %v1129
  %1131 = vmatmul.bf16.gmra.mxu0 %v425
  %v1132 = vpop.f32.mrf.mxu0
  %v1133 = vadd.f32 %v1084, %v1132
  %v1134 = vpop.f32.mrf.mxu0
  %v1135 = vadd.f32 %v1086, %v1134
  %1136 = vmatmul.bf16.gmra.mxu0 %v433
  %v1137 = vpop.f32.mrf.mxu0
  %v1138 = vadd.f32 %v1089, %v1137
  %v1139 = vpop.f32.mrf.mxu0
  %v1140 = vadd.f32 %v1091, %v1139
  %1141 = vmatmul.bf16.gmra.mxu0 %v441
  %v1142 = vpop.f32.mrf.mxu0
  %v1143 = vadd.f32 %v1094, %v1142
  %v1144 = vpop.f32.mrf.mxu0
  %v1145 = vadd.f32 %v1096, %v1144
  %1146 = vmatmul.bf16.gmra.mxu0 %v449
  %v1147 = vpop.f32.mrf.mxu0
  %v1148 = vadd.f32 %v1099, %v1147
  %v1149 = vpop.f32.mrf.mxu0
  %v1150 = vadd.f32 %v1101, %v1149
  %1151 = vmatmul.bf16.gmra.mxu0 %v457
  %v1152 = vpop.f32.mrf.mxu0
  %v1153 = vadd.f32 %v1104, %v1152
  %v1154 = vpop.f32.mrf.mxu0
  %v1155 = vadd.f32 %v1106, %v1154
  %1156 = vmatmul.bf16.gmra.mxu0 %v465
  %v1157 = vpop.f32.mrf.mxu0
  %v1158 = vadd.f32 %v1109, %v1157
  %v1159 = vpop.f32.mrf.mxu0
  %v1160 = vadd.f32 %v1111, %v1159
  %1161 = vdwg.mxu0
  %1162 = vmatpush.bf16.msra.mxu0 %v836
  %1163 = vmatpush.bf16.msra.mxu0 %v835
  %1164 = vmatpush.bf16.msra.mxu0 %v834
  %1165 = vmatpush.bf16.msra.mxu0 %v833
  %1166 = vmatpush.bf16.msra.mxu0 %v832
  %1167 = vmatpush.bf16.msra.mxu0 %v831
  %1168 = vmatpush.bf16.msra.mxu0 %v830
  %1169 = vmatpush.bf16.msra.mxu0 %v829
  %1170 = vmatmul.bf16.gmra.mxu0 %v410
  %v1171 = vpop.f32.mrf.mxu0
  %v1172 = vadd.f32 %v1123, %v1171
  %v1173 = vpop.f32.mrf.mxu0
  %v1174 = vadd.f32 %v1125, %v1173
  %1175 = vmatmul.bf16.gmra.mxu0 %v418
  %v1176 = vpop.f32.mrf.mxu0
  %v1177 = vadd.f32 %v1128, %v1176
  %v1178 = vpop.f32.mrf.mxu0
  %v1179 = vadd.f32 %v1130, %v1178
  %1180 = vmatmul.bf16.gmra.mxu0 %v426
  %v1181 = vpop.f32.mrf.mxu0
  %v1182 = vadd.f32 %v1133, %v1181
  %v1183 = vpop.f32.mrf.mxu0
  %v1184 = vadd.f32 %v1135, %v1183
  %1185 = vmatmul.bf16.gmra.mxu0 %v434
  %v1186 = vpop.f32.mrf.mxu0
  %v1187 = vadd.f32 %v1138, %v1186
  %v1188 = vpop.f32.mrf.mxu0
  %v1189 = vadd.f32 %v1140, %v1188
  %1190 = vmatmul.bf16.gmra.mxu0 %v442
  %v1191 = vpop.f32.mrf.mxu0
  %v1192 = vadd.f32 %v1143, %v1191
  %v1193 = vpop.f32.mrf.mxu0
  %v1194 = vadd.f32 %v1145, %v1193
  %1195 = vmatmul.bf16.gmra.mxu0 %v450
  %v1196 = vpop.f32.mrf.mxu0
  %v1197 = vadd.f32 %v1148, %v1196
  %v1198 = vpop.f32.mrf.mxu0
  %v1199 = vadd.f32 %v1150, %v1198
  %1200 = vmatmul.bf16.gmra.mxu0 %v458
  %v1201 = vpop.f32.mrf.mxu0
  %v1202 = vadd.f32 %v1153, %v1201
  %v1203 = vpop.f32.mrf.mxu0
  %v1204 = vadd.f32 %v1155, %v1203
  %1205 = vmatmul.bf16.gmra.mxu0 %v466
  %v1206 = vpop.f32.mrf.mxu0
  %v1207 = vadd.f32 %v1158, %v1206
  %v1208 = vpop.f32.mrf.mxu0
  %v1209 = vadd.f32 %v1160, %v1208
  %1210 = vdwg.mxu0
  %1211 = vmatpush.bf16.msra.mxu0 %v844
  %1212 = vmatpush.bf16.msra.mxu0 %v843
  %1213 = vmatpush.bf16.msra.mxu0 %v842
  %1214 = vmatpush.bf16.msra.mxu0 %v841
  %1215 = vmatpush.bf16.msra.mxu0 %v840
  %1216 = vmatpush.bf16.msra.mxu0 %v839
  %1217 = vmatpush.bf16.msra.mxu0 %v838
  %1218 = vmatpush.bf16.msra.mxu0 %v837
  %1219 = vmatmul.bf16.gmra.mxu0 %v411
  %v1220 = vpop.f32.mrf.mxu0
  %v1221 = vadd.f32 %v1172, %v1220
  %v1222 = vpop.f32.mrf.mxu0
  %v1223 = vadd.f32 %v1174, %v1222
  %1224 = vmatmul.bf16.gmra.mxu0 %v419
  %v1225 = vpop.f32.mrf.mxu0
  %v1226 = vadd.f32 %v1177, %v1225
  %v1227 = vpop.f32.mrf.mxu0
  %v1228 = vadd.f32 %v1179, %v1227
  %1229 = vmatmul.bf16.gmra.mxu0 %v427
  %v1230 = vpop.f32.mrf.mxu0
  %v1231 = vadd.f32 %v1182, %v1230
  %v1232 = vpop.f32.mrf.mxu0
  %v1233 = vadd.f32 %v1184, %v1232
  %1234 = vmatmul.bf16.gmra.mxu0 %v435
  %v1235 = vpop.f32.mrf.mxu0
  %v1236 = vadd.f32 %v1187, %v1235
  %v1237 = vpop.f32.mrf.mxu0
  %v1238 = vadd.f32 %v1189, %v1237
  %1239 = vmatmul.bf16.gmra.mxu0 %v443
  %v1240 = vpop.f32.mrf.mxu0
  %v1241 = vadd.f32 %v1192, %v1240
  %v1242 = vpop.f32.mrf.mxu0
  %v1243 = vadd.f32 %v1194, %v1242
  %1244 = vmatmul.bf16.gmra.mxu0 %v451
  %v1245 = vpop.f32.mrf.mxu0
  %v1246 = vadd.f32 %v1197, %v1245
  %v1247 = vpop.f32.mrf.mxu0
  %v1248 = vadd.f32 %v1199, %v1247
  %1249 = vmatmul.bf16.gmra.mxu0 %v459
  %v1250 = vpop.f32.mrf.mxu0
  %v1251 = vadd.f32 %v1202, %v1250
  %v1252 = vpop.f32.mrf.mxu0
  %v1253 = vadd.f32 %v1204, %v1252
  %1254 = vmatmul.bf16.gmra.mxu0 %v467
  %v1255 = vpop.f32.mrf.mxu0
  %v1256 = vadd.f32 %v1207, %v1255
  %v1257 = vpop.f32.mrf.mxu0
  %v1258 = vadd.f32 %v1209, %v1257
  %1259 = vdwg.mxu0
  %1260 = vmatpush.bf16.msra.mxu0 %v852
  %1261 = vmatpush.bf16.msra.mxu0 %v851
  %1262 = vmatpush.bf16.msra.mxu0 %v850
  %1263 = vmatpush.bf16.msra.mxu0 %v849
  %1264 = vmatpush.bf16.msra.mxu0 %v848
  %1265 = vmatpush.bf16.msra.mxu0 %v847
  %1266 = vmatpush.bf16.msra.mxu0 %v846
  %1267 = vmatpush.bf16.msra.mxu0 %v845
  %1268 = vmatmul.bf16.gmra.mxu0 %v412
  %v1269 = vpop.f32.mrf.mxu0
  %v1270 = vadd.f32 %v1221, %v1269
  %v1271 = vpop.f32.mrf.mxu0
  %v1272 = vadd.f32 %v1223, %v1271
  %1273 = vmatmul.bf16.gmra.mxu0 %v420
  %v1274 = vpop.f32.mrf.mxu0
  %v1275 = vadd.f32 %v1226, %v1274
  %v1276 = vpop.f32.mrf.mxu0
  %v1277 = vadd.f32 %v1228, %v1276
  %1278 = vmatmul.bf16.gmra.mxu0 %v428
  %v1279 = vpop.f32.mrf.mxu0
  %v1280 = vadd.f32 %v1231, %v1279
  %v1281 = vpop.f32.mrf.mxu0
  %v1282 = vadd.f32 %v1233, %v1281
  %1283 = vmatmul.bf16.gmra.mxu0 %v436
  %v1284 = vpop.f32.mrf.mxu0
  %v1285 = vadd.f32 %v1236, %v1284
  %v1286 = vpop.f32.mrf.mxu0
  %v1287 = vadd.f32 %v1238, %v1286
  %1288 = vmatmul.bf16.gmra.mxu0 %v444
  %v1289 = vpop.f32.mrf.mxu0
  %v1290 = vadd.f32 %v1241, %v1289
  %v1291 = vpop.f32.mrf.mxu0
  %v1292 = vadd.f32 %v1243, %v1291
  %1293 = vmatmul.bf16.gmra.mxu0 %v452
  %v1294 = vpop.f32.mrf.mxu0
  %v1295 = vadd.f32 %v1246, %v1294
  %v1296 = vpop.f32.mrf.mxu0
  %v1297 = vadd.f32 %v1248, %v1296
  %1298 = vmatmul.bf16.gmra.mxu0 %v460
  %v1299 = vpop.f32.mrf.mxu0
  %v1300 = vadd.f32 %v1251, %v1299
  %v1301 = vpop.f32.mrf.mxu0
  %v1302 = vadd.f32 %v1253, %v1301
  %1303 = vmatmul.bf16.gmra.mxu0 %v468
  %v1304 = vpop.f32.mrf.mxu0
  %v1305 = vadd.f32 %v1256, %v1304
  %v1306 = vpop.f32.mrf.mxu0
  %v1307 = vadd.f32 %v1258, %v1306
  %1308 = vdwg.mxu0
  %vm1309 = vcmp.ge.f32.partialorder %v1270, 0.0
  %vm1310 = vcmp.ge.f32.partialorder %v1272, 0.0
  %vm1311 = vcmp.ge.f32.partialorder %v1275, 0.0
  %vm1312 = vcmp.ge.f32.partialorder %v1277, 0.0
  %vm1313 = vcmp.ge.f32.partialorder %v1280, 0.0
  %vm1314 = vcmp.ge.f32.partialorder %v1282, 0.0
  %vm1315 = vcmp.ge.f32.partialorder %v1285, 0.0
  %vm1316 = vcmp.ge.f32.partialorder %v1287, 0.0
  %vm1317 = vcmp.ge.f32.partialorder %v1290, 0.0
  %vm1318 = vcmp.ge.f32.partialorder %v1292, 0.0
  %vm1319 = vcmp.ge.f32.partialorder %v1295, 0.0
  %vm1320 = vcmp.ge.f32.partialorder %v1297, 0.0
  %vm1321 = vcmp.ge.f32.partialorder %v1300, 0.0
  %vm1322 = vcmp.ge.f32.partialorder %v1302, 0.0
  %vm1323 = vcmp.ge.f32.partialorder %v1305, 0.0
  %vm1324 = vcmp.ge.f32.partialorder %v1307, 0.0
  %v1325 = vmul.f32 %v1270, 0.1
  %v1326 = vmul.f32 %v1272, 0.1
  %v1327 = vmul.f32 %v1275, 0.1
  %v1328 = vmul.f32 %v1277, 0.1
  %v1329 = vmul.f32 %v1280, 0.1
  %v1330 = vmul.f32 %v1282, 0.1
  %v1331 = vmul.f32 %v1285, 0.1
  %v1332 = vmul.f32 %v1287, 0.1
  %v1333 = vmul.f32 %v1290, 0.1
  %v1334 = vmul.f32 %v1292, 0.1
  %v1335 = vmul.f32 %v1295, 0.1
  %v1336 = vmul.f32 %v1297, 0.1
  %v1337 = vmul.f32 %v1300, 0.1
  %v1338 = vmul.f32 %v1302, 0.1
  %v1339 = vmul.f32 %v1305, 0.1
  %v1340 = vmul.f32 %v1307, 0.1
  %v1341 = vsel %vm1309, %v1270, %v1325
  %v1342 = vsel %vm1310, %v1272, %v1326
  %v1343 = vsel %vm1311, %v1275, %v1327
  %v1344 = vsel %vm1312, %v1277, %v1328
  %v1345 = vsel %vm1313, %v1280, %v1329
  %v1346 = vsel %vm1314, %v1282, %v1330
  %v1347 = vsel %vm1315, %v1285, %v1331
  %v1348 = vsel %vm1316, %v1287, %v1332
  %v1349 = vsel %vm1317, %v1290, %v1333
  %v1350 = vsel %vm1318, %v1292, %v1334
  %v1351 = vsel %vm1319, %v1295, %v1335
  %v1352 = vsel %vm1320, %v1297, %v1336
  %v1353 = vsel %vm1321, %v1300, %v1337
  %v1354 = vsel %vm1322, %v1302, %v1338
  %v1355 = vsel %vm1323, %v1305, %v1339
  %v1356 = vsel %vm1324, %v1307, %v1340
  %v1357 = vld [vmem:[%s3] sm:$0xf]
  %v1358 = vld [vmem:[%s3 + $0x4] sm:$0xf]
  %v1359 = vld [vmem:[%s3 + $0x8] sm:$0xf]
  %v1360 = vld [vmem:[%s3 + $0xc] sm:$0xf]
  %v1361 = vld [vmem:[%s3 + $0x10] sm:$0xf]
  %v1362 = vld [vmem:[%s3 + $0x14] sm:$0xf]
  %v1363 = vld [vmem:[%s3 + $0x18] sm:$0xf]
  %v1364 = vld [vmem:[%s3 + $0x1c] sm:$0xf]
  %v1365 = vld [vmem:[%s3 + $0x20] sm:$0xf]
  %v1366 = vld [vmem:[%s3 + $0x24] sm:$0xf]
  %v1367 = vld [vmem:[%s3 + $0x28] sm:$0xf]
  %v1368 = vld [vmem:[%s3 + $0x2c] sm:$0xf]
  %v1369 = vld [vmem:[%s3 + $0x30] sm:$0xf]
  %v1370 = vld [vmem:[%s3 + $0x34] sm:$0xf]
  %v1371 = vld [vmem:[%s3 + $0x38] sm:$0xf]
  %v1372 = vld [vmem:[%s3 + $0x3c] sm:$0xf]
  %v1373 = vunpack.c.l.bf16 %v1357
  %v1374 = vunpack.c.l.bf16 %v1358
  %v1375 = vunpack.c.l.bf16 %v1359
  %v1376 = vunpack.c.l.bf16 %v1360
  %v1377 = vunpack.c.l.bf16 %v1361
  %v1378 = vunpack.c.l.bf16 %v1362
  %v1379 = vunpack.c.l.bf16 %v1363
  %v1380 = vunpack.c.l.bf16 %v1364
  %v1381 = vunpack.c.l.bf16 %v1365
  %v1382 = vunpack.c.l.bf16 %v1366
  %v1383 = vunpack.c.l.bf16 %v1367
  %v1384 = vunpack.c.l.bf16 %v1368
  %v1385 = vunpack.c.l.bf16 %v1369
  %v1386 = vunpack.c.l.bf16 %v1370
  %v1387 = vunpack.c.l.bf16 %v1371
  %v1388 = vunpack.c.l.bf16 %v1372
  %v1389 = vmul.f32 %v1373, 0.1
  %v1390 = vmul.f32 %v1374, 0.1
  %v1391 = vmul.f32 %v1375, 0.1
  %v1392 = vmul.f32 %v1376, 0.1
  %v1393 = vmul.f32 %v1377, 0.1
  %v1394 = vmul.f32 %v1378, 0.1
  %v1395 = vmul.f32 %v1379, 0.1
  %v1396 = vmul.f32 %v1380, 0.1
  %v1397 = vmul.f32 %v1381, 0.1
  %v1398 = vmul.f32 %v1382, 0.1
  %v1399 = vmul.f32 %v1383, 0.1
  %v1400 = vmul.f32 %v1384, 0.1
  %v1401 = vmul.f32 %v1385, 0.1
  %v1402 = vmul.f32 %v1386, 0.1
  %v1403 = vmul.f32 %v1387, 0.1
  %v1404 = vmul.f32 %v1388, 0.1
  %v1405 = vadd.f32 %v1341, %v1389
  %v1406 = vadd.f32 %v1342, %v1390
  %v1407 = vadd.f32 %v1343, %v1391
  %v1408 = vadd.f32 %v1344, %v1392
  %v1409 = vadd.f32 %v1345, %v1393
  %v1410 = vadd.f32 %v1346, %v1394
  %v1411 = vadd.f32 %v1347, %v1395
  %v1412 = vadd.f32 %v1348, %v1396
  %v1413 = vadd.f32 %v1349, %v1397
  %v1414 = vadd.f32 %v1350, %v1398
  %v1415 = vadd.f32 %v1351, %v1399
  %v1416 = vadd.f32 %v1352, %v1400
  %v1417 = vadd.f32 %v1353, %v1401
  %v1418 = vadd.f32 %v1354, %v1402
  %v1419 = vadd.f32 %v1355, %v1403
  %v1420 = vadd.f32 %v1356, %v1404
  %v1421 = vpack.c.bf16 %v1405, %v1405
  %v1422 = vpack.c.bf16 %v1406, %v1406
  %v1423 = vpack.c.bf16 %v1407, %v1407
  %v1424 = vpack.c.bf16 %v1408, %v1408
  %v1425 = vpack.c.bf16 %v1409, %v1409
  %v1426 = vpack.c.bf16 %v1410, %v1410
  %v1427 = vpack.c.bf16 %v1411, %v1411
  %v1428 = vpack.c.bf16 %v1412, %v1412
  %v1429 = vpack.c.bf16 %v1413, %v1413
  %v1430 = vpack.c.bf16 %v1414, %v1414
  %v1431 = vpack.c.bf16 %v1415, %v1415
  %v1432 = vpack.c.bf16 %v1416, %v1416
  %v1433 = vpack.c.bf16 %v1417, %v1417
  %v1434 = vpack.c.bf16 %v1418, %v1418
  %v1435 = vpack.c.bf16 %v1419, %v1419
  %v1436 = vpack.c.bf16 %v1420, %v1420
  %1437 = vst [vmem:[%s4] sm:$0xf] %v1421
  %1438 = vst [vmem:[%s4 + $0x4] sm:$0xf] %v1422
  %1439 = vst [vmem:[%s4 + $0x8] sm:$0xf] %v1423
  %1440 = vst [vmem:[%s4 + $0xc] sm:$0xf] %v1424
  %1441 = vst [vmem:[%s4 + $0x10] sm:$0xf] %v1425
  %1442 = vst [vmem:[%s4 + $0x14] sm:$0xf] %v1426
  %1443 = vst [vmem:[%s4 + $0x18] sm:$0xf] %v1427
  %1444 = vst [vmem:[%s4 + $0x1c] sm:$0xf] %v1428
  %1445 = vst [vmem:[%s4 + $0x20] sm:$0xf] %v1429
  %1446 = vst [vmem:[%s4 + $0x24] sm:$0xf] %v1430
  %1447 = vst [vmem:[%s4 + $0x28] sm:$0xf] %v1431
  %1448 = vst [vmem:[%s4 + $0x2c] sm:$0xf] %v1432
  %1449 = vst [vmem:[%s4 + $0x30] sm:$0xf] %v1433
  %1450 = vst [vmem:[%s4 + $0x34] sm:$0xf] %v1434
  %1451 = vst [vmem:[%s4 + $0x38] sm:$0xf] %v1435
  %1452 = vst [vmem:[%s4 + $0x3c] sm:$0xf] %v1436
  // Predicated region
  $region18: #{ed_regression_forward.32} parent=0 // pred_check
    _
  $region19: #{ed_regression_forward.32} parent=0 // pred_check_branch
    %1454 = sbr.rel (0) target = $region21
  $region20: #{ed_regression_forward.32} parent=0 // pred_region
    _
  $region21: #{ed_regression_forward.32} parent=0 // pred_fallthru
    _
  // Predicated region
  $region22: #{ed_regression_forward.32} parent=0 // pred_check
    _
  $region23: #{ed_regression_forward.32} parent=0 // pred_check_branch
    %1456 = sbr.rel (0) target = $region25
  $region24: #{ed_regression_forward.32} parent=0 // pred_region
    _
  $region25: #{ed_regression_forward.32} parent=0 // pred_fallthru
    _

// kernel: ed_regression_forward.36
$region0: #{ed_regression_forward.36}
  #allocation0 [shape = 'u32[]', space=smem, size = 0x4, offset = 0x4, fixed_abs, tag = 'smem constant byte address 0x4 - core index']
  #allocation1 [shape = 'u32[72,128]{1,0:T(1,128)}', space=vmem, size = 0x9000, scoped, tag = 'internal scratch']
  %s0 = inlined_call_operand.vmem [shape: bf16[512,1152], index: 0, kind: input, shape index: {}]
  %s1 = inlined_call_operand.vmem [shape: bf16[1152,128], index: 1, kind: input, shape index: {}]
  %s2 = inlined_call_operand.vmem [shape: f32[1,128], index: 2, kind: input, shape index: {}]
  %s3 = inlined_call_operand.vmem [shape: bf16[512,128], index: 3, kind: output, shape index: {}]
  %s4 = sld [smem:[#allocation0]]
  $region45: #{ed_regression_forward.36} parent=0
    _
  %s6 = ssub.s32 1, %s4
  %s7 = scalar_select 0, %s6, %s4
  loop: start=0, step=1, limit=4
  $region2: #{ed_regression_forward.36} parent=0 // loop_pre_header
    _
  $region3: #{ed_regression_forward.36} parent=0 // loop_header
    %s9 = sphi 0, %s13
    %p10 = scmp.ge.s32.totalorder %s9, 4
    %s19 = sphi 0, %s21
    %s22 = sphi 0, %s19
    %s23 = sphi 0, %s22
    %s39 = sphi 0, %s23
    %s43 = sphi 0, %s43
    %s45 = sphi 0, %s43
    %s46 = sphi 0, %s45
    %s60 = sphi 0, %s46
    %s64 = sphi 0, %s64
    %s66 = sphi 0, %s64
    %s67 = sphi 0, %s66
    %s81 = sphi 0, %s67
    %s87 = sphi 0, %s89
    %s90 = sphi 0, %s87
    %s91 = sphi 0, %s90
    %s107 = sphi 0, %s91
  $region4: #{ed_regression_forward.36} parent=0 // loop_header_branch
    %12 = sbr.rel (%p10) target = $region8
  $region5: #{ed_regression_forward.36} parent=0 // loop_body
    %s14 = ssub.s32 %s9, 1
    %s15 = ssub.s32 %s9, 2
    %s16 = sadd.s32 %s9, 1
    %s17 = ssub.s32 %s9, %s16
    %p18 = scmp.eq.s32.totalorder %s17, 0
    %s20 = sadd.s32 %s19, 1
    %s21 = scalar_select %p18, %s19, %s20
    %p24 = pneg %p18
    %p25 = scmp.eq.s32.totalorder %s9, 1
    %p26 = por %p24, %p25
    %p27 = scmp.ne.s32.totalorder %s19, %s22
    %p28 = scmp.eq.s32.totalorder %s9, 0
    %p29 = por %p27, %p28
    %p30 = scmp.ne.s32.totalorder %s19, %s22
    %p31 = scmp.eq.s32.totalorder %s14, 1
    %p32 = por %p30, %p31
    %p33 = scmp.ne.s32.totalorder %s22, %s23
    %p34 = scmp.eq.s32.totalorder %s14, 0
    %p35 = por %p33, %p34
    %p36 = scmp.ne.s32.totalorder %s22, %s23
    %p37 = scmp.eq.s32.totalorder %s15, 1
    %p38 = por %p36, %p37
    %p40 = scmp.ne.s32.totalorder %s23, %s39
    %p41 = scmp.eq.s32.totalorder %s15, 0
    %p42 = por %p40, %p41
    %s44 = sadd.s32 %s43, 1
    %p47 = scmp.eq.s32.totalorder %s9, 1
    %p48 = scmp.ne.s32.totalorder %s43, %s45
    %p49 = scmp.eq.s32.totalorder %s9, 0
    %p50 = por %p48, %p49
    %p51 = scmp.ne.s32.totalorder %s43, %s45
    %p52 = scmp.eq.s32.totalorder %s14, 1
    %p53 = por %p51, %p52
    %p54 = scmp.ne.s32.totalorder %s45, %s46
    %p55 = scmp.eq.s32.totalorder %s14, 0
    %p56 = por %p54, %p55
    %p57 = scmp.ne.s32.totalorder %s45, %s46
    %p58 = scmp.eq.s32.totalorder %s15, 1
    %p59 = por %p57, %p58
    %p61 = scmp.ne.s32.totalorder %s46, %s60
    %p62 = scmp.eq.s32.totalorder %s15, 0
    %p63 = por %p61, %p62
    %s65 = sadd.s32 %s64, 1
    %p68 = scmp.eq.s32.totalorder %s9, 1
    %p69 = scmp.ne.s32.totalorder %s64, %s66
    %p70 = scmp.eq.s32.totalorder %s9, 0
    %p71 = por %p69, %p70
    %p72 = scmp.ne.s32.totalorder %s64, %s66
    %p73 = scmp.eq.s32.totalorder %s14, 1
    %p74 = por %p72, %p73
    %p75 = scmp.ne.s32.totalorder %s66, %s67
    %p76 = scmp.eq.s32.totalorder %s14, 0
    %p77 = por %p75, %p76
    %p78 = scmp.ne.s32.totalorder %s66, %s67
    %p79 = scmp.eq.s32.totalorder %s15, 1
    %p80 = por %p78, %p79
    %p82 = scmp.ne.s32.totalorder %s67, %s81
    %p83 = scmp.eq.s32.totalorder %s15, 0
    %p84 = por %p82, %p83
    %s85 = ssub.s32 %s9, %s16
    %p86 = scmp.eq.s32.totalorder %s85, 0
    %s88 = sadd.s32 %s87, 1
    %s89 = scalar_select %p86, %s87, %s88
    %p92 = pneg %p86
    %p93 = scmp.eq.s32.totalorder %s9, 1
    %p94 = por %p92, %p93
    %p95 = scmp.ne.s32.totalorder %s87, %s90
    %p96 = scmp.eq.s32.totalorder %s9, 0
    %p97 = por %p95, %p96
    %p98 = scmp.ne.s32.totalorder %s87, %s90
    %p99 = scmp.eq.s32.totalorder %s14, 1
    %p100 = por %p98, %p99
    %p101 = scmp.ne.s32.totalorder %s90, %s91
    %p102 = scmp.eq.s32.totalorder %s14, 0
    %p103 = por %p101, %p102
    %p104 = scmp.ne.s32.totalorder %s90, %s91
    %p105 = scmp.eq.s32.totalorder %s15, 1
    %p106 = por %p104, %p105
    %p108 = scmp.ne.s32.totalorder %s91, %s107
    %p109 = scmp.eq.s32.totalorder %s15, 0
    %p110 = por %p108, %p109
    %p111 = scmp.le.s32.totalorder 1, %s9
    %p112 = scmp.lt.s32.totalorder %s9, 3
    %p113 = pnand %p111, %p112
    %p114 = pneg %p113
    // Predicated region
    $region9: #{ed_regression_forward.36} parent=5 // pred_check
      _
    $region10: #{ed_regression_forward.36} parent=5 // pred_check_branch
      %116 = sbr.rel (%p113) target = $region12
    $region11: #{ed_regression_forward.36} parent=5 // pred_region
      %s117 = ssub.s32 %s9, 1
      // Predicated region
      $region13: #{ed_regression_forward.36} parent=11 // pred_check
        %p118 = pneg %p56
      $region14: #{ed_regression_forward.36} parent=11 // pred_check_branch
        %120 = sbr.rel (%p118) target = $region16
      $region15: #{ed_regression_forward.36} parent=11 // pred_region
        _
      $region16: #{ed_regression_forward.36} parent=11 // pred_fallthru
        _
      // Predicated region
      $region17: #{ed_regression_forward.36} parent=11 // pred_check
        %p121 = pneg %p77
      $region18: #{ed_regression_forward.36} parent=11 // pred_check_branch
        %123 = sbr.rel (%p121) target = $region20
      $region19: #{ed_regression_forward.36} parent=11 // pred_region
        _
      $region20: #{ed_regression_forward.36} parent=11 // pred_fallthru
        _
    $region12: #{ed_regression_forward.36} parent=5 // pred_fallthru
      _
    %p124 = scmp.lt.s32.totalorder %s9, 2
    // Predicated region
    $region21: #{ed_regression_forward.36} parent=5 // pred_check
      %p125 = pneg %p124
    $region22: #{ed_regression_forward.36} parent=5 // pred_check_branch
      %127 = sbr.rel (%p125) target = $region24
    $region23: #{ed_regression_forward.36} parent=5 // pred_region
      // Predicated region
      $region25: #{ed_regression_forward.36} parent=23 // pred_check
        %p128 = pneg %p29
      $region26: #{ed_regression_forward.36} parent=23 // pred_check_branch
        %130 = sbr.rel (%p128) target = $region28
      $region27: #{ed_regression_forward.36} parent=23 // pred_region
        %s131 = smul.u32 32, %s9
        %p132 = scmp.lt.s32.totalorder %s131, 63
        %s133 = scalar_select %p132, %s131, 63
        %s134 = smul.addr %s133, 9
        %s135 = smul.addr %s134, 4
        %s136 = scalar_lea.vmem %s0, %s135
        %s137 = smul.u32 32, %s9
      $region28: #{ed_regression_forward.36} parent=23 // pred_fallthru
        _
    $region24: #{ed_regression_forward.36} parent=5 // pred_fallthru
      _
    %p138 = scmp.le.s32.totalorder 1, %s9
    %p139 = scmp.lt.s32.totalorder %s9, 3
    %p140 = pnand %p138, %p139
    %p141 = pneg %p140
    // Predicated region
    $region29: #{ed_regression_forward.36} parent=5 // pred_check
      _
    $region30: #{ed_regression_forward.36} parent=5 // pred_check_branch
      %143 = sbr.rel (%p140) target = $region32
    $region31: #{ed_regression_forward.36} parent=5 // pred_region
      %s144 = ssub.s32 %s9, 1
      %s145 = smul.u32 32, %s14
      %p146 = scmp.lt.s32.totalorder %s145, 63
      %s147 = scalar_select %p146, %s145, 63
      %s148 = smul.addr %s147, 9
      %s149 = smul.addr %s148, 4
      %s150 = scalar_lea.vmem %s0, %s149
      %p151 = pneg %p35
      %p152 = pneg %p32
      %p153 = pneg %p56
      %p154 = pneg %p53
      %p155 = pneg %p77
      %p156 = pneg %p74
      %p157 = pneg %p103
      %p158 = pneg %p100
      %s159 = smul.u32 32, %s14
      %p160 = scmp.lt.s32.totalorder %s159, 63
      %s161 = scalar_select %p160, %s159, 63
      %s162 = smul.addr %s161, 4
      %s163 = scalar_lea.vmem %s3, %s162
      %s164 = smul.u32 32, %s14
      %p165 = scmp.lt.s32.totalorder %s164, 63
      %s166 = scalar_select %p165, %s164, 63
      %s167 = smul.addr %s166, 9
      %s168 = smul.addr %s167, 4
      %s169 = scalar_lea.vmem %s0, %s168
      %s170 = smul.u32 32, %s14
      %s171 = smul.u32 32, %s14
      %p172 = scmp.lt.s32.totalorder %s171, 63
      %s173 = scalar_select %p172, %s171, 63
      %s174 = smul.addr %s173, 4
      %s175 = scalar_lea.vmem %s3, %s174
      %s176 = smul.u32 32, %s14
      %v177 = vld [vmem:[%s169] sm:$0xff]
      %v178 = vld [vmem:[%s169 + $0x8] sm:$0xff]
      %v179 = vld [vmem:[%s169 + $0x10] sm:$0xff]
      %v180 = vld [vmem:[%s169 + $0x18] sm:$0xff]
      %v181 = vld [vmem:[%s169 + $0x20] sm:$0xf]
      %v182 = vld [vmem:[%s169 + $0x24] sm:$0xff]
      %v183 = vld [vmem:[%s169 + $0x2c] sm:$0xff]
      %v184 = vld [vmem:[%s169 + $0x34] sm:$0xff]
      %v185 = vld [vmem:[%s169 + $0x3c] sm:$0xff]
      %v186 = vld [vmem:[%s169 + $0x44] sm:$0xf]
      %v187 = vld [vmem:[%s169 + $0x48] sm:$0xff]
      %v188 = vld [vmem:[%s169 + $0x50] sm:$0xff]
      %v189 = vld [vmem:[%s169 + $0x58] sm:$0xff]
      %v190 = vld [vmem:[%s169 + $0x60] sm:$0xff]
      %v191 = vld [vmem:[%s169 + $0x68] sm:$0xf]
      %v192 = vld [vmem:[%s169 + $0x6c] sm:$0xff]
      %v193 = vld [vmem:[%s169 + $0x74] sm:$0xff]
      %v194 = vld [vmem:[%s169 + $0x7c] sm:$0xff]
      %v195 = vld [vmem:[%s169 + $0x84] sm:$0xff]
      %v196 = vld [vmem:[%s169 + $0x8c] sm:$0xf]
      %v197 = vld [vmem:[%s169 + $0x90] sm:$0xff]
      %v198 = vld [vmem:[%s169 + $0x98] sm:$0xff]
      %v199 = vld [vmem:[%s169 + $0xa0] sm:$0xff]
      %v200 = vld [vmem:[%s169 + $0xa8] sm:$0xff]
      %v201 = vld [vmem:[%s169 + $0xb0] sm:$0xf]
      %v202 = vld [vmem:[%s169 + $0xb4] sm:$0xff]
      %v203 = vld [vmem:[%s169 + $0xbc] sm:$0xff]
      %v204 = vld [vmem:[%s169 + $0xc4] sm:$0xff]
      %v205 = vld [vmem:[%s169 + $0xcc] sm:$0xff]
      %v206 = vld [vmem:[%s169 + $0xd4] sm:$0xf]
      %v207 = vld [vmem:[%s169 + $0xd8] sm:$0xff]
      %v208 = vld [vmem:[%s169 + $0xe0] sm:$0xff]
      %v209 = vld [vmem:[%s169 + $0xe8] sm:$0xff]
      %v210 = vld [vmem:[%s169 + $0xf0] sm:$0xff]
      %v211 = vld [vmem:[%s169 + $0xf8] sm:$0xf]
      %v212 = vld [vmem:[%s169 + $0xfc] sm:$0xff]
      %v213 = vld [vmem:[%s169 + $0x104] sm:$0xff]
      %v214 = vld [vmem:[%s169 + $0x10c] sm:$0xff]
      %v215 = vld [vmem:[%s169 + $0x114] sm:$0xff]
      %v216 = vld [vmem:[%s169 + $0x11c] sm:$0xf]
      %v217 = vld [vmem:[%s169 + $0x120] sm:$0xff]
      %v218 = vld [vmem:[%s169 + $0x128] sm:$0xff]
      %v219 = vld [vmem:[%s169 + $0x130] sm:$0xff]
      %v220 = vld [vmem:[%s169 + $0x138] sm:$0xff]
      %v221 = vld [vmem:[%s169 + $0x140] sm:$0xf]
      %v222 = vld [vmem:[%s169 + $0x144] sm:$0xff]
      %v223 = vld [vmem:[%s169 + $0x14c] sm:$0xff]
      %v224 = vld [vmem:[%s169 + $0x154] sm:$0xff]
      %v225 = vld [vmem:[%s169 + $0x15c] sm:$0xff]
      %v226 = vld [vmem:[%s169 + $0x164] sm:$0xf]
      %v227 = vld [vmem:[%s169 + $0x168] sm:$0xff]
      %v228 = vld [vmem:[%s169 + $0x170] sm:$0xff]
      %v229 = vld [vmem:[%s169 + $0x178] sm:$0xff]
      %v230 = vld [vmem:[%s169 + $0x180] sm:$0xff]
      %v231 = vld [vmem:[%s169 + $0x188] sm:$0xf]
      %v232 = vld [vmem:[%s169 + $0x18c] sm:$0xff]
      %v233 = vld [vmem:[%s169 + $0x194] sm:$0xff]
      %v234 = vld [vmem:[%s169 + $0x19c] sm:$0xff]
      %v235 = vld [vmem:[%s169 + $0x1a4] sm:$0xff]
      %v236 = vld [vmem:[%s169 + $0x1ac] sm:$0xf]
      %v237 = vld [vmem:[%s169 + $0x1b0] sm:$0xff]
      %v238 = vld [vmem:[%s169 + $0x1b8] sm:$0xff]
      %v239 = vld [vmem:[%s169 + $0x1c0] sm:$0xff]
      %v240 = vld [vmem:[%s169 + $0x1c8] sm:$0xff]
      %v241 = vld [vmem:[%s169 + $0x1d0] sm:$0xf]
      %v242 = vld [vmem:[%s169 + $0x1d4] sm:$0xff]
      %v243 = vld [vmem:[%s169 + $0x1dc] sm:$0xff]
      %v244 = vld [vmem:[%s169 + $0x1e4] sm:$0xff]
      %v245 = vld [vmem:[%s169 + $0x1ec] sm:$0xff]
      %v246 = vld [vmem:[%s169 + $0x1f4] sm:$0xf]
      %v247 = vld [vmem:[%s169 + $0x1f8] sm:$0xff]
      %v248 = vld [vmem:[%s169 + $0x200] sm:$0xff]
      %v249 = vld [vmem:[%s169 + $0x208] sm:$0xff]
      %v250 = vld [vmem:[%s169 + $0x210] sm:$0xff]
      %v251 = vld [vmem:[%s169 + $0x218] sm:$0xf]
      %v252 = vld [vmem:[%s169 + $0x21c] sm:$0xff]
      %v253 = vld [vmem:[%s169 + $0x224] sm:$0xff]
      %v254 = vld [vmem:[%s169 + $0x22c] sm:$0xff]
      %v255 = vld [vmem:[%s169 + $0x234] sm:$0xff]
      %v256 = vld [vmem:[%s169 + $0x23c] sm:$0xf]
      %v257 = vld [vmem:[%s169 + $0x240] sm:$0xff]
      %v258 = vld [vmem:[%s169 + $0x248] sm:$0xff]
      %v259 = vld [vmem:[%s169 + $0x250] sm:$0xff]
      %v260 = vld [vmem:[%s169 + $0x258] sm:$0xff]
      %v261 = vld [vmem:[%s169 + $0x260] sm:$0xf]
      %v262 = vld [vmem:[%s169 + $0x264] sm:$0xff]
      %v263 = vld [vmem:[%s169 + $0x26c] sm:$0xff]
      %v264 = vld [vmem:[%s169 + $0x274] sm:$0xff]
      %v265 = vld [vmem:[%s169 + $0x27c] sm:$0xff]
      %v266 = vld [vmem:[%s169 + $0x284] sm:$0xf]
      %v267 = vld [vmem:[%s169 + $0x288] sm:$0xff]
      %v268 = vld [vmem:[%s169 + $0x290] sm:$0xff]
      %v269 = vld [vmem:[%s169 + $0x298] sm:$0xff]
      %v270 = vld [vmem:[%s169 + $0x2a0] sm:$0xff]
      %v271 = vld [vmem:[%s169 + $0x2a8] sm:$0xf]
      %v272 = vld [vmem:[%s169 + $0x2ac] sm:$0xff]
      %v273 = vld [vmem:[%s169 + $0x2b4] sm:$0xff]
      %v274 = vld [vmem:[%s169 + $0x2bc] sm:$0xff]
      %v275 = vld [vmem:[%s169 + $0x2c4] sm:$0xff]
      %v276 = vld [vmem:[%s169 + $0x2cc] sm:$0xf]
      %v277 = vld [vmem:[%s169 + $0x2d0] sm:$0xff]
      %v278 = vld [vmem:[%s169 + $0x2d8] sm:$0xff]
      %v279 = vld [vmem:[%s169 + $0x2e0] sm:$0xff]
      %v280 = vld [vmem:[%s169 + $0x2e8] sm:$0xff]
      %v281 = vld [vmem:[%s169 + $0x2f0] sm:$0xf]
      %v282 = vld [vmem:[%s169 + $0x2f4] sm:$0xff]
      %v283 = vld [vmem:[%s169 + $0x2fc] sm:$0xff]
      %v284 = vld [vmem:[%s169 + $0x304] sm:$0xff]
      %v285 = vld [vmem:[%s169 + $0x30c] sm:$0xff]
      %v286 = vld [vmem:[%s169 + $0x314] sm:$0xf]
      %v287 = vld [vmem:[%s169 + $0x318] sm:$0xff]
      %v288 = vld [vmem:[%s169 + $0x320] sm:$0xff]
      %v289 = vld [vmem:[%s169 + $0x328] sm:$0xff]
      %v290 = vld [vmem:[%s169 + $0x330] sm:$0xff]
      %v291 = vld [vmem:[%s169 + $0x338] sm:$0xf]
      %v292 = vld [vmem:[%s169 + $0x33c] sm:$0xff]
      %v293 = vld [vmem:[%s169 + $0x344] sm:$0xff]
      %v294 = vld [vmem:[%s169 + $0x34c] sm:$0xff]
      %v295 = vld [vmem:[%s169 + $0x354] sm:$0xff]
      %v296 = vld [vmem:[%s169 + $0x35c] sm:$0xf]
      %v297 = vld [vmem:[%s169 + $0x360] sm:$0xff]
      %v298 = vld [vmem:[%s169 + $0x368] sm:$0xff]
      %v299 = vld [vmem:[%s169 + $0x370] sm:$0xff]
      %v300 = vld [vmem:[%s169 + $0x378] sm:$0xff]
      %v301 = vld [vmem:[%s169 + $0x380] sm:$0xf]
      %v302 = vld [vmem:[%s169 + $0x384] sm:$0xff]
      %v303 = vld [vmem:[%s169 + $0x38c] sm:$0xff]
      %v304 = vld [vmem:[%s169 + $0x394] sm:$0xff]
      %v305 = vld [vmem:[%s169 + $0x39c] sm:$0xff]
      %v306 = vld [vmem:[%s169 + $0x3a4] sm:$0xf]
      %v307 = vld [vmem:[%s169 + $0x3a8] sm:$0xff]
      %v308 = vld [vmem:[%s169 + $0x3b0] sm:$0xff]
      %v309 = vld [vmem:[%s169 + $0x3b8] sm:$0xff]
      %v310 = vld [vmem:[%s169 + $0x3c0] sm:$0xff]
      %v311 = vld [vmem:[%s169 + $0x3c8] sm:$0xf]
      %v312 = vld [vmem:[%s169 + $0x3cc] sm:$0xff]
      %v313 = vld [vmem:[%s169 + $0x3d4] sm:$0xff]
      %v314 = vld [vmem:[%s169 + $0x3dc] sm:$0xff]
      %v315 = vld [vmem:[%s169 + $0x3e4] sm:$0xff]
      %v316 = vld [vmem:[%s169 + $0x3ec] sm:$0xf]
      %v317 = vld [vmem:[%s169 + $0x3f0] sm:$0xff]
      %v318 = vld [vmem:[%s169 + $0x3f8] sm:$0xff]
      %v319 = vld [vmem:[%s169 + $0x400] sm:$0xff]
      %v320 = vld [vmem:[%s169 + $0x408] sm:$0xff]
      %v321 = vld [vmem:[%s169 + $0x410] sm:$0xf]
      %v322 = vld [vmem:[%s169 + $0x414] sm:$0xff]
      %v323 = vld [vmem:[%s169 + $0x41c] sm:$0xff]
      %v324 = vld [vmem:[%s169 + $0x424] sm:$0xff]
      %v325 = vld [vmem:[%s169 + $0x42c] sm:$0xff]
      %v326 = vld [vmem:[%s169 + $0x434] sm:$0xf]
      %v327 = vld [vmem:[%s169 + $0x438] sm:$0xff]
      %v328 = vld [vmem:[%s169 + $0x440] sm:$0xff]
      %v329 = vld [vmem:[%s169 + $0x448] sm:$0xff]
      %v330 = vld [vmem:[%s169 + $0x450] sm:$0xff]
      %v331 = vld [vmem:[%s169 + $0x458] sm:$0xf]
      %v332 = vld [vmem:[%s169 + $0x45c] sm:$0xff]
      %v333 = vld [vmem:[%s169 + $0x464] sm:$0xff]
      %v334 = vld [vmem:[%s169 + $0x46c] sm:$0xff]
      %v335 = vld [vmem:[%s169 + $0x474] sm:$0xff]
      %v336 = vld [vmem:[%s169 + $0x47c] sm:$0xf]
      %v337 = vld [vmem:[%s1] sm:$0xf]
      %v338 = vld [vmem:[%s1 + $0x4] sm:$0xf]
      %v339 = vld [vmem:[%s1 + $0x8] sm:$0xf]
      %v340 = vld [vmem:[%s1 + $0xc] sm:$0xf]
      %v341 = vld [vmem:[%s1 + $0x10] sm:$0xf]
      %v342 = vld [vmem:[%s1 + $0x14] sm:$0xf]
      %v343 = vld [vmem:[%s1 + $0x18] sm:$0xf]
      %v344 = vld [vmem:[%s1 + $0x1c] sm:$0xf]
      %v345 = vld [vmem:[%s1 + $0x20] sm:$0xf]
      %v346 = vld [vmem:[%s1 + $0x24] sm:$0xf]
      %v347 = vld [vmem:[%s1 + $0x28] sm:$0xf]
      %v348 = vld [vmem:[%s1 + $0x2c] sm:$0xf]
      %v349 = vld [vmem:[%s1 + $0x30] sm:$0xf]
      %v350 = vld [vmem:[%s1 + $0x34] sm:$0xf]
      %v351 = vld [vmem:[%s1 + $0x38] sm:$0xf]
      %v352 = vld [vmem:[%s1 + $0x3c] sm:$0xf]
      %v353 = vld [vmem:[%s1 + $0x40] sm:$0xf]
      %v354 = vld [vmem:[%s1 + $0x44] sm:$0xf]
      %v355 = vld [vmem:[%s1 + $0x48] sm:$0xf]
      %v356 = vld [vmem:[%s1 + $0x4c] sm:$0xf]
      %v357 = vld [vmem:[%s1 + $0x50] sm:$0xf]
      %v358 = vld [vmem:[%s1 + $0x54] sm:$0xf]
      %v359 = vld [vmem:[%s1 + $0x58] sm:$0xf]
      %v360 = vld [vmem:[%s1 + $0x5c] sm:$0xf]
      %v361 = vld [vmem:[%s1 + $0x60] sm:$0xf]
      %v362 = vld [vmem:[%s1 + $0x64] sm:$0xf]
      %v363 = vld [vmem:[%s1 + $0x68] sm:$0xf]
      %v364 = vld [vmem:[%s1 + $0x6c] sm:$0xf]
      %v365 = vld [vmem:[%s1 + $0x70] sm:$0xf]
      %v366 = vld [vmem:[%s1 + $0x74] sm:$0xf]
      %v367 = vld [vmem:[%s1 + $0x78] sm:$0xf]
      %v368 = vld [vmem:[%s1 + $0x7c] sm:$0xf]
      %v369 = vld [vmem:[%s1 + $0x80] sm:$0xf]
      %v370 = vld [vmem:[%s1 + $0x84] sm:$0xf]
      %v371 = vld [vmem:[%s1 + $0x88] sm:$0xf]
      %v372 = vld [vmem:[%s1 + $0x8c] sm:$0xf]
      %v373 = vld [vmem:[%s1 + $0x90] sm:$0xf]
      %v374 = vld [vmem:[%s1 + $0x94] sm:$0xf]
      %v375 = vld [vmem:[%s1 + $0x98] sm:$0xf]
      %v376 = vld [vmem:[%s1 + $0x9c] sm:$0xf]
      %v377 = vld [vmem:[%s1 + $0xa0] sm:$0xf]
      %v378 = vld [vmem:[%s1 + $0xa4] sm:$0xf]
      %v379 = vld [vmem:[%s1 + $0xa8] sm:$0xf]
      %v380 = vld [vmem:[%s1 + $0xac] sm:$0xf]
      %v381 = vld [vmem:[%s1 + $0xb0] sm:$0xf]
      %v382 = vld [vmem:[%s1 + $0xb4] sm:$0xf]
      %v383 = vld [vmem:[%s1 + $0xb8] sm:$0xf]
      %v384 = vld [vmem:[%s1 + $0xbc] sm:$0xf]
      %v385 = vld [vmem:[%s1 + $0xc0] sm:$0xf]
      %v386 = vld [vmem:[%s1 + $0xc4] sm:$0xf]
      %v387 = vld [vmem:[%s1 + $0xc8] sm:$0xf]
      %v388 = vld [vmem:[%s1 + $0xcc] sm:$0xf]
      %v389 = vld [vmem:[%s1 + $0xd0] sm:$0xf]
      %v390 = vld [vmem:[%s1 + $0xd4] sm:$0xf]
      %v391 = vld [vmem:[%s1 + $0xd8] sm:$0xf]
      %v392 = vld [vmem:[%s1 + $0xdc] sm:$0xf]
      %v393 = vld [vmem:[%s1 + $0xe0] sm:$0xf]
      %v394 = vld [vmem:[%s1 + $0xe4] sm:$0xf]
      %v395 = vld [vmem:[%s1 + $0xe8] sm:$0xf]
      %v396 = vld [vmem:[%s1 + $0xec] sm:$0xf]
      %v397 = vld [vmem:[%s1 + $0xf0] sm:$0xf]
      %v398 = vld [vmem:[%s1 + $0xf4] sm:$0xf]
      %v399 = vld [vmem:[%s1 + $0xf8] sm:$0xf]
      %v400 = vld [vmem:[%s1 + $0xfc] sm:$0xf]
      %v401 = vld [vmem:[%s1 + $0x100] sm:$0xf]
      %v402 = vld [vmem:[%s1 + $0x104] sm:$0xf]
      %v403 = vld [vmem:[%s1 + $0x108] sm:$0xf]
      %v404 = vld [vmem:[%s1 + $0x10c] sm:$0xf]
      %v405 = vld [vmem:[%s1 + $0x110] sm:$0xf]
      %v406 = vld [vmem:[%s1 + $0x114] sm:$0xf]
      %v407 = vld [vmem:[%s1 + $0x118] sm:$0xf]
      %v408 = vld [vmem:[%s1 + $0x11c] sm:$0xf]
      %v409 = vld [vmem:[%s1 + $0x120] sm:$0xf]
      %v410 = vld [vmem:[%s1 + $0x124] sm:$0xf]
      %v411 = vld [vmem:[%s1 + $0x128] sm:$0xf]
      %v412 = vld [vmem:[%s1 + $0x12c] sm:$0xf]
      %v413 = vld [vmem:[%s1 + $0x130] sm:$0xf]
      %v414 = vld [vmem:[%s1 + $0x134] sm:$0xf]
      %v415 = vld [vmem:[%s1 + $0x138] sm:$0xf]
      %v416 = vld [vmem:[%s1 + $0x13c] sm:$0xf]
      %v417 = vld [vmem:[%s1 + $0x140] sm:$0xf]
      %v418 = vld [vmem:[%s1 + $0x144] sm:$0xf]
      %v419 = vld [vmem:[%s1 + $0x148] sm:$0xf]
      %v420 = vld [vmem:[%s1 + $0x14c] sm:$0xf]
      %v421 = vld [vmem:[%s1 + $0x150] sm:$0xf]
      %v422 = vld [vmem:[%s1 + $0x154] sm:$0xf]
      %v423 = vld [vmem:[%s1 + $0x158] sm:$0xf]
      %v424 = vld [vmem:[%s1 + $0x15c] sm:$0xf]
      %v425 = vld [vmem:[%s1 + $0x160] sm:$0xf]
      %v426 = vld [vmem:[%s1 + $0x164] sm:$0xf]
      %v427 = vld [vmem:[%s1 + $0x168] sm:$0xf]
      %v428 = vld [vmem:[%s1 + $0x16c] sm:$0xf]
      %v429 = vld [vmem:[%s1 + $0x170] sm:$0xf]
      %v430 = vld [vmem:[%s1 + $0x174] sm:$0xf]
      %v431 = vld [vmem:[%s1 + $0x178] sm:$0xf]
      %v432 = vld [vmem:[%s1 + $0x17c] sm:$0xf]
      %v433 = vld [vmem:[%s1 + $0x180] sm:$0xf]
      %v434 = vld [vmem:[%s1 + $0x184] sm:$0xf]
      %v435 = vld [vmem:[%s1 + $0x188] sm:$0xf]
      %v436 = vld [vmem:[%s1 + $0x18c] sm:$0xf]
      %v437 = vld [vmem:[%s1 + $0x190] sm:$0xf]
      %v438 = vld [vmem:[%s1 + $0x194] sm:$0xf]
      %v439 = vld [vmem:[%s1 + $0x198] sm:$0xf]
      %v440 = vld [vmem:[%s1 + $0x19c] sm:$0xf]
      %v441 = vld [vmem:[%s1 + $0x1a0] sm:$0xf]
      %v442 = vld [vmem:[%s1 + $0x1a4] sm:$0xf]
      %v443 = vld [vmem:[%s1 + $0x1a8] sm:$0xf]
      %v444 = vld [vmem:[%s1 + $0x1ac] sm:$0xf]
      %v445 = vld [vmem:[%s1 + $0x1b0] sm:$0xf]
      %v446 = vld [vmem:[%s1 + $0x1b4] sm:$0xf]
      %v447 = vld [vmem:[%s1 + $0x1b8] sm:$0xf]
      %v448 = vld [vmem:[%s1 + $0x1bc] sm:$0xf]
      %v449 = vld [vmem:[%s1 + $0x1c0] sm:$0xf]
      %v450 = vld [vmem:[%s1 + $0x1c4] sm:$0xf]
      %v451 = vld [vmem:[%s1 + $0x1c8] sm:$0xf]
      %v452 = vld [vmem:[%s1 + $0x1cc] sm:$0xf]
      %v453 = vld [vmem:[%s1 + $0x1d0] sm:$0xf]
      %v454 = vld [vmem:[%s1 + $0x1d4] sm:$0xf]
      %v455 = vld [vmem:[%s1 + $0x1d8] sm:$0xf]
      %v456 = vld [vmem:[%s1 + $0x1dc] sm:$0xf]
      %v457 = vld [vmem:[%s1 + $0x1e0] sm:$0xf]
      %v458 = vld [vmem:[%s1 + $0x1e4] sm:$0xf]
      %v459 = vld [vmem:[%s1 + $0x1e8] sm:$0xf]
      %v460 = vld [vmem:[%s1 + $0x1ec] sm:$0xf]
      %v461 = vld [vmem:[%s1 + $0x1f0] sm:$0xf]
      %v462 = vld [vmem:[%s1 + $0x1f4] sm:$0xf]
      %v463 = vld [vmem:[%s1 + $0x1f8] sm:$0xf]
      %v464 = vld [vmem:[%s1 + $0x1fc] sm:$0xf]
      %v465 = vld [vmem:[%s1 + $0x200] sm:$0xf]
      %v466 = vld [vmem:[%s1 + $0x204] sm:$0xf]
      %v467 = vld [vmem:[%s1 + $0x208] sm:$0xf]
      %v468 = vld [vmem:[%s1 + $0x20c] sm:$0xf]
      %v469 = vld [vmem:[%s1 + $0x210] sm:$0xf]
      %v470 = vld [vmem:[%s1 + $0x214] sm:$0xf]
      %v471 = vld [vmem:[%s1 + $0x218] sm:$0xf]
      %v472 = vld [vmem:[%s1 + $0x21c] sm:$0xf]
      %v473 = vld [vmem:[%s1 + $0x220] sm:$0xf]
      %v474 = vld [vmem:[%s1 + $0x224] sm:$0xf]
      %v475 = vld [vmem:[%s1 + $0x228] sm:$0xf]
      %v476 = vld [vmem:[%s1 + $0x22c] sm:$0xf]
      %v477 = vld [vmem:[%s1 + $0x230] sm:$0xf]
      %v478 = vld [vmem:[%s1 + $0x234] sm:$0xf]
      %v479 = vld [vmem:[%s1 + $0x238] sm:$0xf]
      %v480 = vld [vmem:[%s1 + $0x23c] sm:$0xf]
      %v481 = vld [vmem:[%s2] sm:$0x1]
      %v483 = vperm.slane %v481, 0
      %v645 = vunpack.c.l.b16 %v177
      %v646 = vunpack.c.h.b16 %v177
      %v647 = vunpack.c.l.b16 %v178
      %v648 = vunpack.c.h.b16 %v178
      %v649 = vunpack.c.l.b16 %v179
      %v650 = vunpack.c.h.b16 %v179
      %v651 = vunpack.c.l.b16 %v180
      %v652 = vunpack.c.h.b16 %v180
      %v653 = vunpack.c.l.b16 %v181
      %v654 = vunpack.c.l.b16 %v182
      %v655 = vunpack.c.h.b16 %v182
      %v656 = vunpack.c.l.b16 %v183
      %v657 = vunpack.c.h.b16 %v183
      %v658 = vunpack.c.l.b16 %v184
      %v659 = vunpack.c.h.b16 %v184
      %v660 = vunpack.c.l.b16 %v185
      %v661 = vunpack.c.h.b16 %v185
      %v662 = vunpack.c.l.b16 %v186
      %v663 = vunpack.c.l.b16 %v187
      %v664 = vunpack.c.h.b16 %v187
      %v665 = vunpack.c.l.b16 %v188
      %v666 = vunpack.c.h.b16 %v188
      %v667 = vunpack.c.l.b16 %v189
      %v668 = vunpack.c.h.b16 %v189
      %v669 = vunpack.c.l.b16 %v190
      %v670 = vunpack.c.h.b16 %v190
      %v671 = vunpack.c.l.b16 %v191
      %v672 = vunpack.c.l.b16 %v192
      %v673 = vunpack.c.h.b16 %v192
      %v674 = vunpack.c.l.b16 %v193
      %v675 = vunpack.c.h.b16 %v193
      %v676 = vunpack.c.l.b16 %v194
      %v677 = vunpack.c.h.b16 %v194
      %v678 = vunpack.c.l.b16 %v195
      %v679 = vunpack.c.h.b16 %v195
      %v680 = vunpack.c.l.b16 %v196
      %v681 = vunpack.c.l.b16 %v197
      %v682 = vunpack.c.h.b16 %v197
      %v683 = vunpack.c.l.b16 %v198
      %v684 = vunpack.c.h.b16 %v198
      %v685 = vunpack.c.l.b16 %v199
      %v686 = vunpack.c.h.b16 %v199
      %v687 = vunpack.c.l.b16 %v200
      %v688 = vunpack.c.h.b16 %v200
      %v689 = vunpack.c.l.b16 %v201
      %v690 = vunpack.c.l.b16 %v202
      %v691 = vunpack.c.h.b16 %v202
      %v692 = vunpack.c.l.b16 %v203
      %v693 = vunpack.c.h.b16 %v203
      %v694 = vunpack.c.l.b16 %v204
      %v695 = vunpack.c.h.b16 %v204
      %v696 = vunpack.c.l.b16 %v205
      %v697 = vunpack.c.h.b16 %v205
      %v698 = vunpack.c.l.b16 %v206
      %v699 = vunpack.c.l.b16 %v207
      %v700 = vunpack.c.h.b16 %v207
      %v701 = vunpack.c.l.b16 %v208
      %v702 = vunpack.c.h.b16 %v208
      %v703 = vunpack.c.l.b16 %v209
      %v704 = vunpack.c.h.b16 %v209
      %v705 = vunpack.c.l.b16 %v210
      %v706 = vunpack.c.h.b16 %v210
      %v707 = vunpack.c.l.b16 %v211
      %v708 = vunpack.c.l.b16 %v212
      %v709 = vunpack.c.h.b16 %v212
      %v710 = vunpack.c.l.b16 %v213
      %v711 = vunpack.c.h.b16 %v213
      %v712 = vunpack.c.l.b16 %v214
      %v713 = vunpack.c.h.b16 %v214
      %v714 = vunpack.c.l.b16 %v215
      %v715 = vunpack.c.h.b16 %v215
      %v716 = vunpack.c.l.b16 %v216
      %v717 = vunpack.c.l.b16 %v217
      %v718 = vunpack.c.h.b16 %v217
      %v719 = vunpack.c.l.b16 %v218
      %v720 = vunpack.c.h.b16 %v218
      %v721 = vunpack.c.l.b16 %v219
      %v722 = vunpack.c.h.b16 %v219
      %v723 = vunpack.c.l.b16 %v220
      %v724 = vunpack.c.h.b16 %v220
      %v725 = vunpack.c.l.b16 %v221
      %v726 = vunpack.c.l.b16 %v222
      %v727 = vunpack.c.h.b16 %v222
      %v728 = vunpack.c.l.b16 %v223
      %v729 = vunpack.c.h.b16 %v223
      %v730 = vunpack.c.l.b16 %v224
      %v731 = vunpack.c.h.b16 %v224
      %v732 = vunpack.c.l.b16 %v225
      %v733 = vunpack.c.h.b16 %v225
      %v734 = vunpack.c.l.b16 %v226
      %v735 = vunpack.c.l.b16 %v227
      %v736 = vunpack.c.h.b16 %v227
      %v737 = vunpack.c.l.b16 %v228
      %v738 = vunpack.c.h.b16 %v228
      %v739 = vunpack.c.l.b16 %v229
      %v740 = vunpack.c.h.b16 %v229
      %v741 = vunpack.c.l.b16 %v230
      %v742 = vunpack.c.h.b16 %v230
      %v743 = vunpack.c.l.b16 %v231
      %v744 = vunpack.c.l.b16 %v232
      %v745 = vunpack.c.h.b16 %v232
      %v746 = vunpack.c.l.b16 %v233
      %v747 = vunpack.c.h.b16 %v233
      %v748 = vunpack.c.l.b16 %v234
      %v749 = vunpack.c.h.b16 %v234
      %v750 = vunpack.c.l.b16 %v235
      %v751 = vunpack.c.h.b16 %v235
      %v752 = vunpack.c.l.b16 %v236
      %v753 = vunpack.c.l.b16 %v237
      %v754 = vunpack.c.h.b16 %v237
      %v755 = vunpack.c.l.b16 %v238
      %v756 = vunpack.c.h.b16 %v238
      %v757 = vunpack.c.l.b16 %v239
      %v758 = vunpack.c.h.b16 %v239
      %v759 = vunpack.c.l.b16 %v240
      %v760 = vunpack.c.h.b16 %v240
      %v761 = vunpack.c.l.b16 %v241
      %v762 = vunpack.c.l.b16 %v242
      %v763 = vunpack.c.h.b16 %v242
      %v764 = vunpack.c.l.b16 %v243
      %v765 = vunpack.c.h.b16 %v243
      %v766 = vunpack.c.l.b16 %v244
      %v767 = vunpack.c.h.b16 %v244
      %v768 = vunpack.c.l.b16 %v245
      %v769 = vunpack.c.h.b16 %v245
      %v770 = vunpack.c.l.b16 %v246
      %v771 = vunpack.c.l.b16 %v247
      %v772 = vunpack.c.h.b16 %v247
      %v773 = vunpack.c.l.b16 %v248
      %v774 = vunpack.c.h.b16 %v248
      %v775 = vunpack.c.l.b16 %v249
      %v776 = vunpack.c.h.b16 %v249
      %v777 = vunpack.c.l.b16 %v250
      %v778 = vunpack.c.h.b16 %v250
      %v779 = vunpack.c.l.b16 %v251
      %v780 = vunpack.c.l.b16 %v252
      %v781 = vunpack.c.h.b16 %v252
      %v782 = vunpack.c.l.b16 %v253
      %v783 = vunpack.c.h.b16 %v253
      %v784 = vunpack.c.l.b16 %v254
      %v785 = vunpack.c.h.b16 %v254
      %v786 = vunpack.c.l.b16 %v255
      %v787 = vunpack.c.h.b16 %v255
      %v788 = vunpack.c.l.b16 %v256
      %v789 = vunpack.c.l.b16 %v257
      %v790 = vunpack.c.h.b16 %v257
      %v791 = vunpack.c.l.b16 %v258
      %v792 = vunpack.c.h.b16 %v258
      %v793 = vunpack.c.l.b16 %v259
      %v794 = vunpack.c.h.b16 %v259
      %v795 = vunpack.c.l.b16 %v260
      %v796 = vunpack.c.h.b16 %v260
      %v797 = vunpack.c.l.b16 %v261
      %v798 = vunpack.c.l.b16 %v262
      %v799 = vunpack.c.h.b16 %v262
      %v800 = vunpack.c.l.b16 %v263
      %v801 = vunpack.c.h.b16 %v263
      %v802 = vunpack.c.l.b16 %v264
      %v803 = vunpack.c.h.b16 %v264
      %v804 = vunpack.c.l.b16 %v265
      %v805 = vunpack.c.h.b16 %v265
      %v806 = vunpack.c.l.b16 %v266
      %v807 = vunpack.c.l.b16 %v267
      %v808 = vunpack.c.h.b16 %v267
      %v809 = vunpack.c.l.b16 %v268
      %v810 = vunpack.c.h.b16 %v268
      %v811 = vunpack.c.l.b16 %v269
      %v812 = vunpack.c.h.b16 %v269
      %v813 = vunpack.c.l.b16 %v270
      %v814 = vunpack.c.h.b16 %v270
      %v815 = vunpack.c.l.b16 %v271
      %v816 = vunpack.c.l.b16 %v272
      %v817 = vunpack.c.h.b16 %v272
      %v818 = vunpack.c.l.b16 %v273
      %v819 = vunpack.c.h.b16 %v273
      %v820 = vunpack.c.l.b16 %v274
      %v821 = vunpack.c.h.b16 %v274
      %v822 = vunpack.c.l.b16 %v275
      %v823 = vunpack.c.h.b16 %v275
      %v824 = vunpack.c.l.b16 %v276
      %v825 = vunpack.c.l.b16 %v277
      %v826 = vunpack.c.h.b16 %v277
      %v827 = vunpack.c.l.b16 %v278
      %v828 = vunpack.c.h.b16 %v278
      %v829 = vunpack.c.l.b16 %v279
      %v830 = vunpack.c.h.b16 %v279
      %v831 = vunpack.c.l.b16 %v280
      %v832 = vunpack.c.h.b16 %v280
      %v833 = vunpack.c.l.b16 %v281
      %v834 = vunpack.c.l.b16 %v282
      %v835 = vunpack.c.h.b16 %v282
      %v836 = vunpack.c.l.b16 %v283
      %v837 = vunpack.c.h.b16 %v283
      %v838 = vunpack.c.l.b16 %v284
      %v839 = vunpack.c.h.b16 %v284
      %v840 = vunpack.c.l.b16 %v285
      %v841 = vunpack.c.h.b16 %v285
      %v842 = vunpack.c.l.b16 %v286
      %v843 = vunpack.c.l.b16 %v287
      %v844 = vunpack.c.h.b16 %v287
      %v845 = vunpack.c.l.b16 %v288
      %v846 = vunpack.c.h.b16 %v288
      %v847 = vunpack.c.l.b16 %v289
      %v848 = vunpack.c.h.b16 %v289
      %v849 = vunpack.c.l.b16 %v290
      %v850 = vunpack.c.h.b16 %v290
      %v851 = vunpack.c.l.b16 %v291
      %v852 = vunpack.c.l.b16 %v292
      %v853 = vunpack.c.h.b16 %v292
      %v854 = vunpack.c.l.b16 %v293
      %v855 = vunpack.c.h.b16 %v293
      %v856 = vunpack.c.l.b16 %v294
      %v857 = vunpack.c.h.b16 %v294
      %v858 = vunpack.c.l.b16 %v295
      %v859 = vunpack.c.h.b16 %v295
      %v860 = vunpack.c.l.b16 %v296
      %v861 = vunpack.c.l.b16 %v297
      %v862 = vunpack.c.h.b16 %v297
      %v863 = vunpack.c.l.b16 %v298
      %v864 = vunpack.c.h.b16 %v298
      %v865 = vunpack.c.l.b16 %v299
      %v866 = vunpack.c.h.b16 %v299
      %v867 = vunpack.c.l.b16 %v300
      %v868 = vunpack.c.h.b16 %v300
      %v869 = vunpack.c.l.b16 %v301
      %v870 = vunpack.c.l.b16 %v302
      %v871 = vunpack.c.h.b16 %v302
      %v872 = vunpack.c.l.b16 %v303
      %v873 = vunpack.c.h.b16 %v303
      %v874 = vunpack.c.l.b16 %v304
      %v875 = vunpack.c.h.b16 %v304
      %v876 = vunpack.c.l.b16 %v305
      %v877 = vunpack.c.h.b16 %v305
      %v878 = vunpack.c.l.b16 %v306
      %v879 = vunpack.c.l.b16 %v307
      %v880 = vunpack.c.h.b16 %v307
      %v881 = vunpack.c.l.b16 %v308
      %v882 = vunpack.c.h.b16 %v308
      %v883 = vunpack.c.l.b16 %v309
      %v884 = vunpack.c.h.b16 %v309
      %v885 = vunpack.c.l.b16 %v310
      %v886 = vunpack.c.h.b16 %v310
      %v887 = vunpack.c.l.b16 %v311
      %v888 = vunpack.c.l.b16 %v312
      %v889 = vunpack.c.h.b16 %v312
      %v890 = vunpack.c.l.b16 %v313
      %v891 = vunpack.c.h.b16 %v313
      %v892 = vunpack.c.l.b16 %v314
      %v893 = vunpack.c.h.b16 %v314
      %v894 = vunpack.c.l.b16 %v315
      %v895 = vunpack.c.h.b16 %v315
      %v896 = vunpack.c.l.b16 %v316
      %v897 = vunpack.c.l.b16 %v317
      %v898 = vunpack.c.h.b16 %v317
      %v899 = vunpack.c.l.b16 %v318
      %v900 = vunpack.c.h.b16 %v318
      %v901 = vunpack.c.l.b16 %v319
      %v902 = vunpack.c.h.b16 %v319
      %v903 = vunpack.c.l.b16 %v320
      %v904 = vunpack.c.h.b16 %v320
      %v905 = vunpack.c.l.b16 %v321
      %v906 = vunpack.c.l.b16 %v322
      %v907 = vunpack.c.h.b16 %v322
      %v908 = vunpack.c.l.b16 %v323
      %v909 = vunpack.c.h.b16 %v323
      %v910 = vunpack.c.l.b16 %v324
      %v911 = vunpack.c.h.b16 %v324
      %v912 = vunpack.c.l.b16 %v325
      %v913 = vunpack.c.h.b16 %v325
      %v914 = vunpack.c.l.b16 %v326
      %v915 = vunpack.c.l.b16 %v327
      %v916 = vunpack.c.h.b16 %v327
      %v917 = vunpack.c.l.b16 %v328
      %v918 = vunpack.c.h.b16 %v328
      %v919 = vunpack.c.l.b16 %v329
      %v920 = vunpack.c.h.b16 %v329
      %v921 = vunpack.c.l.b16 %v330
      %v922 = vunpack.c.h.b16 %v330
      %v923 = vunpack.c.l.b16 %v331
      %v924 = vunpack.c.l.b16 %v332
      %v925 = vunpack.c.h.b16 %v332
      %v926 = vunpack.c.l.b16 %v333
      %v927 = vunpack.c.h.b16 %v333
      %v928 = vunpack.c.l.b16 %v334
      %v929 = vunpack.c.h.b16 %v334
      %v930 = vunpack.c.l.b16 %v335
      %v931 = vunpack.c.h.b16 %v335
      %v932 = vunpack.c.l.b16 %v336
      %v933 = vpack.c.b16 %v654, %v645
      %v934 = vpack.c.b16 %v655, %v646
      %v935 = vpack.c.b16 %v656, %v647
      %v936 = vpack.c.b16 %v657, %v648
      %v937 = vpack.c.b16 %v658, %v649
      %v938 = vpack.c.b16 %v659, %v650
      %v939 = vpack.c.b16 %v660, %v651
      %v940 = vpack.c.b16 %v661, %v652
      %v941 = vpack.c.b16 %v662, %v653
      %v942 = vpack.c.b16 %v672, %v663
      %v943 = vpack.c.b16 %v673, %v664
      %v944 = vpack.c.b16 %v674, %v665
      %v945 = vpack.c.b16 %v675, %v666
      %v946 = vpack.c.b16 %v676, %v667
      %v947 = vpack.c.b16 %v677, %v668
      %v948 = vpack.c.b16 %v678, %v669
      %v949 = vpack.c.b16 %v679, %v670
      %v950 = vpack.c.b16 %v680, %v671
      %v951 = vpack.c.b16 %v690, %v681
      %v952 = vpack.c.b16 %v691, %v682
      %v953 = vpack.c.b16 %v692, %v683
      %v954 = vpack.c.b16 %v693, %v684
      %v955 = vpack.c.b16 %v694, %v685
      %v956 = vpack.c.b16 %v695, %v686
      %v957 = vpack.c.b16 %v696, %v687
      %v958 = vpack.c.b16 %v697, %v688
      %v959 = vpack.c.b16 %v698, %v689
      %v960 = vpack.c.b16 %v708, %v699
      %v961 = vpack.c.b16 %v709, %v700
      %v962 = vpack.c.b16 %v710, %v701
      %v963 = vpack.c.b16 %v711, %v702
      %v964 = vpack.c.b16 %v712, %v703
      %v965 = vpack.c.b16 %v713, %v704
      %v966 = vpack.c.b16 %v714, %v705
      %v967 = vpack.c.b16 %v715, %v706
      %v968 = vpack.c.b16 %v716, %v707
      %v969 = vpack.c.b16 %v726, %v717
      %v970 = vpack.c.b16 %v727, %v718
      %v971 = vpack.c.b16 %v728, %v719
      %v972 = vpack.c.b16 %v729, %v720
      %v973 = vpack.c.b16 %v730, %v721
      %v974 = vpack.c.b16 %v731, %v722
      %v975 = vpack.c.b16 %v732, %v723
      %v976 = vpack.c.b16 %v733, %v724
      %v977 = vpack.c.b16 %v734, %v725
      %v978 = vpack.c.b16 %v744, %v735
      %v979 = vpack.c.b16 %v745, %v736
      %v980 = vpack.c.b16 %v746, %v737
      %v981 = vpack.c.b16 %v747, %v738
      %v982 = vpack.c.b16 %v748, %v739
      %v983 = vpack.c.b16 %v749, %v740
      %v984 = vpack.c.b16 %v750, %v741
      %v985 = vpack.c.b16 %v751, %v742
      %v986 = vpack.c.b16 %v752, %v743
      %v987 = vpack.c.b16 %v762, %v753
      %v988 = vpack.c.b16 %v763, %v754
      %v989 = vpack.c.b16 %v764, %v755
      %v990 = vpack.c.b16 %v765, %v756
      %v991 = vpack.c.b16 %v766, %v757
      %v992 = vpack.c.b16 %v767, %v758
      %v993 = vpack.c.b16 %v768, %v759
      %v994 = vpack.c.b16 %v769, %v760
      %v995 = vpack.c.b16 %v770, %v761
      %v996 = vpack.c.b16 %v780, %v771
      %v997 = vpack.c.b16 %v781, %v772
      %v998 = vpack.c.b16 %v782, %v773
      %v999 = vpack.c.b16 %v783, %v774
      %v1000 = vpack.c.b16 %v784, %v775
      %v1001 = vpack.c.b16 %v785, %v776
      %v1002 = vpack.c.b16 %v786, %v777
      %v1003 = vpack.c.b16 %v787, %v778
      %v1004 = vpack.c.b16 %v788, %v779
      %v1005 = vpack.c.b16 %v798, %v789
      %v1006 = vpack.c.b16 %v799, %v790
      %v1007 = vpack.c.b16 %v800, %v791
      %v1008 = vpack.c.b16 %v801, %v792
      %v1009 = vpack.c.b16 %v802, %v793
      %v1010 = vpack.c.b16 %v803, %v794
      %v1011 = vpack.c.b16 %v804, %v795
      %v1012 = vpack.c.b16 %v805, %v796
      %v1013 = vpack.c.b16 %v806, %v797
      %v1014 = vpack.c.b16 %v816, %v807
      %v1015 = vpack.c.b16 %v817, %v808
      %v1016 = vpack.c.b16 %v818, %v809
      %v1017 = vpack.c.b16 %v819, %v810
      %v1018 = vpack.c.b16 %v820, %v811
      %v1019 = vpack.c.b16 %v821, %v812
      %v1020 = vpack.c.b16 %v822, %v813
      %v1021 = vpack.c.b16 %v823, %v814
      %v1022 = vpack.c.b16 %v824, %v815
      %v1023 = vpack.c.b16 %v834, %v825
      %v1024 = vpack.c.b16 %v835, %v826
      %v1025 = vpack.c.b16 %v836, %v827
      %v1026 = vpack.c.b16 %v837, %v828
      %v1027 = vpack.c.b16 %v838, %v829
      %v1028 = vpack.c.b16 %v839, %v830
      %v1029 = vpack.c.b16 %v840, %v831
      %v1030 = vpack.c.b16 %v841, %v832
      %v1031 = vpack.c.b16 %v842, %v833
      %v1032 = vpack.c.b16 %v852, %v843
      %v1033 = vpack.c.b16 %v853, %v844
      %v1034 = vpack.c.b16 %v854, %v845
      %v1035 = vpack.c.b16 %v855, %v846
      %v1036 = vpack.c.b16 %v856, %v847
      %v1037 = vpack.c.b16 %v857, %v848
      %v1038 = vpack.c.b16 %v858, %v849
      %v1039 = vpack.c.b16 %v859, %v850
      %v1040 = vpack.c.b16 %v860, %v851
      %v1041 = vpack.c.b16 %v870, %v861
      %v1042 = vpack.c.b16 %v871, %v862
      %v1043 = vpack.c.b16 %v872, %v863
      %v1044 = vpack.c.b16 %v873, %v864
      %v1045 = vpack.c.b16 %v874, %v865
      %v1046 = vpack.c.b16 %v875, %v866
      %v1047 = vpack.c.b16 %v876, %v867
      %v1048 = vpack.c.b16 %v877, %v868
      %v1049 = vpack.c.b16 %v878, %v869
      %v1050 = vpack.c.b16 %v888, %v879
      %v1051 = vpack.c.b16 %v889, %v880
      %v1052 = vpack.c.b16 %v890, %v881
      %v1053 = vpack.c.b16 %v891, %v882
      %v1054 = vpack.c.b16 %v892, %v883
      %v1055 = vpack.c.b16 %v893, %v884
      %v1056 = vpack.c.b16 %v894, %v885
      %v1057 = vpack.c.b16 %v895, %v886
      %v1058 = vpack.c.b16 %v896, %v887
      %v1059 = vpack.c.b16 %v906, %v897
      %v1060 = vpack.c.b16 %v907, %v898
      %v1061 = vpack.c.b16 %v908, %v899
      %v1062 = vpack.c.b16 %v909, %v900
      %v1063 = vpack.c.b16 %v910, %v901
      %v1064 = vpack.c.b16 %v911, %v902
      %v1065 = vpack.c.b16 %v912, %v903
      %v1066 = vpack.c.b16 %v913, %v904
      %v1067 = vpack.c.b16 %v914, %v905
      %v1068 = vpack.c.b16 %v924, %v915
      %v1069 = vpack.c.b16 %v925, %v916
      %v1070 = vpack.c.b16 %v926, %v917
      %v1071 = vpack.c.b16 %v927, %v918
      %v1072 = vpack.c.b16 %v928, %v919
      %v1073 = vpack.c.b16 %v929, %v920
      %v1074 = vpack.c.b16 %v930, %v921
      %v1075 = vpack.c.b16 %v931, %v922
      %v1076 = vpack.c.b16 %v932, %v923
      %v1365 = vunpack.c.l.b16 %v337
      %v1366 = vunpack.c.l.b16 %v338
      %v1367 = vunpack.c.l.b16 %v339
      %v1368 = vunpack.c.l.b16 %v340
      %v1369 = vunpack.c.l.b16 %v341
      %v1370 = vunpack.c.l.b16 %v342
      %v1371 = vunpack.c.l.b16 %v343
      %v1372 = vunpack.c.l.b16 %v344
      %v1373 = vunpack.c.l.b16 %v345
      %v1374 = vunpack.c.l.b16 %v346
      %v1375 = vunpack.c.l.b16 %v347
      %v1376 = vunpack.c.l.b16 %v348
      %v1377 = vunpack.c.l.b16 %v349
      %v1378 = vunpack.c.l.b16 %v350
      %v1379 = vunpack.c.l.b16 %v351
      %v1380 = vunpack.c.l.b16 %v352
      %v1381 = vunpack.c.l.b16 %v353
      %v1382 = vunpack.c.l.b16 %v354
      %v1383 = vunpack.c.l.b16 %v355
      %v1384 = vunpack.c.l.b16 %v356
      %v1385 = vunpack.c.l.b16 %v357
      %v1386 = vunpack.c.l.b16 %v358
      %v1387 = vunpack.c.l.b16 %v359
      %v1388 = vunpack.c.l.b16 %v360
      %v1389 = vunpack.c.l.b16 %v361
      %v1390 = vunpack.c.l.b16 %v362
      %v1391 = vunpack.c.l.b16 %v363
      %v1392 = vunpack.c.l.b16 %v364
      %v1393 = vunpack.c.l.b16 %v365
      %v1394 = vunpack.c.l.b16 %v366
      %v1395 = vunpack.c.l.b16 %v367
      %v1396 = vunpack.c.l.b16 %v368
      %v1397 = vunpack.c.l.b16 %v369
      %v1398 = vunpack.c.l.b16 %v370
      %v1399 = vunpack.c.l.b16 %v371
      %v1400 = vunpack.c.l.b16 %v372
      %v1401 = vunpack.c.l.b16 %v373
      %v1402 = vunpack.c.l.b16 %v374
      %v1403 = vunpack.c.l.b16 %v375
      %v1404 = vunpack.c.l.b16 %v376
      %v1405 = vunpack.c.l.b16 %v377
      %v1406 = vunpack.c.l.b16 %v378
      %v1407 = vunpack.c.l.b16 %v379
      %v1408 = vunpack.c.l.b16 %v380
      %v1409 = vunpack.c.l.b16 %v381
      %v1410 = vunpack.c.l.b16 %v382
      %v1411 = vunpack.c.l.b16 %v383
      %v1412 = vunpack.c.l.b16 %v384
      %v1413 = vunpack.c.l.b16 %v385
      %v1414 = vunpack.c.l.b16 %v386
      %v1415 = vunpack.c.l.b16 %v387
      %v1416 = vunpack.c.l.b16 %v388
      %v1417 = vunpack.c.l.b16 %v389
      %v1418 = vunpack.c.l.b16 %v390
      %v1419 = vunpack.c.l.b16 %v391
      %v1420 = vunpack.c.l.b16 %v392
      %v1421 = vunpack.c.l.b16 %v393
      %v1422 = vunpack.c.l.b16 %v394
      %v1423 = vunpack.c.l.b16 %v395
      %v1424 = vunpack.c.l.b16 %v396
      %v1425 = vunpack.c.l.b16 %v397
      %v1426 = vunpack.c.l.b16 %v398
      %v1427 = vunpack.c.l.b16 %v399
      %v1428 = vunpack.c.l.b16 %v400
      %v1429 = vunpack.c.l.b16 %v401
      %v1430 = vunpack.c.l.b16 %v402
      %v1431 = vunpack.c.l.b16 %v403
      %v1432 = vunpack.c.l.b16 %v404
      %v1433 = vunpack.c.l.b16 %v405
      %v1434 = vunpack.c.l.b16 %v406
      %v1435 = vunpack.c.l.b16 %v407
      %v1436 = vunpack.c.l.b16 %v408
      %v1437 = vunpack.c.l.b16 %v409
      %v1438 = vunpack.c.l.b16 %v410
      %v1439 = vunpack.c.l.b16 %v411
      %v1440 = vunpack.c.l.b16 %v412
      %v1441 = vunpack.c.l.b16 %v413
      %v1442 = vunpack.c.l.b16 %v414
      %v1443 = vunpack.c.l.b16 %v415
      %v1444 = vunpack.c.l.b16 %v416
      %v1445 = vunpack.c.l.b16 %v417
      %v1446 = vunpack.c.l.b16 %v418
      %v1447 = vunpack.c.l.b16 %v419
      %v1448 = vunpack.c.l.b16 %v420
      %v1449 = vunpack.c.l.b16 %v421
      %v1450 = vunpack.c.l.b16 %v422
      %v1451 = vunpack.c.l.b16 %v423
      %v1452 = vunpack.c.l.b16 %v424
      %v1453 = vunpack.c.l.b16 %v425
      %v1454 = vunpack.c.l.b16 %v426
      %v1455 = vunpack.c.l.b16 %v427
      %v1456 = vunpack.c.l.b16 %v428
      %v1457 = vunpack.c.l.b16 %v429
      %v1458 = vunpack.c.l.b16 %v430
      %v1459 = vunpack.c.l.b16 %v431
      %v1460 = vunpack.c.l.b16 %v432
      %v1461 = vunpack.c.l.b16 %v433
      %v1462 = vunpack.c.l.b16 %v434
      %v1463 = vunpack.c.l.b16 %v435
      %v1464 = vunpack.c.l.b16 %v436
      %v1465 = vunpack.c.l.b16 %v437
      %v1466 = vunpack.c.l.b16 %v438
      %v1467 = vunpack.c.l.b16 %v439
      %v1468 = vunpack.c.l.b16 %v440
      %v1469 = vunpack.c.l.b16 %v441
      %v1470 = vunpack.c.l.b16 %v442
      %v1471 = vunpack.c.l.b16 %v443
      %v1472 = vunpack.c.l.b16 %v444
      %v1473 = vunpack.c.l.b16 %v445
      %v1474 = vunpack.c.l.b16 %v446
      %v1475 = vunpack.c.l.b16 %v447
      %v1476 = vunpack.c.l.b16 %v448
      %v1477 = vunpack.c.l.b16 %v449
      %v1478 = vunpack.c.l.b16 %v450
      %v1479 = vunpack.c.l.b16 %v451
      %v1480 = vunpack.c.l.b16 %v452
      %v1481 = vunpack.c.l.b16 %v453
      %v1482 = vunpack.c.l.b16 %v454
      %v1483 = vunpack.c.l.b16 %v455
      %v1484 = vunpack.c.l.b16 %v456
      %v1485 = vunpack.c.l.b16 %v457
      %v1486 = vunpack.c.l.b16 %v458
      %v1487 = vunpack.c.l.b16 %v459
      %v1488 = vunpack.c.l.b16 %v460
      %v1489 = vunpack.c.l.b16 %v461
      %v1490 = vunpack.c.l.b16 %v462
      %v1491 = vunpack.c.l.b16 %v463
      %v1492 = vunpack.c.l.b16 %v464
      %v1493 = vunpack.c.l.b16 %v465
      %v1494 = vunpack.c.l.b16 %v466
      %v1495 = vunpack.c.l.b16 %v467
      %v1496 = vunpack.c.l.b16 %v468
      %v1497 = vunpack.c.l.b16 %v469
      %v1498 = vunpack.c.l.b16 %v470
      %v1499 = vunpack.c.l.b16 %v471
      %v1500 = vunpack.c.l.b16 %v472
      %v1501 = vunpack.c.l.b16 %v473
      %v1502 = vunpack.c.l.b16 %v474
      %v1503 = vunpack.c.l.b16 %v475
      %v1504 = vunpack.c.l.b16 %v476
      %v1505 = vunpack.c.l.b16 %v477
      %v1506 = vunpack.c.l.b16 %v478
      %v1507 = vunpack.c.l.b16 %v479
      %v1508 = vunpack.c.l.b16 %v480
      %v1509 = vpack.c.b16 %v1366, %v1365
      %v1510 = vpack.c.b16 %v1368, %v1367
      %v1511 = vpack.c.b16 %v1370, %v1369
      %v1512 = vpack.c.b16 %v1372, %v1371
      %v1513 = vpack.c.b16 %v1374, %v1373
      %v1514 = vpack.c.b16 %v1376, %v1375
      %v1515 = vpack.c.b16 %v1378, %v1377
      %v1516 = vpack.c.b16 %v1380, %v1379
      %v1517 = vpack.c.b16 %v1382, %v1381
      %v1518 = vpack.c.b16 %v1384, %v1383
      %v1519 = vpack.c.b16 %v1386, %v1385
      %v1520 = vpack.c.b16 %v1388, %v1387
      %v1521 = vpack.c.b16 %v1390, %v1389
      %v1522 = vpack.c.b16 %v1392, %v1391
      %v1523 = vpack.c.b16 %v1394, %v1393
      %v1524 = vpack.c.b16 %v1396, %v1395
      %v1525 = vpack.c.b16 %v1398, %v1397
      %v1526 = vpack.c.b16 %v1400, %v1399
      %v1527 = vpack.c.b16 %v1402, %v1401
      %v1528 = vpack.c.b16 %v1404, %v1403
      %v1529 = vpack.c.b16 %v1406, %v1405
      %v1530 = vpack.c.b16 %v1408, %v1407
      %v1531 = vpack.c.b16 %v1410, %v1409
      %v1532 = vpack.c.b16 %v1412, %v1411
      %v1533 = vpack.c.b16 %v1414, %v1413
      %v1534 = vpack.c.b16 %v1416, %v1415
      %v1535 = vpack.c.b16 %v1418, %v1417
      %v1536 = vpack.c.b16 %v1420, %v1419
      %v1537 = vpack.c.b16 %v1422, %v1421
      %v1538 = vpack.c.b16 %v1424, %v1423
      %v1539 = vpack.c.b16 %v1426, %v1425
      %v1540 = vpack.c.b16 %v1428, %v1427
      %v1541 = vpack.c.b16 %v1430, %v1429
      %v1542 = vpack.c.b16 %v1432, %v1431
      %v1543 = vpack.c.b16 %v1434, %v1433
      %v1544 = vpack.c.b16 %v1436, %v1435
      %v1545 = vpack.c.b16 %v1438, %v1437
      %v1546 = vpack.c.b16 %v1440, %v1439
      %v1547 = vpack.c.b16 %v1442, %v1441
      %v1548 = vpack.c.b16 %v1444, %v1443
      %v1549 = vpack.c.b16 %v1446, %v1445
      %v1550 = vpack.c.b16 %v1448, %v1447
      %v1551 = vpack.c.b16 %v1450, %v1449
      %v1552 = vpack.c.b16 %v1452, %v1451
      %v1553 = vpack.c.b16 %v1454, %v1453
      %v1554 = vpack.c.b16 %v1456, %v1455
      %v1555 = vpack.c.b16 %v1458, %v1457
      %v1556 = vpack.c.b16 %v1460, %v1459
      %v1557 = vpack.c.b16 %v1462, %v1461
      %v1558 = vpack.c.b16 %v1464, %v1463
      %v1559 = vpack.c.b16 %v1466, %v1465
      %v1560 = vpack.c.b16 %v1468, %v1467
      %v1561 = vpack.c.b16 %v1470, %v1469
      %v1562 = vpack.c.b16 %v1472, %v1471
      %v1563 = vpack.c.b16 %v1474, %v1473
      %v1564 = vpack.c.b16 %v1476, %v1475
      %v1565 = vpack.c.b16 %v1478, %v1477
      %v1566 = vpack.c.b16 %v1480, %v1479
      %v1567 = vpack.c.b16 %v1482, %v1481
      %v1568 = vpack.c.b16 %v1484, %v1483
      %v1569 = vpack.c.b16 %v1486, %v1485
      %v1570 = vpack.c.b16 %v1488, %v1487
      %v1571 = vpack.c.b16 %v1490, %v1489
      %v1572 = vpack.c.b16 %v1492, %v1491
      %v1573 = vpack.c.b16 %v1494, %v1493
      %v1574 = vpack.c.b16 %v1496, %v1495
      %v1575 = vpack.c.b16 %v1498, %v1497
      %v1576 = vpack.c.b16 %v1500, %v1499
      %v1577 = vpack.c.b16 %v1502, %v1501
      %v1578 = vpack.c.b16 %v1504, %v1503
      %v1579 = vpack.c.b16 %v1506, %v1505
      %v1580 = vpack.c.b16 %v1508, %v1507
      %1653 = vmatpush.bf16.msra.mxu0 %v1516
      %1654 = vmatpush.bf16.msra.mxu0 %v1515
      %1655 = vmatpush.bf16.msra.mxu0 %v1514
      %1656 = vmatpush.bf16.msra.mxu0 %v1513
      %1657 = vmatpush.bf16.msra.mxu0 %v1512
      %1658 = vmatpush.bf16.msra.mxu0 %v1511
      %1659 = vmatpush.bf16.msra.mxu0 %v1510
      %1660 = vmatpush.bf16.msra.mxu0 %v1509
      %1661 = vmatmul.bf16.gmra.mxu0 %v933
      %v1662 = vpop.f32.mrf.mxu0
      %v1663 = vadd.f32 %v483, %v1662
      %v1664 = vpop.f32.mrf.mxu0
      %v1665 = vadd.f32 %v483, %v1664
      %1666 = vmatmul.bf16.gmra.mxu0 %v942
      %v1667 = vpop.f32.mrf.mxu0
      %v1668 = vadd.f32 %v483, %v1667
      %v1669 = vpop.f32.mrf.mxu0
      %v1670 = vadd.f32 %v483, %v1669
      %1671 = vmatmul.bf16.gmra.mxu0 %v951
      %v1672 = vpop.f32.mrf.mxu0
      %v1673 = vadd.f32 %v483, %v1672
      %v1674 = vpop.f32.mrf.mxu0
      %v1675 = vadd.f32 %v483, %v1674
      %1676 = vmatmul.bf16.gmra.mxu0 %v960
      %v1677 = vpop.f32.mrf.mxu0
      %v1678 = vadd.f32 %v483, %v1677
      %v1679 = vpop.f32.mrf.mxu0
      %v1680 = vadd.f32 %v483, %v1679
      %1681 = vmatmul.bf16.gmra.mxu0 %v969
      %v1682 = vpop.f32.mrf.mxu0
      %v1683 = vadd.f32 %v483, %v1682
      %v1684 = vpop.f32.mrf.mxu0
      %v1685 = vadd.f32 %v483, %v1684
      %1686 = vmatmul.bf16.gmra.mxu0 %v978
      %v1687 = vpop.f32.mrf.mxu0
      %v1688 = vadd.f32 %v483, %v1687
      %v1689 = vpop.f32.mrf.mxu0
      %v1690 = vadd.f32 %v483, %v1689
      %1691 = vmatmul.bf16.gmra.mxu0 %v987
      %v1692 = vpop.f32.mrf.mxu0
      %v1693 = vadd.f32 %v483, %v1692
      %v1694 = vpop.f32.mrf.mxu0
      %v1695 = vadd.f32 %v483, %v1694
      %1696 = vmatmul.bf16.gmra.mxu0 %v996
      %v1697 = vpop.f32.mrf.mxu0
      %v1698 = vadd.f32 %v483, %v1697
      %v1699 = vpop.f32.mrf.mxu0
      %v1700 = vadd.f32 %v483, %v1699
      %1701 = vmatmul.bf16.gmra.mxu0 %v1005
      %v1702 = vpop.f32.mrf.mxu0
      %v1703 = vadd.f32 %v483, %v1702
      %v1704 = vpop.f32.mrf.mxu0
      %v1705 = vadd.f32 %v483, %v1704
      %1706 = vmatmul.bf16.gmra.mxu0 %v1014
      %v1707 = vpop.f32.mrf.mxu0
      %v1708 = vadd.f32 %v483, %v1707
      %v1709 = vpop.f32.mrf.mxu0
      %v1710 = vadd.f32 %v483, %v1709
      %1711 = vmatmul.bf16.gmra.mxu0 %v1023
      %v1712 = vpop.f32.mrf.mxu0
      %v1713 = vadd.f32 %v483, %v1712
      %v1714 = vpop.f32.mrf.mxu0
      %v1715 = vadd.f32 %v483, %v1714
      %1716 = vmatmul.bf16.gmra.mxu0 %v1032
      %v1717 = vpop.f32.mrf.mxu0
      %v1718 = vadd.f32 %v483, %v1717
      %v1719 = vpop.f32.mrf.mxu0
      %v1720 = vadd.f32 %v483, %v1719
      %1721 = vmatmul.bf16.gmra.mxu0 %v1041
      %v1722 = vpop.f32.mrf.mxu0
      %v1723 = vadd.f32 %v483, %v1722
      %v1724 = vpop.f32.mrf.mxu0
      %v1725 = vadd.f32 %v483, %v1724
      %1726 = vmatmul.bf16.gmra.mxu0 %v1050
      %v1727 = vpop.f32.mrf.mxu0
      %v1728 = vadd.f32 %v483, %v1727
      %v1729 = vpop.f32.mrf.mxu0
      %v1730 = vadd.f32 %v483, %v1729
      %1731 = vmatmul.bf16.gmra.mxu0 %v1059
      %v1732 = vpop.f32.mrf.mxu0
      %v1733 = vadd.f32 %v483, %v1732
      %v1734 = vpop.f32.mrf.mxu0
      %v1735 = vadd.f32 %v483, %v1734
      %1736 = vmatmul.bf16.gmra.mxu0 %v1068
      %v1737 = vpop.f32.mrf.mxu0
      %v1738 = vadd.f32 %v483, %v1737
      %v1739 = vpop.f32.mrf.mxu0
      %v1740 = vadd.f32 %v483, %v1739
      %1741 = vdwg.mxu0
      %1742 = vmatpush.bf16.msra.mxu0 %v1524
      %1743 = vmatpush.bf16.msra.mxu0 %v1523
      %1744 = vmatpush.bf16.msra.mxu0 %v1522
      %1745 = vmatpush.bf16.msra.mxu0 %v1521
      %1746 = vmatpush.bf16.msra.mxu0 %v1520
      %1747 = vmatpush.bf16.msra.mxu0 %v1519
      %1748 = vmatpush.bf16.msra.mxu0 %v1518
      %1749 = vmatpush.bf16.msra.mxu0 %v1517
      %1750 = vmatmul.bf16.gmra.mxu0 %v934
      %v1751 = vpop.f32.mrf.mxu0
      %v1752 = vadd.f32 %v1663, %v1751
      %v1753 = vpop.f32.mrf.mxu0
      %v1754 = vadd.f32 %v1665, %v1753
      %1755 = vmatmul.bf16.gmra.mxu0 %v943
      %v1756 = vpop.f32.mrf.mxu0
      %v1757 = vadd.f32 %v1668, %v1756
      %v1758 = vpop.f32.mrf.mxu0
      %v1759 = vadd.f32 %v1670, %v1758
      %1760 = vmatmul.bf16.gmra.mxu0 %v952
      %v1761 = vpop.f32.mrf.mxu0
      %v1762 = vadd.f32 %v1673, %v1761
      %v1763 = vpop.f32.mrf.mxu0
      %v1764 = vadd.f32 %v1675, %v1763
      %1765 = vmatmul.bf16.gmra.mxu0 %v961
      %v1766 = vpop.f32.mrf.mxu0
      %v1767 = vadd.f32 %v1678, %v1766
      %v1768 = vpop.f32.mrf.mxu0
      %v1769 = vadd.f32 %v1680, %v1768
      %1770 = vmatmul.bf16.gmra.mxu0 %v970
      %v1771 = vpop.f32.mrf.mxu0
      %v1772 = vadd.f32 %v1683, %v1771
      %v1773 = vpop.f32.mrf.mxu0
      %v1774 = vadd.f32 %v1685, %v1773
      %1775 = vmatmul.bf16.gmra.mxu0 %v979
      %v1776 = vpop.f32.mrf.mxu0
      %v1777 = vadd.f32 %v1688, %v1776
      %v1778 = vpop.f32.mrf.mxu0
      %v1779 = vadd.f32 %v1690, %v1778
      %1780 = vmatmul.bf16.gmra.mxu0 %v988
      %v1781 = vpop.f32.mrf.mxu0
      %v1782 = vadd.f32 %v1693, %v1781
      %v1783 = vpop.f32.mrf.mxu0
      %v1784 = vadd.f32 %v1695, %v1783
      %1785 = vmatmul.bf16.gmra.mxu0 %v997
      %v1786 = vpop.f32.mrf.mxu0
      %v1787 = vadd.f32 %v1698, %v1786
      %v1788 = vpop.f32.mrf.mxu0
      %v1789 = vadd.f32 %v1700, %v1788
      %1790 = vmatmul.bf16.gmra.mxu0 %v1006
      %v1791 = vpop.f32.mrf.mxu0
      %v1792 = vadd.f32 %v1703, %v1791
      %v1793 = vpop.f32.mrf.mxu0
      %v1794 = vadd.f32 %v1705, %v1793
      %1795 = vmatmul.bf16.gmra.mxu0 %v1015
      %v1796 = vpop.f32.mrf.mxu0
      %v1797 = vadd.f32 %v1708, %v1796
      %v1798 = vpop.f32.mrf.mxu0
      %v1799 = vadd.f32 %v1710, %v1798
      %1800 = vmatmul.bf16.gmra.mxu0 %v1024
      %v1801 = vpop.f32.mrf.mxu0
      %v1802 = vadd.f32 %v1713, %v1801
      %v1803 = vpop.f32.mrf.mxu0
      %v1804 = vadd.f32 %v1715, %v1803
      %1805 = vmatmul.bf16.gmra.mxu0 %v1033
      %v1806 = vpop.f32.mrf.mxu0
      %v1807 = vadd.f32 %v1718, %v1806
      %v1808 = vpop.f32.mrf.mxu0
      %v1809 = vadd.f32 %v1720, %v1808
      %1810 = vmatmul.bf16.gmra.mxu0 %v1042
      %v1811 = vpop.f32.mrf.mxu0
      %v1812 = vadd.f32 %v1723, %v1811
      %v1813 = vpop.f32.mrf.mxu0
      %v1814 = vadd.f32 %v1725, %v1813
      %1815 = vmatmul.bf16.gmra.mxu0 %v1051
      %v1816 = vpop.f32.mrf.mxu0
      %v1817 = vadd.f32 %v1728, %v1816
      %v1818 = vpop.f32.mrf.mxu0
      %v1819 = vadd.f32 %v1730, %v1818
      %1820 = vmatmul.bf16.gmra.mxu0 %v1060
      %v1821 = vpop.f32.mrf.mxu0
      %v1822 = vadd.f32 %v1733, %v1821
      %v1823 = vpop.f32.mrf.mxu0
      %v1824 = vadd.f32 %v1735, %v1823
      %1825 = vmatmul.bf16.gmra.mxu0 %v1069
      %v1826 = vpop.f32.mrf.mxu0
      %v1827 = vadd.f32 %v1738, %v1826
      %v1828 = vpop.f32.mrf.mxu0
      %v1829 = vadd.f32 %v1740, %v1828
      %1830 = vdwg.mxu0
      %1831 = vmatpush.bf16.msra.mxu0 %v1532
      %1832 = vmatpush.bf16.msra.mxu0 %v1531
      %1833 = vmatpush.bf16.msra.mxu0 %v1530
      %1834 = vmatpush.bf16.msra.mxu0 %v1529
      %1835 = vmatpush.bf16.msra.mxu0 %v1528
      %1836 = vmatpush.bf16.msra.mxu0 %v1527
      %1837 = vmatpush.bf16.msra.mxu0 %v1526
      %1838 = vmatpush.bf16.msra.mxu0 %v1525
      %1839 = vmatmul.bf16.gmra.mxu0 %v935
      %v1840 = vpop.f32.mrf.mxu0
      %v1841 = vadd.f32 %v1752, %v1840
      %v1842 = vpop.f32.mrf.mxu0
      %v1843 = vadd.f32 %v1754, %v1842
      %1844 = vmatmul.bf16.gmra.mxu0 %v944
      %v1845 = vpop.f32.mrf.mxu0
      %v1846 = vadd.f32 %v1757, %v1845
      %v1847 = vpop.f32.mrf.mxu0
      %v1848 = vadd.f32 %v1759, %v1847
      %1849 = vmatmul.bf16.gmra.mxu0 %v953
      %v1850 = vpop.f32.mrf.mxu0
      %v1851 = vadd.f32 %v1762, %v1850
      %v1852 = vpop.f32.mrf.mxu0
      %v1853 = vadd.f32 %v1764, %v1852
      %1854 = vmatmul.bf16.gmra.mxu0 %v962
      %v1855 = vpop.f32.mrf.mxu0
      %v1856 = vadd.f32 %v1767, %v1855
      %v1857 = vpop.f32.mrf.mxu0
      %v1858 = vadd.f32 %v1769, %v1857
      %1859 = vmatmul.bf16.gmra.mxu0 %v971
      %v1860 = vpop.f32.mrf.mxu0
      %v1861 = vadd.f32 %v1772, %v1860
      %v1862 = vpop.f32.mrf.mxu0
      %v1863 = vadd.f32 %v1774, %v1862
      %1864 = vmatmul.bf16.gmra.mxu0 %v980
      %v1865 = vpop.f32.mrf.mxu0
      %v1866 = vadd.f32 %v1777, %v1865
      %v1867 = vpop.f32.mrf.mxu0
      %v1868 = vadd.f32 %v1779, %v1867
      %1869 = vmatmul.bf16.gmra.mxu0 %v989
      %v1870 = vpop.f32.mrf.mxu0
      %v1871 = vadd.f32 %v1782, %v1870
      %v1872 = vpop.f32.mrf.mxu0
      %v1873 = vadd.f32 %v1784, %v1872
      %1874 = vmatmul.bf16.gmra.mxu0 %v998
      %v1875 = vpop.f32.mrf.mxu0
      %v1876 = vadd.f32 %v1787, %v1875
      %v1877 = vpop.f32.mrf.mxu0
      %v1878 = vadd.f32 %v1789, %v1877
      %1879 = vmatmul.bf16.gmra.mxu0 %v1007
      %v1880 = vpop.f32.mrf.mxu0
      %v1881 = vadd.f32 %v1792, %v1880
      %v1882 = vpop.f32.mrf.mxu0
      %v1883 = vadd.f32 %v1794, %v1882
      %1884 = vmatmul.bf16.gmra.mxu0 %v1016
      %v1885 = vpop.f32.mrf.mxu0
      %v1886 = vadd.f32 %v1797, %v1885
      %v1887 = vpop.f32.mrf.mxu0
      %v1888 = vadd.f32 %v1799, %v1887
      %1889 = vmatmul.bf16.gmra.mxu0 %v1025
      %v1890 = vpop.f32.mrf.mxu0
      %v1891 = vadd.f32 %v1802, %v1890
      %v1892 = vpop.f32.mrf.mxu0
      %v1893 = vadd.f32 %v1804, %v1892
      %1894 = vmatmul.bf16.gmra.mxu0 %v1034
      %v1895 = vpop.f32.mrf.mxu0
      %v1896 = vadd.f32 %v1807, %v1895
      %v1897 = vpop.f32.mrf.mxu0
      %v1898 = vadd.f32 %v1809, %v1897
      %1899 = vmatmul.bf16.gmra.mxu0 %v1043
      %v1900 = vpop.f32.mrf.mxu0
      %v1901 = vadd.f32 %v1812, %v1900
      %v1902 = vpop.f32.mrf.mxu0
      %v1903 = vadd.f32 %v1814, %v1902
      %1904 = vmatmul.bf16.gmra.mxu0 %v1052
      %v1905 = vpop.f32.mrf.mxu0
      %v1906 = vadd.f32 %v1817, %v1905
      %v1907 = vpop.f32.mrf.mxu0
      %v1908 = vadd.f32 %v1819, %v1907
      %1909 = vmatmul.bf16.gmra.mxu0 %v1061
      %v1910 = vpop.f32.mrf.mxu0
      %v1911 = vadd.f32 %v1822, %v1910
      %v1912 = vpop.f32.mrf.mxu0
      %v1913 = vadd.f32 %v1824, %v1912
      %1914 = vmatmul.bf16.gmra.mxu0 %v1070
      %v1915 = vpop.f32.mrf.mxu0
      %v1916 = vadd.f32 %v1827, %v1915
      %v1917 = vpop.f32.mrf.mxu0
      %v1918 = vadd.f32 %v1829, %v1917
      %1919 = vdwg.mxu0
      %1920 = vmatpush.bf16.msra.mxu0 %v1540
      %1921 = vmatpush.bf16.msra.mxu0 %v1539
      %1922 = vmatpush.bf16.msra.mxu0 %v1538
      %1923 = vmatpush.bf16.msra.mxu0 %v1537
      %1924 = vmatpush.bf16.msra.mxu0 %v1536
      %1925 = vmatpush.bf16.msra.mxu0 %v1535
      %1926 = vmatpush.bf16.msra.mxu0 %v1534
      %1927 = vmatpush.bf16.msra.mxu0 %v1533
      %1928 = vmatmul.bf16.gmra.mxu0 %v936
      %v1929 = vpop.f32.mrf.mxu0
      %v1930 = vadd.f32 %v1841, %v1929
      %v1931 = vpop.f32.mrf.mxu0
      %v1932 = vadd.f32 %v1843, %v1931
      %1933 = vmatmul.bf16.gmra.mxu0 %v945
      %v1934 = vpop.f32.mrf.mxu0
      %v1935 = vadd.f32 %v1846, %v1934
      %v1936 = vpop.f32.mrf.mxu0
      %v1937 = vadd.f32 %v1848, %v1936
      %1938 = vmatmul.bf16.gmra.mxu0 %v954
      %v1939 = vpop.f32.mrf.mxu0
      %v1940 = vadd.f32 %v1851, %v1939
      %v1941 = vpop.f32.mrf.mxu0
      %v1942 = vadd.f32 %v1853, %v1941
      %1943 = vmatmul.bf16.gmra.mxu0 %v963
      %v1944 = vpop.f32.mrf.mxu0
      %v1945 = vadd.f32 %v1856, %v1944
      %v1946 = vpop.f32.mrf.mxu0
      %v1947 = vadd.f32 %v1858, %v1946
      %1948 = vmatmul.bf16.gmra.mxu0 %v972
      %v1949 = vpop.f32.mrf.mxu0
      %v1950 = vadd.f32 %v1861, %v1949
      %v1951 = vpop.f32.mrf.mxu0
      %v1952 = vadd.f32 %v1863, %v1951
      %1953 = vmatmul.bf16.gmra.mxu0 %v981
      %v1954 = vpop.f32.mrf.mxu0
      %v1955 = vadd.f32 %v1866, %v1954
      %v1956 = vpop.f32.mrf.mxu0
      %v1957 = vadd.f32 %v1868, %v1956
      %1958 = vmatmul.bf16.gmra.mxu0 %v990
      %v1959 = vpop.f32.mrf.mxu0
      %v1960 = vadd.f32 %v1871, %v1959
      %v1961 = vpop.f32.mrf.mxu0
      %v1962 = vadd.f32 %v1873, %v1961
      %1963 = vmatmul.bf16.gmra.mxu0 %v999
      %v1964 = vpop.f32.mrf.mxu0
      %v1965 = vadd.f32 %v1876, %v1964
      %v1966 = vpop.f32.mrf.mxu0
      %v1967 = vadd.f32 %v1878, %v1966
      %1968 = vmatmul.bf16.gmra.mxu0 %v1008
      %v1969 = vpop.f32.mrf.mxu0
      %v1970 = vadd.f32 %v1881, %v1969
      %v1971 = vpop.f32.mrf.mxu0
      %v1972 = vadd.f32 %v1883, %v1971
      %1973 = vmatmul.bf16.gmra.mxu0 %v1017
      %v1974 = vpop.f32.mrf.mxu0
      %v1975 = vadd.f32 %v1886, %v1974
      %v1976 = vpop.f32.mrf.mxu0
      %v1977 = vadd.f32 %v1888, %v1976
      %1978 = vmatmul.bf16.gmra.mxu0 %v1026
      %v1979 = vpop.f32.mrf.mxu0
      %v1980 = vadd.f32 %v1891, %v1979
      %v1981 = vpop.f32.mrf.mxu0
      %v1982 = vadd.f32 %v1893, %v1981
      %1983 = vmatmul.bf16.gmra.mxu0 %v1035
      %v1984 = vpop.f32.mrf.mxu0
      %v1985 = vadd.f32 %v1896, %v1984
      %v1986 = vpop.f32.mrf.mxu0
      %v1987 = vadd.f32 %v1898, %v1986
      %1988 = vmatmul.bf16.gmra.mxu0 %v1044
      %v1989 = vpop.f32.mrf.mxu0
      %v1990 = vadd.f32 %v1901, %v1989
      %v1991 = vpop.f32.mrf.mxu0
      %v1992 = vadd.f32 %v1903, %v1991
      %1993 = vmatmul.bf16.gmra.mxu0 %v1053
      %v1994 = vpop.f32.mrf.mxu0
      %v1995 = vadd.f32 %v1906, %v1994
      %v1996 = vpop.f32.mrf.mxu0
      %v1997 = vadd.f32 %v1908, %v1996
      %1998 = vmatmul.bf16.gmra.mxu0 %v1062
      %v1999 = vpop.f32.mrf.mxu0
      %v2000 = vadd.f32 %v1911, %v1999
      %v2001 = vpop.f32.mrf.mxu0
      %v2002 = vadd.f32 %v1913, %v2001
      %2003 = vmatmul.bf16.gmra.mxu0 %v1071
      %v2004 = vpop.f32.mrf.mxu0
      %v2005 = vadd.f32 %v1916, %v2004
      %v2006 = vpop.f32.mrf.mxu0
      %v2007 = vadd.f32 %v1918, %v2006
      %2008 = vdwg.mxu0
      %2009 = vmatpush.bf16.msra.mxu0 %v1548
      %2010 = vmatpush.bf16.msra.mxu0 %v1547
      %2011 = vmatpush.bf16.msra.mxu0 %v1546
      %2012 = vmatpush.bf16.msra.mxu0 %v1545
      %2013 = vmatpush.bf16.msra.mxu0 %v1544
      %2014 = vmatpush.bf16.msra.mxu0 %v1543
      %2015 = vmatpush.bf16.msra.mxu0 %v1542
      %2016 = vmatpush.bf16.msra.mxu0 %v1541
      %2017 = vmatmul.bf16.gmra.mxu0 %v937
      %v2018 = vpop.f32.mrf.mxu0
      %v2019 = vadd.f32 %v1930, %v2018
      %v2020 = vpop.f32.mrf.mxu0
      %v2021 = vadd.f32 %v1932, %v2020
      %2022 = vmatmul.bf16.gmra.mxu0 %v946
      %v2023 = vpop.f32.mrf.mxu0
      %v2024 = vadd.f32 %v1935, %v2023
      %v2025 = vpop.f32.mrf.mxu0
      %v2026 = vadd.f32 %v1937, %v2025
      %2027 = vmatmul.bf16.gmra.mxu0 %v955
      %v2028 = vpop.f32.mrf.mxu0
      %v2029 = vadd.f32 %v1940, %v2028
      %v2030 = vpop.f32.mrf.mxu0
      %v2031 = vadd.f32 %v1942, %v2030
      %2032 = vmatmul.bf16.gmra.mxu0 %v964
      %v2033 = vpop.f32.mrf.mxu0
      %v2034 = vadd.f32 %v1945, %v2033
      %v2035 = vpop.f32.mrf.mxu0
      %v2036 = vadd.f32 %v1947, %v2035
      %2037 = vmatmul.bf16.gmra.mxu0 %v973
      %v2038 = vpop.f32.mrf.mxu0
      %v2039 = vadd.f32 %v1950, %v2038
      %v2040 = vpop.f32.mrf.mxu0
      %v2041 = vadd.f32 %v1952, %v2040
      %2042 = vmatmul.bf16.gmra.mxu0 %v982
      %v2043 = vpop.f32.mrf.mxu0
      %v2044 = vadd.f32 %v1955, %v2043
      %v2045 = vpop.f32.mrf.mxu0
      %v2046 = vadd.f32 %v1957, %v2045
      %2047 = vmatmul.bf16.gmra.mxu0 %v991
      %v2048 = vpop.f32.mrf.mxu0
      %v2049 = vadd.f32 %v1960, %v2048
      %v2050 = vpop.f32.mrf.mxu0
      %v2051 = vadd.f32 %v1962, %v2050
      %2052 = vmatmul.bf16.gmra.mxu0 %v1000
      %v2053 = vpop.f32.mrf.mxu0
      %v2054 = vadd.f32 %v1965, %v2053
      %v2055 = vpop.f32.mrf.mxu0
      %v2056 = vadd.f32 %v1967, %v2055
      %2057 = vmatmul.bf16.gmra.mxu0 %v1009
      %v2058 = vpop.f32.mrf.mxu0
      %v2059 = vadd.f32 %v1970, %v2058
      %v2060 = vpop.f32.mrf.mxu0
      %v2061 = vadd.f32 %v1972, %v2060
      %2062 = vmatmul.bf16.gmra.mxu0 %v1018
      %v2063 = vpop.f32.mrf.mxu0
      %v2064 = vadd.f32 %v1975, %v2063
      %v2065 = vpop.f32.mrf.mxu0
      %v2066 = vadd.f32 %v1977, %v2065
      %2067 = vmatmul.bf16.gmra.mxu0 %v1027
      %v2068 = vpop.f32.mrf.mxu0
      %v2069 = vadd.f32 %v1980, %v2068
      %v2070 = vpop.f32.mrf.mxu0
      %v2071 = vadd.f32 %v1982, %v2070
      %2072 = vmatmul.bf16.gmra.mxu0 %v1036
      %v2073 = vpop.f32.mrf.mxu0
      %v2074 = vadd.f32 %v1985, %v2073
      %v2075 = vpop.f32.mrf.mxu0
      %v2076 = vadd.f32 %v1987, %v2075
      %2077 = vmatmul.bf16.gmra.mxu0 %v1045
      %v2078 = vpop.f32.mrf.mxu0
      %v2079 = vadd.f32 %v1990, %v2078
      %v2080 = vpop.f32.mrf.mxu0
      %v2081 = vadd.f32 %v1992, %v2080
      %2082 = vmatmul.bf16.gmra.mxu0 %v1054
      %v2083 = vpop.f32.mrf.mxu0
      %v2084 = vadd.f32 %v1995, %v2083
      %v2085 = vpop.f32.mrf.mxu0
      %v2086 = vadd.f32 %v1997, %v2085
      %2087 = vmatmul.bf16.gmra.mxu0 %v1063
      %v2088 = vpop.f32.mrf.mxu0
      %v2089 = vadd.f32 %v2000, %v2088
      %v2090 = vpop.f32.mrf.mxu0
      %v2091 = vadd.f32 %v2002, %v2090
      %2092 = vmatmul.bf16.gmra.mxu0 %v1072
      %v2093 = vpop.f32.mrf.mxu0
      %v2094 = vadd.f32 %v2005, %v2093
      %v2095 = vpop.f32.mrf.mxu0
      %v2096 = vadd.f32 %v2007, %v2095
      %2097 = vdwg.mxu0
      %2098 = vmatpush.bf16.msra.mxu0 %v1556
      %2099 = vmatpush.bf16.msra.mxu0 %v1555
      %2100 = vmatpush.bf16.msra.mxu0 %v1554
      %2101 = vmatpush.bf16.msra.mxu0 %v1553
      %2102 = vmatpush.bf16.msra.mxu0 %v1552
      %2103 = vmatpush.bf16.msra.mxu0 %v1551
      %2104 = vmatpush.bf16.msra.mxu0 %v1550
      %2105 = vmatpush.bf16.msra.mxu0 %v1549
      %2106 = vmatmul.bf16.gmra.mxu0 %v938
      %v2107 = vpop.f32.mrf.mxu0
      %v2108 = vadd.f32 %v2019, %v2107
      %v2109 = vpop.f32.mrf.mxu0
      %v2110 = vadd.f32 %v2021, %v2109
      %2111 = vmatmul.bf16.gmra.mxu0 %v947
      %v2112 = vpop.f32.mrf.mxu0
      %v2113 = vadd.f32 %v2024, %v2112
      %v2114 = vpop.f32.mrf.mxu0
      %v2115 = vadd.f32 %v2026, %v2114
      %2116 = vmatmul.bf16.gmra.mxu0 %v956
      %v2117 = vpop.f32.mrf.mxu0
      %v2118 = vadd.f32 %v2029, %v2117
      %v2119 = vpop.f32.mrf.mxu0
      %v2120 = vadd.f32 %v2031, %v2119
      %2121 = vmatmul.bf16.gmra.mxu0 %v965
      %v2122 = vpop.f32.mrf.mxu0
      %v2123 = vadd.f32 %v2034, %v2122
      %v2124 = vpop.f32.mrf.mxu0
      %v2125 = vadd.f32 %v2036, %v2124
      %2126 = vmatmul.bf16.gmra.mxu0 %v974
      %v2127 = vpop.f32.mrf.mxu0
      %v2128 = vadd.f32 %v2039, %v2127
      %v2129 = vpop.f32.mrf.mxu0
      %v2130 = vadd.f32 %v2041, %v2129
      %2131 = vmatmul.bf16.gmra.mxu0 %v983
      %v2132 = vpop.f32.mrf.mxu0
      %v2133 = vadd.f32 %v2044, %v2132
      %v2134 = vpop.f32.mrf.mxu0
      %v2135 = vadd.f32 %v2046, %v2134
      %2136 = vmatmul.bf16.gmra.mxu0 %v992
      %v2137 = vpop.f32.mrf.mxu0
      %v2138 = vadd.f32 %v2049, %v2137
      %v2139 = vpop.f32.mrf.mxu0
      %v2140 = vadd.f32 %v2051, %v2139
      %2141 = vmatmul.bf16.gmra.mxu0 %v1001
      %v2142 = vpop.f32.mrf.mxu0
      %v2143 = vadd.f32 %v2054, %v2142
      %v2144 = vpop.f32.mrf.mxu0
      %v2145 = vadd.f32 %v2056, %v2144
      %2146 = vmatmul.bf16.gmra.mxu0 %v1010
      %v2147 = vpop.f32.mrf.mxu0
      %v2148 = vadd.f32 %v2059, %v2147
      %v2149 = vpop.f32.mrf.mxu0
      %v2150 = vadd.f32 %v2061, %v2149
      %2151 = vmatmul.bf16.gmra.mxu0 %v1019
      %v2152 = vpop.f32.mrf.mxu0
      %v2153 = vadd.f32 %v2064, %v2152
      %v2154 = vpop.f32.mrf.mxu0
      %v2155 = vadd.f32 %v2066, %v2154
      %2156 = vmatmul.bf16.gmra.mxu0 %v1028
      %v2157 = vpop.f32.mrf.mxu0
      %v2158 = vadd.f32 %v2069, %v2157
      %v2159 = vpop.f32.mrf.mxu0
      %v2160 = vadd.f32 %v2071, %v2159
      %2161 = vmatmul.bf16.gmra.mxu0 %v1037
      %v2162 = vpop.f32.mrf.mxu0
      %v2163 = vadd.f32 %v2074, %v2162
      %v2164 = vpop.f32.mrf.mxu0
      %v2165 = vadd.f32 %v2076, %v2164
      %2166 = vmatmul.bf16.gmra.mxu0 %v1046
      %v2167 = vpop.f32.mrf.mxu0
      %v2168 = vadd.f32 %v2079, %v2167
      %v2169 = vpop.f32.mrf.mxu0
      %v2170 = vadd.f32 %v2081, %v2169
      %2171 = vmatmul.bf16.gmra.mxu0 %v1055
      %v2172 = vpop.f32.mrf.mxu0
      %v2173 = vadd.f32 %v2084, %v2172
      %v2174 = vpop.f32.mrf.mxu0
      %v2175 = vadd.f32 %v2086, %v2174
      %2176 = vmatmul.bf16.gmra.mxu0 %v1064
      %v2177 = vpop.f32.mrf.mxu0
      %v2178 = vadd.f32 %v2089, %v2177
      %v2179 = vpop.f32.mrf.mxu0
      %v2180 = vadd.f32 %v2091, %v2179
      %2181 = vmatmul.bf16.gmra.mxu0 %v1073
      %v2182 = vpop.f32.mrf.mxu0
      %v2183 = vadd.f32 %v2094, %v2182
      %v2184 = vpop.f32.mrf.mxu0
      %v2185 = vadd.f32 %v2096, %v2184
      %2186 = vdwg.mxu0
      %2187 = vmatpush.bf16.msra.mxu0 %v1564
      %2188 = vmatpush.bf16.msra.mxu0 %v1563
      %2189 = vmatpush.bf16.msra.mxu0 %v1562
      %2190 = vmatpush.bf16.msra.mxu0 %v1561
      %2191 = vmatpush.bf16.msra.mxu0 %v1560
      %2192 = vmatpush.bf16.msra.mxu0 %v1559
      %2193 = vmatpush.bf16.msra.mxu0 %v1558
      %2194 = vmatpush.bf16.msra.mxu0 %v1557
      %2195 = vmatmul.bf16.gmra.mxu0 %v939
      %v2196 = vpop.f32.mrf.mxu0
      %v2197 = vadd.f32 %v2108, %v2196
      %v2198 = vpop.f32.mrf.mxu0
      %v2199 = vadd.f32 %v2110, %v2198
      %2200 = vmatmul.bf16.gmra.mxu0 %v948
      %v2201 = vpop.f32.mrf.mxu0
      %v2202 = vadd.f32 %v2113, %v2201
      %v2203 = vpop.f32.mrf.mxu0
      %v2204 = vadd.f32 %v2115, %v2203
      %2205 = vmatmul.bf16.gmra.mxu0 %v957
      %v2206 = vpop.f32.mrf.mxu0
      %v2207 = vadd.f32 %v2118, %v2206
      %v2208 = vpop.f32.mrf.mxu0
      %v2209 = vadd.f32 %v2120, %v2208
      %2210 = vmatmul.bf16.gmra.mxu0 %v966
      %v2211 = vpop.f32.mrf.mxu0
      %v2212 = vadd.f32 %v2123, %v2211
      %v2213 = vpop.f32.mrf.mxu0
      %v2214 = vadd.f32 %v2125, %v2213
      %2215 = vmatmul.bf16.gmra.mxu0 %v975
      %v2216 = vpop.f32.mrf.mxu0
      %v2217 = vadd.f32 %v2128, %v2216
      %v2218 = vpop.f32.mrf.mxu0
      %v2219 = vadd.f32 %v2130, %v2218
      %2220 = vmatmul.bf16.gmra.mxu0 %v984
      %v2221 = vpop.f32.mrf.mxu0
      %v2222 = vadd.f32 %v2133, %v2221
      %v2223 = vpop.f32.mrf.mxu0
      %v2224 = vadd.f32 %v2135, %v2223
      %2225 = vmatmul.bf16.gmra.mxu0 %v993
      %v2226 = vpop.f32.mrf.mxu0
      %v2227 = vadd.f32 %v2138, %v2226
      %v2228 = vpop.f32.mrf.mxu0
      %v2229 = vadd.f32 %v2140, %v2228
      %2230 = vmatmul.bf16.gmra.mxu0 %v1002
      %v2231 = vpop.f32.mrf.mxu0
      %v2232 = vadd.f32 %v2143, %v2231
      %v2233 = vpop.f32.mrf.mxu0
      %v2234 = vadd.f32 %v2145, %v2233
      %2235 = vmatmul.bf16.gmra.mxu0 %v1011
      %v2236 = vpop.f32.mrf.mxu0
      %v2237 = vadd.f32 %v2148, %v2236
      %v2238 = vpop.f32.mrf.mxu0
      %v2239 = vadd.f32 %v2150, %v2238
      %2240 = vmatmul.bf16.gmra.mxu0 %v1020
      %v2241 = vpop.f32.mrf.mxu0
      %v2242 = vadd.f32 %v2153, %v2241
      %v2243 = vpop.f32.mrf.mxu0
      %v2244 = vadd.f32 %v2155, %v2243
      %2245 = vmatmul.bf16.gmra.mxu0 %v1029
      %v2246 = vpop.f32.mrf.mxu0
      %v2247 = vadd.f32 %v2158, %v2246
      %v2248 = vpop.f32.mrf.mxu0
      %v2249 = vadd.f32 %v2160, %v2248
      %2250 = vmatmul.bf16.gmra.mxu0 %v1038
      %v2251 = vpop.f32.mrf.mxu0
      %v2252 = vadd.f32 %v2163, %v2251
      %v2253 = vpop.f32.mrf.mxu0
      %v2254 = vadd.f32 %v2165, %v2253
      %2255 = vmatmul.bf16.gmra.mxu0 %v1047
      %v2256 = vpop.f32.mrf.mxu0
      %v2257 = vadd.f32 %v2168, %v2256
      %v2258 = vpop.f32.mrf.mxu0
      %v2259 = vadd.f32 %v2170, %v2258
      %2260 = vmatmul.bf16.gmra.mxu0 %v1056
      %v2261 = vpop.f32.mrf.mxu0
      %v2262 = vadd.f32 %v2173, %v2261
      %v2263 = vpop.f32.mrf.mxu0
      %v2264 = vadd.f32 %v2175, %v2263
      %2265 = vmatmul.bf16.gmra.mxu0 %v1065
      %v2266 = vpop.f32.mrf.mxu0
      %v2267 = vadd.f32 %v2178, %v2266
      %v2268 = vpop.f32.mrf.mxu0
      %v2269 = vadd.f32 %v2180, %v2268
      %2270 = vmatmul.bf16.gmra.mxu0 %v1074
      %v2271 = vpop.f32.mrf.mxu0
      %v2272 = vadd.f32 %v2183, %v2271
      %v2273 = vpop.f32.mrf.mxu0
      %v2274 = vadd.f32 %v2185, %v2273
      %2275 = vdwg.mxu0
      %2276 = vmatpush.bf16.msra.mxu0 %v1572
      %2277 = vmatpush.bf16.msra.mxu0 %v1571
      %2278 = vmatpush.bf16.msra.mxu0 %v1570
      %2279 = vmatpush.bf16.msra.mxu0 %v1569
      %2280 = vmatpush.bf16.msra.mxu0 %v1568
      %2281 = vmatpush.bf16.msra.mxu0 %v1567
      %2282 = vmatpush.bf16.msra.mxu0 %v1566
      %2283 = vmatpush.bf16.msra.mxu0 %v1565
      %2284 = vmatmul.bf16.gmra.mxu0 %v940
      %v2285 = vpop.f32.mrf.mxu0
      %v2286 = vadd.f32 %v2197, %v2285
      %v2287 = vpop.f32.mrf.mxu0
      %v2288 = vadd.f32 %v2199, %v2287
      %2289 = vmatmul.bf16.gmra.mxu0 %v949
      %v2290 = vpop.f32.mrf.mxu0
      %v2291 = vadd.f32 %v2202, %v2290
      %v2292 = vpop.f32.mrf.mxu0
      %v2293 = vadd.f32 %v2204, %v2292
      %2294 = vmatmul.bf16.gmra.mxu0 %v958
      %v2295 = vpop.f32.mrf.mxu0
      %v2296 = vadd.f32 %v2207, %v2295
      %v2297 = vpop.f32.mrf.mxu0
      %v2298 = vadd.f32 %v2209, %v2297
      %2299 = vmatmul.bf16.gmra.mxu0 %v967
      %v2300 = vpop.f32.mrf.mxu0
      %v2301 = vadd.f32 %v2212, %v2300
      %v2302 = vpop.f32.mrf.mxu0
      %v2303 = vadd.f32 %v2214, %v2302
      %2304 = vmatmul.bf16.gmra.mxu0 %v976
      %v2305 = vpop.f32.mrf.mxu0
      %v2306 = vadd.f32 %v2217, %v2305
      %v2307 = vpop.f32.mrf.mxu0
      %v2308 = vadd.f32 %v2219, %v2307
      %2309 = vmatmul.bf16.gmra.mxu0 %v985
      %v2310 = vpop.f32.mrf.mxu0
      %v2311 = vadd.f32 %v2222, %v2310
      %v2312 = vpop.f32.mrf.mxu0
      %v2313 = vadd.f32 %v2224, %v2312
      %2314 = vmatmul.bf16.gmra.mxu0 %v994
      %v2315 = vpop.f32.mrf.mxu0
      %v2316 = vadd.f32 %v2227, %v2315
      %v2317 = vpop.f32.mrf.mxu0
      %v2318 = vadd.f32 %v2229, %v2317
      %2319 = vmatmul.bf16.gmra.mxu0 %v1003
      %v2320 = vpop.f32.mrf.mxu0
      %v2321 = vadd.f32 %v2232, %v2320
      %v2322 = vpop.f32.mrf.mxu0
      %v2323 = vadd.f32 %v2234, %v2322
      %2324 = vmatmul.bf16.gmra.mxu0 %v1012
      %v2325 = vpop.f32.mrf.mxu0
      %v2326 = vadd.f32 %v2237, %v2325
      %v2327 = vpop.f32.mrf.mxu0
      %v2328 = vadd.f32 %v2239, %v2327
      %2329 = vmatmul.bf16.gmra.mxu0 %v1021
      %v2330 = vpop.f32.mrf.mxu0
      %v2331 = vadd.f32 %v2242, %v2330
      %v2332 = vpop.f32.mrf.mxu0
      %v2333 = vadd.f32 %v2244, %v2332
      %2334 = vmatmul.bf16.gmra.mxu0 %v1030
      %v2335 = vpop.f32.mrf.mxu0
      %v2336 = vadd.f32 %v2247, %v2335
      %v2337 = vpop.f32.mrf.mxu0
      %v2338 = vadd.f32 %v2249, %v2337
      %2339 = vmatmul.bf16.gmra.mxu0 %v1039
      %v2340 = vpop.f32.mrf.mxu0
      %v2341 = vadd.f32 %v2252, %v2340
      %v2342 = vpop.f32.mrf.mxu0
      %v2343 = vadd.f32 %v2254, %v2342
      %2344 = vmatmul.bf16.gmra.mxu0 %v1048
      %v2345 = vpop.f32.mrf.mxu0
      %v2346 = vadd.f32 %v2257, %v2345
      %v2347 = vpop.f32.mrf.mxu0
      %v2348 = vadd.f32 %v2259, %v2347
      %2349 = vmatmul.bf16.gmra.mxu0 %v1057
      %v2350 = vpop.f32.mrf.mxu0
      %v2351 = vadd.f32 %v2262, %v2350
      %v2352 = vpop.f32.mrf.mxu0
      %v2353 = vadd.f32 %v2264, %v2352
      %2354 = vmatmul.bf16.gmra.mxu0 %v1066
      %v2355 = vpop.f32.mrf.mxu0
      %v2356 = vadd.f32 %v2267, %v2355
      %v2357 = vpop.f32.mrf.mxu0
      %v2358 = vadd.f32 %v2269, %v2357
      %2359 = vmatmul.bf16.gmra.mxu0 %v1075
      %v2360 = vpop.f32.mrf.mxu0
      %v2361 = vadd.f32 %v2272, %v2360
      %v2362 = vpop.f32.mrf.mxu0
      %v2363 = vadd.f32 %v2274, %v2362
      %2364 = vdwg.mxu0
      %2365 = vmatpush.bf16.msra.mxu0 %v1580
      %2366 = vmatpush.bf16.msra.mxu0 %v1579
      %2367 = vmatpush.bf16.msra.mxu0 %v1578
      %2368 = vmatpush.bf16.msra.mxu0 %v1577
      %2369 = vmatpush.bf16.msra.mxu0 %v1576
      %2370 = vmatpush.bf16.msra.mxu0 %v1575
      %2371 = vmatpush.bf16.msra.mxu0 %v1574
      %2372 = vmatpush.bf16.msra.mxu0 %v1573
      %2373 = vmatmul.bf16.gmra.mxu0 %v941
      %v2374 = vpop.f32.mrf.mxu0
      %v2375 = vadd.f32 %v2286, %v2374
      %v2376 = vpop.f32.mrf.mxu0
      %v2377 = vadd.f32 %v2288, %v2376
      %2378 = vmatmul.bf16.gmra.mxu0 %v950
      %v2379 = vpop.f32.mrf.mxu0
      %v2380 = vadd.f32 %v2291, %v2379
      %v2381 = vpop.f32.mrf.mxu0
      %v2382 = vadd.f32 %v2293, %v2381
      %2383 = vmatmul.bf16.gmra.mxu0 %v959
      %v2384 = vpop.f32.mrf.mxu0
      %v2385 = vadd.f32 %v2296, %v2384
      %v2386 = vpop.f32.mrf.mxu0
      %v2387 = vadd.f32 %v2298, %v2386
      %2388 = vmatmul.bf16.gmra.mxu0 %v968
      %v2389 = vpop.f32.mrf.mxu0
      %v2390 = vadd.f32 %v2301, %v2389
      %v2391 = vpop.f32.mrf.mxu0
      %v2392 = vadd.f32 %v2303, %v2391
      %2393 = vmatmul.bf16.gmra.mxu0 %v977
      %v2394 = vpop.f32.mrf.mxu0
      %v2395 = vadd.f32 %v2306, %v2394
      %v2396 = vpop.f32.mrf.mxu0
      %v2397 = vadd.f32 %v2308, %v2396
      %2398 = vmatmul.bf16.gmra.mxu0 %v986
      %v2399 = vpop.f32.mrf.mxu0
      %v2400 = vadd.f32 %v2311, %v2399
      %v2401 = vpop.f32.mrf.mxu0
      %v2402 = vadd.f32 %v2313, %v2401
      %2403 = vmatmul.bf16.gmra.mxu0 %v995
      %v2404 = vpop.f32.mrf.mxu0
      %v2405 = vadd.f32 %v2316, %v2404
      %v2406 = vpop.f32.mrf.mxu0
      %v2407 = vadd.f32 %v2318, %v2406
      %2408 = vmatmul.bf16.gmra.mxu0 %v1004
      %v2409 = vpop.f32.mrf.mxu0
      %v2410 = vadd.f32 %v2321, %v2409
      %v2411 = vpop.f32.mrf.mxu0
      %v2412 = vadd.f32 %v2323, %v2411
      %2413 = vmatmul.bf16.gmra.mxu0 %v1013
      %v2414 = vpop.f32.mrf.mxu0
      %v2415 = vadd.f32 %v2326, %v2414
      %v2416 = vpop.f32.mrf.mxu0
      %v2417 = vadd.f32 %v2328, %v2416
      %2418 = vmatmul.bf16.gmra.mxu0 %v1022
      %v2419 = vpop.f32.mrf.mxu0
      %v2420 = vadd.f32 %v2331, %v2419
      %v2421 = vpop.f32.mrf.mxu0
      %v2422 = vadd.f32 %v2333, %v2421
      %2423 = vmatmul.bf16.gmra.mxu0 %v1031
      %v2424 = vpop.f32.mrf.mxu0
      %v2425 = vadd.f32 %v2336, %v2424
      %v2426 = vpop.f32.mrf.mxu0
      %v2427 = vadd.f32 %v2338, %v2426
      %2428 = vmatmul.bf16.gmra.mxu0 %v1040
      %v2429 = vpop.f32.mrf.mxu0
      %v2430 = vadd.f32 %v2341, %v2429
      %v2431 = vpop.f32.mrf.mxu0
      %v2432 = vadd.f32 %v2343, %v2431
      %2433 = vmatmul.bf16.gmra.mxu0 %v1049
      %v2434 = vpop.f32.mrf.mxu0
      %v2435 = vadd.f32 %v2346, %v2434
      %v2436 = vpop.f32.mrf.mxu0
      %v2437 = vadd.f32 %v2348, %v2436
      %2438 = vmatmul.bf16.gmra.mxu0 %v1058
      %v2439 = vpop.f32.mrf.mxu0
      %v2440 = vadd.f32 %v2351, %v2439
      %v2441 = vpop.f32.mrf.mxu0
      %v2442 = vadd.f32 %v2353, %v2441
      %2443 = vmatmul.bf16.gmra.mxu0 %v1067
      %v2444 = vpop.f32.mrf.mxu0
      %v2445 = vadd.f32 %v2356, %v2444
      %v2446 = vpop.f32.mrf.mxu0
      %v2447 = vadd.f32 %v2358, %v2446
      %2448 = vmatmul.bf16.gmra.mxu0 %v1076
      %v2449 = vpop.f32.mrf.mxu0
      %v2450 = vadd.f32 %v2361, %v2449
      %v2451 = vpop.f32.mrf.mxu0
      %v2452 = vadd.f32 %v2363, %v2451
      %2453 = vdwg.mxu0
      %vm2454 = vcmp.ge.f32.partialorder %v2375, 0.0
      %vm2455 = vcmp.ge.f32.partialorder %v2377, 0.0
      %vm2456 = vcmp.ge.f32.partialorder %v2380, 0.0
      %vm2457 = vcmp.ge.f32.partialorder %v2382, 0.0
      %vm2458 = vcmp.ge.f32.partialorder %v2385, 0.0
      %vm2459 = vcmp.ge.f32.partialorder %v2387, 0.0
      %vm2460 = vcmp.ge.f32.partialorder %v2390, 0.0
      %vm2461 = vcmp.ge.f32.partialorder %v2392, 0.0
      %vm2462 = vcmp.ge.f32.partialorder %v2395, 0.0
      %vm2463 = vcmp.ge.f32.partialorder %v2397, 0.0
      %vm2464 = vcmp.ge.f32.partialorder %v2400, 0.0
      %vm2465 = vcmp.ge.f32.partialorder %v2402, 0.0
      %vm2466 = vcmp.ge.f32.partialorder %v2405, 0.0
      %vm2467 = vcmp.ge.f32.partialorder %v2407, 0.0
      %vm2468 = vcmp.ge.f32.partialorder %v2410, 0.0
      %vm2469 = vcmp.ge.f32.partialorder %v2412, 0.0
      %vm2470 = vcmp.ge.f32.partialorder %v2415, 0.0
      %vm2471 = vcmp.ge.f32.partialorder %v2417, 0.0
      %vm2472 = vcmp.ge.f32.partialorder %v2420, 0.0
      %vm2473 = vcmp.ge.f32.partialorder %v2422, 0.0
      %vm2474 = vcmp.ge.f32.partialorder %v2425, 0.0
      %vm2475 = vcmp.ge.f32.partialorder %v2427, 0.0
      %vm2476 = vcmp.ge.f32.partialorder %v2430, 0.0
      %vm2477 = vcmp.ge.f32.partialorder %v2432, 0.0
      %vm2478 = vcmp.ge.f32.partialorder %v2435, 0.0
      %vm2479 = vcmp.ge.f32.partialorder %v2437, 0.0
      %vm2480 = vcmp.ge.f32.partialorder %v2440, 0.0
      %vm2481 = vcmp.ge.f32.partialorder %v2442, 0.0
      %vm2482 = vcmp.ge.f32.partialorder %v2445, 0.0
      %vm2483 = vcmp.ge.f32.partialorder %v2447, 0.0
      %vm2484 = vcmp.ge.f32.partialorder %v2450, 0.0
      %vm2485 = vcmp.ge.f32.partialorder %v2452, 0.0
      %v2486 = vmul.f32 %v2375, 0.1
      %v2487 = vmul.f32 %v2377, 0.1
      %v2488 = vmul.f32 %v2380, 0.1
      %v2489 = vmul.f32 %v2382, 0.1
      %v2490 = vmul.f32 %v2385, 0.1
      %v2491 = vmul.f32 %v2387, 0.1
      %v2492 = vmul.f32 %v2390, 0.1
      %v2493 = vmul.f32 %v2392, 0.1
      %v2494 = vmul.f32 %v2395, 0.1
      %v2495 = vmul.f32 %v2397, 0.1
      %v2496 = vmul.f32 %v2400, 0.1
      %v2497 = vmul.f32 %v2402, 0.1
      %v2498 = vmul.f32 %v2405, 0.1
      %v2499 = vmul.f32 %v2407, 0.1
      %v2500 = vmul.f32 %v2410, 0.1
      %v2501 = vmul.f32 %v2412, 0.1
      %v2502 = vmul.f32 %v2415, 0.1
      %v2503 = vmul.f32 %v2417, 0.1
      %v2504 = vmul.f32 %v2420, 0.1
      %v2505 = vmul.f32 %v2422, 0.1
      %v2506 = vmul.f32 %v2425, 0.1
      %v2507 = vmul.f32 %v2427, 0.1
      %v2508 = vmul.f32 %v2430, 0.1
      %v2509 = vmul.f32 %v2432, 0.1
      %v2510 = vmul.f32 %v2435, 0.1
      %v2511 = vmul.f32 %v2437, 0.1
      %v2512 = vmul.f32 %v2440, 0.1
      %v2513 = vmul.f32 %v2442, 0.1
      %v2514 = vmul.f32 %v2445, 0.1
      %v2515 = vmul.f32 %v2447, 0.1
      %v2516 = vmul.f32 %v2450, 0.1
      %v2517 = vmul.f32 %v2452, 0.1
      %v2518 = vsel %vm2454, %v2375, %v2486
      %v2519 = vsel %vm2455, %v2377, %v2487
      %v2520 = vsel %vm2456, %v2380, %v2488
      %v2521 = vsel %vm2457, %v2382, %v2489
      %v2522 = vsel %vm2458, %v2385, %v2490
      %v2523 = vsel %vm2459, %v2387, %v2491
      %v2524 = vsel %vm2460, %v2390, %v2492
      %v2525 = vsel %vm2461, %v2392, %v2493
      %v2526 = vsel %vm2462, %v2395, %v2494
      %v2527 = vsel %vm2463, %v2397, %v2495
      %v2528 = vsel %vm2464, %v2400, %v2496
      %v2529 = vsel %vm2465, %v2402, %v2497
      %v2530 = vsel %vm2466, %v2405, %v2498
      %v2531 = vsel %vm2467, %v2407, %v2499
      %v2532 = vsel %vm2468, %v2410, %v2500
      %v2533 = vsel %vm2469, %v2412, %v2501
      %v2534 = vsel %vm2470, %v2415, %v2502
      %v2535 = vsel %vm2471, %v2417, %v2503
      %v2536 = vsel %vm2472, %v2420, %v2504
      %v2537 = vsel %vm2473, %v2422, %v2505
      %v2538 = vsel %vm2474, %v2425, %v2506
      %v2539 = vsel %vm2475, %v2427, %v2507
      %v2540 = vsel %vm2476, %v2430, %v2508
      %v2541 = vsel %vm2477, %v2432, %v2509
      %v2542 = vsel %vm2478, %v2435, %v2510
      %v2543 = vsel %vm2479, %v2437, %v2511
      %v2544 = vsel %vm2480, %v2440, %v2512
      %v2545 = vsel %vm2481, %v2442, %v2513
      %v2546 = vsel %vm2482, %v2445, %v2514
      %v2547 = vsel %vm2483, %v2447, %v2515
      %v2548 = vsel %vm2484, %v2450, %v2516
      %v2549 = vsel %vm2485, %v2452, %v2517
      %v2550 = vpack.c.bf16 %v2518, %v2518
      %v2551 = vpack.c.bf16 %v2519, %v2519
      %v2552 = vpack.c.bf16 %v2520, %v2520
      %v2553 = vpack.c.bf16 %v2521, %v2521
      %v2554 = vpack.c.bf16 %v2522, %v2522
      %v2555 = vpack.c.bf16 %v2523, %v2523
      %v2556 = vpack.c.bf16 %v2524, %v2524
      %v2557 = vpack.c.bf16 %v2525, %v2525
      %v2558 = vpack.c.bf16 %v2526, %v2526
      %v2559 = vpack.c.bf16 %v2527, %v2527
      %v2560 = vpack.c.bf16 %v2528, %v2528
      %v2561 = vpack.c.bf16 %v2529, %v2529
      %v2562 = vpack.c.bf16 %v2530, %v2530
      %v2563 = vpack.c.bf16 %v2531, %v2531
      %v2564 = vpack.c.bf16 %v2532, %v2532
      %v2565 = vpack.c.bf16 %v2533, %v2533
      %v2566 = vpack.c.bf16 %v2534, %v2534
      %v2567 = vpack.c.bf16 %v2535, %v2535
      %v2568 = vpack.c.bf16 %v2536, %v2536
      %v2569 = vpack.c.bf16 %v2537, %v2537
      %v2570 = vpack.c.bf16 %v2538, %v2538
      %v2571 = vpack.c.bf16 %v2539, %v2539
      %v2572 = vpack.c.bf16 %v2540, %v2540
      %v2573 = vpack.c.bf16 %v2541, %v2541
      %v2574 = vpack.c.bf16 %v2542, %v2542
      %v2575 = vpack.c.bf16 %v2543, %v2543
      %v2576 = vpack.c.bf16 %v2544, %v2544
      %v2577 = vpack.c.bf16 %v2545, %v2545
      %v2578 = vpack.c.bf16 %v2546, %v2546
      %v2579 = vpack.c.bf16 %v2547, %v2547
      %v2580 = vpack.c.bf16 %v2548, %v2548
      %v2581 = vpack.c.bf16 %v2549, %v2549
      %2582 = vst [vmem:[%s175] sm:$0xf] %v2550
      %2583 = vst [vmem:[%s175 + $0x4] sm:$0xf] %v2551
      %2584 = vst [vmem:[%s175 + $0x8] sm:$0xf] %v2552
      %2585 = vst [vmem:[%s175 + $0xc] sm:$0xf] %v2553
      %2586 = vst [vmem:[%s175 + $0x10] sm:$0xf] %v2554
      %2587 = vst [vmem:[%s175 + $0x14] sm:$0xf] %v2555
      %2588 = vst [vmem:[%s175 + $0x18] sm:$0xf] %v2556
      %2589 = vst [vmem:[%s175 + $0x1c] sm:$0xf] %v2557
      %2590 = vst [vmem:[%s175 + $0x20] sm:$0xf] %v2558
      %2591 = vst [vmem:[%s175 + $0x24] sm:$0xf] %v2559
      %2592 = vst [vmem:[%s175 + $0x28] sm:$0xf] %v2560
      %2593 = vst [vmem:[%s175 + $0x2c] sm:$0xf] %v2561
      %2594 = vst [vmem:[%s175 + $0x30] sm:$0xf] %v2562
      %2595 = vst [vmem:[%s175 + $0x34] sm:$0xf] %v2563
      %2596 = vst [vmem:[%s175 + $0x38] sm:$0xf] %v2564
      %2597 = vst [vmem:[%s175 + $0x3c] sm:$0xf] %v2565
      %2598 = vst [vmem:[%s175 + $0x40] sm:$0xf] %v2566
      %2599 = vst [vmem:[%s175 + $0x44] sm:$0xf] %v2567
      %2600 = vst [vmem:[%s175 + $0x48] sm:$0xf] %v2568
      %2601 = vst [vmem:[%s175 + $0x4c] sm:$0xf] %v2569
      %2602 = vst [vmem:[%s175 + $0x50] sm:$0xf] %v2570
      %2603 = vst [vmem:[%s175 + $0x54] sm:$0xf] %v2571
      %2604 = vst [vmem:[%s175 + $0x58] sm:$0xf] %v2572
      %2605 = vst [vmem:[%s175 + $0x5c] sm:$0xf] %v2573
      %2606 = vst [vmem:[%s175 + $0x60] sm:$0xf] %v2574
      %2607 = vst [vmem:[%s175 + $0x64] sm:$0xf] %v2575
      %2608 = vst [vmem:[%s175 + $0x68] sm:$0xf] %v2576
      %2609 = vst [vmem:[%s175 + $0x6c] sm:$0xf] %v2577
      %2610 = vst [vmem:[%s175 + $0x70] sm:$0xf] %v2578
      %2611 = vst [vmem:[%s175 + $0x74] sm:$0xf] %v2579
      %2612 = vst [vmem:[%s175 + $0x78] sm:$0xf] %v2580
      %2613 = vst [vmem:[%s175 + $0x7c] sm:$0xf] %v2581
      %s2614 = smul.u32 32, %s14
      %p2615 = scmp.lt.s32.totalorder %s2614, 63
      %s2616 = scalar_select %p2615, %s2614, 63
      %s2617 = smul.addr %s2616, 4
      %s2618 = scalar_lea.vmem %s3, %s2617
      // Predicated region
      $region33: #{ed_regression_forward.36} parent=31 // pred_check
        %p2619 = pneg %p100
      $region34: #{ed_regression_forward.36} parent=31 // pred_check_branch
        %2621 = sbr.rel (%p2619) target = $region36
      $region35: #{ed_regression_forward.36} parent=31 // pred_region
        %s2622 = smul.u32 32, %s14
      $region36: #{ed_regression_forward.36} parent=31 // pred_fallthru
        _
    $region32: #{ed_regression_forward.36} parent=5 // pred_fallthru
      _
    %p2623 = scmp.le.s32.totalorder 2, %s9
    // Predicated region
    $region37: #{ed_regression_forward.36} parent=5 // pred_check
      %p2624 = pneg %p2623
    $region38: #{ed_regression_forward.36} parent=5 // pred_check_branch
      %2626 = sbr.rel (%p2624) target = $region40
    $region39: #{ed_regression_forward.36} parent=5 // pred_region
      %s2627 = ssub.s32 %s9, 2
      // Predicated region
      $region41: #{ed_regression_forward.36} parent=39 // pred_check
        %p2628 = pneg %p106
      $region42: #{ed_regression_forward.36} parent=39 // pred_check_branch
        %2630 = sbr.rel (%p2628) target = $region44
      $region43: #{ed_regression_forward.36} parent=39 // pred_region
        %s2631 = smul.u32 32, %s15
        %p2632 = scmp.lt.s32.totalorder %s2631, 63
        %s2633 = scalar_select %p2632, %s2631, 63
        %s2634 = smul.addr %s2633, 4
        %s2635 = scalar_lea.vmem %s3, %s2634
      $region44: #{ed_regression_forward.36} parent=39 // pred_fallthru
        _
    $region40: #{ed_regression_forward.36} parent=5 // pred_fallthru
      _
  $region6: #{ed_regression_forward.36} parent=0 // loop_footer
    %s13 = sadd.s32 1, %s9
  $region7: #{ed_regression_forward.36} parent=0 // loop_footer_branch
    %8 = sbr.rel target = $region3
  $region8: #{ed_regression_forward.36} parent=0 // loop_exit
    _

// kernel: ed_regression_forward.37
$region0: #{ed_regression_forward.37}
  #allocation0 [shape = 'u32[]', space=smem, size = 0x4, offset = 0x4, fixed_abs, tag = 'smem constant byte address 0x4 - core index']
  #allocation1 [shape = 'u32[72,128]{1,0:T(1,128)}', space=vmem, size = 0x9000, scoped, tag = 'internal scratch']
  %s0 = inlined_call_operand.vmem [shape: bf16[512,576], index: 0, kind: input, shape index: {}]
  %s1 = inlined_call_operand.vmem [shape: bf16[576,128], index: 1, kind: input, shape index: {}]
  %s2 = inlined_call_operand.vmem [shape: f32[1,128], index: 2, kind: input, shape index: {}]
  %s3 = inlined_call_operand.vmem [shape: f32[512,128], index: 3, kind: output, shape index: {}]
  %s4 = sld [smem:[#allocation0]]
  $region45: #{ed_regression_forward.37} parent=0
    _
  %s6 = ssub.s32 1, %s4
  %s7 = scalar_select 0, %s6, %s4
  loop: start=0, step=1, limit=4
  $region2: #{ed_regression_forward.37} parent=0 // loop_pre_header
    _
  $region3: #{ed_regression_forward.37} parent=0 // loop_header
    %s9 = sphi 0, %s13
    %p10 = scmp.ge.s32.totalorder %s9, 4
    %s19 = sphi 0, %s21
    %s22 = sphi 0, %s19
    %s23 = sphi 0, %s22
    %s39 = sphi 0, %s23
    %s43 = sphi 0, %s43
    %s45 = sphi 0, %s43
    %s46 = sphi 0, %s45
    %s60 = sphi 0, %s46
    %s64 = sphi 0, %s64
    %s66 = sphi 0, %s64
    %s67 = sphi 0, %s66
    %s81 = sphi 0, %s67
    %s87 = sphi 0, %s89
    %s90 = sphi 0, %s87
    %s91 = sphi 0, %s90
    %s107 = sphi 0, %s91
  $region4: #{ed_regression_forward.37} parent=0 // loop_header_branch
    %12 = sbr.rel (%p10) target = $region8
  $region5: #{ed_regression_forward.37} parent=0 // loop_body
    %s14 = ssub.s32 %s9, 1
    %s15 = ssub.s32 %s9, 2
    %s16 = sadd.s32 %s9, 1
    %s17 = ssub.s32 %s9, %s16
    %p18 = scmp.eq.s32.totalorder %s17, 0
    %s20 = sadd.s32 %s19, 1
    %s21 = scalar_select %p18, %s19, %s20
    %p24 = pneg %p18
    %p25 = scmp.eq.s32.totalorder %s9, 1
    %p26 = por %p24, %p25
    %p27 = scmp.ne.s32.totalorder %s19, %s22
    %p28 = scmp.eq.s32.totalorder %s9, 0
    %p29 = por %p27, %p28
    %p30 = scmp.ne.s32.totalorder %s19, %s22
    %p31 = scmp.eq.s32.totalorder %s14, 1
    %p32 = por %p30, %p31
    %p33 = scmp.ne.s32.totalorder %s22, %s23
    %p34 = scmp.eq.s32.totalorder %s14, 0
    %p35 = por %p33, %p34
    %p36 = scmp.ne.s32.totalorder %s22, %s23
    %p37 = scmp.eq.s32.totalorder %s15, 1
    %p38 = por %p36, %p37
    %p40 = scmp.ne.s32.totalorder %s23, %s39
    %p41 = scmp.eq.s32.totalorder %s15, 0
    %p42 = por %p40, %p41
    %s44 = sadd.s32 %s43, 1
    %p47 = scmp.eq.s32.totalorder %s9, 1
    %p48 = scmp.ne.s32.totalorder %s43, %s45
    %p49 = scmp.eq.s32.totalorder %s9, 0
    %p50 = por %p48, %p49
    %p51 = scmp.ne.s32.totalorder %s43, %s45
    %p52 = scmp.eq.s32.totalorder %s14, 1
    %p53 = por %p51, %p52
    %p54 = scmp.ne.s32.totalorder %s45, %s46
    %p55 = scmp.eq.s32.totalorder %s14, 0
    %p56 = por %p54, %p55
    %p57 = scmp.ne.s32.totalorder %s45, %s46
    %p58 = scmp.eq.s32.totalorder %s15, 1
    %p59 = por %p57, %p58
    %p61 = scmp.ne.s32.totalorder %s46, %s60
    %p62 = scmp.eq.s32.totalorder %s15, 0
    %p63 = por %p61, %p62
    %s65 = sadd.s32 %s64, 1
    %p68 = scmp.eq.s32.totalorder %s9, 1
    %p69 = scmp.ne.s32.totalorder %s64, %s66
    %p70 = scmp.eq.s32.totalorder %s9, 0
    %p71 = por %p69, %p70
    %p72 = scmp.ne.s32.totalorder %s64, %s66
    %p73 = scmp.eq.s32.totalorder %s14, 1
    %p74 = por %p72, %p73
    %p75 = scmp.ne.s32.totalorder %s66, %s67
    %p76 = scmp.eq.s32.totalorder %s14, 0
    %p77 = por %p75, %p76
    %p78 = scmp.ne.s32.totalorder %s66, %s67
    %p79 = scmp.eq.s32.totalorder %s15, 1
    %p80 = por %p78, %p79
    %p82 = scmp.ne.s32.totalorder %s67, %s81
    %p83 = scmp.eq.s32.totalorder %s15, 0
    %p84 = por %p82, %p83
    %s85 = ssub.s32 %s9, %s16
    %p86 = scmp.eq.s32.totalorder %s85, 0
    %s88 = sadd.s32 %s87, 1
    %s89 = scalar_select %p86, %s87, %s88
    %p92 = pneg %p86
    %p93 = scmp.eq.s32.totalorder %s9, 1
    %p94 = por %p92, %p93
    %p95 = scmp.ne.s32.totalorder %s87, %s90
    %p96 = scmp.eq.s32.totalorder %s9, 0
    %p97 = por %p95, %p96
    %p98 = scmp.ne.s32.totalorder %s87, %s90
    %p99 = scmp.eq.s32.totalorder %s14, 1
    %p100 = por %p98, %p99
    %p101 = scmp.ne.s32.totalorder %s90, %s91
    %p102 = scmp.eq.s32.totalorder %s14, 0
    %p103 = por %p101, %p102
    %p104 = scmp.ne.s32.totalorder %s90, %s91
    %p105 = scmp.eq.s32.totalorder %s15, 1
    %p106 = por %p104, %p105
    %p108 = scmp.ne.s32.totalorder %s91, %s107
    %p109 = scmp.eq.s32.totalorder %s15, 0
    %p110 = por %p108, %p109
    %p111 = scmp.le.s32.totalorder 1, %s9
    %p112 = scmp.lt.s32.totalorder %s9, 3
    %p113 = pnand %p111, %p112
    %p114 = pneg %p113
    // Predicated region
    $region9: #{ed_regression_forward.37} parent=5 // pred_check
      _
    $region10: #{ed_regression_forward.37} parent=5 // pred_check_branch
      %116 = sbr.rel (%p113) target = $region12
    $region11: #{ed_regression_forward.37} parent=5 // pred_region
      %s117 = ssub.s32 %s9, 1
      // Predicated region
      $region13: #{ed_regression_forward.37} parent=11 // pred_check
        %p118 = pneg %p56
      $region14: #{ed_regression_forward.37} parent=11 // pred_check_branch
        %120 = sbr.rel (%p118) target = $region16
      $region15: #{ed_regression_forward.37} parent=11 // pred_region
        _
      $region16: #{ed_regression_forward.37} parent=11 // pred_fallthru
        _
      // Predicated region
      $region17: #{ed_regression_forward.37} parent=11 // pred_check
        %p121 = pneg %p77
      $region18: #{ed_regression_forward.37} parent=11 // pred_check_branch
        %123 = sbr.rel (%p121) target = $region20
      $region19: #{ed_regression_forward.37} parent=11 // pred_region
        _
      $region20: #{ed_regression_forward.37} parent=11 // pred_fallthru
        _
    $region12: #{ed_regression_forward.37} parent=5 // pred_fallthru
      _
    %p124 = scmp.lt.s32.totalorder %s9, 2
    // Predicated region
    $region21: #{ed_regression_forward.37} parent=5 // pred_check
      %p125 = pneg %p124
    $region22: #{ed_regression_forward.37} parent=5 // pred_check_branch
      %127 = sbr.rel (%p125) target = $region24
    $region23: #{ed_regression_forward.37} parent=5 // pred_region
      // Predicated region
      $region25: #{ed_regression_forward.37} parent=23 // pred_check
        %p128 = pneg %p29
      $region26: #{ed_regression_forward.37} parent=23 // pred_check_branch
        %130 = sbr.rel (%p128) target = $region28
      $region27: #{ed_regression_forward.37} parent=23 // pred_region
        %s131 = smul.u32 32, %s9
        %p132 = scmp.lt.s32.totalorder %s131, 63
        %s133 = scalar_select %p132, %s131, 63
        %s134 = smul.addr %s133, 5
        %s135 = smul.addr %s134, 4
        %s136 = scalar_lea.vmem %s0, %s135
        %s137 = smul.u32 32, %s9
      $region28: #{ed_regression_forward.37} parent=23 // pred_fallthru
        _
    $region24: #{ed_regression_forward.37} parent=5 // pred_fallthru
      _
    %p138 = scmp.le.s32.totalorder 1, %s9
    %p139 = scmp.lt.s32.totalorder %s9, 3
    %p140 = pnand %p138, %p139
    %p141 = pneg %p140
    // Predicated region
    $region29: #{ed_regression_forward.37} parent=5 // pred_check
      _
    $region30: #{ed_regression_forward.37} parent=5 // pred_check_branch
      %143 = sbr.rel (%p140) target = $region32
    $region31: #{ed_regression_forward.37} parent=5 // pred_region
      %s144 = ssub.s32 %s9, 1
      %s145 = smul.u32 32, %s14
      %p146 = scmp.lt.s32.totalorder %s145, 63
      %s147 = scalar_select %p146, %s145, 63
      %s148 = smul.addr %s147, 5
      %s149 = smul.addr %s148, 4
      %s150 = scalar_lea.vmem %s0, %s149
      %p151 = pneg %p35
      %p152 = pneg %p32
      %p153 = pneg %p56
      %p154 = pneg %p53
      %p155 = pneg %p77
      %p156 = pneg %p74
      %p157 = pneg %p103
      %p158 = pneg %p100
      %s159 = smul.u32 32, %s14
      %p160 = scmp.lt.s32.totalorder %s159, 63
      %s161 = scalar_select %p160, %s159, 63
      %s162 = smul.addr %s161, 8
      %s163 = scalar_lea.vmem %s3, %s162
      %s164 = smul.u32 32, %s14
      %p165 = scmp.lt.s32.totalorder %s164, 63
      %s166 = scalar_select %p165, %s164, 63
      %s167 = smul.addr %s166, 5
      %s168 = smul.addr %s167, 4
      %s169 = scalar_lea.vmem %s0, %s168
      %s170 = smul.u32 32, %s14
      %s171 = smul.u32 32, %s14
      %p172 = scmp.lt.s32.totalorder %s171, 63
      %s173 = scalar_select %p172, %s171, 63
      %s174 = smul.addr %s173, 8
      %s175 = scalar_lea.vmem %s3, %s174
      %s176 = smul.u32 32, %s14
      %v178 = vld [vmem:[%s169] sm:$0xff]
      %v179 = vld [vmem:[%s169 + $0x8] sm:$0xff]
      %v180 = vld [vmem:[%s169 + $0x10] sm:$0xf]
      %v181 = vld [vmem:[%s169 + $0x14] sm:$0xff]
      %v182 = vld [vmem:[%s169 + $0x1c] sm:$0xff]
      %v183 = vld [vmem:[%s169 + $0x24] sm:$0xf]
      %v184 = vld [vmem:[%s169 + $0x28] sm:$0xff]
      %v185 = vld [vmem:[%s169 + $0x30] sm:$0xff]
      %v186 = vld [vmem:[%s169 + $0x38] sm:$0xf]
      %v187 = vld [vmem:[%s169 + $0x3c] sm:$0xff]
      %v188 = vld [vmem:[%s169 + $0x44] sm:$0xff]
      %v189 = vld [vmem:[%s169 + $0x4c] sm:$0xf]
      %v190 = vld [vmem:[%s169 + $0x50] sm:$0xff]
      %v191 = vld [vmem:[%s169 + $0x58] sm:$0xff]
      %v192 = vld [vmem:[%s169 + $0x60] sm:$0xf]
      %v193 = vld [vmem:[%s169 + $0x64] sm:$0xff]
      %v194 = vld [vmem:[%s169 + $0x6c] sm:$0xff]
      %v195 = vld [vmem:[%s169 + $0x74] sm:$0xf]
      %v196 = vld [vmem:[%s169 + $0x78] sm:$0xff]
      %v197 = vld [vmem:[%s169 + $0x80] sm:$0xff]
      %v198 = vld [vmem:[%s169 + $0x88] sm:$0xf]
      %v199 = vld [vmem:[%s169 + $0x8c] sm:$0xff]
      %v200 = vld [vmem:[%s169 + $0x94] sm:$0xff]
      %v201 = vld [vmem:[%s169 + $0x9c] sm:$0xf]
      %v202 = vld [vmem:[%s169 + $0xa0] sm:$0xff]
      %v203 = vld [vmem:[%s169 + $0xa8] sm:$0xff]
      %v204 = vld [vmem:[%s169 + $0xb0] sm:$0xf]
      %v205 = vld [vmem:[%s169 + $0xb4] sm:$0xff]
      %v206 = vld [vmem:[%s169 + $0xbc] sm:$0xff]
      %v207 = vld [vmem:[%s169 + $0xc4] sm:$0xf]
      %v208 = vld [vmem:[%s169 + $0xc8] sm:$0xff]
      %v209 = vld [vmem:[%s169 + $0xd0] sm:$0xff]
      %v210 = vld [vmem:[%s169 + $0xd8] sm:$0xf]
      %v211 = vld [vmem:[%s169 + $0xdc] sm:$0xff]
      %v212 = vld [vmem:[%s169 + $0xe4] sm:$0xff]
      %v213 = vld [vmem:[%s169 + $0xec] sm:$0xf]
      %v214 = vld [vmem:[%s169 + $0xf0] sm:$0xff]
      %v215 = vld [vmem:[%s169 + $0xf8] sm:$0xff]
      %v216 = vld [vmem:[%s169 + $0x100] sm:$0xf]
      %v217 = vld [vmem:[%s169 + $0x104] sm:$0xff]
      %v218 = vld [vmem:[%s169 + $0x10c] sm:$0xff]
      %v219 = vld [vmem:[%s169 + $0x114] sm:$0xf]
      %v220 = vld [vmem:[%s169 + $0x118] sm:$0xff]
      %v221 = vld [vmem:[%s169 + $0x120] sm:$0xff]
      %v222 = vld [vmem:[%s169 + $0x128] sm:$0xf]
      %v223 = vld [vmem:[%s169 + $0x12c] sm:$0xff]
      %v224 = vld [vmem:[%s169 + $0x134] sm:$0xff]
      %v225 = vld [vmem:[%s169 + $0x13c] sm:$0xf]
      %v226 = vld [vmem:[%s169 + $0x140] sm:$0xff]
      %v227 = vld [vmem:[%s169 + $0x148] sm:$0xff]
      %v228 = vld [vmem:[%s169 + $0x150] sm:$0xf]
      %v229 = vld [vmem:[%s169 + $0x154] sm:$0xff]
      %v230 = vld [vmem:[%s169 + $0x15c] sm:$0xff]
      %v231 = vld [vmem:[%s169 + $0x164] sm:$0xf]
      %v232 = vld [vmem:[%s169 + $0x168] sm:$0xff]
      %v233 = vld [vmem:[%s169 + $0x170] sm:$0xff]
      %v234 = vld [vmem:[%s169 + $0x178] sm:$0xf]
      %v235 = vld [vmem:[%s169 + $0x17c] sm:$0xff]
      %v236 = vld [vmem:[%s169 + $0x184] sm:$0xff]
      %v237 = vld [vmem:[%s169 + $0x18c] sm:$0xf]
      %v238 = vld [vmem:[%s169 + $0x190] sm:$0xff]
      %v239 = vld [vmem:[%s169 + $0x198] sm:$0xff]
      %v240 = vld [vmem:[%s169 + $0x1a0] sm:$0xf]
      %v241 = vld [vmem:[%s169 + $0x1a4] sm:$0xff]
      %v242 = vld [vmem:[%s169 + $0x1ac] sm:$0xff]
      %v243 = vld [vmem:[%s169 + $0x1b4] sm:$0xf]
      %v244 = vld [vmem:[%s169 + $0x1b8] sm:$0xff]
      %v245 = vld [vmem:[%s169 + $0x1c0] sm:$0xff]
      %v246 = vld [vmem:[%s169 + $0x1c8] sm:$0xf]
      %v247 = vld [vmem:[%s169 + $0x1cc] sm:$0xff]
      %v248 = vld [vmem:[%s169 + $0x1d4] sm:$0xff]
      %v249 = vld [vmem:[%s169 + $0x1dc] sm:$0xf]
      %v250 = vld [vmem:[%s169 + $0x1e0] sm:$0xff]
      %v251 = vld [vmem:[%s169 + $0x1e8] sm:$0xff]
      %v252 = vld [vmem:[%s169 + $0x1f0] sm:$0xf]
      %v253 = vld [vmem:[%s169 + $0x1f4] sm:$0xff]
      %v254 = vld [vmem:[%s169 + $0x1fc] sm:$0xff]
      %v255 = vld [vmem:[%s169 + $0x204] sm:$0xf]
      %v256 = vld [vmem:[%s169 + $0x208] sm:$0xff]
      %v257 = vld [vmem:[%s169 + $0x210] sm:$0xff]
      %v258 = vld [vmem:[%s169 + $0x218] sm:$0xf]
      %v259 = vld [vmem:[%s169 + $0x21c] sm:$0xff]
      %v260 = vld [vmem:[%s169 + $0x224] sm:$0xff]
      %v261 = vld [vmem:[%s169 + $0x22c] sm:$0xf]
      %v262 = vld [vmem:[%s169 + $0x230] sm:$0xff]
      %v263 = vld [vmem:[%s169 + $0x238] sm:$0xff]
      %v264 = vld [vmem:[%s169 + $0x240] sm:$0xf]
      %v265 = vld [vmem:[%s169 + $0x244] sm:$0xff]
      %v266 = vld [vmem:[%s169 + $0x24c] sm:$0xff]
      %v267 = vld [vmem:[%s169 + $0x254] sm:$0xf]
      %v268 = vld [vmem:[%s169 + $0x258] sm:$0xff]
      %v269 = vld [vmem:[%s169 + $0x260] sm:$0xff]
      %v270 = vld [vmem:[%s169 + $0x268] sm:$0xf]
      %v271 = vld [vmem:[%s169 + $0x26c] sm:$0xff]
      %v272 = vld [vmem:[%s169 + $0x274] sm:$0xff]
      %v273 = vld [vmem:[%s169 + $0x27c] sm:$0xf]
      %v274 = vld [vmem:[%s1] sm:$0xf]
      %v275 = vld [vmem:[%s1 + $0x4] sm:$0xf]
      %v276 = vld [vmem:[%s1 + $0x8] sm:$0xf]
      %v277 = vld [vmem:[%s1 + $0xc] sm:$0xf]
      %v278 = vld [vmem:[%s1 + $0x10] sm:$0xf]
      %v279 = vld [vmem:[%s1 + $0x14] sm:$0xf]
      %v280 = vld [vmem:[%s1 + $0x18] sm:$0xf]
      %v281 = vld [vmem:[%s1 + $0x1c] sm:$0xf]
      %v282 = vld [vmem:[%s1 + $0x20] sm:$0xf]
      %v283 = vld [vmem:[%s1 + $0x24] sm:$0xf]
      %v284 = vld [vmem:[%s1 + $0x28] sm:$0xf]
      %v285 = vld [vmem:[%s1 + $0x2c] sm:$0xf]
      %v286 = vld [vmem:[%s1 + $0x30] sm:$0xf]
      %v287 = vld [vmem:[%s1 + $0x34] sm:$0xf]
      %v288 = vld [vmem:[%s1 + $0x38] sm:$0xf]
      %v289 = vld [vmem:[%s1 + $0x3c] sm:$0xf]
      %v290 = vld [vmem:[%s1 + $0x40] sm:$0xf]
      %v291 = vld [vmem:[%s1 + $0x44] sm:$0xf]
      %v292 = vld [vmem:[%s1 + $0x48] sm:$0xf]
      %v293 = vld [vmem:[%s1 + $0x4c] sm:$0xf]
      %v294 = vld [vmem:[%s1 + $0x50] sm:$0xf]
      %v295 = vld [vmem:[%s1 + $0x54] sm:$0xf]
      %v296 = vld [vmem:[%s1 + $0x58] sm:$0xf]
      %v297 = vld [vmem:[%s1 + $0x5c] sm:$0xf]
      %v298 = vld [vmem:[%s1 + $0x60] sm:$0xf]
      %v299 = vld [vmem:[%s1 + $0x64] sm:$0xf]
      %v300 = vld [vmem:[%s1 + $0x68] sm:$0xf]
      %v301 = vld [vmem:[%s1 + $0x6c] sm:$0xf]
      %v302 = vld [vmem:[%s1 + $0x70] sm:$0xf]
      %v303 = vld [vmem:[%s1 + $0x74] sm:$0xf]
      %v304 = vld [vmem:[%s1 + $0x78] sm:$0xf]
      %v305 = vld [vmem:[%s1 + $0x7c] sm:$0xf]
      %v306 = vld [vmem:[%s1 + $0x80] sm:$0xf]
      %v307 = vld [vmem:[%s1 + $0x84] sm:$0xf]
      %v308 = vld [vmem:[%s1 + $0x88] sm:$0xf]
      %v309 = vld [vmem:[%s1 + $0x8c] sm:$0xf]
      %v310 = vld [vmem:[%s1 + $0x90] sm:$0xf]
      %v311 = vld [vmem:[%s1 + $0x94] sm:$0xf]
      %v312 = vld [vmem:[%s1 + $0x98] sm:$0xf]
      %v313 = vld [vmem:[%s1 + $0x9c] sm:$0xf]
      %v314 = vld [vmem:[%s1 + $0xa0] sm:$0xf]
      %v315 = vld [vmem:[%s1 + $0xa4] sm:$0xf]
      %v316 = vld [vmem:[%s1 + $0xa8] sm:$0xf]
      %v317 = vld [vmem:[%s1 + $0xac] sm:$0xf]
      %v318 = vld [vmem:[%s1 + $0xb0] sm:$0xf]
      %v319 = vld [vmem:[%s1 + $0xb4] sm:$0xf]
      %v320 = vld [vmem:[%s1 + $0xb8] sm:$0xf]
      %v321 = vld [vmem:[%s1 + $0xbc] sm:$0xf]
      %v322 = vld [vmem:[%s1 + $0xc0] sm:$0xf]
      %v323 = vld [vmem:[%s1 + $0xc4] sm:$0xf]
      %v324 = vld [vmem:[%s1 + $0xc8] sm:$0xf]
      %v325 = vld [vmem:[%s1 + $0xcc] sm:$0xf]
      %v326 = vld [vmem:[%s1 + $0xd0] sm:$0xf]
      %v327 = vld [vmem:[%s1 + $0xd4] sm:$0xf]
      %v328 = vld [vmem:[%s1 + $0xd8] sm:$0xf]
      %v329 = vld [vmem:[%s1 + $0xdc] sm:$0xf]
      %v330 = vld [vmem:[%s1 + $0xe0] sm:$0xf]
      %v331 = vld [vmem:[%s1 + $0xe4] sm:$0xf]
      %v332 = vld [vmem:[%s1 + $0xe8] sm:$0xf]
      %v333 = vld [vmem:[%s1 + $0xec] sm:$0xf]
      %v334 = vld [vmem:[%s1 + $0xf0] sm:$0xf]
      %v335 = vld [vmem:[%s1 + $0xf4] sm:$0xf]
      %v336 = vld [vmem:[%s1 + $0xf8] sm:$0xf]
      %v337 = vld [vmem:[%s1 + $0xfc] sm:$0xf]
      %v338 = vld [vmem:[%s1 + $0x100] sm:$0xf]
      %v339 = vld [vmem:[%s1 + $0x104] sm:$0xf]
      %v340 = vld [vmem:[%s1 + $0x108] sm:$0xf]
      %v341 = vld [vmem:[%s1 + $0x10c] sm:$0xf]
      %v342 = vld [vmem:[%s1 + $0x110] sm:$0xf]
      %v343 = vld [vmem:[%s1 + $0x114] sm:$0xf]
      %v344 = vld [vmem:[%s1 + $0x118] sm:$0xf]
      %v345 = vld [vmem:[%s1 + $0x11c] sm:$0xf]
      %v346 = vld [vmem:[%s2] sm:$0x1]
      %v348 = vperm.slane %v346, 0
      %v446 = vunpack.c.l.b16 %v178
      %v447 = vunpack.c.h.b16 %v178
      %v448 = vunpack.c.l.b16 %v179
      %v449 = vunpack.c.h.b16 %v179
      %v450 = vunpack.c.l.b16 %v180
      %v451 = vunpack.c.l.b16 %v181
      %v452 = vunpack.c.h.b16 %v181
      %v453 = vunpack.c.l.b16 %v182
      %v454 = vunpack.c.h.b16 %v182
      %v455 = vunpack.c.l.b16 %v183
      %v456 = vunpack.c.l.b16 %v184
      %v457 = vunpack.c.h.b16 %v184
      %v458 = vunpack.c.l.b16 %v185
      %v459 = vunpack.c.h.b16 %v185
      %v460 = vunpack.c.l.b16 %v186
      %v461 = vunpack.c.l.b16 %v187
      %v462 = vunpack.c.h.b16 %v187
      %v463 = vunpack.c.l.b16 %v188
      %v464 = vunpack.c.h.b16 %v188
      %v465 = vunpack.c.l.b16 %v189
      %v466 = vunpack.c.l.b16 %v190
      %v467 = vunpack.c.h.b16 %v190
      %v468 = vunpack.c.l.b16 %v191
      %v469 = vunpack.c.h.b16 %v191
      %v470 = vunpack.c.l.b16 %v192
      %v471 = vunpack.c.l.b16 %v193
      %v472 = vunpack.c.h.b16 %v193
      %v473 = vunpack.c.l.b16 %v194
      %v474 = vunpack.c.h.b16 %v194
      %v475 = vunpack.c.l.b16 %v195
      %v476 = vunpack.c.l.b16 %v196
      %v477 = vunpack.c.h.b16 %v196
      %v478 = vunpack.c.l.b16 %v197
      %v479 = vunpack.c.h.b16 %v197
      %v480 = vunpack.c.l.b16 %v198
      %v481 = vunpack.c.l.b16 %v199
      %v482 = vunpack.c.h.b16 %v199
      %v483 = vunpack.c.l.b16 %v200
      %v484 = vunpack.c.h.b16 %v200
      %v485 = vunpack.c.l.b16 %v201
      %v486 = vunpack.c.l.b16 %v202
      %v487 = vunpack.c.h.b16 %v202
      %v488 = vunpack.c.l.b16 %v203
      %v489 = vunpack.c.h.b16 %v203
      %v490 = vunpack.c.l.b16 %v204
      %v491 = vunpack.c.l.b16 %v205
      %v492 = vunpack.c.h.b16 %v205
      %v493 = vunpack.c.l.b16 %v206
      %v494 = vunpack.c.h.b16 %v206
      %v495 = vunpack.c.l.b16 %v207
      %v496 = vunpack.c.l.b16 %v208
      %v497 = vunpack.c.h.b16 %v208
      %v498 = vunpack.c.l.b16 %v209
      %v499 = vunpack.c.h.b16 %v209
      %v500 = vunpack.c.l.b16 %v210
      %v501 = vunpack.c.l.b16 %v211
      %v502 = vunpack.c.h.b16 %v211
      %v503 = vunpack.c.l.b16 %v212
      %v504 = vunpack.c.h.b16 %v212
      %v505 = vunpack.c.l.b16 %v213
      %v506 = vunpack.c.l.b16 %v214
      %v507 = vunpack.c.h.b16 %v214
      %v508 = vunpack.c.l.b16 %v215
      %v509 = vunpack.c.h.b16 %v215
      %v510 = vunpack.c.l.b16 %v216
      %v511 = vunpack.c.l.b16 %v217
      %v512 = vunpack.c.h.b16 %v217
      %v513 = vunpack.c.l.b16 %v218
      %v514 = vunpack.c.h.b16 %v218
      %v515 = vunpack.c.l.b16 %v219
      %v516 = vunpack.c.l.b16 %v220
      %v517 = vunpack.c.h.b16 %v220
      %v518 = vunpack.c.l.b16 %v221
      %v519 = vunpack.c.h.b16 %v221
      %v520 = vunpack.c.l.b16 %v222
      %v521 = vunpack.c.l.b16 %v223
      %v522 = vunpack.c.h.b16 %v223
      %v523 = vunpack.c.l.b16 %v224
      %v524 = vunpack.c.h.b16 %v224
      %v525 = vunpack.c.l.b16 %v225
      %v526 = vunpack.c.l.b16 %v226
      %v527 = vunpack.c.h.b16 %v226
      %v528 = vunpack.c.l.b16 %v227
      %v529 = vunpack.c.h.b16 %v227
      %v530 = vunpack.c.l.b16 %v228
      %v531 = vunpack.c.l.b16 %v229
      %v532 = vunpack.c.h.b16 %v229
      %v533 = vunpack.c.l.b16 %v230
      %v534 = vunpack.c.h.b16 %v230
      %v535 = vunpack.c.l.b16 %v231
      %v536 = vunpack.c.l.b16 %v232
      %v537 = vunpack.c.h.b16 %v232
      %v538 = vunpack.c.l.b16 %v233
      %v539 = vunpack.c.h.b16 %v233
      %v540 = vunpack.c.l.b16 %v234
      %v541 = vunpack.c.l.b16 %v235
      %v542 = vunpack.c.h.b16 %v235
      %v543 = vunpack.c.l.b16 %v236
      %v544 = vunpack.c.h.b16 %v236
      %v545 = vunpack.c.l.b16 %v237
      %v546 = vunpack.c.l.b16 %v238
      %v547 = vunpack.c.h.b16 %v238
      %v548 = vunpack.c.l.b16 %v239
      %v549 = vunpack.c.h.b16 %v239
      %v550 = vunpack.c.l.b16 %v240
      %v551 = vunpack.c.l.b16 %v241
      %v552 = vunpack.c.h.b16 %v241
      %v553 = vunpack.c.l.b16 %v242
      %v554 = vunpack.c.h.b16 %v242
      %v555 = vunpack.c.l.b16 %v243
      %v556 = vunpack.c.l.b16 %v244
      %v557 = vunpack.c.h.b16 %v244
      %v558 = vunpack.c.l.b16 %v245
      %v559 = vunpack.c.h.b16 %v245
      %v560 = vunpack.c.l.b16 %v246
      %v561 = vunpack.c.l.b16 %v247
      %v562 = vunpack.c.h.b16 %v247
      %v563 = vunpack.c.l.b16 %v248
      %v564 = vunpack.c.h.b16 %v248
      %v565 = vunpack.c.l.b16 %v249
      %v566 = vunpack.c.l.b16 %v250
      %v567 = vunpack.c.h.b16 %v250
      %v568 = vunpack.c.l.b16 %v251
      %v569 = vunpack.c.h.b16 %v251
      %v570 = vunpack.c.l.b16 %v252
      %v571 = vunpack.c.l.b16 %v253
      %v572 = vunpack.c.h.b16 %v253
      %v573 = vunpack.c.l.b16 %v254
      %v574 = vunpack.c.h.b16 %v254
      %v575 = vunpack.c.l.b16 %v255
      %v576 = vunpack.c.l.b16 %v256
      %v577 = vunpack.c.h.b16 %v256
      %v578 = vunpack.c.l.b16 %v257
      %v579 = vunpack.c.h.b16 %v257
      %v580 = vunpack.c.l.b16 %v258
      %v581 = vunpack.c.l.b16 %v259
      %v582 = vunpack.c.h.b16 %v259
      %v583 = vunpack.c.l.b16 %v260
      %v584 = vunpack.c.h.b16 %v260
      %v585 = vunpack.c.l.b16 %v261
      %v586 = vunpack.c.l.b16 %v262
      %v587 = vunpack.c.h.b16 %v262
      %v588 = vunpack.c.l.b16 %v263
      %v589 = vunpack.c.h.b16 %v263
      %v590 = vunpack.c.l.b16 %v264
      %v591 = vunpack.c.l.b16 %v265
      %v592 = vunpack.c.h.b16 %v265
      %v593 = vunpack.c.l.b16 %v266
      %v594 = vunpack.c.h.b16 %v266
      %v595 = vunpack.c.l.b16 %v267
      %v596 = vunpack.c.l.b16 %v268
      %v597 = vunpack.c.h.b16 %v268
      %v598 = vunpack.c.l.b16 %v269
      %v599 = vunpack.c.h.b16 %v269
      %v600 = vunpack.c.l.b16 %v270
      %v601 = vunpack.c.l.b16 %v271
      %v602 = vunpack.c.h.b16 %v271
      %v603 = vunpack.c.l.b16 %v272
      %v604 = vunpack.c.h.b16 %v272
      %v605 = vunpack.c.l.b16 %v273
      %v606 = vpack.c.b16 %v451, %v446
      %v607 = vpack.c.b16 %v452, %v447
      %v608 = vpack.c.b16 %v453, %v448
      %v609 = vpack.c.b16 %v454, %v449
      %v610 = vpack.c.b16 %v455, %v450
      %v611 = vpack.c.b16 %v461, %v456
      %v612 = vpack.c.b16 %v462, %v457
      %v613 = vpack.c.b16 %v463, %v458
      %v614 = vpack.c.b16 %v464, %v459
      %v615 = vpack.c.b16 %v465, %v460
      %v616 = vpack.c.b16 %v471, %v466
      %v617 = vpack.c.b16 %v472, %v467
      %v618 = vpack.c.b16 %v473, %v468
      %v619 = vpack.c.b16 %v474, %v469
      %v620 = vpack.c.b16 %v475, %v470
      %v621 = vpack.c.b16 %v481, %v476
      %v622 = vpack.c.b16 %v482, %v477
      %v623 = vpack.c.b16 %v483, %v478
      %v624 = vpack.c.b16 %v484, %v479
      %v625 = vpack.c.b16 %v485, %v480
      %v626 = vpack.c.b16 %v491, %v486
      %v627 = vpack.c.b16 %v492, %v487
      %v628 = vpack.c.b16 %v493, %v488
      %v629 = vpack.c.b16 %v494, %v489
      %v630 = vpack.c.b16 %v495, %v490
      %v631 = vpack.c.b16 %v501, %v496
      %v632 = vpack.c.b16 %v502, %v497
      %v633 = vpack.c.b16 %v503, %v498
      %v634 = vpack.c.b16 %v504, %v499
      %v635 = vpack.c.b16 %v505, %v500
      %v636 = vpack.c.b16 %v511, %v506
      %v637 = vpack.c.b16 %v512, %v507
      %v638 = vpack.c.b16 %v513, %v508
      %v639 = vpack.c.b16 %v514, %v509
      %v640 = vpack.c.b16 %v515, %v510
      %v641 = vpack.c.b16 %v521, %v516
      %v642 = vpack.c.b16 %v522, %v517
      %v643 = vpack.c.b16 %v523, %v518
      %v644 = vpack.c.b16 %v524, %v519
      %v645 = vpack.c.b16 %v525, %v520
      %v646 = vpack.c.b16 %v531, %v526
      %v647 = vpack.c.b16 %v532, %v527
      %v648 = vpack.c.b16 %v533, %v528
      %v649 = vpack.c.b16 %v534, %v529
      %v650 = vpack.c.b16 %v535, %v530
      %v651 = vpack.c.b16 %v541, %v536
      %v652 = vpack.c.b16 %v542, %v537
      %v653 = vpack.c.b16 %v543, %v538
      %v654 = vpack.c.b16 %v544, %v539
      %v655 = vpack.c.b16 %v545, %v540
      %v656 = vpack.c.b16 %v551, %v546
      %v657 = vpack.c.b16 %v552, %v547
      %v658 = vpack.c.b16 %v553, %v548
      %v659 = vpack.c.b16 %v554, %v549
      %v660 = vpack.c.b16 %v555, %v550
      %v661 = vpack.c.b16 %v561, %v556
      %v662 = vpack.c.b16 %v562, %v557
      %v663 = vpack.c.b16 %v563, %v558
      %v664 = vpack.c.b16 %v564, %v559
      %v665 = vpack.c.b16 %v565, %v560
      %v666 = vpack.c.b16 %v571, %v566
      %v667 = vpack.c.b16 %v572, %v567
      %v668 = vpack.c.b16 %v573, %v568
      %v669 = vpack.c.b16 %v574, %v569
      %v670 = vpack.c.b16 %v575, %v570
      %v671 = vpack.c.b16 %v581, %v576
      %v672 = vpack.c.b16 %v582, %v577
      %v673 = vpack.c.b16 %v583, %v578
      %v674 = vpack.c.b16 %v584, %v579
      %v675 = vpack.c.b16 %v585, %v580
      %v676 = vpack.c.b16 %v591, %v586
      %v677 = vpack.c.b16 %v592, %v587
      %v678 = vpack.c.b16 %v593, %v588
      %v679 = vpack.c.b16 %v594, %v589
      %v680 = vpack.c.b16 %v595, %v590
      %v681 = vpack.c.b16 %v601, %v596
      %v682 = vpack.c.b16 %v602, %v597
      %v683 = vpack.c.b16 %v603, %v598
      %v684 = vpack.c.b16 %v604, %v599
      %v685 = vpack.c.b16 %v605, %v600
      %v822 = vunpack.c.l.b16 %v274
      %v823 = vunpack.c.l.b16 %v275
      %v824 = vunpack.c.l.b16 %v276
      %v825 = vunpack.c.l.b16 %v277
      %v826 = vunpack.c.l.b16 %v278
      %v827 = vunpack.c.l.b16 %v279
      %v828 = vunpack.c.l.b16 %v280
      %v829 = vunpack.c.l.b16 %v281
      %v830 = vunpack.c.l.b16 %v282
      %v831 = vunpack.c.l.b16 %v283
      %v832 = vunpack.c.l.b16 %v284
      %v833 = vunpack.c.l.b16 %v285
      %v834 = vunpack.c.l.b16 %v286
      %v835 = vunpack.c.l.b16 %v287
      %v836 = vunpack.c.l.b16 %v288
      %v837 = vunpack.c.l.b16 %v289
      %v838 = vunpack.c.l.b16 %v290
      %v839 = vunpack.c.l.b16 %v291
      %v840 = vunpack.c.l.b16 %v292
      %v841 = vunpack.c.l.b16 %v293
      %v842 = vunpack.c.l.b16 %v294
      %v843 = vunpack.c.l.b16 %v295
      %v844 = vunpack.c.l.b16 %v296
      %v845 = vunpack.c.l.b16 %v297
      %v846 = vunpack.c.l.b16 %v298
      %v847 = vunpack.c.l.b16 %v299
      %v848 = vunpack.c.l.b16 %v300
      %v849 = vunpack.c.l.b16 %v301
      %v850 = vunpack.c.l.b16 %v302
      %v851 = vunpack.c.l.b16 %v303
      %v852 = vunpack.c.l.b16 %v304
      %v853 = vunpack.c.l.b16 %v305
      %v854 = vunpack.c.l.b16 %v306
      %v855 = vunpack.c.l.b16 %v307
      %v856 = vunpack.c.l.b16 %v308
      %v857 = vunpack.c.l.b16 %v309
      %v858 = vunpack.c.l.b16 %v310
      %v859 = vunpack.c.l.b16 %v311
      %v860 = vunpack.c.l.b16 %v312
      %v861 = vunpack.c.l.b16 %v313
      %v862 = vunpack.c.l.b16 %v314
      %v863 = vunpack.c.l.b16 %v315
      %v864 = vunpack.c.l.b16 %v316
      %v865 = vunpack.c.l.b16 %v317
      %v866 = vunpack.c.l.b16 %v318
      %v867 = vunpack.c.l.b16 %v319
      %v868 = vunpack.c.l.b16 %v320
      %v869 = vunpack.c.l.b16 %v321
      %v870 = vunpack.c.l.b16 %v322
      %v871 = vunpack.c.l.b16 %v323
      %v872 = vunpack.c.l.b16 %v324
      %v873 = vunpack.c.l.b16 %v325
      %v874 = vunpack.c.l.b16 %v326
      %v875 = vunpack.c.l.b16 %v327
      %v876 = vunpack.c.l.b16 %v328
      %v877 = vunpack.c.l.b16 %v329
      %v878 = vunpack.c.l.b16 %v330
      %v879 = vunpack.c.l.b16 %v331
      %v880 = vunpack.c.l.b16 %v332
      %v881 = vunpack.c.l.b16 %v333
      %v882 = vunpack.c.l.b16 %v334
      %v883 = vunpack.c.l.b16 %v335
      %v884 = vunpack.c.l.b16 %v336
      %v885 = vunpack.c.l.b16 %v337
      %v886 = vunpack.c.l.b16 %v338
      %v887 = vunpack.c.l.b16 %v339
      %v888 = vunpack.c.l.b16 %v340
      %v889 = vunpack.c.l.b16 %v341
      %v890 = vunpack.c.l.b16 %v342
      %v891 = vunpack.c.l.b16 %v343
      %v892 = vunpack.c.l.b16 %v344
      %v893 = vunpack.c.l.b16 %v345
      %v894 = vpack.c.b16 %v823, %v822
      %v895 = vpack.c.b16 %v825, %v824
      %v896 = vpack.c.b16 %v827, %v826
      %v897 = vpack.c.b16 %v829, %v828
      %v898 = vpack.c.b16 %v831, %v830
      %v899 = vpack.c.b16 %v833, %v832
      %v900 = vpack.c.b16 %v835, %v834
      %v901 = vpack.c.b16 %v837, %v836
      %v902 = vpack.c.b16 %v839, %v838
      %v903 = vpack.c.b16 %v841, %v840
      %v904 = vpack.c.b16 %v843, %v842
      %v905 = vpack.c.b16 %v845, %v844
      %v906 = vpack.c.b16 %v847, %v846
      %v907 = vpack.c.b16 %v849, %v848
      %v908 = vpack.c.b16 %v851, %v850
      %v909 = vpack.c.b16 %v853, %v852
      %v910 = vpack.c.b16 %v855, %v854
      %v911 = vpack.c.b16 %v857, %v856
      %v912 = vpack.c.b16 %v859, %v858
      %v913 = vpack.c.b16 %v861, %v860
      %v914 = vpack.c.b16 %v863, %v862
      %v915 = vpack.c.b16 %v865, %v864
      %v916 = vpack.c.b16 %v867, %v866
      %v917 = vpack.c.b16 %v869, %v868
      %v918 = vpack.c.b16 %v871, %v870
      %v919 = vpack.c.b16 %v873, %v872
      %v920 = vpack.c.b16 %v875, %v874
      %v921 = vpack.c.b16 %v877, %v876
      %v922 = vpack.c.b16 %v879, %v878
      %v923 = vpack.c.b16 %v881, %v880
      %v924 = vpack.c.b16 %v883, %v882
      %v925 = vpack.c.b16 %v885, %v884
      %v926 = vpack.c.b16 %v887, %v886
      %v927 = vpack.c.b16 %v889, %v888
      %v928 = vpack.c.b16 %v891, %v890
      %v929 = vpack.c.b16 %v893, %v892
      %vm966 = vcmask 523264
      %v968 = vsel %vm966, %v610, 0
      %v971 = vsel %vm966, %v615, 0
      %v974 = vsel %vm966, %v620, 0
      %v977 = vsel %vm966, %v625, 0
      %v980 = vsel %vm966, %v630, 0
      %v983 = vsel %vm966, %v635, 0
      %v986 = vsel %vm966, %v640, 0
      %v989 = vsel %vm966, %v645, 0
      %v992 = vsel %vm966, %v650, 0
      %v995 = vsel %vm966, %v655, 0
      %v998 = vsel %vm966, %v660, 0
      %v1001 = vsel %vm966, %v665, 0
      %v1004 = vsel %vm966, %v670, 0
      %v1007 = vsel %vm966, %v675, 0
      %v1010 = vsel %vm966, %v680, 0
      %v1013 = vsel %vm966, %v685, 0
      %1015 = vmatpush.bf16.msra.mxu0 %v901
      %1016 = vmatpush.bf16.msra.mxu0 %v900
      %1017 = vmatpush.bf16.msra.mxu0 %v899
      %1018 = vmatpush.bf16.msra.mxu0 %v898
      %1019 = vmatpush.bf16.msra.mxu0 %v897
      %1020 = vmatpush.bf16.msra.mxu0 %v896
      %1021 = vmatpush.bf16.msra.mxu0 %v895
      %1022 = vmatpush.bf16.msra.mxu0 %v894
      %1023 = vmatmul.bf16.gmra.mxu0 %v606
      %v1024 = vpop.f32.mrf.mxu0
      %v1025 = vadd.f32 %v348, %v1024
      %v1026 = vpop.f32.mrf.mxu0
      %v1027 = vadd.f32 %v348, %v1026
      %1028 = vmatmul.bf16.gmra.mxu0 %v611
      %v1029 = vpop.f32.mrf.mxu0
      %v1030 = vadd.f32 %v348, %v1029
      %v1031 = vpop.f32.mrf.mxu0
      %v1032 = vadd.f32 %v348, %v1031
      %1033 = vmatmul.bf16.gmra.mxu0 %v616
      %v1034 = vpop.f32.mrf.mxu0
      %v1035 = vadd.f32 %v348, %v1034
      %v1036 = vpop.f32.mrf.mxu0
      %v1037 = vadd.f32 %v348, %v1036
      %1038 = vmatmul.bf16.gmra.mxu0 %v621
      %v1039 = vpop.f32.mrf.mxu0
      %v1040 = vadd.f32 %v348, %v1039
      %v1041 = vpop.f32.mrf.mxu0
      %v1042 = vadd.f32 %v348, %v1041
      %1043 = vmatmul.bf16.gmra.mxu0 %v626
      %v1044 = vpop.f32.mrf.mxu0
      %v1045 = vadd.f32 %v348, %v1044
      %v1046 = vpop.f32.mrf.mxu0
      %v1047 = vadd.f32 %v348, %v1046
      %1048 = vmatmul.bf16.gmra.mxu0 %v631
      %v1049 = vpop.f32.mrf.mxu0
      %v1050 = vadd.f32 %v348, %v1049
      %v1051 = vpop.f32.mrf.mxu0
      %v1052 = vadd.f32 %v348, %v1051
      %1053 = vmatmul.bf16.gmra.mxu0 %v636
      %v1054 = vpop.f32.mrf.mxu0
      %v1055 = vadd.f32 %v348, %v1054
      %v1056 = vpop.f32.mrf.mxu0
      %v1057 = vadd.f32 %v348, %v1056
      %1058 = vmatmul.bf16.gmra.mxu0 %v641
      %v1059 = vpop.f32.mrf.mxu0
      %v1060 = vadd.f32 %v348, %v1059
      %v1061 = vpop.f32.mrf.mxu0
      %v1062 = vadd.f32 %v348, %v1061
      %1063 = vmatmul.bf16.gmra.mxu0 %v646
      %v1064 = vpop.f32.mrf.mxu0
      %v1065 = vadd.f32 %v348, %v1064
      %v1066 = vpop.f32.mrf.mxu0
      %v1067 = vadd.f32 %v348, %v1066
      %1068 = vmatmul.bf16.gmra.mxu0 %v651
      %v1069 = vpop.f32.mrf.mxu0
      %v1070 = vadd.f32 %v348, %v1069
      %v1071 = vpop.f32.mrf.mxu0
      %v1072 = vadd.f32 %v348, %v1071
      %1073 = vmatmul.bf16.gmra.mxu0 %v656
      %v1074 = vpop.f32.mrf.mxu0
      %v1075 = vadd.f32 %v348, %v1074
      %v1076 = vpop.f32.mrf.mxu0
      %v1077 = vadd.f32 %v348, %v1076
      %1078 = vmatmul.bf16.gmra.mxu0 %v661
      %v1079 = vpop.f32.mrf.mxu0
      %v1080 = vadd.f32 %v348, %v1079
      %v1081 = vpop.f32.mrf.mxu0
      %v1082 = vadd.f32 %v348, %v1081
      %1083 = vmatmul.bf16.gmra.mxu0 %v666
      %v1084 = vpop.f32.mrf.mxu0
      %v1085 = vadd.f32 %v348, %v1084
      %v1086 = vpop.f32.mrf.mxu0
      %v1087 = vadd.f32 %v348, %v1086
      %1088 = vmatmul.bf16.gmra.mxu0 %v671
      %v1089 = vpop.f32.mrf.mxu0
      %v1090 = vadd.f32 %v348, %v1089
      %v1091 = vpop.f32.mrf.mxu0
      %v1092 = vadd.f32 %v348, %v1091
      %1093 = vmatmul.bf16.gmra.mxu0 %v676
      %v1094 = vpop.f32.mrf.mxu0
      %v1095 = vadd.f32 %v348, %v1094
      %v1096 = vpop.f32.mrf.mxu0
      %v1097 = vadd.f32 %v348, %v1096
      %1098 = vmatmul.bf16.gmra.mxu0 %v681
      %v1099 = vpop.f32.mrf.mxu0
      %v1100 = vadd.f32 %v348, %v1099
      %v1101 = vpop.f32.mrf.mxu0
      %v1102 = vadd.f32 %v348, %v1101
      %1103 = vdwg.mxu0
      %1104 = vmatpush.bf16.msra.mxu0 %v909
      %1105 = vmatpush.bf16.msra.mxu0 %v908
      %1106 = vmatpush.bf16.msra.mxu0 %v907
      %1107 = vmatpush.bf16.msra.mxu0 %v906
      %1108 = vmatpush.bf16.msra.mxu0 %v905
      %1109 = vmatpush.bf16.msra.mxu0 %v904
      %1110 = vmatpush.bf16.msra.mxu0 %v903
      %1111 = vmatpush.bf16.msra.mxu0 %v902
      %1112 = vmatmul.bf16.gmra.mxu0 %v607
      %v1113 = vpop.f32.mrf.mxu0
      %v1114 = vadd.f32 %v1025, %v1113
      %v1115 = vpop.f32.mrf.mxu0
      %v1116 = vadd.f32 %v1027, %v1115
      %1117 = vmatmul.bf16.gmra.mxu0 %v612
      %v1118 = vpop.f32.mrf.mxu0
      %v1119 = vadd.f32 %v1030, %v1118
      %v1120 = vpop.f32.mrf.mxu0
      %v1121 = vadd.f32 %v1032, %v1120
      %1122 = vmatmul.bf16.gmra.mxu0 %v617
      %v1123 = vpop.f32.mrf.mxu0
      %v1124 = vadd.f32 %v1035, %v1123
      %v1125 = vpop.f32.mrf.mxu0
      %v1126 = vadd.f32 %v1037, %v1125
      %1127 = vmatmul.bf16.gmra.mxu0 %v622
      %v1128 = vpop.f32.mrf.mxu0
      %v1129 = vadd.f32 %v1040, %v1128
      %v1130 = vpop.f32.mrf.mxu0
      %v1131 = vadd.f32 %v1042, %v1130
      %1132 = vmatmul.bf16.gmra.mxu0 %v627
      %v1133 = vpop.f32.mrf.mxu0
      %v1134 = vadd.f32 %v1045, %v1133
      %v1135 = vpop.f32.mrf.mxu0
      %v1136 = vadd.f32 %v1047, %v1135
      %1137 = vmatmul.bf16.gmra.mxu0 %v632
      %v1138 = vpop.f32.mrf.mxu0
      %v1139 = vadd.f32 %v1050, %v1138
      %v1140 = vpop.f32.mrf.mxu0
      %v1141 = vadd.f32 %v1052, %v1140
      %1142 = vmatmul.bf16.gmra.mxu0 %v637
      %v1143 = vpop.f32.mrf.mxu0
      %v1144 = vadd.f32 %v1055, %v1143
      %v1145 = vpop.f32.mrf.mxu0
      %v1146 = vadd.f32 %v1057, %v1145
      %1147 = vmatmul.bf16.gmra.mxu0 %v642
      %v1148 = vpop.f32.mrf.mxu0
      %v1149 = vadd.f32 %v1060, %v1148
      %v1150 = vpop.f32.mrf.mxu0
      %v1151 = vadd.f32 %v1062, %v1150
      %1152 = vmatmul.bf16.gmra.mxu0 %v647
      %v1153 = vpop.f32.mrf.mxu0
      %v1154 = vadd.f32 %v1065, %v1153
      %v1155 = vpop.f32.mrf.mxu0
      %v1156 = vadd.f32 %v1067, %v1155
      %1157 = vmatmul.bf16.gmra.mxu0 %v652
      %v1158 = vpop.f32.mrf.mxu0
      %v1159 = vadd.f32 %v1070, %v1158
      %v1160 = vpop.f32.mrf.mxu0
      %v1161 = vadd.f32 %v1072, %v1160
      %1162 = vmatmul.bf16.gmra.mxu0 %v657
      %v1163 = vpop.f32.mrf.mxu0
      %v1164 = vadd.f32 %v1075, %v1163
      %v1165 = vpop.f32.mrf.mxu0
      %v1166 = vadd.f32 %v1077, %v1165
      %1167 = vmatmul.bf16.gmra.mxu0 %v662
      %v1168 = vpop.f32.mrf.mxu0
      %v1169 = vadd.f32 %v1080, %v1168
      %v1170 = vpop.f32.mrf.mxu0
      %v1171 = vadd.f32 %v1082, %v1170
      %1172 = vmatmul.bf16.gmra.mxu0 %v667
      %v1173 = vpop.f32.mrf.mxu0
      %v1174 = vadd.f32 %v1085, %v1173
      %v1175 = vpop.f32.mrf.mxu0
      %v1176 = vadd.f32 %v1087, %v1175
      %1177 = vmatmul.bf16.gmra.mxu0 %v672
      %v1178 = vpop.f32.mrf.mxu0
      %v1179 = vadd.f32 %v1090, %v1178
      %v1180 = vpop.f32.mrf.mxu0
      %v1181 = vadd.f32 %v1092, %v1180
      %1182 = vmatmul.bf16.gmra.mxu0 %v677
      %v1183 = vpop.f32.mrf.mxu0
      %v1184 = vadd.f32 %v1095, %v1183
      %v1185 = vpop.f32.mrf.mxu0
      %v1186 = vadd.f32 %v1097, %v1185
      %1187 = vmatmul.bf16.gmra.mxu0 %v682
      %v1188 = vpop.f32.mrf.mxu0
      %v1189 = vadd.f32 %v1100, %v1188
      %v1190 = vpop.f32.mrf.mxu0
      %v1191 = vadd.f32 %v1102, %v1190
      %1192 = vdwg.mxu0
      %1193 = vmatpush.bf16.msra.mxu0 %v917
      %1194 = vmatpush.bf16.msra.mxu0 %v916
      %1195 = vmatpush.bf16.msra.mxu0 %v915
      %1196 = vmatpush.bf16.msra.mxu0 %v914
      %1197 = vmatpush.bf16.msra.mxu0 %v913
      %1198 = vmatpush.bf16.msra.mxu0 %v912
      %1199 = vmatpush.bf16.msra.mxu0 %v911
      %1200 = vmatpush.bf16.msra.mxu0 %v910
      %1201 = vmatmul.bf16.gmra.mxu0 %v608
      %v1202 = vpop.f32.mrf.mxu0
      %v1203 = vadd.f32 %v1114, %v1202
      %v1204 = vpop.f32.mrf.mxu0
      %v1205 = vadd.f32 %v1116, %v1204
      %1206 = vmatmul.bf16.gmra.mxu0 %v613
      %v1207 = vpop.f32.mrf.mxu0
      %v1208 = vadd.f32 %v1119, %v1207
      %v1209 = vpop.f32.mrf.mxu0
      %v1210 = vadd.f32 %v1121, %v1209
      %1211 = vmatmul.bf16.gmra.mxu0 %v618
      %v1212 = vpop.f32.mrf.mxu0
      %v1213 = vadd.f32 %v1124, %v1212
      %v1214 = vpop.f32.mrf.mxu0
      %v1215 = vadd.f32 %v1126, %v1214
      %1216 = vmatmul.bf16.gmra.mxu0 %v623
      %v1217 = vpop.f32.mrf.mxu0
      %v1218 = vadd.f32 %v1129, %v1217
      %v1219 = vpop.f32.mrf.mxu0
      %v1220 = vadd.f32 %v1131, %v1219
      %1221 = vmatmul.bf16.gmra.mxu0 %v628
      %v1222 = vpop.f32.mrf.mxu0
      %v1223 = vadd.f32 %v1134, %v1222
      %v1224 = vpop.f32.mrf.mxu0
      %v1225 = vadd.f32 %v1136, %v1224
      %1226 = vmatmul.bf16.gmra.mxu0 %v633
      %v1227 = vpop.f32.mrf.mxu0
      %v1228 = vadd.f32 %v1139, %v1227
      %v1229 = vpop.f32.mrf.mxu0
      %v1230 = vadd.f32 %v1141, %v1229
      %1231 = vmatmul.bf16.gmra.mxu0 %v638
      %v1232 = vpop.f32.mrf.mxu0
      %v1233 = vadd.f32 %v1144, %v1232
      %v1234 = vpop.f32.mrf.mxu0
      %v1235 = vadd.f32 %v1146, %v1234
      %1236 = vmatmul.bf16.gmra.mxu0 %v643
      %v1237 = vpop.f32.mrf.mxu0
      %v1238 = vadd.f32 %v1149, %v1237
      %v1239 = vpop.f32.mrf.mxu0
      %v1240 = vadd.f32 %v1151, %v1239
      %1241 = vmatmul.bf16.gmra.mxu0 %v648
      %v1242 = vpop.f32.mrf.mxu0
      %v1243 = vadd.f32 %v1154, %v1242
      %v1244 = vpop.f32.mrf.mxu0
      %v1245 = vadd.f32 %v1156, %v1244
      %1246 = vmatmul.bf16.gmra.mxu0 %v653
      %v1247 = vpop.f32.mrf.mxu0
      %v1248 = vadd.f32 %v1159, %v1247
      %v1249 = vpop.f32.mrf.mxu0
      %v1250 = vadd.f32 %v1161, %v1249
      %1251 = vmatmul.bf16.gmra.mxu0 %v658
      %v1252 = vpop.f32.mrf.mxu0
      %v1253 = vadd.f32 %v1164, %v1252
      %v1254 = vpop.f32.mrf.mxu0
      %v1255 = vadd.f32 %v1166, %v1254
      %1256 = vmatmul.bf16.gmra.mxu0 %v663
      %v1257 = vpop.f32.mrf.mxu0
      %v1258 = vadd.f32 %v1169, %v1257
      %v1259 = vpop.f32.mrf.mxu0
      %v1260 = vadd.f32 %v1171, %v1259
      %1261 = vmatmul.bf16.gmra.mxu0 %v668
      %v1262 = vpop.f32.mrf.mxu0
      %v1263 = vadd.f32 %v1174, %v1262
      %v1264 = vpop.f32.mrf.mxu0
      %v1265 = vadd.f32 %v1176, %v1264
      %1266 = vmatmul.bf16.gmra.mxu0 %v673
      %v1267 = vpop.f32.mrf.mxu0
      %v1268 = vadd.f32 %v1179, %v1267
      %v1269 = vpop.f32.mrf.mxu0
      %v1270 = vadd.f32 %v1181, %v1269
      %1271 = vmatmul.bf16.gmra.mxu0 %v678
      %v1272 = vpop.f32.mrf.mxu0
      %v1273 = vadd.f32 %v1184, %v1272
      %v1274 = vpop.f32.mrf.mxu0
      %v1275 = vadd.f32 %v1186, %v1274
      %1276 = vmatmul.bf16.gmra.mxu0 %v683
      %v1277 = vpop.f32.mrf.mxu0
      %v1278 = vadd.f32 %v1189, %v1277
      %v1279 = vpop.f32.mrf.mxu0
      %v1280 = vadd.f32 %v1191, %v1279
      %1281 = vdwg.mxu0
      %1282 = vmatpush.bf16.msra.mxu0 %v925
      %1283 = vmatpush.bf16.msra.mxu0 %v924
      %1284 = vmatpush.bf16.msra.mxu0 %v923
      %1285 = vmatpush.bf16.msra.mxu0 %v922
      %1286 = vmatpush.bf16.msra.mxu0 %v921
      %1287 = vmatpush.bf16.msra.mxu0 %v920
      %1288 = vmatpush.bf16.msra.mxu0 %v919
      %1289 = vmatpush.bf16.msra.mxu0 %v918
      %1290 = vmatmul.bf16.gmra.mxu0 %v609
      %v1291 = vpop.f32.mrf.mxu0
      %v1292 = vadd.f32 %v1203, %v1291
      %v1293 = vpop.f32.mrf.mxu0
      %v1294 = vadd.f32 %v1205, %v1293
      %1295 = vmatmul.bf16.gmra.mxu0 %v614
      %v1296 = vpop.f32.mrf.mxu0
      %v1297 = vadd.f32 %v1208, %v1296
      %v1298 = vpop.f32.mrf.mxu0
      %v1299 = vadd.f32 %v1210, %v1298
      %1300 = vmatmul.bf16.gmra.mxu0 %v619
      %v1301 = vpop.f32.mrf.mxu0
      %v1302 = vadd.f32 %v1213, %v1301
      %v1303 = vpop.f32.mrf.mxu0
      %v1304 = vadd.f32 %v1215, %v1303
      %1305 = vmatmul.bf16.gmra.mxu0 %v624
      %v1306 = vpop.f32.mrf.mxu0
      %v1307 = vadd.f32 %v1218, %v1306
      %v1308 = vpop.f32.mrf.mxu0
      %v1309 = vadd.f32 %v1220, %v1308
      %1310 = vmatmul.bf16.gmra.mxu0 %v629
      %v1311 = vpop.f32.mrf.mxu0
      %v1312 = vadd.f32 %v1223, %v1311
      %v1313 = vpop.f32.mrf.mxu0
      %v1314 = vadd.f32 %v1225, %v1313
      %1315 = vmatmul.bf16.gmra.mxu0 %v634
      %v1316 = vpop.f32.mrf.mxu0
      %v1317 = vadd.f32 %v1228, %v1316
      %v1318 = vpop.f32.mrf.mxu0
      %v1319 = vadd.f32 %v1230, %v1318
      %1320 = vmatmul.bf16.gmra.mxu0 %v639
      %v1321 = vpop.f32.mrf.mxu0
      %v1322 = vadd.f32 %v1233, %v1321
      %v1323 = vpop.f32.mrf.mxu0
      %v1324 = vadd.f32 %v1235, %v1323
      %1325 = vmatmul.bf16.gmra.mxu0 %v644
      %v1326 = vpop.f32.mrf.mxu0
      %v1327 = vadd.f32 %v1238, %v1326
      %v1328 = vpop.f32.mrf.mxu0
      %v1329 = vadd.f32 %v1240, %v1328
      %1330 = vmatmul.bf16.gmra.mxu0 %v649
      %v1331 = vpop.f32.mrf.mxu0
      %v1332 = vadd.f32 %v1243, %v1331
      %v1333 = vpop.f32.mrf.mxu0
      %v1334 = vadd.f32 %v1245, %v1333
      %1335 = vmatmul.bf16.gmra.mxu0 %v654
      %v1336 = vpop.f32.mrf.mxu0
      %v1337 = vadd.f32 %v1248, %v1336
      %v1338 = vpop.f32.mrf.mxu0
      %v1339 = vadd.f32 %v1250, %v1338
      %1340 = vmatmul.bf16.gmra.mxu0 %v659
      %v1341 = vpop.f32.mrf.mxu0
      %v1342 = vadd.f32 %v1253, %v1341
      %v1343 = vpop.f32.mrf.mxu0
      %v1344 = vadd.f32 %v1255, %v1343
      %1345 = vmatmul.bf16.gmra.mxu0 %v664
      %v1346 = vpop.f32.mrf.mxu0
      %v1347 = vadd.f32 %v1258, %v1346
      %v1348 = vpop.f32.mrf.mxu0
      %v1349 = vadd.f32 %v1260, %v1348
      %1350 = vmatmul.bf16.gmra.mxu0 %v669
      %v1351 = vpop.f32.mrf.mxu0
      %v1352 = vadd.f32 %v1263, %v1351
      %v1353 = vpop.f32.mrf.mxu0
      %v1354 = vadd.f32 %v1265, %v1353
      %1355 = vmatmul.bf16.gmra.mxu0 %v674
      %v1356 = vpop.f32.mrf.mxu0
      %v1357 = vadd.f32 %v1268, %v1356
      %v1358 = vpop.f32.mrf.mxu0
      %v1359 = vadd.f32 %v1270, %v1358
      %1360 = vmatmul.bf16.gmra.mxu0 %v679
      %v1361 = vpop.f32.mrf.mxu0
      %v1362 = vadd.f32 %v1273, %v1361
      %v1363 = vpop.f32.mrf.mxu0
      %v1364 = vadd.f32 %v1275, %v1363
      %1365 = vmatmul.bf16.gmra.mxu0 %v684
      %v1366 = vpop.f32.mrf.mxu0
      %v1367 = vadd.f32 %v1278, %v1366
      %v1368 = vpop.f32.mrf.mxu0
      %v1369 = vadd.f32 %v1280, %v1368
      %1370 = vdwg.mxu0
      %1371 = vmatpush.bf16.msra.mxu0 0
      %1372 = vmatpush.bf16.msra.mxu0 0
      %1373 = vmatpush.bf16.msra.mxu0 0
      %1374 = vmatpush.bf16.msra.mxu0 0
      %1375 = vmatpush.bf16.msra.mxu0 %v929
      %1376 = vmatpush.bf16.msra.mxu0 %v928
      %1377 = vmatpush.bf16.msra.mxu0 %v927
      %1378 = vmatpush.bf16.msra.mxu0 %v926
      %1379 = vmatmul.bf16.gmra.mxu0 %v968
      %v1380 = vpop.f32.mrf.mxu0
      %v1381 = vadd.f32 %v1292, %v1380
      %v1382 = vpop.f32.mrf.mxu0
      %v1383 = vadd.f32 %v1294, %v1382
      %1384 = vmatmul.bf16.gmra.mxu0 %v971
      %v1385 = vpop.f32.mrf.mxu0
      %v1386 = vadd.f32 %v1297, %v1385
      %v1387 = vpop.f32.mrf.mxu0
      %v1388 = vadd.f32 %v1299, %v1387
      %1389 = vmatmul.bf16.gmra.mxu0 %v974
      %v1390 = vpop.f32.mrf.mxu0
      %v1391 = vadd.f32 %v1302, %v1390
      %v1392 = vpop.f32.mrf.mxu0
      %v1393 = vadd.f32 %v1304, %v1392
      %1394 = vmatmul.bf16.gmra.mxu0 %v977
      %v1395 = vpop.f32.mrf.mxu0
      %v1396 = vadd.f32 %v1307, %v1395
      %v1397 = vpop.f32.mrf.mxu0
      %v1398 = vadd.f32 %v1309, %v1397
      %1399 = vmatmul.bf16.gmra.mxu0 %v980
      %v1400 = vpop.f32.mrf.mxu0
      %v1401 = vadd.f32 %v1312, %v1400
      %v1402 = vpop.f32.mrf.mxu0
      %v1403 = vadd.f32 %v1314, %v1402
      %1404 = vmatmul.bf16.gmra.mxu0 %v983
      %v1405 = vpop.f32.mrf.mxu0
      %v1406 = vadd.f32 %v1317, %v1405
      %v1407 = vpop.f32.mrf.mxu0
      %v1408 = vadd.f32 %v1319, %v1407
      %1409 = vmatmul.bf16.gmra.mxu0 %v986
      %v1410 = vpop.f32.mrf.mxu0
      %v1411 = vadd.f32 %v1322, %v1410
      %v1412 = vpop.f32.mrf.mxu0
      %v1413 = vadd.f32 %v1324, %v1412
      %1414 = vmatmul.bf16.gmra.mxu0 %v989
      %v1415 = vpop.f32.mrf.mxu0
      %v1416 = vadd.f32 %v1327, %v1415
      %v1417 = vpop.f32.mrf.mxu0
      %v1418 = vadd.f32 %v1329, %v1417
      %1419 = vmatmul.bf16.gmra.mxu0 %v992
      %v1420 = vpop.f32.mrf.mxu0
      %v1421 = vadd.f32 %v1332, %v1420
      %v1422 = vpop.f32.mrf.mxu0
      %v1423 = vadd.f32 %v1334, %v1422
      %1424 = vmatmul.bf16.gmra.mxu0 %v995
      %v1425 = vpop.f32.mrf.mxu0
      %v1426 = vadd.f32 %v1337, %v1425
      %v1427 = vpop.f32.mrf.mxu0
      %v1428 = vadd.f32 %v1339, %v1427
      %1429 = vmatmul.bf16.gmra.mxu0 %v998
      %v1430 = vpop.f32.mrf.mxu0
      %v1431 = vadd.f32 %v1342, %v1430
      %v1432 = vpop.f32.mrf.mxu0
      %v1433 = vadd.f32 %v1344, %v1432
      %1434 = vmatmul.bf16.gmra.mxu0 %v1001
      %v1435 = vpop.f32.mrf.mxu0
      %v1436 = vadd.f32 %v1347, %v1435
      %v1437 = vpop.f32.mrf.mxu0
      %v1438 = vadd.f32 %v1349, %v1437
      %1439 = vmatmul.bf16.gmra.mxu0 %v1004
      %v1440 = vpop.f32.mrf.mxu0
      %v1441 = vadd.f32 %v1352, %v1440
      %v1442 = vpop.f32.mrf.mxu0
      %v1443 = vadd.f32 %v1354, %v1442
      %1444 = vmatmul.bf16.gmra.mxu0 %v1007
      %v1445 = vpop.f32.mrf.mxu0
      %v1446 = vadd.f32 %v1357, %v1445
      %v1447 = vpop.f32.mrf.mxu0
      %v1448 = vadd.f32 %v1359, %v1447
      %1449 = vmatmul.bf16.gmra.mxu0 %v1010
      %v1450 = vpop.f32.mrf.mxu0
      %v1451 = vadd.f32 %v1362, %v1450
      %v1452 = vpop.f32.mrf.mxu0
      %v1453 = vadd.f32 %v1364, %v1452
      %1454 = vmatmul.bf16.gmra.mxu0 %v1013
      %v1455 = vpop.f32.mrf.mxu0
      %v1456 = vadd.f32 %v1367, %v1455
      %v1457 = vpop.f32.mrf.mxu0
      %v1458 = vadd.f32 %v1369, %v1457
      %1459 = vdwg.mxu0
      %1460 = vst [vmem:[%s175] sm:$0xff] %v1381
      %1461 = vst [vmem:[%s175 + $0x8] sm:$0xff] %v1383
      %1462 = vst [vmem:[%s175 + $0x10] sm:$0xff] %v1386
      %1463 = vst [vmem:[%s175 + $0x18] sm:$0xff] %v1388
      %1464 = vst [vmem:[%s175 + $0x20] sm:$0xff] %v1391
      %1465 = vst [vmem:[%s175 + $0x28] sm:$0xff] %v1393
      %1466 = vst [vmem:[%s175 + $0x30] sm:$0xff] %v1396
      %1467 = vst [vmem:[%s175 + $0x38] sm:$0xff] %v1398
      %1468 = vst [vmem:[%s175 + $0x40] sm:$0xff] %v1401
      %1469 = vst [vmem:[%s175 + $0x48] sm:$0xff] %v1403
      %1470 = vst [vmem:[%s175 + $0x50] sm:$0xff] %v1406
      %1471 = vst [vmem:[%s175 + $0x58] sm:$0xff] %v1408
      %1472 = vst [vmem:[%s175 + $0x60] sm:$0xff] %v1411
      %1473 = vst [vmem:[%s175 + $0x68] sm:$0xff] %v1413
      %1474 = vst [vmem:[%s175 + $0x70] sm:$0xff] %v1416
      %1475 = vst [vmem:[%s175 + $0x78] sm:$0xff] %v1418
      %1476 = vst [vmem:[%s175 + $0x80] sm:$0xff] %v1421
      %1477 = vst [vmem:[%s175 + $0x88] sm:$0xff] %v1423
      %1478 = vst [vmem:[%s175 + $0x90] sm:$0xff] %v1426
      %1479 = vst [vmem:[%s175 + $0x98] sm:$0xff] %v1428
      %1480 = vst [vmem:[%s175 + $0xa0] sm:$0xff] %v1431
      %1481 = vst [vmem:[%s175 + $0xa8] sm:$0xff] %v1433
      %1482 = vst [vmem:[%s175 + $0xb0] sm:$0xff] %v1436
      %1483 = vst [vmem:[%s175 + $0xb8] sm:$0xff] %v1438
      %1484 = vst [vmem:[%s175 + $0xc0] sm:$0xff] %v1441
      %1485 = vst [vmem:[%s175 + $0xc8] sm:$0xff] %v1443
      %1486 = vst [vmem:[%s175 + $0xd0] sm:$0xff] %v1446
      %1487 = vst [vmem:[%s175 + $0xd8] sm:$0xff] %v1448
      %1488 = vst [vmem:[%s175 + $0xe0] sm:$0xff] %v1451
      %1489 = vst [vmem:[%s175 + $0xe8] sm:$0xff] %v1453
      %1490 = vst [vmem:[%s175 + $0xf0] sm:$0xff] %v1456
      %1491 = vst [vmem:[%s175 + $0xf8] sm:$0xff] %v1458
      %s1492 = smul.u32 32, %s14
      %p1493 = scmp.lt.s32.totalorder %s1492, 63
      %s1494 = scalar_select %p1493, %s1492, 63
      %s1495 = smul.addr %s1494, 8
      %s1496 = scalar_lea.vmem %s3, %s1495
      // Predicated region
      $region33: #{ed_regression_forward.37} parent=31 // pred_check
        %p1497 = pneg %p100
      $region34: #{ed_regression_forward.37} parent=31 // pred_check_branch
        %1499 = sbr.rel (%p1497) target = $region36
      $region35: #{ed_regression_forward.37} parent=31 // pred_region
        %s1500 = smul.u32 32, %s14
      $region36: #{ed_regression_forward.37} parent=31 // pred_fallthru
        _
    $region32: #{ed_regression_forward.37} parent=5 // pred_fallthru
      _
    %p1501 = scmp.le.s32.totalorder 2, %s9
    // Predicated region
    $region37: #{ed_regression_forward.37} parent=5 // pred_check
      %p1502 = pneg %p1501
    $region38: #{ed_regression_forward.37} parent=5 // pred_check_branch
      %1504 = sbr.rel (%p1502) target = $region40
    $region39: #{ed_regression_forward.37} parent=5 // pred_region
      %s1505 = ssub.s32 %s9, 2
      // Predicated region
      $region41: #{ed_regression_forward.37} parent=39 // pred_check
        %p1506 = pneg %p106
      $region42: #{ed_regression_forward.37} parent=39 // pred_check_branch
        %1508 = sbr.rel (%p1506) target = $region44
      $region43: #{ed_regression_forward.37} parent=39 // pred_region
        %s1509 = smul.u32 32, %s15
        %p1510 = scmp.lt.s32.totalorder %s1509, 63
        %s1511 = scalar_select %p1510, %s1509, 63
        %s1512 = smul.addr %s1511, 8
        %s1513 = scalar_lea.vmem %s3, %s1512
      $region44: #{ed_regression_forward.37} parent=39 // pred_fallthru
        _
    $region40: #{ed_regression_forward.37} parent=5 // pred_fallthru
      _
  $region6: #{ed_regression_forward.37} parent=0 // loop_footer
    %s13 = sadd.s32 1, %s9
  $region7: #{ed_regression_forward.37} parent=0 // loop_footer_branch
    %8 = sbr.rel target = $region3
  $region8: #{ed_regression_forward.37} parent=0 // loop_exit
    _

</llo_original>
